<compile_context>
chip_gen: v7x
topology: tpu7x:2x2x1
jax: 0.10.0
libtpu: 0.0.40
codegen_flags: <defaults>
</compile_context>

<pallas_src>
import functools

import jax
import jax.numpy as jnp
import numpy as np
from jax.experimental import pallas as pl
from jax.experimental.pallas import tpu as pltpu

K = 5      # kernel_size of the partial convs
PAD = 2    # padding of the partial convs


def _partial_conv5x5(src, pad_ref, wk_ref, c, H, W):
    """Dense 5x5 conv of `src` ((c, H*W) f32) with per-tap weights wk_ref (25, c, c).

    pad_ref is an f32 VMEM scratch of shape (c, H*W + 2*(PAD*W + PAD)); the
    flat zero margin of PAD*W + PAD on each side absorbs vertical out-of-range
    taps, and horizontal wrap-around across image rows is masked per dw.
    """
    f32 = jnp.float32
    HW = H * W
    B = PAD * W + PAD                               # flat margin on each side

    # Zero only the two margins, then store the activation in the middle.
    pad_ref[:, 0:B] = jnp.zeros((c, B), f32)
    pad_ref[:, B + HW:B + HW + B] = jnp.zeros((c, B), f32)
    pad_ref[:, B:B + HW] = src

    col = jax.lax.broadcasted_iota(jnp.int32, (1, HW), 1)
    w_idx = col % W                                 # column index inside a row

    acc = jnp.zeros((c, HW), f32)
    for kw in range(K):
        dw = kw - PAD
        acc_w = jnp.zeros((c, HW), f32)
        for kh in range(K):
            dh = kh - PAD
            s = dh * W + dw
            shifted = pad_ref[:, B + s:B + s + HW]  # (c, HW), MXU rhs
            acc_w = acc_w + jnp.dot(wk_ref[kh * K + kw], shifted,
                                    preferred_element_type=f32)
        if dw == 0:
            acc = acc + acc_w
        else:
            valid = ((w_idx + dw >= 0) & (w_idx + dw < W)).astype(f32)
            acc = acc + acc_w * valid               # mask horizontal wrap
    return acc


def _encoder_block_kernel(x_ref, w1_ref, wp1_ref, wp1h_ref,
                          w2_ref, wp2_ref, wp2h_ref,
                          out_ref, pad1_ref, pad2_ref,
                          *, c1, c2, H, W):
    f32 = jnp.float32

    x = x_ref[...].astype(f32)                      # (Cin, H*W), lane-dense
    x1 = x[:c1]                                     # conv'd slice (prefix)

    # ---- conv1: partial 5x5 -> 1x1 pointwise (no bias) -> ReLU --------------
    p1 = _partial_conv5x5(x1, pad1_ref, w1_ref, c1, H, W)
    z = (jnp.dot(wp1_ref[...], x, preferred_element_type=f32)
         + jnp.dot(wp1h_ref[...], p1 - x1, preferred_element_type=f32))
    z = jnp.maximum(z, 0.0)                         # (Cmid, H*W)
    z1 = z[:c2]

    # ---- conv2: partial 5x5 -> 1x1 pointwise (no bias), no ReLU -------------
    p2 = _partial_conv5x5(z1, pad2_ref, w2_ref, c2, H, W)
    y = (jnp.dot(wp2_ref[...], z, preferred_element_type=f32)
         + jnp.dot(wp2h_ref[...], p2 - z1, preferred_element_type=f32))

    # ---- residual (proj = nn.Identity()) + ReLU -----------------------------
    out_ref[...] = jnp.maximum(y + x, 0.0).astype(out_ref.dtype)


def encoder_block_forward(x, w1, wp1, w2, wp2, *, n_div=4):
    """x: (N, Cin, H, W) f32.  Weights follow PyTorch OIHW conventions."""
    N, Cin, H, W = x.shape
    c1 = Cin // n_div
    Cmid = wp1.shape[0]
    c2 = Cmid // n_div
    Cout = wp2.shape[0]
    assert Cout == Cin, "kernel covers the stride=1, in==out EncoderBlock config"
    HW = H * W
    HWP = HW + 2 * (PAD * W + PAD)

    f32 = jnp.float32
    x_flat = x.reshape(N, Cin, HW)
    # 5x5 partial-conv weights regrouped per tap: (K*K, c, c) with [tap, co, ci]
    w1_t = jnp.transpose(w1, (2, 3, 0, 1)).reshape(K * K, c1, c1).astype(f32)
    w2_t = jnp.transpose(w2, (2, 3, 0, 1)).reshape(K * K, c2, c2).astype(f32)
    wp1_2d = wp1.reshape(Cmid, Cin).astype(f32)
    wp2_2d = wp2.reshape(Cout, Cmid).astype(f32)
    wp1_head = wp1_2d[:, :c1]   # columns multiplying the conv'd slice
    wp2_head = wp2_2d[:, :c2]

    kernel = functools.partial(_encoder_block_kernel, c1=c1, c2=c2, H=H, W=W)

    def full_spec(shape):
        zeros = (0,) * len(shape)
        return pl.BlockSpec(shape, lambda n, _z=zeros: _z)

    out_flat = pl.pallas_call(
        kernel,
        out_shape=jax.ShapeDtypeStruct((N, Cout, HW), x.dtype),
        grid=(N,),
        in_specs=[
            pl.BlockSpec((None, Cin, HW), lambda n: (n, 0, 0)),
            full_spec(w1_t.shape),
            full_spec(wp1_2d.shape),
            full_spec(wp1_head.shape),
            full_spec(w2_t.shape),
            full_spec(wp2_2d.shape),
            full_spec(wp2_head.shape),
        ],
        out_specs=pl.BlockSpec((None, Cout, HW), lambda n: (n, 0, 0)),
        scratch_shapes=[
            pltpu.VMEM((c1, HWP), f32),
            pltpu.VMEM((c2, HWP), f32),
        ],
        compiler_params=pltpu.CompilerParams(
            dimension_semantics=("parallel",)),
    )(x_flat, w1_t, wp1_2d, wp1_head, w2_t, wp2_2d, wp2_head)

    return out_flat.reshape(N, Cout, H, W)


# ----------------------------- pure-JAX reference -----------------------------
def _conv2d_nchw(x, w, padding):
    return jax.lax.conv_general_dilated(
        x, w, window_strides=(1, 1), padding=[(padding, padding)] * 2,
        dimension_numbers=("NCHW", "OIHW", "NCHW"),
        precision=jax.lax.Precision.HIGHEST)


def encoder_block_ref(x, w1, wp1, w2, wp2, *, n_div=4):
    Cin = x.shape[1]
    c1 = Cin // n_div
    Cmid = wp1.shape[0]
    c2 = Cmid // n_div
    # conv1 (pconv: partial 5x5 -> concat -> 1x1, then ReLU)
    x1 = _conv2d_nchw(x[:, :c1], w1, PAD)
    xa = jnp.concatenate([x1, x[:, c1:]], axis=1)
    z = jax.nn.relu(_conv2d_nchw(xa, wp1, 0))
    # conv2 (pconv, no ReLU)
    z1 = _conv2d_nchw(z[:, :c2], w2, PAD)
    za = jnp.concatenate([z1, z[:, c2:]], axis=1)
    y = _conv2d_nchw(za, wp2, 0)
    # proj = Identity, residual + ReLU
    return jax.nn.relu(y + x)


if __name__ == "__main__":
    N, Cin, Cmid, Cout, H, W = 2, 32, 64, 32, 16, 16
    n_div = 4
    c1, c2 = Cin // n_div, Cmid // n_div

    key = jax.random.PRNGKey(0)
    k1, k2, k3, k4, k5 = jax.random.split(key, 5)
    x = jax.random.normal(k1, (N, Cin, H, W), jnp.float32)
    # parameter shapes mirror the nn.Conv2d weights in the module's __init__
    w1 = 0.2 * jax.random.normal(k2, (c1, c1, K, K), jnp.float32)       # partial conv 1
    wp1 = 0.2 * jax.random.normal(k3, (Cmid, Cin, 1, 1), jnp.float32)   # pointwise 1 (no bias)
    w2 = 0.2 * jax.random.normal(k4, (c2, c2, K, K), jnp.float32)       # partial conv 2
    wp2 = 0.2 * jax.random.normal(k5, (Cout, Cmid, 1, 1), jnp.float32)  # pointwise 2 (no bias)

    out = encoder_block_forward(x, w1, wp1, w2, wp2, n_div=n_div)
    out = jax.block_until_ready(out)

    ref = encoder_block_ref(x, w1, wp1, w2, wp2, n_div=n_div)
    np.testing.assert_allclose(np.asarray(out), np.asarray(ref),
                               atol=5e-3, rtol=5e-3)
    print("KERNEL_OK")
</pallas_src>

<mosaic_0001>
module attributes {stable_mosaic.version = 11 : i64} {
  func.func @_encoder_block_kernel(%arg0: i32, %arg1: memref<1x32x256xf32, #tpu.memory_space<vmem>>, %arg2: memref<25x8x8xf32, #tpu.memory_space<vmem>>, %arg3: memref<64x32xf32, #tpu.memory_space<vmem>>, %arg4: memref<64x8xf32, #tpu.memory_space<vmem>>, %arg5: memref<25x16x16xf32, #tpu.memory_space<vmem>>, %arg6: memref<32x64xf32, #tpu.memory_space<vmem>>, %arg7: memref<32x16xf32, #tpu.memory_space<vmem>>, %arg8: memref<1x32x256xf32, #tpu.memory_space<vmem>>, %arg9: memref<8x324xf32, #tpu.memory_space<vmem>>, %arg10: memref<16x324xf32, #tpu.memory_space<vmem>>) attributes {dimension_semantics = [#tpu.dimension_semantics<parallel>], iteration_bounds = array<i64: 2>, scalar_prefetch = 0 : i64, scratch_operands = 2 : i64, tpu.core_type = #tpu.core_type<tc>, window_params = [{transform_indices = @transform_0, window_bounds = array<i64: 1, 32, 256>}, {pipeline_mode = #tpu.pipeline_mode<synchronous>, transform_indices = @transform_1, window_bounds = array<i64: 25, 8, 8>}, {pipeline_mode = #tpu.pipeline_mode<synchronous>, transform_indices = @transform_2, window_bounds = array<i64: 64, 32>}, {pipeline_mode = #tpu.pipeline_mode<synchronous>, transform_indices = @transform_3, window_bounds = array<i64: 64, 8>}, {pipeline_mode = #tpu.pipeline_mode<synchronous>, transform_indices = @transform_4, window_bounds = array<i64: 25, 16, 16>}, {pipeline_mode = #tpu.pipeline_mode<synchronous>, transform_indices = @transform_5, window_bounds = array<i64: 32, 64>}, {pipeline_mode = #tpu.pipeline_mode<synchronous>, transform_indices = @transform_6, window_bounds = array<i64: 32, 16>}, {transform_indices = @transform_7, window_bounds = array<i64: 1, 32, 256>}]} {
    %c0 = arith.constant 0 : index
    %c0_0 = arith.constant 0 : index
    %c0_1 = arith.constant 0 : index
    %0 = vector.load %arg1[%c0, %c0_0, %c0_1] : memref<1x32x256xf32, #tpu.memory_space<vmem>>, vector<1x32x256xf32>
    %1 = vector.shape_cast %0 : vector<1x32x256xf32> to vector<32x256xf32>
    %2 = vector.extract_strided_slice %1 {offsets = [0, 0], sizes = [8, 256], strides = [1, 1]} : vector<32x256xf32> to vector<8x256xf32>
    %cst = arith.constant 0.000000e+00 : f32
    %3 = vector.broadcast %cst : f32 to vector<8x34xf32>
    %c0_2 = arith.constant 0 : index
    %c0_3 = arith.constant 0 : index
    %4 = vector.load %arg9[%c0_2, %c0_3] : memref<8x324xf32, #tpu.memory_space<vmem>>, vector<8x34xf32>
    tpu.vector_store %arg9[%c0_2, %c0_3], %3 {strides = array<i32>} : memref<8x324xf32, #tpu.memory_space<vmem>>, vector<8x34xf32>,
    %cst_4 = arith.constant 0.000000e+00 : f32
    %5 = vector.broadcast %cst_4 : f32 to vector<8x34xf32>
    %c0_5 = arith.constant 0 : index
    %c290 = arith.constant 290 : index
    %6 = vector.load %arg9[%c0_5, %c290] : memref<8x324xf32, #tpu.memory_space<vmem>>, vector<8x34xf32>
    tpu.vector_store %arg9[%c0_5, %c290], %5 {strides = array<i32>} : memref<8x324xf32, #tpu.memory_space<vmem>>, vector<8x34xf32>,
    %c0_6 = arith.constant 0 : index
    %c34 = arith.constant 34 : index
    %7 = vector.load %arg9[%c0_6, %c34] : memref<8x324xf32, #tpu.memory_space<vmem>>, vector<8x256xf32>
    tpu.vector_store %arg9[%c0_6, %c34], %2 {strides = array<i32>} : memref<8x324xf32, #tpu.memory_space<vmem>>, vector<8x256xf32>,
    %8 = tpu.iota {dimensions = array<i32: 1>} : vector<1x256xi32>
    %c16_i32 = arith.constant 16 : i32
    %c0_i32 = arith.constant 0 : i32
    %9 = arith.cmpi eq, %c16_i32, %c0_i32 : i32
    %c1_i32 = arith.constant 1 : i32
    %10 = arith.select %9, %c1_i32, %c16_i32 : i32
    %11 = vector.broadcast %10 : i32 to vector<1x256xi32>
    %12 = arith.remsi %8, %11 : vector<1x256xi32>
    %c0_i32_7 = arith.constant 0 : i32
    %13 = vector.broadcast %c0_i32_7 : i32 to vector<1x256xi32>
    %14 = arith.cmpi ne, %12, %13 : vector<1x256xi32>
    %c0_i32_8 = arith.constant 0 : i32
    %15 = vector.broadcast %c0_i32_8 : i32 to vector<1x256xi32>
    %16 = arith.cmpi slt, %12, %15 : vector<1x256xi32>
    %c0_i32_9 = arith.constant 0 : i32
    %17 = arith.cmpi slt, %10, %c0_i32_9 : i32
    %18 = vector.broadcast %17 : i1 to vector<1x256xi1>
    %19 = vector.broadcast %18 : vector<1x256xi1> to vector<1x256xi1>
    %20 = arith.xori %16, %19 : vector<1x256xi1>
    %21 = arith.andi %20, %14 : vector<1x256xi1>
    %22 = vector.broadcast %10 : i32 to vector<1x256xi32>
    %23 = arith.addi %12, %22 : vector<1x256xi32>
    %24 = arith.select %21, %23, %12 : vector<1x256xi1>, vector<1x256xi32>
    %cst_10 = arith.constant 0.000000e+00 : f32
    %25 = vector.broadcast %cst_10 : f32 to vector<8x256xf32>
    %cst_11 = arith.constant 0.000000e+00 : f32
    %26 = vector.broadcast %cst_11 : f32 to vector<8x256xf32>
    %c0_12 = arith.constant 0 : index
    %c0_13 = arith.constant 0 : index
    %27 = vector.load %arg9[%c0_12, %c0_13] : memref<8x324xf32, #tpu.memory_space<vmem>>, vector<8x256xf32>
    %c0_14 = arith.constant 0 : index
    %c0_15 = arith.constant 0 : index
    %c0_16 = arith.constant 0 : index
    %28 = vector.load %arg2[%c0_14, %c0_15, %c0_16] : memref<25x8x8xf32, #tpu.memory_space<vmem>>, vector<1x8x8xf32>
    %29 = vector.shape_cast %28 : vector<1x8x8xf32> to vector<8x8xf32>
    %cst_17 = arith.constant dense<0.000000e+00> : vector<8x256xf32>
    %30 = tpu.matmul %29, %27, %cst_17 {dimension_numbers = #tpu.dot_dimension_numbers<[1], [0], [0], [1], [0, 0, 1, 1], [], []>} : vector<8x8xf32>, vector<8x256xf32>, vector<8x256xf32> -> vector<8x256xf32>
    %31 = arith.addf %26, %30 : vector<8x256xf32>
    %c0_18 = arith.constant 0 : index
    %c16 = arith.constant 16 : index
    %32 = vector.load %arg9[%c0_18, %c16] : memref<8x324xf32, #tpu.memory_space<vmem>>, vector<8x256xf32>
    %c5 = arith.constant 5 : index
    %c0_19 = arith.constant 0 : index
    %c0_20 = arith.constant 0 : index
    %33 = vector.load %arg2[%c5, %c0_19, %c0_20] : memref<25x8x8xf32, #tpu.memory_space<vmem>>, vector<1x8x8xf32>
    %34 = vector.shape_cast %33 : vector<1x8x8xf32> to vector<8x8xf32>
    %cst_21 = arith.constant dense<0.000000e+00> : vector<8x256xf32>
    %35 = tpu.matmul %34, %32, %cst_21 {dimension_numbers = #tpu.dot_dimension_numbers<[1], [0], [0], [1], [0, 0, 1, 1], [], []>} : vector<8x8xf32>, vector<8x256xf32>, vector<8x256xf32> -> vector<8x256xf32>
    %36 = arith.addf %31, %35 : vector<8x256xf32>
    %c0_22 = arith.constant 0 : index
    %c32 = arith.constant 32 : index
    %37 = vector.load %arg9[%c0_22, %c32] : memref<8x324xf32, #tpu.memory_space<vmem>>, vector<8x256xf32>
    %c10 = arith.constant 10 : index
    %c0_23 = arith.constant 0 : index
    %c0_24 = arith.constant 0 : index
    %38 = vector.load %arg2[%c10, %c0_23, %c0_24] : memref<25x8x8xf32, #tpu.memory_space<vmem>>, vector<1x8x8xf32>
    %39 = vector.shape_cast %38 : vector<1x8x8xf32> to vector<8x8xf32>
    %cst_25 = arith.constant dense<0.000000e+00> : vector<8x256xf32>
    %40 = tpu.matmul %39, %37, %cst_25 {dimension_numbers = #tpu.dot_dimension_numbers<[1], [0], [0], [1], [0, 0, 1, 1], [], []>} : vector<8x8xf32>, vector<8x256xf32>, vector<8x256xf32> -> vector<8x256xf32>
    %41 = arith.addf %36, %40 : vector<8x256xf32>
    %c0_26 = arith.constant 0 : index
    %c48 = arith.constant 48 : index
    %42 = vector.load %arg9[%c0_26, %c48] : memref<8x324xf32, #tpu.memory_space<vmem>>, vector<8x256xf32>
    %c15 = arith.constant 15 : index
    %c0_27 = arith.constant 0 : index
    %c0_28 = arith.constant 0 : index
    %43 = vector.load %arg2[%c15, %c0_27, %c0_28] : memref<25x8x8xf32, #tpu.memory_space<vmem>>, vector<1x8x8xf32>
    %44 = vector.shape_cast %43 : vector<1x8x8xf32> to vector<8x8xf32>
    %cst_29 = arith.constant dense<0.000000e+00> : vector<8x256xf32>
    %45 = tpu.matmul %44, %42, %cst_29 {dimension_numbers = #tpu.dot_dimension_numbers<[1], [0], [0], [1], [0, 0, 1, 1], [], []>} : vector<8x8xf32>, vector<8x256xf32>, vector<8x256xf32> -> vector<8x256xf32>
    %46 = arith.addf %41, %45 : vector<8x256xf32>
    %c0_30 = arith.constant 0 : index
    %c64 = arith.constant 64 : index
    %47 = vector.load %arg9[%c0_30, %c64] : memref<8x324xf32, #tpu.memory_space<vmem>>, vector<8x256xf32>
    %c20 = arith.constant 20 : index
    %c0_31 = arith.constant 0 : index
    %c0_32 = arith.constant 0 : index
    %48 = vector.load %arg2[%c20, %c0_31, %c0_32] : memref<25x8x8xf32, #tpu.memory_space<vmem>>, vector<1x8x8xf32>
    %49 = vector.shape_cast %48 : vector<1x8x8xf32> to vector<8x8xf32>
    %cst_33 = arith.constant dense<0.000000e+00> : vector<8x256xf32>
    %50 = tpu.matmul %49, %47, %cst_33 {dimension_numbers = #tpu.dot_dimension_numbers<[1], [0], [0], [1], [0, 0, 1, 1], [], []>} : vector<8x8xf32>, vector<8x256xf32>, vector<8x256xf32> -> vector<8x256xf32>
    %51 = arith.addf %46, %50 : vector<8x256xf32>
    %c-2_i32 = arith.constant -2 : i32
    %52 = vector.broadcast %c-2_i32 : i32 to vector<1x256xi32>
    %53 = arith.addi %24, %52 : vector<1x256xi32>
    %c0_i32_34 = arith.constant 0 : i32
    %54 = vector.broadcast %c0_i32_34 : i32 to vector<1x256xi32>
    %55 = arith.cmpi sge, %53, %54 : vector<1x256xi32>
    %c-2_i32_35 = arith.constant -2 : i32
    %56 = vector.broadcast %c-2_i32_35 : i32 to vector<1x256xi32>
    %57 = arith.addi %24, %56 : vector<1x256xi32>
    %c16_i32_36 = arith.constant 16 : i32
    %58 = vector.broadcast %c16_i32_36 : i32 to vector<1x256xi32>
    %59 = arith.cmpi slt, %57, %58 : vector<1x256xi32>
    %60 = arith.andi %55, %59 : vector<1x256xi1>
    %61 = arith.extui %60 : vector<1x256xi1> to vector<1x256xi32>
    %62 = arith.sitofp %61 : vector<1x256xi32> to vector<1x256xf32>
    %63 = vector.broadcast %62 : vector<1x256xf32> to vector<8x256xf32>
    %64 = arith.mulf %51, %63 : vector<8x256xf32>
    %65 = arith.addf %25, %64 : vector<8x256xf32>
    %cst_37 = arith.constant 0.000000e+00 : f32
    %66 = vector.broadcast %cst_37 : f32 to vector<8x256xf32>
    %c0_38 = arith.constant 0 : index
    %c1 = arith.constant 1 : index
    %67 = vector.load %arg9[%c0_38, %c1] : memref<8x324xf32, #tpu.memory_space<vmem>>, vector<8x256xf32>
    %c1_39 = arith.constant 1 : index
    %c0_40 = arith.constant 0 : index
    %c0_41 = arith.constant 0 : index
    %68 = vector.load %arg2[%c1_39, %c0_40, %c0_41] : memref<25x8x8xf32, #tpu.memory_space<vmem>>, vector<1x8x8xf32>
    %69 = vector.shape_cast %68 : vector<1x8x8xf32> to vector<8x8xf32>
    %cst_42 = arith.constant dense<0.000000e+00> : vector<8x256xf32>
    %70 = tpu.matmul %69, %67, %cst_42 {dimension_numbers = #tpu.dot_dimension_numbers<[1], [0], [0], [1], [0, 0, 1, 1], [], []>} : vector<8x8xf32>, vector<8x256xf32>, vector<8x256xf32> -> vector<8x256xf32>
    %71 = arith.addf %66, %70 : vector<8x256xf32>
    %c0_43 = arith.constant 0 : index
    %c17 = arith.constant 17 : index
    %72 = vector.load %arg9[%c0_43, %c17] : memref<8x324xf32, #tpu.memory_space<vmem>>, vector<8x256xf32>
    %c6 = arith.constant 6 : index
    %c0_44 = arith.constant 0 : index
    %c0_45 = arith.constant 0 : index
    %73 = vector.load %arg2[%c6, %c0_44, %c0_45] : memref<25x8x8xf32, #tpu.memory_space<vmem>>, vector<1x8x8xf32>
    %74 = vector.shape_cast %73 : vector<1x8x8xf32> to vector<8x8xf32>
    %cst_46 = arith.constant dense<0.000000e+00> : vector<8x256xf32>
    %75 = tpu.matmul %74, %72, %cst_46 {dimension_numbers = #tpu.dot_dimension_numbers<[1], [0], [0], [1], [0, 0, 1, 1], [], []>} : vector<8x8xf32>, vector<8x256xf32>, vector<8x256xf32> -> vector<8x256xf32>
    %76 = arith.addf %71, %75 : vector<8x256xf32>
    %c0_47 = arith.constant 0 : index
    %c33 = arith.constant 33 : index
    %77 = vector.load %arg9[%c0_47, %c33] : memref<8x324xf32, #tpu.memory_space<vmem>>, vector<8x256xf32>
    %c11 = arith.constant 11 : index
    %c0_48 = arith.constant 0 : index
    %c0_49 = arith.constant 0 : index
    %78 = vector.load %arg2[%c11, %c0_48, %c0_49] : memref<25x8x8xf32, #tpu.memory_space<vmem>>, vector<1x8x8xf32>
    %79 = vector.shape_cast %78 : vector<1x8x8xf32> to vector<8x8xf32>
    %cst_50 = arith.constant dense<0.000000e+00> : vector<8x256xf32>
    %80 = tpu.matmul %79, %77, %cst_50 {dimension_numbers = #tpu.dot_dimension_numbers<[1], [0], [0], [1], [0, 0, 1, 1], [], []>} : vector<8x8xf32>, vector<8x256xf32>, vector<8x256xf32> -> vector<8x256xf32>
    %81 = arith.addf %76, %80 : vector<8x256xf32>
    %c0_51 = arith.constant 0 : index
    %c49 = arith.constant 49 : index
    %82 = vector.load %arg9[%c0_51, %c49] : memref<8x324xf32, #tpu.memory_space<vmem>>, vector<8x256xf32>
    %c16_52 = arith.constant 16 : index
    %c0_53 = arith.constant 0 : index
    %c0_54 = arith.constant 0 : index
    %83 = vector.load %arg2[%c16_52, %c0_53, %c0_54] : memref<25x8x8xf32, #tpu.memory_space<vmem>>, vector<1x8x8xf32>
    %84 = vector.shape_cast %83 : vector<1x8x8xf32> to vector<8x8xf32>
    %cst_55 = arith.constant dense<0.000000e+00> : vector<8x256xf32>
    %85 = tpu.matmul %84, %82, %cst_55 {dimension_numbers = #tpu.dot_dimension_numbers<[1], [0], [0], [1], [0, 0, 1, 1], [], []>} : vector<8x8xf32>, vector<8x256xf32>, vector<8x256xf32> -> vector<8x256xf32>
    %86 = arith.addf %81, %85 : vector<8x256xf32>
    %c0_56 = arith.constant 0 : index
    %c65 = arith.constant 65 : index
    %87 = vector.load %arg9[%c0_56, %c65] : memref<8x324xf32, #tpu.memory_space<vmem>>, vector<8x256xf32>
    %c21 = arith.constant 21 : index
    %c0_57 = arith.constant 0 : index
    %c0_58 = arith.constant 0 : index
    %88 = vector.load %arg2[%c21, %c0_57, %c0_58] : memref<25x8x8xf32, #tpu.memory_space<vmem>>, vector<1x8x8xf32>
    %89 = vector.shape_cast %88 : vector<1x8x8xf32> to vector<8x8xf32>
    %cst_59 = arith.constant dense<0.000000e+00> : vector<8x256xf32>
    %90 = tpu.matmul %89, %87, %cst_59 {dimension_numbers = #tpu.dot_dimension_numbers<[1], [0], [0], [1], [0, 0, 1, 1], [], []>} : vector<8x8xf32>, vector<8x256xf32>, vector<8x256xf32> -> vector<8x256xf32>
    %91 = arith.addf %86, %90 : vector<8x256xf32>
    %c-1_i32 = arith.constant -1 : i32
    %92 = vector.broadcast %c-1_i32 : i32 to vector<1x256xi32>
    %93 = arith.addi %24, %92 : vector<1x256xi32>
    %c0_i32_60 = arith.constant 0 : i32
    %94 = vector.broadcast %c0_i32_60 : i32 to vector<1x256xi32>
    %95 = arith.cmpi sge, %93, %94 : vector<1x256xi32>
    %c-1_i32_61 = arith.constant -1 : i32
    %96 = vector.broadcast %c-1_i32_61 : i32 to vector<1x256xi32>
    %97 = arith.addi %24, %96 : vector<1x256xi32>
    %c16_i32_62 = arith.constant 16 : i32
    %98 = vector.broadcast %c16_i32_62 : i32 to vector<1x256xi32>
    %99 = arith.cmpi slt, %97, %98 : vector<1x256xi32>
    %100 = arith.andi %95, %99 : vector<1x256xi1>
    %101 = arith.extui %100 : vector<1x256xi1> to vector<1x256xi32>
    %102 = arith.sitofp %101 : vector<1x256xi32> to vector<1x256xf32>
    %103 = vector.broadcast %102 : vector<1x256xf32> to vector<8x256xf32>
    %104 = arith.mulf %91, %103 : vector<8x256xf32>
    %105 = arith.addf %65, %104 : vector<8x256xf32>
    %cst_63 = arith.constant 0.000000e+00 : f32
    %106 = vector.broadcast %cst_63 : f32 to vector<8x256xf32>
    %c0_64 = arith.constant 0 : index
    %c2 = arith.constant 2 : index
    %107 = vector.load %arg9[%c0_64, %c2] : memref<8x324xf32, #tpu.memory_space<vmem>>, vector<8x256xf32>
    %c2_65 = arith.constant 2 : index
    %c0_66 = arith.constant 0 : index
    %c0_67 = arith.constant 0 : index
    %108 = vector.load %arg2[%c2_65, %c0_66, %c0_67] : memref<25x8x8xf32, #tpu.memory_space<vmem>>, vector<1x8x8xf32>
    %109 = vector.shape_cast %108 : vector<1x8x8xf32> to vector<8x8xf32>
    %cst_68 = arith.constant dense<0.000000e+00> : vector<8x256xf32>
    %110 = tpu.matmul %109, %107, %cst_68 {dimension_numbers = #tpu.dot_dimension_numbers<[1], [0], [0], [1], [0, 0, 1, 1], [], []>} : vector<8x8xf32>, vector<8x256xf32>, vector<8x256xf32> -> vector<8x256xf32>
    %111 = arith.addf %106, %110 : vector<8x256xf32>
    %c0_69 = arith.constant 0 : index
    %c18 = arith.constant 18 : index
    %112 = vector.load %arg9[%c0_69, %c18] : memref<8x324xf32, #tpu.memory_space<vmem>>, vector<8x256xf32>
    %c7 = arith.constant 7 : index
    %c0_70 = arith.constant 0 : index
    %c0_71 = arith.constant 0 : index
    %113 = vector.load %arg2[%c7, %c0_70, %c0_71] : memref<25x8x8xf32, #tpu.memory_space<vmem>>, vector<1x8x8xf32>
    %114 = vector.shape_cast %113 : vector<1x8x8xf32> to vector<8x8xf32>
    %cst_72 = arith.constant dense<0.000000e+00> : vector<8x256xf32>
    %115 = tpu.matmul %114, %112, %cst_72 {dimension_numbers = #tpu.dot_dimension_numbers<[1], [0], [0], [1], [0, 0, 1, 1], [], []>} : vector<8x8xf32>, vector<8x256xf32>, vector<8x256xf32> -> vector<8x256xf32>
    %116 = arith.addf %111, %115 : vector<8x256xf32>
    %c0_73 = arith.constant 0 : index
    %c34_74 = arith.constant 34 : index
    %117 = vector.load %arg9[%c0_73, %c34_74] : memref<8x324xf32, #tpu.memory_space<vmem>>, vector<8x256xf32>
    %c12 = arith.constant 12 : index
    %c0_75 = arith.constant 0 : index
    %c0_76 = arith.constant 0 : index
    %118 = vector.load %arg2[%c12, %c0_75, %c0_76] : memref<25x8x8xf32, #tpu.memory_space<vmem>>, vector<1x8x8xf32>
    %119 = vector.shape_cast %118 : vector<1x8x8xf32> to vector<8x8xf32>
    %cst_77 = arith.constant dense<0.000000e+00> : vector<8x256xf32>
    %120 = tpu.matmul %119, %117, %cst_77 {dimension_numbers = #tpu.dot_dimension_numbers<[1], [0], [0], [1], [0, 0, 1, 1], [], []>} : vector<8x8xf32>, vector<8x256xf32>, vector<8x256xf32> -> vector<8x256xf32>
    %121 = arith.addf %116, %120 : vector<8x256xf32>
    %c0_78 = arith.constant 0 : index
    %c50 = arith.constant 50 : index
    %122 = vector.load %arg9[%c0_78, %c50] : memref<8x324xf32, #tpu.memory_space<vmem>>, vector<8x256xf32>
    %c17_79 = arith.constant 17 : index
    %c0_80 = arith.constant 0 : index
    %c0_81 = arith.constant 0 : index
    %123 = vector.load %arg2[%c17_79, %c0_80, %c0_81] : memref<25x8x8xf32, #tpu.memory_space<vmem>>, vector<1x8x8xf32>
    %124 = vector.shape_cast %123 : vector<1x8x8xf32> to vector<8x8xf32>
    %cst_82 = arith.constant dense<0.000000e+00> : vector<8x256xf32>
    %125 = tpu.matmul %124, %122, %cst_82 {dimension_numbers = #tpu.dot_dimension_numbers<[1], [0], [0], [1], [0, 0, 1, 1], [], []>} : vector<8x8xf32>, vector<8x256xf32>, vector<8x256xf32> -> vector<8x256xf32>
    %126 = arith.addf %121, %125 : vector<8x256xf32>
    %c0_83 = arith.constant 0 : index
    %c66 = arith.constant 66 : index
    %127 = vector.load %arg9[%c0_83, %c66] : memref<8x324xf32, #tpu.memory_space<vmem>>, vector<8x256xf32>
    %c22 = arith.constant 22 : index
    %c0_84 = arith.constant 0 : index
    %c0_85 = arith.constant 0 : index
    %128 = vector.load %arg2[%c22, %c0_84, %c0_85] : memref<25x8x8xf32, #tpu.memory_space<vmem>>, vector<1x8x8xf32>
    %129 = vector.shape_cast %128 : vector<1x8x8xf32> to vector<8x8xf32>
    %cst_86 = arith.constant dense<0.000000e+00> : vector<8x256xf32>
    %130 = tpu.matmul %129, %127, %cst_86 {dimension_numbers = #tpu.dot_dimension_numbers<[1], [0], [0], [1], [0, 0, 1, 1], [], []>} : vector<8x8xf32>, vector<8x256xf32>, vector<8x256xf32> -> vector<8x256xf32>
    %131 = arith.addf %126, %130 : vector<8x256xf32>
    %132 = arith.addf %105, %131 : vector<8x256xf32>
    %cst_87 = arith.constant 0.000000e+00 : f32
    %133 = vector.broadcast %cst_87 : f32 to vector<8x256xf32>
    %c0_88 = arith.constant 0 : index
    %c3 = arith.constant 3 : index
    %134 = vector.load %arg9[%c0_88, %c3] : memref<8x324xf32, #tpu.memory_space<vmem>>, vector<8x256xf32>
    %c3_89 = arith.constant 3 : index
    %c0_90 = arith.constant 0 : index
    %c0_91 = arith.constant 0 : index
    %135 = vector.load %arg2[%c3_89, %c0_90, %c0_91] : memref<25x8x8xf32, #tpu.memory_space<vmem>>, vector<1x8x8xf32>
    %136 = vector.shape_cast %135 : vector<1x8x8xf32> to vector<8x8xf32>
    %cst_92 = arith.constant dense<0.000000e+00> : vector<8x256xf32>
    %137 = tpu.matmul %136, %134, %cst_92 {dimension_numbers = #tpu.dot_dimension_numbers<[1], [0], [0], [1], [0, 0, 1, 1], [], []>} : vector<8x8xf32>, vector<8x256xf32>, vector<8x256xf32> -> vector<8x256xf32>
    %138 = arith.addf %133, %137 : vector<8x256xf32>
    %c0_93 = arith.constant 0 : index
    %c19 = arith.constant 19 : index
    %139 = vector.load %arg9[%c0_93, %c19] : memref<8x324xf32, #tpu.memory_space<vmem>>, vector<8x256xf32>
    %c8 = arith.constant 8 : index
    %c0_94 = arith.constant 0 : index
    %c0_95 = arith.constant 0 : index
    %140 = vector.load %arg2[%c8, %c0_94, %c0_95] : memref<25x8x8xf32, #tpu.memory_space<vmem>>, vector<1x8x8xf32>
    %141 = vector.shape_cast %140 : vector<1x8x8xf32> to vector<8x8xf32>
    %cst_96 = arith.constant dense<0.000000e+00> : vector<8x256xf32>
    %142 = tpu.matmul %141, %139, %cst_96 {dimension_numbers = #tpu.dot_dimension_numbers<[1], [0], [0], [1], [0, 0, 1, 1], [], []>} : vector<8x8xf32>, vector<8x256xf32>, vector<8x256xf32> -> vector<8x256xf32>
    %143 = arith.addf %138, %142 : vector<8x256xf32>
    %c0_97 = arith.constant 0 : index
    %c35 = arith.constant 35 : index
    %144 = vector.load %arg9[%c0_97, %c35] : memref<8x324xf32, #tpu.memory_space<vmem>>, vector<8x256xf32>
    %c13 = arith.constant 13 : index
    %c0_98 = arith.constant 0 : index
    %c0_99 = arith.constant 0 : index
    %145 = vector.load %arg2[%c13, %c0_98, %c0_99] : memref<25x8x8xf32, #tpu.memory_space<vmem>>, vector<1x8x8xf32>
    %146 = vector.shape_cast %145 : vector<1x8x8xf32> to vector<8x8xf32>
    %cst_100 = arith.constant dense<0.000000e+00> : vector<8x256xf32>
    %147 = tpu.matmul %146, %144, %cst_100 {dimension_numbers = #tpu.dot_dimension_numbers<[1], [0], [0], [1], [0, 0, 1, 1], [], []>} : vector<8x8xf32>, vector<8x256xf32>, vector<8x256xf32> -> vector<8x256xf32>
    %148 = arith.addf %143, %147 : vector<8x256xf32>
    %c0_101 = arith.constant 0 : index
    %c51 = arith.constant 51 : index
    %149 = vector.load %arg9[%c0_101, %c51] : memref<8x324xf32, #tpu.memory_space<vmem>>, vector<8x256xf32>
    %c18_102 = arith.constant 18 : index
    %c0_103 = arith.constant 0 : index
    %c0_104 = arith.constant 0 : index
    %150 = vector.load %arg2[%c18_102, %c0_103, %c0_104] : memref<25x8x8xf32, #tpu.memory_space<vmem>>, vector<1x8x8xf32>
    %151 = vector.shape_cast %150 : vector<1x8x8xf32> to vector<8x8xf32>
    %cst_105 = arith.constant dense<0.000000e+00> : vector<8x256xf32>
    %152 = tpu.matmul %151, %149, %cst_105 {dimension_numbers = #tpu.dot_dimension_numbers<[1], [0], [0], [1], [0, 0, 1, 1], [], []>} : vector<8x8xf32>, vector<8x256xf32>, vector<8x256xf32> -> vector<8x256xf32>
    %153 = arith.addf %148, %152 : vector<8x256xf32>
    %c0_106 = arith.constant 0 : index
    %c67 = arith.constant 67 : index
    %154 = vector.load %arg9[%c0_106, %c67] : memref<8x324xf32, #tpu.memory_space<vmem>>, vector<8x256xf32>
    %c23 = arith.constant 23 : index
    %c0_107 = arith.constant 0 : index
    %c0_108 = arith.constant 0 : index
    %155 = vector.load %arg2[%c23, %c0_107, %c0_108] : memref<25x8x8xf32, #tpu.memory_space<vmem>>, vector<1x8x8xf32>
    %156 = vector.shape_cast %155 : vector<1x8x8xf32> to vector<8x8xf32>
    %cst_109 = arith.constant dense<0.000000e+00> : vector<8x256xf32>
    %157 = tpu.matmul %156, %154, %cst_109 {dimension_numbers = #tpu.dot_dimension_numbers<[1], [0], [0], [1], [0, 0, 1, 1], [], []>} : vector<8x8xf32>, vector<8x256xf32>, vector<8x256xf32> -> vector<8x256xf32>
    %158 = arith.addf %153, %157 : vector<8x256xf32>
    %c1_i32_110 = arith.constant 1 : i32
    %159 = vector.broadcast %c1_i32_110 : i32 to vector<1x256xi32>
    %160 = arith.addi %24, %159 : vector<1x256xi32>
    %c0_i32_111 = arith.constant 0 : i32
    %161 = vector.broadcast %c0_i32_111 : i32 to vector<1x256xi32>
    %162 = arith.cmpi sge, %160, %161 : vector<1x256xi32>
    %c1_i32_112 = arith.constant 1 : i32
    %163 = vector.broadcast %c1_i32_112 : i32 to vector<1x256xi32>
    %164 = arith.addi %24, %163 : vector<1x256xi32>
    %c16_i32_113 = arith.constant 16 : i32
    %165 = vector.broadcast %c16_i32_113 : i32 to vector<1x256xi32>
    %166 = arith.cmpi slt, %164, %165 : vector<1x256xi32>
    %167 = arith.andi %162, %166 : vector<1x256xi1>
    %168 = arith.extui %167 : vector<1x256xi1> to vector<1x256xi32>
    %169 = arith.sitofp %168 : vector<1x256xi32> to vector<1x256xf32>
    %170 = vector.broadcast %169 : vector<1x256xf32> to vector<8x256xf32>
    %171 = arith.mulf %158, %170 : vector<8x256xf32>
    %172 = arith.addf %132, %171 : vector<8x256xf32>
    %cst_114 = arith.constant 0.000000e+00 : f32
    %173 = vector.broadcast %cst_114 : f32 to vector<8x256xf32>
    %c0_115 = arith.constant 0 : index
    %c4 = arith.constant 4 : index
    %174 = vector.load %arg9[%c0_115, %c4] : memref<8x324xf32, #tpu.memory_space<vmem>>, vector<8x256xf32>
    %c4_116 = arith.constant 4 : index
    %c0_117 = arith.constant 0 : index
    %c0_118 = arith.constant 0 : index
    %175 = vector.load %arg2[%c4_116, %c0_117, %c0_118] : memref<25x8x8xf32, #tpu.memory_space<vmem>>, vector<1x8x8xf32>
    %176 = vector.shape_cast %175 : vector<1x8x8xf32> to vector<8x8xf32>
    %cst_119 = arith.constant dense<0.000000e+00> : vector<8x256xf32>
    %177 = tpu.matmul %176, %174, %cst_119 {dimension_numbers = #tpu.dot_dimension_numbers<[1], [0], [0], [1], [0, 0, 1, 1], [], []>} : vector<8x8xf32>, vector<8x256xf32>, vector<8x256xf32> -> vector<8x256xf32>
    %178 = arith.addf %173, %177 : vector<8x256xf32>
    %c0_120 = arith.constant 0 : index
    %c20_121 = arith.constant 20 : index
    %179 = vector.load %arg9[%c0_120, %c20_121] : memref<8x324xf32, #tpu.memory_space<vmem>>, vector<8x256xf32>
    %c9 = arith.constant 9 : index
    %c0_122 = arith.constant 0 : index
    %c0_123 = arith.constant 0 : index
    %180 = vector.load %arg2[%c9, %c0_122, %c0_123] : memref<25x8x8xf32, #tpu.memory_space<vmem>>, vector<1x8x8xf32>
    %181 = vector.shape_cast %180 : vector<1x8x8xf32> to vector<8x8xf32>
    %cst_124 = arith.constant dense<0.000000e+00> : vector<8x256xf32>
    %182 = tpu.matmul %181, %179, %cst_124 {dimension_numbers = #tpu.dot_dimension_numbers<[1], [0], [0], [1], [0, 0, 1, 1], [], []>} : vector<8x8xf32>, vector<8x256xf32>, vector<8x256xf32> -> vector<8x256xf32>
    %183 = arith.addf %178, %182 : vector<8x256xf32>
    %c0_125 = arith.constant 0 : index
    %c36 = arith.constant 36 : index
    %184 = vector.load %arg9[%c0_125, %c36] : memref<8x324xf32, #tpu.memory_space<vmem>>, vector<8x256xf32>
    %c14 = arith.constant 14 : index
    %c0_126 = arith.constant 0 : index
    %c0_127 = arith.constant 0 : index
    %185 = vector.load %arg2[%c14, %c0_126, %c0_127] : memref<25x8x8xf32, #tpu.memory_space<vmem>>, vector<1x8x8xf32>
    %186 = vector.shape_cast %185 : vector<1x8x8xf32> to vector<8x8xf32>
    %cst_128 = arith.constant dense<0.000000e+00> : vector<8x256xf32>
    %187 = tpu.matmul %186, %184, %cst_128 {dimension_numbers = #tpu.dot_dimension_numbers<[1], [0], [0], [1], [0, 0, 1, 1], [], []>} : vector<8x8xf32>, vector<8x256xf32>, vector<8x256xf32> -> vector<8x256xf32>
    %188 = arith.addf %183, %187 : vector<8x256xf32>
    %c0_129 = arith.constant 0 : index
    %c52 = arith.constant 52 : index
    %189 = vector.load %arg9[%c0_129, %c52] : memref<8x324xf32, #tpu.memory_space<vmem>>, vector<8x256xf32>
    %c19_130 = arith.constant 19 : index
    %c0_131 = arith.constant 0 : index
    %c0_132 = arith.constant 0 : index
    %190 = vector.load %arg2[%c19_130, %c0_131, %c0_132] : memref<25x8x8xf32, #tpu.memory_space<vmem>>, vector<1x8x8xf32>
    %191 = vector.shape_cast %190 : vector<1x8x8xf32> to vector<8x8xf32>
    %cst_133 = arith.constant dense<0.000000e+00> : vector<8x256xf32>
    %192 = tpu.matmul %191, %189, %cst_133 {dimension_numbers = #tpu.dot_dimension_numbers<[1], [0], [0], [1], [0, 0, 1, 1], [], []>} : vector<8x8xf32>, vector<8x256xf32>, vector<8x256xf32> -> vector<8x256xf32>
    %193 = arith.addf %188, %192 : vector<8x256xf32>
    %c0_134 = arith.constant 0 : index
    %c68 = arith.constant 68 : index
    %194 = vector.load %arg9[%c0_134, %c68] : memref<8x324xf32, #tpu.memory_space<vmem>>, vector<8x256xf32>
    %c24 = arith.constant 24 : index
    %c0_135 = arith.constant 0 : index
    %c0_136 = arith.constant 0 : index
    %195 = vector.load %arg2[%c24, %c0_135, %c0_136] : memref<25x8x8xf32, #tpu.memory_space<vmem>>, vector<1x8x8xf32>
    %196 = vector.shape_cast %195 : vector<1x8x8xf32> to vector<8x8xf32>
    %cst_137 = arith.constant dense<0.000000e+00> : vector<8x256xf32>
    %197 = tpu.matmul %196, %194, %cst_137 {dimension_numbers = #tpu.dot_dimension_numbers<[1], [0], [0], [1], [0, 0, 1, 1], [], []>} : vector<8x8xf32>, vector<8x256xf32>, vector<8x256xf32> -> vector<8x256xf32>
    %198 = arith.addf %193, %197 : vector<8x256xf32>
    %c2_i32 = arith.constant 2 : i32
    %199 = vector.broadcast %c2_i32 : i32 to vector<1x256xi32>
    %200 = arith.addi %24, %199 : vector<1x256xi32>
    %c0_i32_138 = arith.constant 0 : i32
    %201 = vector.broadcast %c0_i32_138 : i32 to vector<1x256xi32>
    %202 = arith.cmpi sge, %200, %201 : vector<1x256xi32>
    %c2_i32_139 = arith.constant 2 : i32
    %203 = vector.broadcast %c2_i32_139 : i32 to vector<1x256xi32>
    %204 = arith.addi %24, %203 : vector<1x256xi32>
    %c16_i32_140 = arith.constant 16 : i32
    %205 = vector.broadcast %c16_i32_140 : i32 to vector<1x256xi32>
    %206 = arith.cmpi slt, %204, %205 : vector<1x256xi32>
    %207 = arith.andi %202, %206 : vector<1x256xi1>
    %208 = arith.extui %207 : vector<1x256xi1> to vector<1x256xi32>
    %209 = arith.sitofp %208 : vector<1x256xi32> to vector<1x256xf32>
    %210 = vector.broadcast %209 : vector<1x256xf32> to vector<8x256xf32>
    %211 = arith.mulf %198, %210 : vector<8x256xf32>
    %212 = arith.addf %172, %211 : vector<8x256xf32>
    %c0_141 = arith.constant 0 : index
    %c0_142 = arith.constant 0 : index
    %213 = vector.load %arg3[%c0_141, %c0_142] : memref<64x32xf32, #tpu.memory_space<vmem>>, vector<64x32xf32>
    %cst_143 = arith.constant dense<0.000000e+00> : vector<64x256xf32>
    %214 = tpu.matmul %213, %1, %cst_143 {dimension_numbers = #tpu.dot_dimension_numbers<[1], [0], [0], [1], [0, 0, 1, 1], [], []>} : vector<64x32xf32>, vector<32x256xf32>, vector<64x256xf32> -> vector<64x256xf32>
    %c0_144 = arith.constant 0 : index
    %c0_145 = arith.constant 0 : index
    %215 = vector.load %arg4[%c0_144, %c0_145] : memref<64x8xf32, #tpu.memory_space<vmem>>, vector<64x8xf32>
    %216 = arith.subf %212, %2 : vector<8x256xf32>
    %cst_146 = arith.constant dense<0.000000e+00> : vector<64x256xf32>
    %217 = tpu.matmul %215, %216, %cst_146 {dimension_numbers = #tpu.dot_dimension_numbers<[1], [0], [0], [1], [0, 0, 1, 1], [], []>} : vector<64x8xf32>, vector<8x256xf32>, vector<64x256xf32> -> vector<64x256xf32>
    %218 = arith.addf %214, %217 : vector<64x256xf32>
    %cst_147 = arith.constant 0.000000e+00 : f32
    %219 = vector.broadcast %cst_147 : f32 to vector<64x256xf32>
    %220 = arith.maximumf %218, %219 : vector<64x256xf32>
    %221 = vector.extract_strided_slice %220 {offsets = [0, 0], sizes = [16, 256], strides = [1, 1]} : vector<64x256xf32> to vector<16x256xf32>
    %cst_148 = arith.constant 0.000000e+00 : f32
    %222 = vector.broadcast %cst_148 : f32 to vector<16x34xf32>
    %c0_149 = arith.constant 0 : index
    %c0_150 = arith.constant 0 : index
    %223 = vector.load %arg10[%c0_149, %c0_150] : memref<16x324xf32, #tpu.memory_space<vmem>>, vector<16x34xf32>
    tpu.vector_store %arg10[%c0_149, %c0_150], %222 {strides = array<i32>} : memref<16x324xf32, #tpu.memory_space<vmem>>, vector<16x34xf32>,
    %cst_151 = arith.constant 0.000000e+00 : f32
    %224 = vector.broadcast %cst_151 : f32 to vector<16x34xf32>
    %c0_152 = arith.constant 0 : index
    %c290_153 = arith.constant 290 : index
    %225 = vector.load %arg10[%c0_152, %c290_153] : memref<16x324xf32, #tpu.memory_space<vmem>>, vector<16x34xf32>
    tpu.vector_store %arg10[%c0_152, %c290_153], %224 {strides = array<i32>} : memref<16x324xf32, #tpu.memory_space<vmem>>, vector<16x34xf32>,
    %c0_154 = arith.constant 0 : index
    %c34_155 = arith.constant 34 : index
    %226 = vector.load %arg10[%c0_154, %c34_155] : memref<16x324xf32, #tpu.memory_space<vmem>>, vector<16x256xf32>
    tpu.vector_store %arg10[%c0_154, %c34_155], %221 {strides = array<i32>} : memref<16x324xf32, #tpu.memory_space<vmem>>, vector<16x256xf32>,
    %227 = tpu.iota {dimensions = array<i32: 1>} : vector<1x256xi32>
    %c16_i32_156 = arith.constant 16 : i32
    %c0_i32_157 = arith.constant 0 : i32
    %228 = arith.cmpi eq, %c16_i32_156, %c0_i32_157 : i32
    %c1_i32_158 = arith.constant 1 : i32
    %229 = arith.select %228, %c1_i32_158, %c16_i32_156 : i32
    %230 = vector.broadcast %229 : i32 to vector<1x256xi32>
    %231 = arith.remsi %227, %230 : vector<1x256xi32>
    %c0_i32_159 = arith.constant 0 : i32
    %232 = vector.broadcast %c0_i32_159 : i32 to vector<1x256xi32>
    %233 = arith.cmpi ne, %231, %232 : vector<1x256xi32>
    %c0_i32_160 = arith.constant 0 : i32
    %234 = vector.broadcast %c0_i32_160 : i32 to vector<1x256xi32>
    %235 = arith.cmpi slt, %231, %234 : vector<1x256xi32>
    %c0_i32_161 = arith.constant 0 : i32
    %236 = arith.cmpi slt, %229, %c0_i32_161 : i32
    %237 = vector.broadcast %236 : i1 to vector<1x256xi1>
    %238 = vector.broadcast %237 : vector<1x256xi1> to vector<1x256xi1>
    %239 = arith.xori %235, %238 : vector<1x256xi1>
    %240 = arith.andi %239, %233 : vector<1x256xi1>
    %241 = vector.broadcast %229 : i32 to vector<1x256xi32>
    %242 = arith.addi %231, %241 : vector<1x256xi32>
    %243 = arith.select %240, %242, %231 : vector<1x256xi1>, vector<1x256xi32>
    %cst_162 = arith.constant 0.000000e+00 : f32
    %244 = vector.broadcast %cst_162 : f32 to vector<16x256xf32>
    %cst_163 = arith.constant 0.000000e+00 : f32
    %245 = vector.broadcast %cst_163 : f32 to vector<16x256xf32>
    %c0_164 = arith.constant 0 : index
    %c0_165 = arith.constant 0 : index
    %246 = vector.load %arg10[%c0_164, %c0_165] : memref<16x324xf32, #tpu.memory_space<vmem>>, vector<16x256xf32>
    %c0_166 = arith.constant 0 : index
    %c0_167 = arith.constant 0 : index
    %c0_168 = arith.constant 0 : index
    %247 = vector.load %arg5[%c0_166, %c0_167, %c0_168] : memref<25x16x16xf32, #tpu.memory_space<vmem>>, vector<1x16x16xf32>
    %248 = vector.shape_cast %247 : vector<1x16x16xf32> to vector<16x16xf32>
    %cst_169 = arith.constant dense<0.000000e+00> : vector<16x256xf32>
    %249 = tpu.matmul %248, %246, %cst_169 {dimension_numbers = #tpu.dot_dimension_numbers<[1], [0], [0], [1], [0, 0, 1, 1], [], []>} : vector<16x16xf32>, vector<16x256xf32>, vector<16x256xf32> -> vector<16x256xf32>
    %250 = arith.addf %245, %249 : vector<16x256xf32>
    %c0_170 = arith.constant 0 : index
    %c16_171 = arith.constant 16 : index
    %251 = vector.load %arg10[%c0_170, %c16_171] : memref<16x324xf32, #tpu.memory_space<vmem>>, vector<16x256xf32>
    %c5_172 = arith.constant 5 : index
    %c0_173 = arith.constant 0 : index
    %c0_174 = arith.constant 0 : index
    %252 = vector.load %arg5[%c5_172, %c0_173, %c0_174] : memref<25x16x16xf32, #tpu.memory_space<vmem>>, vector<1x16x16xf32>
    %253 = vector.shape_cast %252 : vector<1x16x16xf32> to vector<16x16xf32>
    %cst_175 = arith.constant dense<0.000000e+00> : vector<16x256xf32>
    %254 = tpu.matmul %253, %251, %cst_175 {dimension_numbers = #tpu.dot_dimension_numbers<[1], [0], [0], [1], [0, 0, 1, 1], [], []>} : vector<16x16xf32>, vector<16x256xf32>, vector<16x256xf32> -> vector<16x256xf32>
    %255 = arith.addf %250, %254 : vector<16x256xf32>
    %c0_176 = arith.constant 0 : index
    %c32_177 = arith.constant 32 : index
    %256 = vector.load %arg10[%c0_176, %c32_177] : memref<16x324xf32, #tpu.memory_space<vmem>>, vector<16x256xf32>
    %c10_178 = arith.constant 10 : index
    %c0_179 = arith.constant 0 : index
    %c0_180 = arith.constant 0 : index
    %257 = vector.load %arg5[%c10_178, %c0_179, %c0_180] : memref<25x16x16xf32, #tpu.memory_space<vmem>>, vector<1x16x16xf32>
    %258 = vector.shape_cast %257 : vector<1x16x16xf32> to vector<16x16xf32>
    %cst_181 = arith.constant dense<0.000000e+00> : vector<16x256xf32>
    %259 = tpu.matmul %258, %256, %cst_181 {dimension_numbers = #tpu.dot_dimension_numbers<[1], [0], [0], [1], [0, 0, 1, 1], [], []>} : vector<16x16xf32>, vector<16x256xf32>, vector<16x256xf32> -> vector<16x256xf32>
    %260 = arith.addf %255, %259 : vector<16x256xf32>
    %c0_182 = arith.constant 0 : index
    %c48_183 = arith.constant 48 : index
    %261 = vector.load %arg10[%c0_182, %c48_183] : memref<16x324xf32, #tpu.memory_space<vmem>>, vector<16x256xf32>
    %c15_184 = arith.constant 15 : index
    %c0_185 = arith.constant 0 : index
    %c0_186 = arith.constant 0 : index
    %262 = vector.load %arg5[%c15_184, %c0_185, %c0_186] : memref<25x16x16xf32, #tpu.memory_space<vmem>>, vector<1x16x16xf32>
    %263 = vector.shape_cast %262 : vector<1x16x16xf32> to vector<16x16xf32>
    %cst_187 = arith.constant dense<0.000000e+00> : vector<16x256xf32>
    %264 = tpu.matmul %263, %261, %cst_187 {dimension_numbers = #tpu.dot_dimension_numbers<[1], [0], [0], [1], [0, 0, 1, 1], [], []>} : vector<16x16xf32>, vector<16x256xf32>, vector<16x256xf32> -> vector<16x256xf32>
    %265 = arith.addf %260, %264 : vector<16x256xf32>
    %c0_188 = arith.constant 0 : index
    %c64_189 = arith.constant 64 : index
    %266 = vector.load %arg10[%c0_188, %c64_189] : memref<16x324xf32, #tpu.memory_space<vmem>>, vector<16x256xf32>
    %c20_190 = arith.constant 20 : index
    %c0_191 = arith.constant 0 : index
    %c0_192 = arith.constant 0 : index
    %267 = vector.load %arg5[%c20_190, %c0_191, %c0_192] : memref<25x16x16xf32, #tpu.memory_space<vmem>>, vector<1x16x16xf32>
    %268 = vector.shape_cast %267 : vector<1x16x16xf32> to vector<16x16xf32>
    %cst_193 = arith.constant dense<0.000000e+00> : vector<16x256xf32>
    %269 = tpu.matmul %268, %266, %cst_193 {dimension_numbers = #tpu.dot_dimension_numbers<[1], [0], [0], [1], [0, 0, 1, 1], [], []>} : vector<16x16xf32>, vector<16x256xf32>, vector<16x256xf32> -> vector<16x256xf32>
    %270 = arith.addf %265, %269 : vector<16x256xf32>
    %c-2_i32_194 = arith.constant -2 : i32
    %271 = vector.broadcast %c-2_i32_194 : i32 to vector<1x256xi32>
    %272 = arith.addi %243, %271 : vector<1x256xi32>
    %c0_i32_195 = arith.constant 0 : i32
    %273 = vector.broadcast %c0_i32_195 : i32 to vector<1x256xi32>
    %274 = arith.cmpi sge, %272, %273 : vector<1x256xi32>
    %c-2_i32_196 = arith.constant -2 : i32
    %275 = vector.broadcast %c-2_i32_196 : i32 to vector<1x256xi32>
    %276 = arith.addi %243, %275 : vector<1x256xi32>
    %c16_i32_197 = arith.constant 16 : i32
    %277 = vector.broadcast %c16_i32_197 : i32 to vector<1x256xi32>
    %278 = arith.cmpi slt, %276, %277 : vector<1x256xi32>
    %279 = arith.andi %274, %278 : vector<1x256xi1>
    %280 = arith.extui %279 : vector<1x256xi1> to vector<1x256xi32>
    %281 = arith.sitofp %280 : vector<1x256xi32> to vector<1x256xf32>
    %282 = vector.broadcast %281 : vector<1x256xf32> to vector<16x256xf32>
    %283 = arith.mulf %270, %282 : vector<16x256xf32>
    %284 = arith.addf %244, %283 : vector<16x256xf32>
    %cst_198 = arith.constant 0.000000e+00 : f32
    %285 = vector.broadcast %cst_198 : f32 to vector<16x256xf32>
    %c0_199 = arith.constant 0 : index
    %c1_200 = arith.constant 1 : index
    %286 = vector.load %arg10[%c0_199, %c1_200] : memref<16x324xf32, #tpu.memory_space<vmem>>, vector<16x256xf32>
    %c1_201 = arith.constant 1 : index
    %c0_202 = arith.constant 0 : index
    %c0_203 = arith.constant 0 : index
    %287 = vector.load %arg5[%c1_201, %c0_202, %c0_203] : memref<25x16x16xf32, #tpu.memory_space<vmem>>, vector<1x16x16xf32>
    %288 = vector.shape_cast %287 : vector<1x16x16xf32> to vector<16x16xf32>
    %cst_204 = arith.constant dense<0.000000e+00> : vector<16x256xf32>
    %289 = tpu.matmul %288, %286, %cst_204 {dimension_numbers = #tpu.dot_dimension_numbers<[1], [0], [0], [1], [0, 0, 1, 1], [], []>} : vector<16x16xf32>, vector<16x256xf32>, vector<16x256xf32> -> vector<16x256xf32>
    %290 = arith.addf %285, %289 : vector<16x256xf32>
    %c0_205 = arith.constant 0 : index
    %c17_206 = arith.constant 17 : index
    %291 = vector.load %arg10[%c0_205, %c17_206] : memref<16x324xf32, #tpu.memory_space<vmem>>, vector<16x256xf32>
    %c6_207 = arith.constant 6 : index
    %c0_208 = arith.constant 0 : index
    %c0_209 = arith.constant 0 : index
    %292 = vector.load %arg5[%c6_207, %c0_208, %c0_209] : memref<25x16x16xf32, #tpu.memory_space<vmem>>, vector<1x16x16xf32>
    %293 = vector.shape_cast %292 : vector<1x16x16xf32> to vector<16x16xf32>
    %cst_210 = arith.constant dense<0.000000e+00> : vector<16x256xf32>
    %294 = tpu.matmul %293, %291, %cst_210 {dimension_numbers = #tpu.dot_dimension_numbers<[1], [0], [0], [1], [0, 0, 1, 1], [], []>} : vector<16x16xf32>, vector<16x256xf32>, vector<16x256xf32> -> vector<16x256xf32>
    %295 = arith.addf %290, %294 : vector<16x256xf32>
    %c0_211 = arith.constant 0 : index
    %c33_212 = arith.constant 33 : index
    %296 = vector.load %arg10[%c0_211, %c33_212] : memref<16x324xf32, #tpu.memory_space<vmem>>, vector<16x256xf32>
    %c11_213 = arith.constant 11 : index
    %c0_214 = arith.constant 0 : index
    %c0_215 = arith.constant 0 : index
    %297 = vector.load %arg5[%c11_213, %c0_214, %c0_215] : memref<25x16x16xf32, #tpu.memory_space<vmem>>, vector<1x16x16xf32>
    %298 = vector.shape_cast %297 : vector<1x16x16xf32> to vector<16x16xf32>
    %cst_216 = arith.constant dense<0.000000e+00> : vector<16x256xf32>
    %299 = tpu.matmul %298, %296, %cst_216 {dimension_numbers = #tpu.dot_dimension_numbers<[1], [0], [0], [1], [0, 0, 1, 1], [], []>} : vector<16x16xf32>, vector<16x256xf32>, vector<16x256xf32> -> vector<16x256xf32>
    %300 = arith.addf %295, %299 : vector<16x256xf32>
    %c0_217 = arith.constant 0 : index
    %c49_218 = arith.constant 49 : index
    %301 = vector.load %arg10[%c0_217, %c49_218] : memref<16x324xf32, #tpu.memory_space<vmem>>, vector<16x256xf32>
    %c16_219 = arith.constant 16 : index
    %c0_220 = arith.constant 0 : index
    %c0_221 = arith.constant 0 : index
    %302 = vector.load %arg5[%c16_219, %c0_220, %c0_221] : memref<25x16x16xf32, #tpu.memory_space<vmem>>, vector<1x16x16xf32>
    %303 = vector.shape_cast %302 : vector<1x16x16xf32> to vector<16x16xf32>
    %cst_222 = arith.constant dense<0.000000e+00> : vector<16x256xf32>
    %304 = tpu.matmul %303, %301, %cst_222 {dimension_numbers = #tpu.dot_dimension_numbers<[1], [0], [0], [1], [0, 0, 1, 1], [], []>} : vector<16x16xf32>, vector<16x256xf32>, vector<16x256xf32> -> vector<16x256xf32>
    %305 = arith.addf %300, %304 : vector<16x256xf32>
    %c0_223 = arith.constant 0 : index
    %c65_224 = arith.constant 65 : index
    %306 = vector.load %arg10[%c0_223, %c65_224] : memref<16x324xf32, #tpu.memory_space<vmem>>, vector<16x256xf32>
    %c21_225 = arith.constant 21 : index
    %c0_226 = arith.constant 0 : index
    %c0_227 = arith.constant 0 : index
    %307 = vector.load %arg5[%c21_225, %c0_226, %c0_227] : memref<25x16x16xf32, #tpu.memory_space<vmem>>, vector<1x16x16xf32>
    %308 = vector.shape_cast %307 : vector<1x16x16xf32> to vector<16x16xf32>
    %cst_228 = arith.constant dense<0.000000e+00> : vector<16x256xf32>
    %309 = tpu.matmul %308, %306, %cst_228 {dimension_numbers = #tpu.dot_dimension_numbers<[1], [0], [0], [1], [0, 0, 1, 1], [], []>} : vector<16x16xf32>, vector<16x256xf32>, vector<16x256xf32> -> vector<16x256xf32>
    %310 = arith.addf %305, %309 : vector<16x256xf32>
    %c-1_i32_229 = arith.constant -1 : i32
    %311 = vector.broadcast %c-1_i32_229 : i32 to vector<1x256xi32>
    %312 = arith.addi %243, %311 : vector<1x256xi32>
    %c0_i32_230 = arith.constant 0 : i32
    %313 = vector.broadcast %c0_i32_230 : i32 to vector<1x256xi32>
    %314 = arith.cmpi sge, %312, %313 : vector<1x256xi32>
    %c-1_i32_231 = arith.constant -1 : i32
    %315 = vector.broadcast %c-1_i32_231 : i32 to vector<1x256xi32>
    %316 = arith.addi %243, %315 : vector<1x256xi32>
    %c16_i32_232 = arith.constant 16 : i32
    %317 = vector.broadcast %c16_i32_232 : i32 to vector<1x256xi32>
    %318 = arith.cmpi slt, %316, %317 : vector<1x256xi32>
    %319 = arith.andi %314, %318 : vector<1x256xi1>
    %320 = arith.extui %319 : vector<1x256xi1> to vector<1x256xi32>
    %321 = arith.sitofp %320 : vector<1x256xi32> to vector<1x256xf32>
    %322 = vector.broadcast %321 : vector<1x256xf32> to vector<16x256xf32>
    %323 = arith.mulf %310, %322 : vector<16x256xf32>
    %324 = arith.addf %284, %323 : vector<16x256xf32>
    %cst_233 = arith.constant 0.000000e+00 : f32
    %325 = vector.broadcast %cst_233 : f32 to vector<16x256xf32>
    %c0_234 = arith.constant 0 : index
    %c2_235 = arith.constant 2 : index
    %326 = vector.load %arg10[%c0_234, %c2_235] : memref<16x324xf32, #tpu.memory_space<vmem>>, vector<16x256xf32>
    %c2_236 = arith.constant 2 : index
    %c0_237 = arith.constant 0 : index
    %c0_238 = arith.constant 0 : index
    %327 = vector.load %arg5[%c2_236, %c0_237, %c0_238] : memref<25x16x16xf32, #tpu.memory_space<vmem>>, vector<1x16x16xf32>
    %328 = vector.shape_cast %327 : vector<1x16x16xf32> to vector<16x16xf32>
    %cst_239 = arith.constant dense<0.000000e+00> : vector<16x256xf32>
    %329 = tpu.matmul %328, %326, %cst_239 {dimension_numbers = #tpu.dot_dimension_numbers<[1], [0], [0], [1], [0, 0, 1, 1], [], []>} : vector<16x16xf32>, vector<16x256xf32>, vector<16x256xf32> -> vector<16x256xf32>
    %330 = arith.addf %325, %329 : vector<16x256xf32>
    %c0_240 = arith.constant 0 : index
    %c18_241 = arith.constant 18 : index
    %331 = vector.load %arg10[%c0_240, %c18_241] : memref<16x324xf32, #tpu.memory_space<vmem>>, vector<16x256xf32>
    %c7_242 = arith.constant 7 : index
    %c0_243 = arith.constant 0 : index
    %c0_244 = arith.constant 0 : index
    %332 = vector.load %arg5[%c7_242, %c0_243, %c0_244] : memref<25x16x16xf32, #tpu.memory_space<vmem>>, vector<1x16x16xf32>
    %333 = vector.shape_cast %332 : vector<1x16x16xf32> to vector<16x16xf32>
    %cst_245 = arith.constant dense<0.000000e+00> : vector<16x256xf32>
    %334 = tpu.matmul %333, %331, %cst_245 {dimension_numbers = #tpu.dot_dimension_numbers<[1], [0], [0], [1], [0, 0, 1, 1], [], []>} : vector<16x16xf32>, vector<16x256xf32>, vector<16x256xf32> -> vector<16x256xf32>
    %335 = arith.addf %330, %334 : vector<16x256xf32>
    %c0_246 = arith.constant 0 : index
    %c34_247 = arith.constant 34 : index
    %336 = vector.load %arg10[%c0_246, %c34_247] : memref<16x324xf32, #tpu.memory_space<vmem>>, vector<16x256xf32>
    %c12_248 = arith.constant 12 : index
    %c0_249 = arith.constant 0 : index
    %c0_250 = arith.constant 0 : index
    %337 = vector.load %arg5[%c12_248, %c0_249, %c0_250] : memref<25x16x16xf32, #tpu.memory_space<vmem>>, vector<1x16x16xf32>
    %338 = vector.shape_cast %337 : vector<1x16x16xf32> to vector<16x16xf32>
    %cst_251 = arith.constant dense<0.000000e+00> : vector<16x256xf32>
    %339 = tpu.matmul %338, %336, %cst_251 {dimension_numbers = #tpu.dot_dimension_numbers<[1], [0], [0], [1], [0, 0, 1, 1], [], []>} : vector<16x16xf32>, vector<16x256xf32>, vector<16x256xf32> -> vector<16x256xf32>
    %340 = arith.addf %335, %339 : vector<16x256xf32>
    %c0_252 = arith.constant 0 : index
    %c50_253 = arith.constant 50 : index
    %341 = vector.load %arg10[%c0_252, %c50_253] : memref<16x324xf32, #tpu.memory_space<vmem>>, vector<16x256xf32>
    %c17_254 = arith.constant 17 : index
    %c0_255 = arith.constant 0 : index
    %c0_256 = arith.constant 0 : index
    %342 = vector.load %arg5[%c17_254, %c0_255, %c0_256] : memref<25x16x16xf32, #tpu.memory_space<vmem>>, vector<1x16x16xf32>
    %343 = vector.shape_cast %342 : vector<1x16x16xf32> to vector<16x16xf32>
    %cst_257 = arith.constant dense<0.000000e+00> : vector<16x256xf32>
    %344 = tpu.matmul %343, %341, %cst_257 {dimension_numbers = #tpu.dot_dimension_numbers<[1], [0], [0], [1], [0, 0, 1, 1], [], []>} : vector<16x16xf32>, vector<16x256xf32>, vector<16x256xf32> -> vector<16x256xf32>
    %345 = arith.addf %340, %344 : vector<16x256xf32>
    %c0_258 = arith.constant 0 : index
    %c66_259 = arith.constant 66 : index
    %346 = vector.load %arg10[%c0_258, %c66_259] : memref<16x324xf32, #tpu.memory_space<vmem>>, vector<16x256xf32>
    %c22_260 = arith.constant 22 : index
    %c0_261 = arith.constant 0 : index
    %c0_262 = arith.constant 0 : index
    %347 = vector.load %arg5[%c22_260, %c0_261, %c0_262] : memref<25x16x16xf32, #tpu.memory_space<vmem>>, vector<1x16x16xf32>
    %348 = vector.shape_cast %347 : vector<1x16x16xf32> to vector<16x16xf32>
    %cst_263 = arith.constant dense<0.000000e+00> : vector<16x256xf32>
    %349 = tpu.matmul %348, %346, %cst_263 {dimension_numbers = #tpu.dot_dimension_numbers<[1], [0], [0], [1], [0, 0, 1, 1], [], []>} : vector<16x16xf32>, vector<16x256xf32>, vector<16x256xf32> -> vector<16x256xf32>
    %350 = arith.addf %345, %349 : vector<16x256xf32>
    %351 = arith.addf %324, %350 : vector<16x256xf32>
    %cst_264 = arith.constant 0.000000e+00 : f32
    %352 = vector.broadcast %cst_264 : f32 to vector<16x256xf32>
    %c0_265 = arith.constant 0 : index
    %c3_266 = arith.constant 3 : index
    %353 = vector.load %arg10[%c0_265, %c3_266] : memref<16x324xf32, #tpu.memory_space<vmem>>, vector<16x256xf32>
    %c3_267 = arith.constant 3 : index
    %c0_268 = arith.constant 0 : index
    %c0_269 = arith.constant 0 : index
    %354 = vector.load %arg5[%c3_267, %c0_268, %c0_269] : memref<25x16x16xf32, #tpu.memory_space<vmem>>, vector<1x16x16xf32>
    %355 = vector.shape_cast %354 : vector<1x16x16xf32> to vector<16x16xf32>
    %cst_270 = arith.constant dense<0.000000e+00> : vector<16x256xf32>
    %356 = tpu.matmul %355, %353, %cst_270 {dimension_numbers = #tpu.dot_dimension_numbers<[1], [0], [0], [1], [0, 0, 1, 1], [], []>} : vector<16x16xf32>, vector<16x256xf32>, vector<16x256xf32> -> vector<16x256xf32>
    %357 = arith.addf %352, %356 : vector<16x256xf32>
    %c0_271 = arith.constant 0 : index
    %c19_272 = arith.constant 19 : index
    %358 = vector.load %arg10[%c0_271, %c19_272] : memref<16x324xf32, #tpu.memory_space<vmem>>, vector<16x256xf32>
    %c8_273 = arith.constant 8 : index
    %c0_274 = arith.constant 0 : index
    %c0_275 = arith.constant 0 : index
    %359 = vector.load %arg5[%c8_273, %c0_274, %c0_275] : memref<25x16x16xf32, #tpu.memory_space<vmem>>, vector<1x16x16xf32>
    %360 = vector.shape_cast %359 : vector<1x16x16xf32> to vector<16x16xf32>
    %cst_276 = arith.constant dense<0.000000e+00> : vector<16x256xf32>
    %361 = tpu.matmul %360, %358, %cst_276 {dimension_numbers = #tpu.dot_dimension_numbers<[1], [0], [0], [1], [0, 0, 1, 1], [], []>} : vector<16x16xf32>, vector<16x256xf32>, vector<16x256xf32> -> vector<16x256xf32>
    %362 = arith.addf %357, %361 : vector<16x256xf32>
    %c0_277 = arith.constant 0 : index
    %c35_278 = arith.constant 35 : index
    %363 = vector.load %arg10[%c0_277, %c35_278] : memref<16x324xf32, #tpu.memory_space<vmem>>, vector<16x256xf32>
    %c13_279 = arith.constant 13 : index
    %c0_280 = arith.constant 0 : index
    %c0_281 = arith.constant 0 : index
    %364 = vector.load %arg5[%c13_279, %c0_280, %c0_281] : memref<25x16x16xf32, #tpu.memory_space<vmem>>, vector<1x16x16xf32>
    %365 = vector.shape_cast %364 : vector<1x16x16xf32> to vector<16x16xf32>
    %cst_282 = arith.constant dense<0.000000e+00> : vector<16x256xf32>
    %366 = tpu.matmul %365, %363, %cst_282 {dimension_numbers = #tpu.dot_dimension_numbers<[1], [0], [0], [1], [0, 0, 1, 1], [], []>} : vector<16x16xf32>, vector<16x256xf32>, vector<16x256xf32> -> vector<16x256xf32>
    %367 = arith.addf %362, %366 : vector<16x256xf32>
    %c0_283 = arith.constant 0 : index
    %c51_284 = arith.constant 51 : index
    %368 = vector.load %arg10[%c0_283, %c51_284] : memref<16x324xf32, #tpu.memory_space<vmem>>, vector<16x256xf32>
    %c18_285 = arith.constant 18 : index
    %c0_286 = arith.constant 0 : index
    %c0_287 = arith.constant 0 : index
    %369 = vector.load %arg5[%c18_285, %c0_286, %c0_287] : memref<25x16x16xf32, #tpu.memory_space<vmem>>, vector<1x16x16xf32>
    %370 = vector.shape_cast %369 : vector<1x16x16xf32> to vector<16x16xf32>
    %cst_288 = arith.constant dense<0.000000e+00> : vector<16x256xf32>
    %371 = tpu.matmul %370, %368, %cst_288 {dimension_numbers = #tpu.dot_dimension_numbers<[1], [0], [0], [1], [0, 0, 1, 1], [], []>} : vector<16x16xf32>, vector<16x256xf32>, vector<16x256xf32> -> vector<16x256xf32>
    %372 = arith.addf %367, %371 : vector<16x256xf32>
    %c0_289 = arith.constant 0 : index
    %c67_290 = arith.constant 67 : index
    %373 = vector.load %arg10[%c0_289, %c67_290] : memref<16x324xf32, #tpu.memory_space<vmem>>, vector<16x256xf32>
    %c23_291 = arith.constant 23 : index
    %c0_292 = arith.constant 0 : index
    %c0_293 = arith.constant 0 : index
    %374 = vector.load %arg5[%c23_291, %c0_292, %c0_293] : memref<25x16x16xf32, #tpu.memory_space<vmem>>, vector<1x16x16xf32>
    %375 = vector.shape_cast %374 : vector<1x16x16xf32> to vector<16x16xf32>
    %cst_294 = arith.constant dense<0.000000e+00> : vector<16x256xf32>
    %376 = tpu.matmul %375, %373, %cst_294 {dimension_numbers = #tpu.dot_dimension_numbers<[1], [0], [0], [1], [0, 0, 1, 1], [], []>} : vector<16x16xf32>, vector<16x256xf32>, vector<16x256xf32> -> vector<16x256xf32>
    %377 = arith.addf %372, %376 : vector<16x256xf32>
    %c1_i32_295 = arith.constant 1 : i32
    %378 = vector.broadcast %c1_i32_295 : i32 to vector<1x256xi32>
    %379 = arith.addi %243, %378 : vector<1x256xi32>
    %c0_i32_296 = arith.constant 0 : i32
    %380 = vector.broadcast %c0_i32_296 : i32 to vector<1x256xi32>
    %381 = arith.cmpi sge, %379, %380 : vector<1x256xi32>
    %c1_i32_297 = arith.constant 1 : i32
    %382 = vector.broadcast %c1_i32_297 : i32 to vector<1x256xi32>
    %383 = arith.addi %243, %382 : vector<1x256xi32>
    %c16_i32_298 = arith.constant 16 : i32
    %384 = vector.broadcast %c16_i32_298 : i32 to vector<1x256xi32>
    %385 = arith.cmpi slt, %383, %384 : vector<1x256xi32>
    %386 = arith.andi %381, %385 : vector<1x256xi1>
    %387 = arith.extui %386 : vector<1x256xi1> to vector<1x256xi32>
    %388 = arith.sitofp %387 : vector<1x256xi32> to vector<1x256xf32>
    %389 = vector.broadcast %388 : vector<1x256xf32> to vector<16x256xf32>
    %390 = arith.mulf %377, %389 : vector<16x256xf32>
    %391 = arith.addf %351, %390 : vector<16x256xf32>
    %cst_299 = arith.constant 0.000000e+00 : f32
    %392 = vector.broadcast %cst_299 : f32 to vector<16x256xf32>
    %c0_300 = arith.constant 0 : index
    %c4_301 = arith.constant 4 : index
    %393 = vector.load %arg10[%c0_300, %c4_301] : memref<16x324xf32, #tpu.memory_space<vmem>>, vector<16x256xf32>
    %c4_302 = arith.constant 4 : index
    %c0_303 = arith.constant 0 : index
    %c0_304 = arith.constant 0 : index
    %394 = vector.load %arg5[%c4_302, %c0_303, %c0_304] : memref<25x16x16xf32, #tpu.memory_space<vmem>>, vector<1x16x16xf32>
    %395 = vector.shape_cast %394 : vector<1x16x16xf32> to vector<16x16xf32>
    %cst_305 = arith.constant dense<0.000000e+00> : vector<16x256xf32>
    %396 = tpu.matmul %395, %393, %cst_305 {dimension_numbers = #tpu.dot_dimension_numbers<[1], [0], [0], [1], [0, 0, 1, 1], [], []>} : vector<16x16xf32>, vector<16x256xf32>, vector<16x256xf32> -> vector<16x256xf32>
    %397 = arith.addf %392, %396 : vector<16x256xf32>
    %c0_306 = arith.constant 0 : index
    %c20_307 = arith.constant 20 : index
    %398 = vector.load %arg10[%c0_306, %c20_307] : memref<16x324xf32, #tpu.memory_space<vmem>>, vector<16x256xf32>
    %c9_308 = arith.constant 9 : index
    %c0_309 = arith.constant 0 : index
    %c0_310 = arith.constant 0 : index
    %399 = vector.load %arg5[%c9_308, %c0_309, %c0_310] : memref<25x16x16xf32, #tpu.memory_space<vmem>>, vector<1x16x16xf32>
    %400 = vector.shape_cast %399 : vector<1x16x16xf32> to vector<16x16xf32>
    %cst_311 = arith.constant dense<0.000000e+00> : vector<16x256xf32>
    %401 = tpu.matmul %400, %398, %cst_311 {dimension_numbers = #tpu.dot_dimension_numbers<[1], [0], [0], [1], [0, 0, 1, 1], [], []>} : vector<16x16xf32>, vector<16x256xf32>, vector<16x256xf32> -> vector<16x256xf32>
    %402 = arith.addf %397, %401 : vector<16x256xf32>
    %c0_312 = arith.constant 0 : index
    %c36_313 = arith.constant 36 : index
    %403 = vector.load %arg10[%c0_312, %c36_313] : memref<16x324xf32, #tpu.memory_space<vmem>>, vector<16x256xf32>
    %c14_314 = arith.constant 14 : index
    %c0_315 = arith.constant 0 : index
    %c0_316 = arith.constant 0 : index
    %404 = vector.load %arg5[%c14_314, %c0_315, %c0_316] : memref<25x16x16xf32, #tpu.memory_space<vmem>>, vector<1x16x16xf32>
    %405 = vector.shape_cast %404 : vector<1x16x16xf32> to vector<16x16xf32>
    %cst_317 = arith.constant dense<0.000000e+00> : vector<16x256xf32>
    %406 = tpu.matmul %405, %403, %cst_317 {dimension_numbers = #tpu.dot_dimension_numbers<[1], [0], [0], [1], [0, 0, 1, 1], [], []>} : vector<16x16xf32>, vector<16x256xf32>, vector<16x256xf32> -> vector<16x256xf32>
    %407 = arith.addf %402, %406 : vector<16x256xf32>
    %c0_318 = arith.constant 0 : index
    %c52_319 = arith.constant 52 : index
    %408 = vector.load %arg10[%c0_318, %c52_319] : memref<16x324xf32, #tpu.memory_space<vmem>>, vector<16x256xf32>
    %c19_320 = arith.constant 19 : index
    %c0_321 = arith.constant 0 : index
    %c0_322 = arith.constant 0 : index
    %409 = vector.load %arg5[%c19_320, %c0_321, %c0_322] : memref<25x16x16xf32, #tpu.memory_space<vmem>>, vector<1x16x16xf32>
    %410 = vector.shape_cast %409 : vector<1x16x16xf32> to vector<16x16xf32>
    %cst_323 = arith.constant dense<0.000000e+00> : vector<16x256xf32>
    %411 = tpu.matmul %410, %408, %cst_323 {dimension_numbers = #tpu.dot_dimension_numbers<[1], [0], [0], [1], [0, 0, 1, 1], [], []>} : vector<16x16xf32>, vector<16x256xf32>, vector<16x256xf32> -> vector<16x256xf32>
    %412 = arith.addf %407, %411 : vector<16x256xf32>
    %c0_324 = arith.constant 0 : index
    %c68_325 = arith.constant 68 : index
    %413 = vector.load %arg10[%c0_324, %c68_325] : memref<16x324xf32, #tpu.memory_space<vmem>>, vector<16x256xf32>
    %c24_326 = arith.constant 24 : index
    %c0_327 = arith.constant 0 : index
    %c0_328 = arith.constant 0 : index
    %414 = vector.load %arg5[%c24_326, %c0_327, %c0_328] : memref<25x16x16xf32, #tpu.memory_space<vmem>>, vector<1x16x16xf32>
    %415 = vector.shape_cast %414 : vector<1x16x16xf32> to vector<16x16xf32>
    %cst_329 = arith.constant dense<0.000000e+00> : vector<16x256xf32>
    %416 = tpu.matmul %415, %413, %cst_329 {dimension_numbers = #tpu.dot_dimension_numbers<[1], [0], [0], [1], [0, 0, 1, 1], [], []>} : vector<16x16xf32>, vector<16x256xf32>, vector<16x256xf32> -> vector<16x256xf32>
    %417 = arith.addf %412, %416 : vector<16x256xf32>
    %c2_i32_330 = arith.constant 2 : i32
    %418 = vector.broadcast %c2_i32_330 : i32 to vector<1x256xi32>
    %419 = arith.addi %243, %418 : vector<1x256xi32>
    %c0_i32_331 = arith.constant 0 : i32
    %420 = vector.broadcast %c0_i32_331 : i32 to vector<1x256xi32>
    %421 = arith.cmpi sge, %419, %420 : vector<1x256xi32>
    %c2_i32_332 = arith.constant 2 : i32
    %422 = vector.broadcast %c2_i32_332 : i32 to vector<1x256xi32>
    %423 = arith.addi %243, %422 : vector<1x256xi32>
    %c16_i32_333 = arith.constant 16 : i32
    %424 = vector.broadcast %c16_i32_333 : i32 to vector<1x256xi32>
    %425 = arith.cmpi slt, %423, %424 : vector<1x256xi32>
    %426 = arith.andi %421, %425 : vector<1x256xi1>
    %427 = arith.extui %426 : vector<1x256xi1> to vector<1x256xi32>
    %428 = arith.sitofp %427 : vector<1x256xi32> to vector<1x256xf32>
    %429 = vector.broadcast %428 : vector<1x256xf32> to vector<16x256xf32>
    %430 = arith.mulf %417, %429 : vector<16x256xf32>
    %431 = arith.addf %391, %430 : vector<16x256xf32>
    %c0_334 = arith.constant 0 : index
    %c0_335 = arith.constant 0 : index
    %432 = vector.load %arg6[%c0_334, %c0_335] : memref<32x64xf32, #tpu.memory_space<vmem>>, vector<32x64xf32>
    %cst_336 = arith.constant dense<0.000000e+00> : vector<32x256xf32>
    %433 = tpu.matmul %432, %220, %cst_336 {dimension_numbers = #tpu.dot_dimension_numbers<[1], [0], [0], [1], [0, 0, 1, 1], [], []>} : vector<32x64xf32>, vector<64x256xf32>, vector<32x256xf32> -> vector<32x256xf32>
    %c0_337 = arith.constant 0 : index
    %c0_338 = arith.constant 0 : index
    %434 = vector.load %arg7[%c0_337, %c0_338] : memref<32x16xf32, #tpu.memory_space<vmem>>, vector<32x16xf32>
    %435 = arith.subf %431, %221 : vector<16x256xf32>
    %cst_339 = arith.constant dense<0.000000e+00> : vector<32x256xf32>
    %436 = tpu.matmul %434, %435, %cst_339 {dimension_numbers = #tpu.dot_dimension_numbers<[1], [0], [0], [1], [0, 0, 1, 1], [], []>} : vector<32x16xf32>, vector<16x256xf32>, vector<32x256xf32> -> vector<32x256xf32>
    %437 = arith.addf %433, %436 : vector<32x256xf32>
    %438 = arith.addf %437, %1 : vector<32x256xf32>
    %cst_340 = arith.constant 0.000000e+00 : f32
    %439 = vector.broadcast %cst_340 : f32 to vector<32x256xf32>
    %440 = arith.maximumf %438, %439 : vector<32x256xf32>
    %c0_341 = arith.constant 0 : index
    %c0_342 = arith.constant 0 : index
    %c0_343 = arith.constant 0 : index
    %441 = vector.load %arg8[%c0_341, %c0_342, %c0_343] : memref<1x32x256xf32, #tpu.memory_space<vmem>>, vector<1x32x256xf32>
    %442 = vector.shape_cast %441 : vector<1x32x256xf32> to vector<32x256xf32>
    %443 = vector.shape_cast %440 : vector<32x256xf32> to vector<1x32x256xf32>
    tpu.vector_store %arg8[%c0_341, %c0_342, %c0_343], %443 {strides = array<i32>} : memref<1x32x256xf32, #tpu.memory_space<vmem>>, vector<1x32x256xf32>,
    return
  }
  func.func @transform_0(%arg0: i32) -> (i32, i32, i32) {
    %c0_i32 = arith.constant 0 : i32
    %c0_i32_0 = arith.constant 0 : i32
    %c0_i32_1 = arith.constant 0 : i32
    return %arg0, %c0_i32, %c0_i32_0 : i32, i32, i32
  }
  func.func @transform_1(%arg0: i32) -> (i32, i32, i32) {
    %c0_i32 = arith.constant 0 : i32
    %c0_i32_0 = arith.constant 0 : i32
    %c0_i32_1 = arith.constant 0 : i32
    %c0_i32_2 = arith.constant 0 : i32
    return %c0_i32, %c0_i32_0, %c0_i32_1 : i32, i32, i32
  }
  func.func @transform_2(%arg0: i32) -> (i32, i32) {
    %c0_i32 = arith.constant 0 : i32
    %c0_i32_0 = arith.constant 0 : i32
    %c0_i32_1 = arith.constant 0 : i32
    return %c0_i32, %c0_i32_0 : i32, i32
  }
  func.func @transform_3(%arg0: i32) -> (i32, i32) {
    %c0_i32 = arith.constant 0 : i32
    %c0_i32_0 = arith.constant 0 : i32
    %c0_i32_1 = arith.constant 0 : i32
    return %c0_i32, %c0_i32_0 : i32, i32
  }
  func.func @transform_4(%arg0: i32) -> (i32, i32, i32) {
    %c0_i32 = arith.constant 0 : i32
    %c0_i32_0 = arith.constant 0 : i32
    %c0_i32_1 = arith.constant 0 : i32
    %c0_i32_2 = arith.constant 0 : i32
    return %c0_i32, %c0_i32_0, %c0_i32_1 : i32, i32, i32
  }
  func.func @transform_5(%arg0: i32) -> (i32, i32) {
    %c0_i32 = arith.constant 0 : i32
    %c0_i32_0 = arith.constant 0 : i32
    %c0_i32_1 = arith.constant 0 : i32
    return %c0_i32, %c0_i32_0 : i32, i32
  }
  func.func @transform_6(%arg0: i32) -> (i32, i32) {
    %c0_i32 = arith.constant 0 : i32
    %c0_i32_0 = arith.constant 0 : i32
    %c0_i32_1 = arith.constant 0 : i32
    return %c0_i32, %c0_i32_0 : i32, i32
  }
  func.func @transform_7(%arg0: i32) -> (i32, i32, i32) {
    %c0_i32 = arith.constant 0 : i32
    %c0_i32_0 = arith.constant 0 : i32
    %c0_i32_1 = arith.constant 0 : i32
    return %arg0, %c0_i32, %c0_i32_0 : i32, i32, i32
  }
}

</mosaic_0001>

<llo_original>
// kernel: tpu_custom_call.1
$region0: #{tpu_custom_call.1}
  #allocation0 [shape = 'u32[]', space=smem, size = 0x4, offset = 0x4, fixed_abs, tag = 'smem constant byte address 0x4 - core index']
  #allocation1 [shape = 'u32[144,128]{1,0:T(1,128)}', space=vmem, size = 0x12000, scoped, tag = 'internal scratch']
  #allocation2 [shape = 'f32[8,324]{1,0:T(8,128)}', space=vmem, size = 0x3000, scoped, tag = 'scratch operand']
  #allocation3 [shape = 'f32[16,324]{1,0:T(8,128)}', space=vmem, size = 0x6000, scoped, tag = 'scratch operand']
  %s0 = inlined_call_operand.vmem [shape: f32[2,32,256], index: 0, kind: input, shape index: {}]
  %s1 = inlined_call_operand.vmem [shape: f32[25,8,8], index: 1, kind: input, shape index: {}]
  %s2 = inlined_call_operand.vmem [shape: f32[64,32], index: 2, kind: input, shape index: {}]
  %s3 = inlined_call_operand.vmem [shape: f32[64,8], index: 3, kind: input, shape index: {}]
  %s4 = inlined_call_operand.vmem [shape: f32[25,16,16], index: 4, kind: input, shape index: {}]
  %s5 = inlined_call_operand.vmem [shape: f32[32,64], index: 5, kind: input, shape index: {}]
  %s6 = inlined_call_operand.vmem [shape: f32[32,16], index: 6, kind: input, shape index: {}]
  %s7 = inlined_call_operand.hbm [shape: f32[2,32,256], index: 7, kind: output, shape index: {}]
  %s8 = sld [smem:[#allocation0]]
  $region61: #{tpu_custom_call.1} parent=0
    _
  %s10 = ssub.s32 1, %s8
  %s11 = scalar_select 0, %s10, %s8
  $region1: #{tpu_custom_call.1} parent=0
    #allocation4 [shape = 'u8[65536]{0}', space=vmem, size = 0x10000, scoped, tag = 'output window, operand 0']
    #allocation5 [shape = 's32[2]{0}', space=sflag, size = 0x8, scoped, tag = 'scoped memory for tpu_custom_call.1']
    %12 = vsyncpa [#allocation5], 0
    %s13 = scalar_lea.sflag [#allocation5], 1
    %14 = vsyncpa %s13, 0
    loop: start=0, step=1, limit=4
    $region2: #{tpu_custom_call.1} parent=1 // loop_pre_header
      _
    $region3: #{tpu_custom_call.1} parent=1 // loop_header
      %s16 = sphi 0, %s20
      %p17 = scmp.ge.s32.totalorder %s16, 4
      %s26 = sphi 0, %s28
      %s29 = sphi 0, %s26
      %s30 = sphi 0, %s29
      %s46 = sphi 0, %s30
      %s50 = sphi 0, %s50
      %s52 = sphi 0, %s50
      %s53 = sphi 0, %s52
      %s67 = sphi 0, %s53
      %s71 = sphi 0, %s71
      %s73 = sphi 0, %s71
      %s74 = sphi 0, %s73
      %s88 = sphi 0, %s74
      %s92 = sphi 0, %s92
      %s94 = sphi 0, %s92
      %s95 = sphi 0, %s94
      %s109 = sphi 0, %s95
      %s113 = sphi 0, %s113
      %s115 = sphi 0, %s113
      %s116 = sphi 0, %s115
      %s130 = sphi 0, %s116
      %s134 = sphi 0, %s134
      %s136 = sphi 0, %s134
      %s137 = sphi 0, %s136
      %s151 = sphi 0, %s137
      %s155 = sphi 0, %s155
      %s157 = sphi 0, %s155
      %s158 = sphi 0, %s157
      %s172 = sphi 0, %s158
      %s178 = sphi 0, %s180
      %s181 = sphi 0, %s178
      %s182 = sphi 0, %s181
      %s198 = sphi 0, %s182
    $region4: #{tpu_custom_call.1} parent=1 // loop_header_branch
      %19 = sbr.rel (%p17) target = $region8
    $region5: #{tpu_custom_call.1} parent=1 // loop_body
      %s21 = ssub.s32 %s16, 1
      %s22 = ssub.s32 %s16, 2
      %s23 = sadd.s32 %s16, 1
      %s24 = ssub.s32 %s16, %s23
      %p25 = scmp.eq.s32.totalorder %s24, 0
      %s27 = sadd.s32 %s26, 1
      %s28 = scalar_select %p25, %s26, %s27
      %p31 = pneg %p25
      %p32 = scmp.eq.s32.totalorder %s16, 1
      %p33 = por %p31, %p32
      %p34 = scmp.ne.s32.totalorder %s26, %s29
      %p35 = scmp.eq.s32.totalorder %s16, 0
      %p36 = por %p34, %p35
      %p37 = scmp.ne.s32.totalorder %s26, %s29
      %p38 = scmp.eq.s32.totalorder %s21, 1
      %p39 = por %p37, %p38
      %p40 = scmp.ne.s32.totalorder %s29, %s30
      %p41 = scmp.eq.s32.totalorder %s21, 0
      %p42 = por %p40, %p41
      %p43 = scmp.ne.s32.totalorder %s29, %s30
      %p44 = scmp.eq.s32.totalorder %s22, 1
      %p45 = por %p43, %p44
      %p47 = scmp.ne.s32.totalorder %s30, %s46
      %p48 = scmp.eq.s32.totalorder %s22, 0
      %p49 = por %p47, %p48
      %s51 = sadd.s32 %s50, 1
      %p54 = scmp.eq.s32.totalorder %s16, 1
      %p55 = scmp.ne.s32.totalorder %s50, %s52
      %p56 = scmp.eq.s32.totalorder %s16, 0
      %p57 = por %p55, %p56
      %p58 = scmp.ne.s32.totalorder %s50, %s52
      %p59 = scmp.eq.s32.totalorder %s21, 1
      %p60 = por %p58, %p59
      %p61 = scmp.ne.s32.totalorder %s52, %s53
      %p62 = scmp.eq.s32.totalorder %s21, 0
      %p63 = por %p61, %p62
      %p64 = scmp.ne.s32.totalorder %s52, %s53
      %p65 = scmp.eq.s32.totalorder %s22, 1
      %p66 = por %p64, %p65
      %p68 = scmp.ne.s32.totalorder %s53, %s67
      %p69 = scmp.eq.s32.totalorder %s22, 0
      %p70 = por %p68, %p69
      %s72 = sadd.s32 %s71, 1
      %p75 = scmp.eq.s32.totalorder %s16, 1
      %p76 = scmp.ne.s32.totalorder %s71, %s73
      %p77 = scmp.eq.s32.totalorder %s16, 0
      %p78 = por %p76, %p77
      %p79 = scmp.ne.s32.totalorder %s71, %s73
      %p80 = scmp.eq.s32.totalorder %s21, 1
      %p81 = por %p79, %p80
      %p82 = scmp.ne.s32.totalorder %s73, %s74
      %p83 = scmp.eq.s32.totalorder %s21, 0
      %p84 = por %p82, %p83
      %p85 = scmp.ne.s32.totalorder %s73, %s74
      %p86 = scmp.eq.s32.totalorder %s22, 1
      %p87 = por %p85, %p86
      %p89 = scmp.ne.s32.totalorder %s74, %s88
      %p90 = scmp.eq.s32.totalorder %s22, 0
      %p91 = por %p89, %p90
      %s93 = sadd.s32 %s92, 1
      %p96 = scmp.eq.s32.totalorder %s16, 1
      %p97 = scmp.ne.s32.totalorder %s92, %s94
      %p98 = scmp.eq.s32.totalorder %s16, 0
      %p99 = por %p97, %p98
      %p100 = scmp.ne.s32.totalorder %s92, %s94
      %p101 = scmp.eq.s32.totalorder %s21, 1
      %p102 = por %p100, %p101
      %p103 = scmp.ne.s32.totalorder %s94, %s95
      %p104 = scmp.eq.s32.totalorder %s21, 0
      %p105 = por %p103, %p104
      %p106 = scmp.ne.s32.totalorder %s94, %s95
      %p107 = scmp.eq.s32.totalorder %s22, 1
      %p108 = por %p106, %p107
      %p110 = scmp.ne.s32.totalorder %s95, %s109
      %p111 = scmp.eq.s32.totalorder %s22, 0
      %p112 = por %p110, %p111
      %s114 = sadd.s32 %s113, 1
      %p117 = scmp.eq.s32.totalorder %s16, 1
      %p118 = scmp.ne.s32.totalorder %s113, %s115
      %p119 = scmp.eq.s32.totalorder %s16, 0
      %p120 = por %p118, %p119
      %p121 = scmp.ne.s32.totalorder %s113, %s115
      %p122 = scmp.eq.s32.totalorder %s21, 1
      %p123 = por %p121, %p122
      %p124 = scmp.ne.s32.totalorder %s115, %s116
      %p125 = scmp.eq.s32.totalorder %s21, 0
      %p126 = por %p124, %p125
      %p127 = scmp.ne.s32.totalorder %s115, %s116
      %p128 = scmp.eq.s32.totalorder %s22, 1
      %p129 = por %p127, %p128
      %p131 = scmp.ne.s32.totalorder %s116, %s130
      %p132 = scmp.eq.s32.totalorder %s22, 0
      %p133 = por %p131, %p132
      %s135 = sadd.s32 %s134, 1
      %p138 = scmp.eq.s32.totalorder %s16, 1
      %p139 = scmp.ne.s32.totalorder %s134, %s136
      %p140 = scmp.eq.s32.totalorder %s16, 0
      %p141 = por %p139, %p140
      %p142 = scmp.ne.s32.totalorder %s134, %s136
      %p143 = scmp.eq.s32.totalorder %s21, 1
      %p144 = por %p142, %p143
      %p145 = scmp.ne.s32.totalorder %s136, %s137
      %p146 = scmp.eq.s32.totalorder %s21, 0
      %p147 = por %p145, %p146
      %p148 = scmp.ne.s32.totalorder %s136, %s137
      %p149 = scmp.eq.s32.totalorder %s22, 1
      %p150 = por %p148, %p149
      %p152 = scmp.ne.s32.totalorder %s137, %s151
      %p153 = scmp.eq.s32.totalorder %s22, 0
      %p154 = por %p152, %p153
      %s156 = sadd.s32 %s155, 1
      %p159 = scmp.eq.s32.totalorder %s16, 1
      %p160 = scmp.ne.s32.totalorder %s155, %s157
      %p161 = scmp.eq.s32.totalorder %s16, 0
      %p162 = por %p160, %p161
      %p163 = scmp.ne.s32.totalorder %s155, %s157
      %p164 = scmp.eq.s32.totalorder %s21, 1
      %p165 = por %p163, %p164
      %p166 = scmp.ne.s32.totalorder %s157, %s158
      %p167 = scmp.eq.s32.totalorder %s21, 0
      %p168 = por %p166, %p167
      %p169 = scmp.ne.s32.totalorder %s157, %s158
      %p170 = scmp.eq.s32.totalorder %s22, 1
      %p171 = por %p169, %p170
      %p173 = scmp.ne.s32.totalorder %s158, %s172
      %p174 = scmp.eq.s32.totalorder %s22, 0
      %p175 = por %p173, %p174
      %s176 = ssub.s32 %s16, %s23
      %p177 = scmp.eq.s32.totalorder %s176, 0
      %s179 = sadd.s32 %s178, 1
      %s180 = scalar_select %p177, %s178, %s179
      %p183 = pneg %p177
      %p184 = scmp.eq.s32.totalorder %s16, 1
      %p185 = por %p183, %p184
      %p186 = scmp.ne.s32.totalorder %s178, %s181
      %p187 = scmp.eq.s32.totalorder %s16, 0
      %p188 = por %p186, %p187
      %p189 = scmp.ne.s32.totalorder %s178, %s181
      %p190 = scmp.eq.s32.totalorder %s21, 1
      %p191 = por %p189, %p190
      %p192 = scmp.ne.s32.totalorder %s181, %s182
      %p193 = scmp.eq.s32.totalorder %s21, 0
      %p194 = por %p192, %p193
      %p195 = scmp.ne.s32.totalorder %s181, %s182
      %p196 = scmp.eq.s32.totalorder %s22, 1
      %p197 = por %p195, %p196
      %p199 = scmp.ne.s32.totalorder %s182, %s198
      %p200 = scmp.eq.s32.totalorder %s22, 0
      %p201 = por %p199, %p200
      %p202 = scmp.le.s32.totalorder 1, %s16
      %p203 = scmp.lt.s32.totalorder %s16, 3
      %p204 = pnand %p202, %p203
      %p205 = pneg %p204
      // Predicated region
      $region9: #{tpu_custom_call.1} parent=5 // pred_check
        _
      $region10: #{tpu_custom_call.1} parent=5 // pred_check_branch
        %207 = sbr.rel (%p204) target = $region12
      $region11: #{tpu_custom_call.1} parent=5 // pred_region
        %s208 = ssub.s32 %s16, 1
        // Predicated region
        $region13: #{tpu_custom_call.1} parent=11 // pred_check
          %p209 = pneg %p63
        $region14: #{tpu_custom_call.1} parent=11 // pred_check_branch
          %211 = sbr.rel (%p209) target = $region16
        $region15: #{tpu_custom_call.1} parent=11 // pred_region
          _
        $region16: #{tpu_custom_call.1} parent=11 // pred_fallthru
          _
        // Predicated region
        $region17: #{tpu_custom_call.1} parent=11 // pred_check
          %p212 = pneg %p84
        $region18: #{tpu_custom_call.1} parent=11 // pred_check_branch
          %214 = sbr.rel (%p212) target = $region20
        $region19: #{tpu_custom_call.1} parent=11 // pred_region
          _
        $region20: #{tpu_custom_call.1} parent=11 // pred_fallthru
          _
        // Predicated region
        $region21: #{tpu_custom_call.1} parent=11 // pred_check
          %p215 = pneg %p105
        $region22: #{tpu_custom_call.1} parent=11 // pred_check_branch
          %217 = sbr.rel (%p215) target = $region24
        $region23: #{tpu_custom_call.1} parent=11 // pred_region
          _
        $region24: #{tpu_custom_call.1} parent=11 // pred_fallthru
          _
        // Predicated region
        $region25: #{tpu_custom_call.1} parent=11 // pred_check
          %p218 = pneg %p126
        $region26: #{tpu_custom_call.1} parent=11 // pred_check_branch
          %220 = sbr.rel (%p218) target = $region28
        $region27: #{tpu_custom_call.1} parent=11 // pred_region
          _
        $region28: #{tpu_custom_call.1} parent=11 // pred_fallthru
          _
        // Predicated region
        $region29: #{tpu_custom_call.1} parent=11 // pred_check
          %p221 = pneg %p147
        $region30: #{tpu_custom_call.1} parent=11 // pred_check_branch
          %223 = sbr.rel (%p221) target = $region32
        $region31: #{tpu_custom_call.1} parent=11 // pred_region
          _
        $region32: #{tpu_custom_call.1} parent=11 // pred_fallthru
          _
        // Predicated region
        $region33: #{tpu_custom_call.1} parent=11 // pred_check
          %p224 = pneg %p168
        $region34: #{tpu_custom_call.1} parent=11 // pred_check_branch
          %226 = sbr.rel (%p224) target = $region36
        $region35: #{tpu_custom_call.1} parent=11 // pred_region
          _
        $region36: #{tpu_custom_call.1} parent=11 // pred_fallthru
          _
      $region12: #{tpu_custom_call.1} parent=5 // pred_fallthru
        _
      %p227 = scmp.lt.s32.totalorder %s16, 2
      // Predicated region
      $region37: #{tpu_custom_call.1} parent=5 // pred_check
        %p228 = pneg %p227
      $region38: #{tpu_custom_call.1} parent=5 // pred_check_branch
        %230 = sbr.rel (%p228) target = $region40
      $region39: #{tpu_custom_call.1} parent=5 // pred_region
        // Predicated region
        $region41: #{tpu_custom_call.1} parent=39 // pred_check
          %p231 = pneg %p36
        $region42: #{tpu_custom_call.1} parent=39 // pred_check_branch
          %233 = sbr.rel (%p231) target = $region44
        $region43: #{tpu_custom_call.1} parent=39 // pred_region
          %p234 = scmp.lt.s32.totalorder %s16, 1
          %s235 = scalar_select %p234, %s16, 1
          %s236 = smul.addr %s235, 8
          %s237 = smul.addr %s236, 8
          %s238 = scalar_lea.vmem %s0, %s237
        $region44: #{tpu_custom_call.1} parent=39 // pred_fallthru
          _
      $region40: #{tpu_custom_call.1} parent=5 // pred_fallthru
        _
      %p239 = scmp.le.s32.totalorder 1, %s16
      %p240 = scmp.lt.s32.totalorder %s16, 3
      %p241 = pnand %p239, %p240
      %p242 = pneg %p241
      // Predicated region
      $region45: #{tpu_custom_call.1} parent=5 // pred_check
        _
      $region46: #{tpu_custom_call.1} parent=5 // pred_check_branch
        %244 = sbr.rel (%p241) target = $region48
      $region47: #{tpu_custom_call.1} parent=5 // pred_region
        %s245 = ssub.s32 %s16, 1
        %p246 = scmp.lt.s32.totalorder %s21, 1
        %s247 = scalar_select %p246, %s21, 1
        %s248 = smul.addr %s247, 8
        %s249 = smul.addr %s248, 8
        %s250 = scalar_lea.vmem %s0, %s249
        %p251 = pneg %p42
        %p252 = pneg %p39
        %p253 = pneg %p63
        %p254 = pneg %p60
        %p255 = pneg %p84
        %p256 = pneg %p81
        %p257 = pneg %p105
        %p258 = pneg %p102
        %p259 = pneg %p126
        %p260 = pneg %p123
        %p261 = pneg %p147
        %p262 = pneg %p144
        %p263 = pneg %p168
        %p264 = pneg %p165
        %p265 = pneg %p194
        %p266 = pneg %p191
        %s267 = sand.u32 %s181, 1
        %s268 = scalar_lea.sflag [#allocation5], %s267
        %s269 = sand.u32 %s181, 1
        %s270 = smul.addr %s269, 64
        %s271 = scalar_lea.vmem [#allocation4], %s270
        %p272 = scmp.lt.s32.totalorder %s21, 1
        %s273 = scalar_select %p272, %s21, 1
        %s274 = smul.addr %s273, 8
        %s275 = smul.addr %s274, 8
        %s276 = scalar_lea.vmem %s0, %s275
        %v277 = vld [vmem:[%s276] sm:$0xff]
        %v278 = vld [vmem:[%s276 + $0x8] sm:$0xff]
        %v279 = vld [vmem:[%s276 + $0x10] sm:$0xff]
        %v280 = vld [vmem:[%s276 + $0x18] sm:$0xff]
        %v281 = vld [vmem:[%s276 + $0x20] sm:$0xff]
        %v282 = vld [vmem:[%s276 + $0x28] sm:$0xff]
        %v283 = vld [vmem:[%s276 + $0x30] sm:$0xff]
        %v284 = vld [vmem:[%s276 + $0x38] sm:$0xff]
        %vm285 = vcmask 277504
        %286 = vst.msk [vmem:[#allocation2] sm:$0xff] %vm285, 0.0
        %vm287 = vcmask 556304
        %288 = vst.msk [vmem:[#allocation2 + $0x10] sm:$0xff] %vm287, 0.0
        %291 = vrot.lane.b32.xlu0 %v277, 34
        %v292 = vpop.permute.xlu0 %291
        %293 = vrot.lane.b32.xlu0 %v278, 34
        %v294 = vpop.permute.xlu0 %293
        %v295 = vsel %vm285, %v292, %v294
        %vm299 = vcmask 1047824
        %300 = vst.msk [vmem:[#allocation2] sm:$0xff] %vm299, %v292
        %301 = vst [vmem:[#allocation2 + $0x8] sm:$0xff] %v295
        %302 = vst.msk [vmem:[#allocation2 + $0x10] sm:$0xff] %vm285, %v294
        %v303 = vlaneseq
        %v304 = vand.u32 %v303, 127
        %v305 = vadd.s32 %v304, 128
        %vm306 = vcmp.lt.s32.totalorder %v304, 0
        %v307 = vsub.s32 0, %v304
        %v308 = vsel %vm306, %v307, %v304
        %v309 = vshrl.u32 %v308, 4
        %v310 = vand.u32 %v308, 15
        %v311 = vsub.s32 0, %v310
        %v312 = vsel %vm306, %v311, %v310
        %vm313 = vcmp.lt.s32.totalorder %v305, 0
        %v314 = vsub.s32 0, %v305
        %v315 = vsel %vm313, %v314, %v305
        %v316 = vshrl.u32 %v315, 4
        %v317 = vand.u32 %v315, 15
        %v318 = vsub.s32 0, %v317
        %v319 = vsel %vm313, %v318, %v317
        %vm320 = vcmp.ne.s32.totalorder %v312, 0
        %vm321 = vcmp.ne.s32.totalorder %v319, 0
        %vm322 = vcmp.lt.s32.totalorder %v312, 0
        %vm323 = vcmp.lt.s32.totalorder %v319, 0
        %vm324 = vmand %vm322, %vm320
        %vm325 = vmand %vm323, %vm321
        %v326 = vadd.s32 %v312, 16
        %v327 = vadd.s32 %v319, 16
        %v328 = vsel %vm324, %v326, %v312
        %v329 = vsel %vm325, %v327, %v319
        %v330 = vld [vmem:[#allocation2] sm:$0xff]
        %v331 = vld [vmem:[#allocation2 + $0x8] sm:$0xff]
        %v332 = vld [vmem:[%s1] sm:$0xff]
        %v333 = vld [vmem:[#allocation2 + $0x10] sm:$0xff]
        %s334 = scalar_lea.vmem %s1, 40
        %v335 = vld [vmem:[%s334] sm:$0xff]
        %339 = vrot.lane.b32.xlu0 %v330, 112
        %v340 = vpop.permute.xlu0 %339
        %341 = vrot.lane.b32.xlu0 %v331, 112
        %v342 = vpop.permute.xlu0 %341
        %343 = vrot.lane.b32.xlu0 %v333, 112
        %v344 = vpop.permute.xlu0 %343
        %vm345 = vcmask 916480
        %v346 = vsel %vm345, %v340, %v342
        %v347 = vsel %vm345, %v342, %v344
        %vm350 = vcmask 64512
        %v352 = vsel %vm350, %v335, 0
        %354 = vmatprep.subr.mxu0 %v347
        %355 = vmatpush1.msra.mxu0 %v346
        %356 = vmatprep.subr.mxu0 0.0
        %357 = vmatpush1.msra.mxu0 0.0
        %358 = vmatprep.subr.mxu0 0.0
        %359 = vmatpush1.msra.mxu0 0.0
        %360 = vmatprep.subr.mxu0 0.0
        %361 = vmatpush1.msra.mxu0 0.0
        %362 = vmatprep.subr.mxu0 0.0
        %363 = vmatpush1.msra.mxu0 0.0
        %364 = vmatprep.subr.mxu0 0.0
        %365 = vmatpush1.msra.mxu0 0.0
        %366 = vmatprep.subr.mxu0 0.0
        %367 = vmatpush1.msra.mxu0 0.0
        %368 = vmatprep.subr.mxu0 0.0
        %369 = vmatpush1.msra.mxu0 0.0
        %370 = vmatprep.subr.mxu0 0.0
        %371 = vmatpush1.msra.mxu0 0.0
        %372 = vmatprep.subr.mxu0 0.0
        %373 = vmatpush1.msra.mxu0 0.0
        %374 = vmatprep.subr.mxu0 0.0
        %375 = vmatpush1.msra.mxu0 0.0
        %376 = vmatprep.subr.mxu0 0.0
        %377 = vmatpush1.msra.mxu0 0.0
        %378 = vmatprep.subr.mxu0 0.0
        %379 = vmatpush1.msra.mxu0 0.0
        %380 = vmatprep.subr.mxu0 0.0
        %381 = vmatpush1.msra.mxu0 0.0
        %382 = vmatprep.subr.mxu0 0.0
        %383 = vmatpush1.msra.mxu0 0.0
        %384 = vmatprep.subr.mxu0 0.0
        %385 = vmatpush1.msra.mxu0 0.0
        %386 = vmatprep.subr.mxu0 0.0
        %387 = vmatpush1.msra.mxu0 0.0
        %388 = vmatprep.subr.mxu0 0.0
        %389 = vmatpush1.msra.mxu0 0.0
        %390 = vmatprep.subr.mxu0 0.0
        %391 = vmatpush1.msra.mxu0 0.0
        %392 = vmatprep.subr.mxu0 0.0
        %393 = vmatpush1.msra.mxu0 0.0
        %394 = vmatprep.subr.mxu0 0.0
        %395 = vmatpush1.msra.mxu0 0.0
        %396 = vmatprep.subr.mxu0 0.0
        %397 = vmatpush1.msra.mxu0 0.0
        %398 = vmatprep.subr.mxu0 0.0
        %399 = vmatpush1.msra.mxu0 0.0
        %400 = vmatprep.subr.mxu0 0.0
        %401 = vmatpush1.msra.mxu0 0.0
        %402 = vmatprep.subr.mxu0 0.0
        %403 = vmatpush1.msra.mxu0 0.0
        %404 = vmatprep.subr.mxu0 0.0
        %405 = vmatpush1.msra.mxu0 0.0
        %406 = vmatprep.subr.mxu0 0.0
        %407 = vmatpush1.msra.mxu0 0.0
        %408 = vmatprep.subr.mxu0 0.0
        %409 = vmatpush1.msra.mxu0 0.0
        %410 = vmatprep.subr.mxu0 0.0
        %411 = vmatpush1.msra.mxu0 0.0
        %412 = vmatprep.subr.mxu0 0.0
        %413 = vmatpush1.msra.mxu0 0.0
        %414 = vmatprep.subr.mxu0 0.0
        %415 = vmatpush1.msra.mxu0 0.0
        %416 = vmatprep.subr.mxu0 0.0
        %417 = vmatpush1.msra.mxu0 0.0
        %418 = vmatprep.mubr.f32.mxu0 0.0
        %419 = vmatmul.mubr.f32.gmra.mrb[0].mxu0 %v352
        %v420 = vpop.f32.mrb[0].mxu0
        %v421 = vadd.f32 0.0, %v420
        %v422 = vpop.f32.mrb[0].mxu0
        %v423 = vadd.f32 0.0, %v422
        %424 = vdwg.mxu0
        %v426 = vsel %vm350, %v332, 0
        %428 = vmatprep.subr.mxu0 %v331
        %429 = vmatpush1.msra.mxu0 %v330
        %430 = vmatprep.subr.mxu0 0.0
        %431 = vmatpush1.msra.mxu0 0.0
        %432 = vmatprep.subr.mxu0 0.0
        %433 = vmatpush1.msra.mxu0 0.0
        %434 = vmatprep.subr.mxu0 0.0
        %435 = vmatpush1.msra.mxu0 0.0
        %436 = vmatprep.subr.mxu0 0.0
        %437 = vmatpush1.msra.mxu0 0.0
        %438 = vmatprep.subr.mxu0 0.0
        %439 = vmatpush1.msra.mxu0 0.0
        %440 = vmatprep.subr.mxu0 0.0
        %441 = vmatpush1.msra.mxu0 0.0
        %442 = vmatprep.subr.mxu0 0.0
        %443 = vmatpush1.msra.mxu0 0.0
        %444 = vmatprep.subr.mxu0 0.0
        %445 = vmatpush1.msra.mxu0 0.0
        %446 = vmatprep.subr.mxu0 0.0
        %447 = vmatpush1.msra.mxu0 0.0
        %448 = vmatprep.subr.mxu0 0.0
        %449 = vmatpush1.msra.mxu0 0.0
        %450 = vmatprep.subr.mxu0 0.0
        %451 = vmatpush1.msra.mxu0 0.0
        %452 = vmatprep.subr.mxu0 0.0
        %453 = vmatpush1.msra.mxu0 0.0
        %454 = vmatprep.subr.mxu0 0.0
        %455 = vmatpush1.msra.mxu0 0.0
        %456 = vmatprep.subr.mxu0 0.0
        %457 = vmatpush1.msra.mxu0 0.0
        %458 = vmatprep.subr.mxu0 0.0
        %459 = vmatpush1.msra.mxu0 0.0
        %460 = vmatprep.subr.mxu0 0.0
        %461 = vmatpush1.msra.mxu0 0.0
        %462 = vmatprep.subr.mxu0 0.0
        %463 = vmatpush1.msra.mxu0 0.0
        %464 = vmatprep.subr.mxu0 0.0
        %465 = vmatpush1.msra.mxu0 0.0
        %466 = vmatprep.subr.mxu0 0.0
        %467 = vmatpush1.msra.mxu0 0.0
        %468 = vmatprep.subr.mxu0 0.0
        %469 = vmatpush1.msra.mxu0 0.0
        %470 = vmatprep.subr.mxu0 0.0
        %471 = vmatpush1.msra.mxu0 0.0
        %472 = vmatprep.subr.mxu0 0.0
        %473 = vmatpush1.msra.mxu0 0.0
        %474 = vmatprep.subr.mxu0 0.0
        %475 = vmatpush1.msra.mxu0 0.0
        %476 = vmatprep.subr.mxu0 0.0
        %477 = vmatpush1.msra.mxu0 0.0
        %478 = vmatprep.subr.mxu0 0.0
        %479 = vmatpush1.msra.mxu0 0.0
        %480 = vmatprep.subr.mxu0 0.0
        %481 = vmatpush1.msra.mxu0 0.0
        %482 = vmatprep.subr.mxu0 0.0
        %483 = vmatpush1.msra.mxu0 0.0
        %484 = vmatprep.subr.mxu0 0.0
        %485 = vmatpush1.msra.mxu0 0.0
        %486 = vmatprep.subr.mxu0 0.0
        %487 = vmatpush1.msra.mxu0 0.0
        %488 = vmatprep.subr.mxu0 0.0
        %489 = vmatpush1.msra.mxu0 0.0
        %490 = vmatprep.subr.mxu0 0.0
        %491 = vmatpush1.msra.mxu0 0.0
        %492 = vmatprep.mubr.f32.mxu0 0.0
        %493 = vmatmul.mubr.f32.gmra.mrb[0].mxu0 %v426
        %v494 = vpop.f32.mrb[0].mxu0
        %v495 = vadd.f32 %v421, %v494
        %v496 = vpop.f32.mrb[0].mxu0
        %v497 = vadd.f32 %v423, %v496
        %498 = vdwg.mxu0
        %s499 = scalar_lea.vmem %s1, 80
        %v500 = vld [vmem:[%s499] sm:$0xff]
        %501 = vrot.lane.b32.xlu0 %v330, 96
        %v502 = vpop.permute.xlu0 %501
        %503 = vrot.lane.b32.xlu0 %v331, 96
        %v504 = vpop.permute.xlu0 %503
        %505 = vrot.lane.b32.xlu0 %v333, 96
        %v506 = vpop.permute.xlu0 %505
        %vm507 = vcmask 785408
        %v508 = vsel %vm507, %v502, %v504
        %v509 = vsel %vm507, %v504, %v506
        %v513 = vsel %vm350, %v500, 0
        %515 = vmatprep.subr.mxu0 %v509
        %516 = vmatpush1.msra.mxu0 %v508
        %517 = vmatprep.subr.mxu0 0.0
        %518 = vmatpush1.msra.mxu0 0.0
        %519 = vmatprep.subr.mxu0 0.0
        %520 = vmatpush1.msra.mxu0 0.0
        %521 = vmatprep.subr.mxu0 0.0
        %522 = vmatpush1.msra.mxu0 0.0
        %523 = vmatprep.subr.mxu0 0.0
        %524 = vmatpush1.msra.mxu0 0.0
        %525 = vmatprep.subr.mxu0 0.0
        %526 = vmatpush1.msra.mxu0 0.0
        %527 = vmatprep.subr.mxu0 0.0
        %528 = vmatpush1.msra.mxu0 0.0
        %529 = vmatprep.subr.mxu0 0.0
        %530 = vmatpush1.msra.mxu0 0.0
        %531 = vmatprep.subr.mxu0 0.0
        %532 = vmatpush1.msra.mxu0 0.0
        %533 = vmatprep.subr.mxu0 0.0
        %534 = vmatpush1.msra.mxu0 0.0
        %535 = vmatprep.subr.mxu0 0.0
        %536 = vmatpush1.msra.mxu0 0.0
        %537 = vmatprep.subr.mxu0 0.0
        %538 = vmatpush1.msra.mxu0 0.0
        %539 = vmatprep.subr.mxu0 0.0
        %540 = vmatpush1.msra.mxu0 0.0
        %541 = vmatprep.subr.mxu0 0.0
        %542 = vmatpush1.msra.mxu0 0.0
        %543 = vmatprep.subr.mxu0 0.0
        %544 = vmatpush1.msra.mxu0 0.0
        %545 = vmatprep.subr.mxu0 0.0
        %546 = vmatpush1.msra.mxu0 0.0
        %547 = vmatprep.subr.mxu0 0.0
        %548 = vmatpush1.msra.mxu0 0.0
        %549 = vmatprep.subr.mxu0 0.0
        %550 = vmatpush1.msra.mxu0 0.0
        %551 = vmatprep.subr.mxu0 0.0
        %552 = vmatpush1.msra.mxu0 0.0
        %553 = vmatprep.subr.mxu0 0.0
        %554 = vmatpush1.msra.mxu0 0.0
        %555 = vmatprep.subr.mxu0 0.0
        %556 = vmatpush1.msra.mxu0 0.0
        %557 = vmatprep.subr.mxu0 0.0
        %558 = vmatpush1.msra.mxu0 0.0
        %559 = vmatprep.subr.mxu0 0.0
        %560 = vmatpush1.msra.mxu0 0.0
        %561 = vmatprep.subr.mxu0 0.0
        %562 = vmatpush1.msra.mxu0 0.0
        %563 = vmatprep.subr.mxu0 0.0
        %564 = vmatpush1.msra.mxu0 0.0
        %565 = vmatprep.subr.mxu0 0.0
        %566 = vmatpush1.msra.mxu0 0.0
        %567 = vmatprep.subr.mxu0 0.0
        %568 = vmatpush1.msra.mxu0 0.0
        %569 = vmatprep.subr.mxu0 0.0
        %570 = vmatpush1.msra.mxu0 0.0
        %571 = vmatprep.subr.mxu0 0.0
        %572 = vmatpush1.msra.mxu0 0.0
        %573 = vmatprep.subr.mxu0 0.0
        %574 = vmatpush1.msra.mxu0 0.0
        %575 = vmatprep.subr.mxu0 0.0
        %576 = vmatpush1.msra.mxu0 0.0
        %577 = vmatprep.subr.mxu0 0.0
        %578 = vmatpush1.msra.mxu0 0.0
        %579 = vmatprep.mubr.f32.mxu0 0.0
        %580 = vmatmul.mubr.f32.gmra.mrb[0].mxu0 %v513
        %v581 = vpop.f32.mrb[0].mxu0
        %v582 = vadd.f32 0.0, %v581
        %v583 = vpop.f32.mrb[0].mxu0
        %v584 = vadd.f32 0.0, %v583
        %585 = vdwg.mxu0
        %v586 = vadd.f32 %v495, %v582
        %v587 = vadd.f32 %v497, %v584
        %s588 = scalar_lea.vmem %s1, 120
        %v589 = vld [vmem:[%s588] sm:$0xff]
        %590 = vrot.lane.b32.xlu0 %v330, 80
        %v591 = vpop.permute.xlu0 %590
        %592 = vrot.lane.b32.xlu0 %v331, 80
        %v593 = vpop.permute.xlu0 %592
        %594 = vrot.lane.b32.xlu0 %v333, 80
        %v595 = vpop.permute.xlu0 %594
        %vm596 = vcmask 654336
        %v597 = vsel %vm596, %v591, %v593
        %v598 = vsel %vm596, %v593, %v595
        %v602 = vsel %vm350, %v589, 0
        %604 = vmatprep.subr.mxu0 %v598
        %605 = vmatpush1.msra.mxu0 %v597
        %606 = vmatprep.subr.mxu0 0.0
        %607 = vmatpush1.msra.mxu0 0.0
        %608 = vmatprep.subr.mxu0 0.0
        %609 = vmatpush1.msra.mxu0 0.0
        %610 = vmatprep.subr.mxu0 0.0
        %611 = vmatpush1.msra.mxu0 0.0
        %612 = vmatprep.subr.mxu0 0.0
        %613 = vmatpush1.msra.mxu0 0.0
        %614 = vmatprep.subr.mxu0 0.0
        %615 = vmatpush1.msra.mxu0 0.0
        %616 = vmatprep.subr.mxu0 0.0
        %617 = vmatpush1.msra.mxu0 0.0
        %618 = vmatprep.subr.mxu0 0.0
        %619 = vmatpush1.msra.mxu0 0.0
        %620 = vmatprep.subr.mxu0 0.0
        %621 = vmatpush1.msra.mxu0 0.0
        %622 = vmatprep.subr.mxu0 0.0
        %623 = vmatpush1.msra.mxu0 0.0
        %624 = vmatprep.subr.mxu0 0.0
        %625 = vmatpush1.msra.mxu0 0.0
        %626 = vmatprep.subr.mxu0 0.0
        %627 = vmatpush1.msra.mxu0 0.0
        %628 = vmatprep.subr.mxu0 0.0
        %629 = vmatpush1.msra.mxu0 0.0
        %630 = vmatprep.subr.mxu0 0.0
        %631 = vmatpush1.msra.mxu0 0.0
        %632 = vmatprep.subr.mxu0 0.0
        %633 = vmatpush1.msra.mxu0 0.0
        %634 = vmatprep.subr.mxu0 0.0
        %635 = vmatpush1.msra.mxu0 0.0
        %636 = vmatprep.subr.mxu0 0.0
        %637 = vmatpush1.msra.mxu0 0.0
        %638 = vmatprep.subr.mxu0 0.0
        %639 = vmatpush1.msra.mxu0 0.0
        %640 = vmatprep.subr.mxu0 0.0
        %641 = vmatpush1.msra.mxu0 0.0
        %642 = vmatprep.subr.mxu0 0.0
        %643 = vmatpush1.msra.mxu0 0.0
        %644 = vmatprep.subr.mxu0 0.0
        %645 = vmatpush1.msra.mxu0 0.0
        %646 = vmatprep.subr.mxu0 0.0
        %647 = vmatpush1.msra.mxu0 0.0
        %648 = vmatprep.subr.mxu0 0.0
        %649 = vmatpush1.msra.mxu0 0.0
        %650 = vmatprep.subr.mxu0 0.0
        %651 = vmatpush1.msra.mxu0 0.0
        %652 = vmatprep.subr.mxu0 0.0
        %653 = vmatpush1.msra.mxu0 0.0
        %654 = vmatprep.subr.mxu0 0.0
        %655 = vmatpush1.msra.mxu0 0.0
        %656 = vmatprep.subr.mxu0 0.0
        %657 = vmatpush1.msra.mxu0 0.0
        %658 = vmatprep.subr.mxu0 0.0
        %659 = vmatpush1.msra.mxu0 0.0
        %660 = vmatprep.subr.mxu0 0.0
        %661 = vmatpush1.msra.mxu0 0.0
        %662 = vmatprep.subr.mxu0 0.0
        %663 = vmatpush1.msra.mxu0 0.0
        %664 = vmatprep.subr.mxu0 0.0
        %665 = vmatpush1.msra.mxu0 0.0
        %666 = vmatprep.subr.mxu0 0.0
        %667 = vmatpush1.msra.mxu0 0.0
        %668 = vmatprep.mubr.f32.mxu0 0.0
        %669 = vmatmul.mubr.f32.gmra.mrb[0].mxu0 %v602
        %v670 = vpop.f32.mrb[0].mxu0
        %v671 = vadd.f32 0.0, %v670
        %v672 = vpop.f32.mrb[0].mxu0
        %v673 = vadd.f32 0.0, %v672
        %674 = vdwg.mxu0
        %v675 = vadd.f32 %v586, %v671
        %v676 = vadd.f32 %v587, %v673
        %s677 = scalar_lea.vmem %s1, 160
        %v678 = vld [vmem:[%s677] sm:$0xff]
        %679 = vrot.lane.b32.xlu0 %v330, 64
        %v680 = vpop.permute.xlu0 %679
        %681 = vrot.lane.b32.xlu0 %v331, 64
        %v682 = vpop.permute.xlu0 %681
        %683 = vrot.lane.b32.xlu0 %v333, 64
        %v684 = vpop.permute.xlu0 %683
        %vm685 = vcmask 523264
        %v686 = vsel %vm685, %v680, %v682
        %v687 = vsel %vm685, %v682, %v684
        %v691 = vsel %vm350, %v678, 0
        %693 = vmatprep.subr.mxu0 %v687
        %694 = vmatpush1.msra.mxu0 %v686
        %695 = vmatprep.subr.mxu0 0.0
        %696 = vmatpush1.msra.mxu0 0.0
        %697 = vmatprep.subr.mxu0 0.0
        %698 = vmatpush1.msra.mxu0 0.0
        %699 = vmatprep.subr.mxu0 0.0
        %700 = vmatpush1.msra.mxu0 0.0
        %701 = vmatprep.subr.mxu0 0.0
        %702 = vmatpush1.msra.mxu0 0.0
        %703 = vmatprep.subr.mxu0 0.0
        %704 = vmatpush1.msra.mxu0 0.0
        %705 = vmatprep.subr.mxu0 0.0
        %706 = vmatpush1.msra.mxu0 0.0
        %707 = vmatprep.subr.mxu0 0.0
        %708 = vmatpush1.msra.mxu0 0.0
        %709 = vmatprep.subr.mxu0 0.0
        %710 = vmatpush1.msra.mxu0 0.0
        %711 = vmatprep.subr.mxu0 0.0
        %712 = vmatpush1.msra.mxu0 0.0
        %713 = vmatprep.subr.mxu0 0.0
        %714 = vmatpush1.msra.mxu0 0.0
        %715 = vmatprep.subr.mxu0 0.0
        %716 = vmatpush1.msra.mxu0 0.0
        %717 = vmatprep.subr.mxu0 0.0
        %718 = vmatpush1.msra.mxu0 0.0
        %719 = vmatprep.subr.mxu0 0.0
        %720 = vmatpush1.msra.mxu0 0.0
        %721 = vmatprep.subr.mxu0 0.0
        %722 = vmatpush1.msra.mxu0 0.0
        %723 = vmatprep.subr.mxu0 0.0
        %724 = vmatpush1.msra.mxu0 0.0
        %725 = vmatprep.subr.mxu0 0.0
        %726 = vmatpush1.msra.mxu0 0.0
        %727 = vmatprep.subr.mxu0 0.0
        %728 = vmatpush1.msra.mxu0 0.0
        %729 = vmatprep.subr.mxu0 0.0
        %730 = vmatpush1.msra.mxu0 0.0
        %731 = vmatprep.subr.mxu0 0.0
        %732 = vmatpush1.msra.mxu0 0.0
        %733 = vmatprep.subr.mxu0 0.0
        %734 = vmatpush1.msra.mxu0 0.0
        %735 = vmatprep.subr.mxu0 0.0
        %736 = vmatpush1.msra.mxu0 0.0
        %737 = vmatprep.subr.mxu0 0.0
        %738 = vmatpush1.msra.mxu0 0.0
        %739 = vmatprep.subr.mxu0 0.0
        %740 = vmatpush1.msra.mxu0 0.0
        %741 = vmatprep.subr.mxu0 0.0
        %742 = vmatpush1.msra.mxu0 0.0
        %743 = vmatprep.subr.mxu0 0.0
        %744 = vmatpush1.msra.mxu0 0.0
        %745 = vmatprep.subr.mxu0 0.0
        %746 = vmatpush1.msra.mxu0 0.0
        %747 = vmatprep.subr.mxu0 0.0
        %748 = vmatpush1.msra.mxu0 0.0
        %749 = vmatprep.subr.mxu0 0.0
        %750 = vmatpush1.msra.mxu0 0.0
        %751 = vmatprep.subr.mxu0 0.0
        %752 = vmatpush1.msra.mxu0 0.0
        %753 = vmatprep.subr.mxu0 0.0
        %754 = vmatpush1.msra.mxu0 0.0
        %755 = vmatprep.subr.mxu0 0.0
        %756 = vmatpush1.msra.mxu0 0.0
        %757 = vmatprep.mubr.f32.mxu0 0.0
        %758 = vmatmul.mubr.f32.gmra.mrb[0].mxu0 %v691
        %v759 = vpop.f32.mrb[0].mxu0
        %v760 = vadd.f32 0.0, %v759
        %v761 = vpop.f32.mrb[0].mxu0
        %v762 = vadd.f32 0.0, %v761
        %763 = vdwg.mxu0
        %v764 = vadd.f32 %v675, %v760
        %v765 = vadd.f32 %v676, %v762
        %v766 = vadd.s32 %v328, 4294967294
        %v767 = vadd.s32 %v329, 4294967294
        %vm768 = vcmp.ge.s32.totalorder %v766, 0
        %vm769 = vcmp.ge.s32.totalorder %v767, 0
        %vm770 = vcmp.lt.s32.totalorder %v766, 16
        %vm771 = vcmp.lt.s32.totalorder %v767, 16
        %vm772 = vmand %vm768, %vm770
        %vm773 = vmand %vm769, %vm771
        %v774 = vsel %vm772, 1, 0
        %v775 = vsel %vm773, 1, 0
        %v776 = vcvt.s32.f32 %v774
        %v777 = vcvt.s32.f32 %v775
        %v778 = vmul.f32 %v764, %v776
        %v779 = vmul.f32 %v765, %v777
        %v780 = vadd.f32 %v778, 0.0
        %v781 = vadd.f32 %v779, 0.0
        %s782 = scalar_lea.vmem %s1, 8
        %v783 = vld [vmem:[%s782] sm:$0xff]
        %s784 = scalar_lea.vmem %s1, 48
        %v785 = vld [vmem:[%s784] sm:$0xff]
        %786 = vrot.lane.b32.xlu0 %v330, 111
        %v787 = vpop.permute.xlu0 %786
        %788 = vrot.lane.b32.xlu0 %v331, 111
        %v789 = vpop.permute.xlu0 %788
        %790 = vrot.lane.b32.xlu0 %v333, 111
        %v791 = vpop.permute.xlu0 %790
        %vm792 = vcmask 908288
        %v793 = vsel %vm792, %v787, %v789
        %v794 = vsel %vm792, %v789, %v791
        %v798 = vsel %vm350, %v785, 0
        %800 = vmatprep.subr.mxu0 %v794
        %801 = vmatpush1.msra.mxu0 %v793
        %802 = vmatprep.subr.mxu0 0.0
        %803 = vmatpush1.msra.mxu0 0.0
        %804 = vmatprep.subr.mxu0 0.0
        %805 = vmatpush1.msra.mxu0 0.0
        %806 = vmatprep.subr.mxu0 0.0
        %807 = vmatpush1.msra.mxu0 0.0
        %808 = vmatprep.subr.mxu0 0.0
        %809 = vmatpush1.msra.mxu0 0.0
        %810 = vmatprep.subr.mxu0 0.0
        %811 = vmatpush1.msra.mxu0 0.0
        %812 = vmatprep.subr.mxu0 0.0
        %813 = vmatpush1.msra.mxu0 0.0
        %814 = vmatprep.subr.mxu0 0.0
        %815 = vmatpush1.msra.mxu0 0.0
        %816 = vmatprep.subr.mxu0 0.0
        %817 = vmatpush1.msra.mxu0 0.0
        %818 = vmatprep.subr.mxu0 0.0
        %819 = vmatpush1.msra.mxu0 0.0
        %820 = vmatprep.subr.mxu0 0.0
        %821 = vmatpush1.msra.mxu0 0.0
        %822 = vmatprep.subr.mxu0 0.0
        %823 = vmatpush1.msra.mxu0 0.0
        %824 = vmatprep.subr.mxu0 0.0
        %825 = vmatpush1.msra.mxu0 0.0
        %826 = vmatprep.subr.mxu0 0.0
        %827 = vmatpush1.msra.mxu0 0.0
        %828 = vmatprep.subr.mxu0 0.0
        %829 = vmatpush1.msra.mxu0 0.0
        %830 = vmatprep.subr.mxu0 0.0
        %831 = vmatpush1.msra.mxu0 0.0
        %832 = vmatprep.subr.mxu0 0.0
        %833 = vmatpush1.msra.mxu0 0.0
        %834 = vmatprep.subr.mxu0 0.0
        %835 = vmatpush1.msra.mxu0 0.0
        %836 = vmatprep.subr.mxu0 0.0
        %837 = vmatpush1.msra.mxu0 0.0
        %838 = vmatprep.subr.mxu0 0.0
        %839 = vmatpush1.msra.mxu0 0.0
        %840 = vmatprep.subr.mxu0 0.0
        %841 = vmatpush1.msra.mxu0 0.0
        %842 = vmatprep.subr.mxu0 0.0
        %843 = vmatpush1.msra.mxu0 0.0
        %844 = vmatprep.subr.mxu0 0.0
        %845 = vmatpush1.msra.mxu0 0.0
        %846 = vmatprep.subr.mxu0 0.0
        %847 = vmatpush1.msra.mxu0 0.0
        %848 = vmatprep.subr.mxu0 0.0
        %849 = vmatpush1.msra.mxu0 0.0
        %850 = vmatprep.subr.mxu0 0.0
        %851 = vmatpush1.msra.mxu0 0.0
        %852 = vmatprep.subr.mxu0 0.0
        %853 = vmatpush1.msra.mxu0 0.0
        %854 = vmatprep.subr.mxu0 0.0
        %855 = vmatpush1.msra.mxu0 0.0
        %856 = vmatprep.subr.mxu0 0.0
        %857 = vmatpush1.msra.mxu0 0.0
        %858 = vmatprep.subr.mxu0 0.0
        %859 = vmatpush1.msra.mxu0 0.0
        %860 = vmatprep.subr.mxu0 0.0
        %861 = vmatpush1.msra.mxu0 0.0
        %862 = vmatprep.subr.mxu0 0.0
        %863 = vmatpush1.msra.mxu0 0.0
        %864 = vmatprep.mubr.f32.mxu0 0.0
        %865 = vmatmul.mubr.f32.gmra.mrb[0].mxu0 %v798
        %v866 = vpop.f32.mrb[0].mxu0
        %v867 = vadd.f32 0.0, %v866
        %v868 = vpop.f32.mrb[0].mxu0
        %v869 = vadd.f32 0.0, %v868
        %870 = vdwg.mxu0
        %871 = vrot.lane.b32.xlu0 %v330, 127
        %v872 = vpop.permute.xlu0 %871
        %873 = vrot.lane.b32.xlu0 %v331, 127
        %v874 = vpop.permute.xlu0 %873
        %875 = vrot.lane.b32.xlu0 %v333, 127
        %v876 = vpop.permute.xlu0 %875
        %vm877 = vcmask 1039360
        %v878 = vsel %vm877, %v872, %v874
        %v879 = vsel %vm877, %v874, %v876
        %v883 = vsel %vm350, %v783, 0
        %885 = vmatprep.subr.mxu0 %v879
        %886 = vmatpush1.msra.mxu0 %v878
        %887 = vmatprep.subr.mxu0 0.0
        %888 = vmatpush1.msra.mxu0 0.0
        %889 = vmatprep.subr.mxu0 0.0
        %890 = vmatpush1.msra.mxu0 0.0
        %891 = vmatprep.subr.mxu0 0.0
        %892 = vmatpush1.msra.mxu0 0.0
        %893 = vmatprep.subr.mxu0 0.0
        %894 = vmatpush1.msra.mxu0 0.0
        %895 = vmatprep.subr.mxu0 0.0
        %896 = vmatpush1.msra.mxu0 0.0
        %897 = vmatprep.subr.mxu0 0.0
        %898 = vmatpush1.msra.mxu0 0.0
        %899 = vmatprep.subr.mxu0 0.0
        %900 = vmatpush1.msra.mxu0 0.0
        %901 = vmatprep.subr.mxu0 0.0
        %902 = vmatpush1.msra.mxu0 0.0
        %903 = vmatprep.subr.mxu0 0.0
        %904 = vmatpush1.msra.mxu0 0.0
        %905 = vmatprep.subr.mxu0 0.0
        %906 = vmatpush1.msra.mxu0 0.0
        %907 = vmatprep.subr.mxu0 0.0
        %908 = vmatpush1.msra.mxu0 0.0
        %909 = vmatprep.subr.mxu0 0.0
        %910 = vmatpush1.msra.mxu0 0.0
        %911 = vmatprep.subr.mxu0 0.0
        %912 = vmatpush1.msra.mxu0 0.0
        %913 = vmatprep.subr.mxu0 0.0
        %914 = vmatpush1.msra.mxu0 0.0
        %915 = vmatprep.subr.mxu0 0.0
        %916 = vmatpush1.msra.mxu0 0.0
        %917 = vmatprep.subr.mxu0 0.0
        %918 = vmatpush1.msra.mxu0 0.0
        %919 = vmatprep.subr.mxu0 0.0
        %920 = vmatpush1.msra.mxu0 0.0
        %921 = vmatprep.subr.mxu0 0.0
        %922 = vmatpush1.msra.mxu0 0.0
        %923 = vmatprep.subr.mxu0 0.0
        %924 = vmatpush1.msra.mxu0 0.0
        %925 = vmatprep.subr.mxu0 0.0
        %926 = vmatpush1.msra.mxu0 0.0
        %927 = vmatprep.subr.mxu0 0.0
        %928 = vmatpush1.msra.mxu0 0.0
        %929 = vmatprep.subr.mxu0 0.0
        %930 = vmatpush1.msra.mxu0 0.0
        %931 = vmatprep.subr.mxu0 0.0
        %932 = vmatpush1.msra.mxu0 0.0
        %933 = vmatprep.subr.mxu0 0.0
        %934 = vmatpush1.msra.mxu0 0.0
        %935 = vmatprep.subr.mxu0 0.0
        %936 = vmatpush1.msra.mxu0 0.0
        %937 = vmatprep.subr.mxu0 0.0
        %938 = vmatpush1.msra.mxu0 0.0
        %939 = vmatprep.subr.mxu0 0.0
        %940 = vmatpush1.msra.mxu0 0.0
        %941 = vmatprep.subr.mxu0 0.0
        %942 = vmatpush1.msra.mxu0 0.0
        %943 = vmatprep.subr.mxu0 0.0
        %944 = vmatpush1.msra.mxu0 0.0
        %945 = vmatprep.subr.mxu0 0.0
        %946 = vmatpush1.msra.mxu0 0.0
        %947 = vmatprep.subr.mxu0 0.0
        %948 = vmatpush1.msra.mxu0 0.0
        %949 = vmatprep.mubr.f32.mxu0 0.0
        %950 = vmatmul.mubr.f32.gmra.mrb[0].mxu0 %v883
        %v951 = vpop.f32.mrb[0].mxu0
        %v952 = vadd.f32 %v867, %v951
        %v953 = vpop.f32.mrb[0].mxu0
        %v954 = vadd.f32 %v869, %v953
        %955 = vdwg.mxu0
        %s956 = scalar_lea.vmem %s1, 88
        %v957 = vld [vmem:[%s956] sm:$0xff]
        %958 = vrot.lane.b32.xlu0 %v330, 95
        %v959 = vpop.permute.xlu0 %958
        %960 = vrot.lane.b32.xlu0 %v331, 95
        %v961 = vpop.permute.xlu0 %960
        %962 = vrot.lane.b32.xlu0 %v333, 95
        %v963 = vpop.permute.xlu0 %962
        %vm964 = vcmask 777216
        %v965 = vsel %vm964, %v959, %v961
        %v966 = vsel %vm964, %v961, %v963
        %v970 = vsel %vm350, %v957, 0
        %972 = vmatprep.subr.mxu0 %v966
        %973 = vmatpush1.msra.mxu0 %v965
        %974 = vmatprep.subr.mxu0 0.0
        %975 = vmatpush1.msra.mxu0 0.0
        %976 = vmatprep.subr.mxu0 0.0
        %977 = vmatpush1.msra.mxu0 0.0
        %978 = vmatprep.subr.mxu0 0.0
        %979 = vmatpush1.msra.mxu0 0.0
        %980 = vmatprep.subr.mxu0 0.0
        %981 = vmatpush1.msra.mxu0 0.0
        %982 = vmatprep.subr.mxu0 0.0
        %983 = vmatpush1.msra.mxu0 0.0
        %984 = vmatprep.subr.mxu0 0.0
        %985 = vmatpush1.msra.mxu0 0.0
        %986 = vmatprep.subr.mxu0 0.0
        %987 = vmatpush1.msra.mxu0 0.0
        %988 = vmatprep.subr.mxu0 0.0
        %989 = vmatpush1.msra.mxu0 0.0
        %990 = vmatprep.subr.mxu0 0.0
        %991 = vmatpush1.msra.mxu0 0.0
        %992 = vmatprep.subr.mxu0 0.0
        %993 = vmatpush1.msra.mxu0 0.0
        %994 = vmatprep.subr.mxu0 0.0
        %995 = vmatpush1.msra.mxu0 0.0
        %996 = vmatprep.subr.mxu0 0.0
        %997 = vmatpush1.msra.mxu0 0.0
        %998 = vmatprep.subr.mxu0 0.0
        %999 = vmatpush1.msra.mxu0 0.0
        %1000 = vmatprep.subr.mxu0 0.0
        %1001 = vmatpush1.msra.mxu0 0.0
        %1002 = vmatprep.subr.mxu0 0.0
        %1003 = vmatpush1.msra.mxu0 0.0
        %1004 = vmatprep.subr.mxu0 0.0
        %1005 = vmatpush1.msra.mxu0 0.0
        %1006 = vmatprep.subr.mxu0 0.0
        %1007 = vmatpush1.msra.mxu0 0.0
        %1008 = vmatprep.subr.mxu0 0.0
        %1009 = vmatpush1.msra.mxu0 0.0
        %1010 = vmatprep.subr.mxu0 0.0
        %1011 = vmatpush1.msra.mxu0 0.0
        %1012 = vmatprep.subr.mxu0 0.0
        %1013 = vmatpush1.msra.mxu0 0.0
        %1014 = vmatprep.subr.mxu0 0.0
        %1015 = vmatpush1.msra.mxu0 0.0
        %1016 = vmatprep.subr.mxu0 0.0
        %1017 = vmatpush1.msra.mxu0 0.0
        %1018 = vmatprep.subr.mxu0 0.0
        %1019 = vmatpush1.msra.mxu0 0.0
        %1020 = vmatprep.subr.mxu0 0.0
        %1021 = vmatpush1.msra.mxu0 0.0
        %1022 = vmatprep.subr.mxu0 0.0
        %1023 = vmatpush1.msra.mxu0 0.0
        %1024 = vmatprep.subr.mxu0 0.0
        %1025 = vmatpush1.msra.mxu0 0.0
        %1026 = vmatprep.subr.mxu0 0.0
        %1027 = vmatpush1.msra.mxu0 0.0
        %1028 = vmatprep.subr.mxu0 0.0
        %1029 = vmatpush1.msra.mxu0 0.0
        %1030 = vmatprep.subr.mxu0 0.0
        %1031 = vmatpush1.msra.mxu0 0.0
        %1032 = vmatprep.subr.mxu0 0.0
        %1033 = vmatpush1.msra.mxu0 0.0
        %1034 = vmatprep.subr.mxu0 0.0
        %1035 = vmatpush1.msra.mxu0 0.0
        %1036 = vmatprep.mubr.f32.mxu0 0.0
        %1037 = vmatmul.mubr.f32.gmra.mrb[0].mxu0 %v970
        %v1038 = vpop.f32.mrb[0].mxu0
        %v1039 = vadd.f32 0.0, %v1038
        %v1040 = vpop.f32.mrb[0].mxu0
        %v1041 = vadd.f32 0.0, %v1040
        %1042 = vdwg.mxu0
        %v1043 = vadd.f32 %v952, %v1039
        %v1044 = vadd.f32 %v954, %v1041
        %s1045 = scalar_lea.vmem %s1, 128
        %v1046 = vld [vmem:[%s1045] sm:$0xff]
        %1047 = vrot.lane.b32.xlu0 %v330, 79
        %v1048 = vpop.permute.xlu0 %1047
        %1049 = vrot.lane.b32.xlu0 %v331, 79
        %v1050 = vpop.permute.xlu0 %1049
        %1051 = vrot.lane.b32.xlu0 %v333, 79
        %v1052 = vpop.permute.xlu0 %1051
        %vm1053 = vcmask 646144
        %v1054 = vsel %vm1053, %v1048, %v1050
        %v1055 = vsel %vm1053, %v1050, %v1052
        %v1059 = vsel %vm350, %v1046, 0
        %1061 = vmatprep.subr.mxu0 %v1055
        %1062 = vmatpush1.msra.mxu0 %v1054
        %1063 = vmatprep.subr.mxu0 0.0
        %1064 = vmatpush1.msra.mxu0 0.0
        %1065 = vmatprep.subr.mxu0 0.0
        %1066 = vmatpush1.msra.mxu0 0.0
        %1067 = vmatprep.subr.mxu0 0.0
        %1068 = vmatpush1.msra.mxu0 0.0
        %1069 = vmatprep.subr.mxu0 0.0
        %1070 = vmatpush1.msra.mxu0 0.0
        %1071 = vmatprep.subr.mxu0 0.0
        %1072 = vmatpush1.msra.mxu0 0.0
        %1073 = vmatprep.subr.mxu0 0.0
        %1074 = vmatpush1.msra.mxu0 0.0
        %1075 = vmatprep.subr.mxu0 0.0
        %1076 = vmatpush1.msra.mxu0 0.0
        %1077 = vmatprep.subr.mxu0 0.0
        %1078 = vmatpush1.msra.mxu0 0.0
        %1079 = vmatprep.subr.mxu0 0.0
        %1080 = vmatpush1.msra.mxu0 0.0
        %1081 = vmatprep.subr.mxu0 0.0
        %1082 = vmatpush1.msra.mxu0 0.0
        %1083 = vmatprep.subr.mxu0 0.0
        %1084 = vmatpush1.msra.mxu0 0.0
        %1085 = vmatprep.subr.mxu0 0.0
        %1086 = vmatpush1.msra.mxu0 0.0
        %1087 = vmatprep.subr.mxu0 0.0
        %1088 = vmatpush1.msra.mxu0 0.0
        %1089 = vmatprep.subr.mxu0 0.0
        %1090 = vmatpush1.msra.mxu0 0.0
        %1091 = vmatprep.subr.mxu0 0.0
        %1092 = vmatpush1.msra.mxu0 0.0
        %1093 = vmatprep.subr.mxu0 0.0
        %1094 = vmatpush1.msra.mxu0 0.0
        %1095 = vmatprep.subr.mxu0 0.0
        %1096 = vmatpush1.msra.mxu0 0.0
        %1097 = vmatprep.subr.mxu0 0.0
        %1098 = vmatpush1.msra.mxu0 0.0
        %1099 = vmatprep.subr.mxu0 0.0
        %1100 = vmatpush1.msra.mxu0 0.0
        %1101 = vmatprep.subr.mxu0 0.0
        %1102 = vmatpush1.msra.mxu0 0.0
        %1103 = vmatprep.subr.mxu0 0.0
        %1104 = vmatpush1.msra.mxu0 0.0
        %1105 = vmatprep.subr.mxu0 0.0
        %1106 = vmatpush1.msra.mxu0 0.0
        %1107 = vmatprep.subr.mxu0 0.0
        %1108 = vmatpush1.msra.mxu0 0.0
        %1109 = vmatprep.subr.mxu0 0.0
        %1110 = vmatpush1.msra.mxu0 0.0
        %1111 = vmatprep.subr.mxu0 0.0
        %1112 = vmatpush1.msra.mxu0 0.0
        %1113 = vmatprep.subr.mxu0 0.0
        %1114 = vmatpush1.msra.mxu0 0.0
        %1115 = vmatprep.subr.mxu0 0.0
        %1116 = vmatpush1.msra.mxu0 0.0
        %1117 = vmatprep.subr.mxu0 0.0
        %1118 = vmatpush1.msra.mxu0 0.0
        %1119 = vmatprep.subr.mxu0 0.0
        %1120 = vmatpush1.msra.mxu0 0.0
        %1121 = vmatprep.subr.mxu0 0.0
        %1122 = vmatpush1.msra.mxu0 0.0
        %1123 = vmatprep.subr.mxu0 0.0
        %1124 = vmatpush1.msra.mxu0 0.0
        %1125 = vmatprep.mubr.f32.mxu0 0.0
        %1126 = vmatmul.mubr.f32.gmra.mrb[0].mxu0 %v1059
        %v1127 = vpop.f32.mrb[0].mxu0
        %v1128 = vadd.f32 0.0, %v1127
        %v1129 = vpop.f32.mrb[0].mxu0
        %v1130 = vadd.f32 0.0, %v1129
        %1131 = vdwg.mxu0
        %v1132 = vadd.f32 %v1043, %v1128
        %v1133 = vadd.f32 %v1044, %v1130
        %s1134 = scalar_lea.vmem %s1, 168
        %v1135 = vld [vmem:[%s1134] sm:$0xff]
        %1136 = vrot.lane.b32.xlu0 %v330, 63
        %v1137 = vpop.permute.xlu0 %1136
        %1138 = vrot.lane.b32.xlu0 %v331, 63
        %v1139 = vpop.permute.xlu0 %1138
        %1140 = vrot.lane.b32.xlu0 %v333, 63
        %v1141 = vpop.permute.xlu0 %1140
        %vm1142 = vcmask 515072
        %v1143 = vsel %vm1142, %v1137, %v1139
        %v1144 = vsel %vm1142, %v1139, %v1141
        %v1148 = vsel %vm350, %v1135, 0
        %1150 = vmatprep.subr.mxu0 %v1144
        %1151 = vmatpush1.msra.mxu0 %v1143
        %1152 = vmatprep.subr.mxu0 0.0
        %1153 = vmatpush1.msra.mxu0 0.0
        %1154 = vmatprep.subr.mxu0 0.0
        %1155 = vmatpush1.msra.mxu0 0.0
        %1156 = vmatprep.subr.mxu0 0.0
        %1157 = vmatpush1.msra.mxu0 0.0
        %1158 = vmatprep.subr.mxu0 0.0
        %1159 = vmatpush1.msra.mxu0 0.0
        %1160 = vmatprep.subr.mxu0 0.0
        %1161 = vmatpush1.msra.mxu0 0.0
        %1162 = vmatprep.subr.mxu0 0.0
        %1163 = vmatpush1.msra.mxu0 0.0
        %1164 = vmatprep.subr.mxu0 0.0
        %1165 = vmatpush1.msra.mxu0 0.0
        %1166 = vmatprep.subr.mxu0 0.0
        %1167 = vmatpush1.msra.mxu0 0.0
        %1168 = vmatprep.subr.mxu0 0.0
        %1169 = vmatpush1.msra.mxu0 0.0
        %1170 = vmatprep.subr.mxu0 0.0
        %1171 = vmatpush1.msra.mxu0 0.0
        %1172 = vmatprep.subr.mxu0 0.0
        %1173 = vmatpush1.msra.mxu0 0.0
        %1174 = vmatprep.subr.mxu0 0.0
        %1175 = vmatpush1.msra.mxu0 0.0
        %1176 = vmatprep.subr.mxu0 0.0
        %1177 = vmatpush1.msra.mxu0 0.0
        %1178 = vmatprep.subr.mxu0 0.0
        %1179 = vmatpush1.msra.mxu0 0.0
        %1180 = vmatprep.subr.mxu0 0.0
        %1181 = vmatpush1.msra.mxu0 0.0
        %1182 = vmatprep.subr.mxu0 0.0
        %1183 = vmatpush1.msra.mxu0 0.0
        %1184 = vmatprep.subr.mxu0 0.0
        %1185 = vmatpush1.msra.mxu0 0.0
        %1186 = vmatprep.subr.mxu0 0.0
        %1187 = vmatpush1.msra.mxu0 0.0
        %1188 = vmatprep.subr.mxu0 0.0
        %1189 = vmatpush1.msra.mxu0 0.0
        %1190 = vmatprep.subr.mxu0 0.0
        %1191 = vmatpush1.msra.mxu0 0.0
        %1192 = vmatprep.subr.mxu0 0.0
        %1193 = vmatpush1.msra.mxu0 0.0
        %1194 = vmatprep.subr.mxu0 0.0
        %1195 = vmatpush1.msra.mxu0 0.0
        %1196 = vmatprep.subr.mxu0 0.0
        %1197 = vmatpush1.msra.mxu0 0.0
        %1198 = vmatprep.subr.mxu0 0.0
        %1199 = vmatpush1.msra.mxu0 0.0
        %1200 = vmatprep.subr.mxu0 0.0
        %1201 = vmatpush1.msra.mxu0 0.0
        %1202 = vmatprep.subr.mxu0 0.0
        %1203 = vmatpush1.msra.mxu0 0.0
        %1204 = vmatprep.subr.mxu0 0.0
        %1205 = vmatpush1.msra.mxu0 0.0
        %1206 = vmatprep.subr.mxu0 0.0
        %1207 = vmatpush1.msra.mxu0 0.0
        %1208 = vmatprep.subr.mxu0 0.0
        %1209 = vmatpush1.msra.mxu0 0.0
        %1210 = vmatprep.subr.mxu0 0.0
        %1211 = vmatpush1.msra.mxu0 0.0
        %1212 = vmatprep.subr.mxu0 0.0
        %1213 = vmatpush1.msra.mxu0 0.0
        %1214 = vmatprep.mubr.f32.mxu0 0.0
        %1215 = vmatmul.mubr.f32.gmra.mrb[0].mxu0 %v1148
        %v1216 = vpop.f32.mrb[0].mxu0
        %v1217 = vadd.f32 0.0, %v1216
        %v1218 = vpop.f32.mrb[0].mxu0
        %v1219 = vadd.f32 0.0, %v1218
        %1220 = vdwg.mxu0
        %v1221 = vadd.f32 %v1132, %v1217
        %v1222 = vadd.f32 %v1133, %v1219
        %v1223 = vadd.s32 %v328, 4294967295
        %v1224 = vadd.s32 %v329, 4294967295
        %vm1225 = vcmp.ge.s32.totalorder %v1223, 0
        %vm1226 = vcmp.ge.s32.totalorder %v1224, 0
        %vm1227 = vcmp.lt.s32.totalorder %v1223, 16
        %vm1228 = vcmp.lt.s32.totalorder %v1224, 16
        %vm1229 = vmand %vm1225, %vm1227
        %vm1230 = vmand %vm1226, %vm1228
        %v1231 = vsel %vm1229, 1, 0
        %v1232 = vsel %vm1230, 1, 0
        %v1233 = vcvt.s32.f32 %v1231
        %v1234 = vcvt.s32.f32 %v1232
        %v1235 = vmul.f32 %v1221, %v1233
        %v1236 = vmul.f32 %v1222, %v1234
        %v1237 = vadd.f32 %v780, %v1235
        %v1238 = vadd.f32 %v781, %v1236
        %s1239 = scalar_lea.vmem %s1, 16
        %v1240 = vld [vmem:[%s1239] sm:$0xff]
        %s1241 = scalar_lea.vmem %s1, 56
        %v1242 = vld [vmem:[%s1241] sm:$0xff]
        %1243 = vrot.lane.b32.xlu0 %v330, 110
        %v1244 = vpop.permute.xlu0 %1243
        %1245 = vrot.lane.b32.xlu0 %v331, 110
        %v1246 = vpop.permute.xlu0 %1245
        %1247 = vrot.lane.b32.xlu0 %v333, 110
        %v1248 = vpop.permute.xlu0 %1247
        %vm1249 = vcmask 900096
        %v1250 = vsel %vm1249, %v1244, %v1246
        %v1251 = vsel %vm1249, %v1246, %v1248
        %v1255 = vsel %vm350, %v1242, 0
        %1257 = vmatprep.subr.mxu0 %v1251
        %1258 = vmatpush1.msra.mxu0 %v1250
        %1259 = vmatprep.subr.mxu0 0.0
        %1260 = vmatpush1.msra.mxu0 0.0
        %1261 = vmatprep.subr.mxu0 0.0
        %1262 = vmatpush1.msra.mxu0 0.0
        %1263 = vmatprep.subr.mxu0 0.0
        %1264 = vmatpush1.msra.mxu0 0.0
        %1265 = vmatprep.subr.mxu0 0.0
        %1266 = vmatpush1.msra.mxu0 0.0
        %1267 = vmatprep.subr.mxu0 0.0
        %1268 = vmatpush1.msra.mxu0 0.0
        %1269 = vmatprep.subr.mxu0 0.0
        %1270 = vmatpush1.msra.mxu0 0.0
        %1271 = vmatprep.subr.mxu0 0.0
        %1272 = vmatpush1.msra.mxu0 0.0
        %1273 = vmatprep.subr.mxu0 0.0
        %1274 = vmatpush1.msra.mxu0 0.0
        %1275 = vmatprep.subr.mxu0 0.0
        %1276 = vmatpush1.msra.mxu0 0.0
        %1277 = vmatprep.subr.mxu0 0.0
        %1278 = vmatpush1.msra.mxu0 0.0
        %1279 = vmatprep.subr.mxu0 0.0
        %1280 = vmatpush1.msra.mxu0 0.0
        %1281 = vmatprep.subr.mxu0 0.0
        %1282 = vmatpush1.msra.mxu0 0.0
        %1283 = vmatprep.subr.mxu0 0.0
        %1284 = vmatpush1.msra.mxu0 0.0
        %1285 = vmatprep.subr.mxu0 0.0
        %1286 = vmatpush1.msra.mxu0 0.0
        %1287 = vmatprep.subr.mxu0 0.0
        %1288 = vmatpush1.msra.mxu0 0.0
        %1289 = vmatprep.subr.mxu0 0.0
        %1290 = vmatpush1.msra.mxu0 0.0
        %1291 = vmatprep.subr.mxu0 0.0
        %1292 = vmatpush1.msra.mxu0 0.0
        %1293 = vmatprep.subr.mxu0 0.0
        %1294 = vmatpush1.msra.mxu0 0.0
        %1295 = vmatprep.subr.mxu0 0.0
        %1296 = vmatpush1.msra.mxu0 0.0
        %1297 = vmatprep.subr.mxu0 0.0
        %1298 = vmatpush1.msra.mxu0 0.0
        %1299 = vmatprep.subr.mxu0 0.0
        %1300 = vmatpush1.msra.mxu0 0.0
        %1301 = vmatprep.subr.mxu0 0.0
        %1302 = vmatpush1.msra.mxu0 0.0
        %1303 = vmatprep.subr.mxu0 0.0
        %1304 = vmatpush1.msra.mxu0 0.0
        %1305 = vmatprep.subr.mxu0 0.0
        %1306 = vmatpush1.msra.mxu0 0.0
        %1307 = vmatprep.subr.mxu0 0.0
        %1308 = vmatpush1.msra.mxu0 0.0
        %1309 = vmatprep.subr.mxu0 0.0
        %1310 = vmatpush1.msra.mxu0 0.0
        %1311 = vmatprep.subr.mxu0 0.0
        %1312 = vmatpush1.msra.mxu0 0.0
        %1313 = vmatprep.subr.mxu0 0.0
        %1314 = vmatpush1.msra.mxu0 0.0
        %1315 = vmatprep.subr.mxu0 0.0
        %1316 = vmatpush1.msra.mxu0 0.0
        %1317 = vmatprep.subr.mxu0 0.0
        %1318 = vmatpush1.msra.mxu0 0.0
        %1319 = vmatprep.subr.mxu0 0.0
        %1320 = vmatpush1.msra.mxu0 0.0
        %1321 = vmatprep.mubr.f32.mxu0 0.0
        %1322 = vmatmul.mubr.f32.gmra.mrb[0].mxu0 %v1255
        %v1323 = vpop.f32.mrb[0].mxu0
        %v1324 = vadd.f32 0.0, %v1323
        %v1325 = vpop.f32.mrb[0].mxu0
        %v1326 = vadd.f32 0.0, %v1325
        %1327 = vdwg.mxu0
        %1328 = vrot.lane.b32.xlu0 %v330, 126
        %v1329 = vpop.permute.xlu0 %1328
        %1330 = vrot.lane.b32.xlu0 %v331, 126
        %v1331 = vpop.permute.xlu0 %1330
        %1332 = vrot.lane.b32.xlu0 %v333, 126
        %v1333 = vpop.permute.xlu0 %1332
        %vm1334 = vcmask 1031168
        %v1335 = vsel %vm1334, %v1329, %v1331
        %v1336 = vsel %vm1334, %v1331, %v1333
        %v1340 = vsel %vm350, %v1240, 0
        %1342 = vmatprep.subr.mxu0 %v1336
        %1343 = vmatpush1.msra.mxu0 %v1335
        %1344 = vmatprep.subr.mxu0 0.0
        %1345 = vmatpush1.msra.mxu0 0.0
        %1346 = vmatprep.subr.mxu0 0.0
        %1347 = vmatpush1.msra.mxu0 0.0
        %1348 = vmatprep.subr.mxu0 0.0
        %1349 = vmatpush1.msra.mxu0 0.0
        %1350 = vmatprep.subr.mxu0 0.0
        %1351 = vmatpush1.msra.mxu0 0.0
        %1352 = vmatprep.subr.mxu0 0.0
        %1353 = vmatpush1.msra.mxu0 0.0
        %1354 = vmatprep.subr.mxu0 0.0
        %1355 = vmatpush1.msra.mxu0 0.0
        %1356 = vmatprep.subr.mxu0 0.0
        %1357 = vmatpush1.msra.mxu0 0.0
        %1358 = vmatprep.subr.mxu0 0.0
        %1359 = vmatpush1.msra.mxu0 0.0
        %1360 = vmatprep.subr.mxu0 0.0
        %1361 = vmatpush1.msra.mxu0 0.0
        %1362 = vmatprep.subr.mxu0 0.0
        %1363 = vmatpush1.msra.mxu0 0.0
        %1364 = vmatprep.subr.mxu0 0.0
        %1365 = vmatpush1.msra.mxu0 0.0
        %1366 = vmatprep.subr.mxu0 0.0
        %1367 = vmatpush1.msra.mxu0 0.0
        %1368 = vmatprep.subr.mxu0 0.0
        %1369 = vmatpush1.msra.mxu0 0.0
        %1370 = vmatprep.subr.mxu0 0.0
        %1371 = vmatpush1.msra.mxu0 0.0
        %1372 = vmatprep.subr.mxu0 0.0
        %1373 = vmatpush1.msra.mxu0 0.0
        %1374 = vmatprep.subr.mxu0 0.0
        %1375 = vmatpush1.msra.mxu0 0.0
        %1376 = vmatprep.subr.mxu0 0.0
        %1377 = vmatpush1.msra.mxu0 0.0
        %1378 = vmatprep.subr.mxu0 0.0
        %1379 = vmatpush1.msra.mxu0 0.0
        %1380 = vmatprep.subr.mxu0 0.0
        %1381 = vmatpush1.msra.mxu0 0.0
        %1382 = vmatprep.subr.mxu0 0.0
        %1383 = vmatpush1.msra.mxu0 0.0
        %1384 = vmatprep.subr.mxu0 0.0
        %1385 = vmatpush1.msra.mxu0 0.0
        %1386 = vmatprep.subr.mxu0 0.0
        %1387 = vmatpush1.msra.mxu0 0.0
        %1388 = vmatprep.subr.mxu0 0.0
        %1389 = vmatpush1.msra.mxu0 0.0
        %1390 = vmatprep.subr.mxu0 0.0
        %1391 = vmatpush1.msra.mxu0 0.0
        %1392 = vmatprep.subr.mxu0 0.0
        %1393 = vmatpush1.msra.mxu0 0.0
        %1394 = vmatprep.subr.mxu0 0.0
        %1395 = vmatpush1.msra.mxu0 0.0
        %1396 = vmatprep.subr.mxu0 0.0
        %1397 = vmatpush1.msra.mxu0 0.0
        %1398 = vmatprep.subr.mxu0 0.0
        %1399 = vmatpush1.msra.mxu0 0.0
        %1400 = vmatprep.subr.mxu0 0.0
        %1401 = vmatpush1.msra.mxu0 0.0
        %1402 = vmatprep.subr.mxu0 0.0
        %1403 = vmatpush1.msra.mxu0 0.0
        %1404 = vmatprep.subr.mxu0 0.0
        %1405 = vmatpush1.msra.mxu0 0.0
        %1406 = vmatprep.mubr.f32.mxu0 0.0
        %1407 = vmatmul.mubr.f32.gmra.mrb[0].mxu0 %v1340
        %v1408 = vpop.f32.mrb[0].mxu0
        %v1409 = vadd.f32 %v1324, %v1408
        %v1410 = vpop.f32.mrb[0].mxu0
        %v1411 = vadd.f32 %v1326, %v1410
        %1412 = vdwg.mxu0
        %s1413 = scalar_lea.vmem %s1, 96
        %v1414 = vld [vmem:[%s1413] sm:$0xff]
        %1415 = vrot.lane.b32.xlu0 %v330, 94
        %v1416 = vpop.permute.xlu0 %1415
        %1417 = vrot.lane.b32.xlu0 %v331, 94
        %v1418 = vpop.permute.xlu0 %1417
        %1419 = vrot.lane.b32.xlu0 %v333, 94
        %v1420 = vpop.permute.xlu0 %1419
        %vm1421 = vcmask 769024
        %v1422 = vsel %vm1421, %v1416, %v1418
        %v1423 = vsel %vm1421, %v1418, %v1420
        %v1427 = vsel %vm350, %v1414, 0
        %1429 = vmatprep.subr.mxu0 %v1423
        %1430 = vmatpush1.msra.mxu0 %v1422
        %1431 = vmatprep.subr.mxu0 0.0
        %1432 = vmatpush1.msra.mxu0 0.0
        %1433 = vmatprep.subr.mxu0 0.0
        %1434 = vmatpush1.msra.mxu0 0.0
        %1435 = vmatprep.subr.mxu0 0.0
        %1436 = vmatpush1.msra.mxu0 0.0
        %1437 = vmatprep.subr.mxu0 0.0
        %1438 = vmatpush1.msra.mxu0 0.0
        %1439 = vmatprep.subr.mxu0 0.0
        %1440 = vmatpush1.msra.mxu0 0.0
        %1441 = vmatprep.subr.mxu0 0.0
        %1442 = vmatpush1.msra.mxu0 0.0
        %1443 = vmatprep.subr.mxu0 0.0
        %1444 = vmatpush1.msra.mxu0 0.0
        %1445 = vmatprep.subr.mxu0 0.0
        %1446 = vmatpush1.msra.mxu0 0.0
        %1447 = vmatprep.subr.mxu0 0.0
        %1448 = vmatpush1.msra.mxu0 0.0
        %1449 = vmatprep.subr.mxu0 0.0
        %1450 = vmatpush1.msra.mxu0 0.0
        %1451 = vmatprep.subr.mxu0 0.0
        %1452 = vmatpush1.msra.mxu0 0.0
        %1453 = vmatprep.subr.mxu0 0.0
        %1454 = vmatpush1.msra.mxu0 0.0
        %1455 = vmatprep.subr.mxu0 0.0
        %1456 = vmatpush1.msra.mxu0 0.0
        %1457 = vmatprep.subr.mxu0 0.0
        %1458 = vmatpush1.msra.mxu0 0.0
        %1459 = vmatprep.subr.mxu0 0.0
        %1460 = vmatpush1.msra.mxu0 0.0
        %1461 = vmatprep.subr.mxu0 0.0
        %1462 = vmatpush1.msra.mxu0 0.0
        %1463 = vmatprep.subr.mxu0 0.0
        %1464 = vmatpush1.msra.mxu0 0.0
        %1465 = vmatprep.subr.mxu0 0.0
        %1466 = vmatpush1.msra.mxu0 0.0
        %1467 = vmatprep.subr.mxu0 0.0
        %1468 = vmatpush1.msra.mxu0 0.0
        %1469 = vmatprep.subr.mxu0 0.0
        %1470 = vmatpush1.msra.mxu0 0.0
        %1471 = vmatprep.subr.mxu0 0.0
        %1472 = vmatpush1.msra.mxu0 0.0
        %1473 = vmatprep.subr.mxu0 0.0
        %1474 = vmatpush1.msra.mxu0 0.0
        %1475 = vmatprep.subr.mxu0 0.0
        %1476 = vmatpush1.msra.mxu0 0.0
        %1477 = vmatprep.subr.mxu0 0.0
        %1478 = vmatpush1.msra.mxu0 0.0
        %1479 = vmatprep.subr.mxu0 0.0
        %1480 = vmatpush1.msra.mxu0 0.0
        %1481 = vmatprep.subr.mxu0 0.0
        %1482 = vmatpush1.msra.mxu0 0.0
        %1483 = vmatprep.subr.mxu0 0.0
        %1484 = vmatpush1.msra.mxu0 0.0
        %1485 = vmatprep.subr.mxu0 0.0
        %1486 = vmatpush1.msra.mxu0 0.0
        %1487 = vmatprep.subr.mxu0 0.0
        %1488 = vmatpush1.msra.mxu0 0.0
        %1489 = vmatprep.subr.mxu0 0.0
        %1490 = vmatpush1.msra.mxu0 0.0
        %1491 = vmatprep.subr.mxu0 0.0
        %1492 = vmatpush1.msra.mxu0 0.0
        %1493 = vmatprep.mubr.f32.mxu0 0.0
        %1494 = vmatmul.mubr.f32.gmra.mrb[0].mxu0 %v1427
        %v1495 = vpop.f32.mrb[0].mxu0
        %v1496 = vadd.f32 0.0, %v1495
        %v1497 = vpop.f32.mrb[0].mxu0
        %v1498 = vadd.f32 0.0, %v1497
        %1499 = vdwg.mxu0
        %v1500 = vadd.f32 %v1409, %v1496
        %v1501 = vadd.f32 %v1411, %v1498
        %s1502 = scalar_lea.vmem %s1, 136
        %v1503 = vld [vmem:[%s1502] sm:$0xff]
        %1504 = vrot.lane.b32.xlu0 %v330, 78
        %v1505 = vpop.permute.xlu0 %1504
        %1506 = vrot.lane.b32.xlu0 %v331, 78
        %v1507 = vpop.permute.xlu0 %1506
        %1508 = vrot.lane.b32.xlu0 %v333, 78
        %v1509 = vpop.permute.xlu0 %1508
        %vm1510 = vcmask 637952
        %v1511 = vsel %vm1510, %v1505, %v1507
        %v1512 = vsel %vm1510, %v1507, %v1509
        %v1516 = vsel %vm350, %v1503, 0
        %1518 = vmatprep.subr.mxu0 %v1512
        %1519 = vmatpush1.msra.mxu0 %v1511
        %1520 = vmatprep.subr.mxu0 0.0
        %1521 = vmatpush1.msra.mxu0 0.0
        %1522 = vmatprep.subr.mxu0 0.0
        %1523 = vmatpush1.msra.mxu0 0.0
        %1524 = vmatprep.subr.mxu0 0.0
        %1525 = vmatpush1.msra.mxu0 0.0
        %1526 = vmatprep.subr.mxu0 0.0
        %1527 = vmatpush1.msra.mxu0 0.0
        %1528 = vmatprep.subr.mxu0 0.0
        %1529 = vmatpush1.msra.mxu0 0.0
        %1530 = vmatprep.subr.mxu0 0.0
        %1531 = vmatpush1.msra.mxu0 0.0
        %1532 = vmatprep.subr.mxu0 0.0
        %1533 = vmatpush1.msra.mxu0 0.0
        %1534 = vmatprep.subr.mxu0 0.0
        %1535 = vmatpush1.msra.mxu0 0.0
        %1536 = vmatprep.subr.mxu0 0.0
        %1537 = vmatpush1.msra.mxu0 0.0
        %1538 = vmatprep.subr.mxu0 0.0
        %1539 = vmatpush1.msra.mxu0 0.0
        %1540 = vmatprep.subr.mxu0 0.0
        %1541 = vmatpush1.msra.mxu0 0.0
        %1542 = vmatprep.subr.mxu0 0.0
        %1543 = vmatpush1.msra.mxu0 0.0
        %1544 = vmatprep.subr.mxu0 0.0
        %1545 = vmatpush1.msra.mxu0 0.0
        %1546 = vmatprep.subr.mxu0 0.0
        %1547 = vmatpush1.msra.mxu0 0.0
        %1548 = vmatprep.subr.mxu0 0.0
        %1549 = vmatpush1.msra.mxu0 0.0
        %1550 = vmatprep.subr.mxu0 0.0
        %1551 = vmatpush1.msra.mxu0 0.0
        %1552 = vmatprep.subr.mxu0 0.0
        %1553 = vmatpush1.msra.mxu0 0.0
        %1554 = vmatprep.subr.mxu0 0.0
        %1555 = vmatpush1.msra.mxu0 0.0
        %1556 = vmatprep.subr.mxu0 0.0
        %1557 = vmatpush1.msra.mxu0 0.0
        %1558 = vmatprep.subr.mxu0 0.0
        %1559 = vmatpush1.msra.mxu0 0.0
        %1560 = vmatprep.subr.mxu0 0.0
        %1561 = vmatpush1.msra.mxu0 0.0
        %1562 = vmatprep.subr.mxu0 0.0
        %1563 = vmatpush1.msra.mxu0 0.0
        %1564 = vmatprep.subr.mxu0 0.0
        %1565 = vmatpush1.msra.mxu0 0.0
        %1566 = vmatprep.subr.mxu0 0.0
        %1567 = vmatpush1.msra.mxu0 0.0
        %1568 = vmatprep.subr.mxu0 0.0
        %1569 = vmatpush1.msra.mxu0 0.0
        %1570 = vmatprep.subr.mxu0 0.0
        %1571 = vmatpush1.msra.mxu0 0.0
        %1572 = vmatprep.subr.mxu0 0.0
        %1573 = vmatpush1.msra.mxu0 0.0
        %1574 = vmatprep.subr.mxu0 0.0
        %1575 = vmatpush1.msra.mxu0 0.0
        %1576 = vmatprep.subr.mxu0 0.0
        %1577 = vmatpush1.msra.mxu0 0.0
        %1578 = vmatprep.subr.mxu0 0.0
        %1579 = vmatpush1.msra.mxu0 0.0
        %1580 = vmatprep.subr.mxu0 0.0
        %1581 = vmatpush1.msra.mxu0 0.0
        %1582 = vmatprep.mubr.f32.mxu0 0.0
        %1583 = vmatmul.mubr.f32.gmra.mrb[0].mxu0 %v1516
        %v1584 = vpop.f32.mrb[0].mxu0
        %v1585 = vadd.f32 0.0, %v1584
        %v1586 = vpop.f32.mrb[0].mxu0
        %v1587 = vadd.f32 0.0, %v1586
        %1588 = vdwg.mxu0
        %v1589 = vadd.f32 %v1500, %v1585
        %v1590 = vadd.f32 %v1501, %v1587
        %s1591 = scalar_lea.vmem %s1, 176
        %v1592 = vld [vmem:[%s1591] sm:$0xff]
        %1593 = vrot.lane.b32.xlu0 %v330, 62
        %v1594 = vpop.permute.xlu0 %1593
        %1595 = vrot.lane.b32.xlu0 %v331, 62
        %v1596 = vpop.permute.xlu0 %1595
        %1597 = vrot.lane.b32.xlu0 %v333, 62
        %v1598 = vpop.permute.xlu0 %1597
        %vm1599 = vcmask 506880
        %v1600 = vsel %vm1599, %v1594, %v1596
        %v1601 = vsel %vm1599, %v1596, %v1598
        %v1605 = vsel %vm350, %v1592, 0
        %1607 = vmatprep.subr.mxu0 %v1601
        %1608 = vmatpush1.msra.mxu0 %v1600
        %1609 = vmatprep.subr.mxu0 0.0
        %1610 = vmatpush1.msra.mxu0 0.0
        %1611 = vmatprep.subr.mxu0 0.0
        %1612 = vmatpush1.msra.mxu0 0.0
        %1613 = vmatprep.subr.mxu0 0.0
        %1614 = vmatpush1.msra.mxu0 0.0
        %1615 = vmatprep.subr.mxu0 0.0
        %1616 = vmatpush1.msra.mxu0 0.0
        %1617 = vmatprep.subr.mxu0 0.0
        %1618 = vmatpush1.msra.mxu0 0.0
        %1619 = vmatprep.subr.mxu0 0.0
        %1620 = vmatpush1.msra.mxu0 0.0
        %1621 = vmatprep.subr.mxu0 0.0
        %1622 = vmatpush1.msra.mxu0 0.0
        %1623 = vmatprep.subr.mxu0 0.0
        %1624 = vmatpush1.msra.mxu0 0.0
        %1625 = vmatprep.subr.mxu0 0.0
        %1626 = vmatpush1.msra.mxu0 0.0
        %1627 = vmatprep.subr.mxu0 0.0
        %1628 = vmatpush1.msra.mxu0 0.0
        %1629 = vmatprep.subr.mxu0 0.0
        %1630 = vmatpush1.msra.mxu0 0.0
        %1631 = vmatprep.subr.mxu0 0.0
        %1632 = vmatpush1.msra.mxu0 0.0
        %1633 = vmatprep.subr.mxu0 0.0
        %1634 = vmatpush1.msra.mxu0 0.0
        %1635 = vmatprep.subr.mxu0 0.0
        %1636 = vmatpush1.msra.mxu0 0.0
        %1637 = vmatprep.subr.mxu0 0.0
        %1638 = vmatpush1.msra.mxu0 0.0
        %1639 = vmatprep.subr.mxu0 0.0
        %1640 = vmatpush1.msra.mxu0 0.0
        %1641 = vmatprep.subr.mxu0 0.0
        %1642 = vmatpush1.msra.mxu0 0.0
        %1643 = vmatprep.subr.mxu0 0.0
        %1644 = vmatpush1.msra.mxu0 0.0
        %1645 = vmatprep.subr.mxu0 0.0
        %1646 = vmatpush1.msra.mxu0 0.0
        %1647 = vmatprep.subr.mxu0 0.0
        %1648 = vmatpush1.msra.mxu0 0.0
        %1649 = vmatprep.subr.mxu0 0.0
        %1650 = vmatpush1.msra.mxu0 0.0
        %1651 = vmatprep.subr.mxu0 0.0
        %1652 = vmatpush1.msra.mxu0 0.0
        %1653 = vmatprep.subr.mxu0 0.0
        %1654 = vmatpush1.msra.mxu0 0.0
        %1655 = vmatprep.subr.mxu0 0.0
        %1656 = vmatpush1.msra.mxu0 0.0
        %1657 = vmatprep.subr.mxu0 0.0
        %1658 = vmatpush1.msra.mxu0 0.0
        %1659 = vmatprep.subr.mxu0 0.0
        %1660 = vmatpush1.msra.mxu0 0.0
        %1661 = vmatprep.subr.mxu0 0.0
        %1662 = vmatpush1.msra.mxu0 0.0
        %1663 = vmatprep.subr.mxu0 0.0
        %1664 = vmatpush1.msra.mxu0 0.0
        %1665 = vmatprep.subr.mxu0 0.0
        %1666 = vmatpush1.msra.mxu0 0.0
        %1667 = vmatprep.subr.mxu0 0.0
        %1668 = vmatpush1.msra.mxu0 0.0
        %1669 = vmatprep.subr.mxu0 0.0
        %1670 = vmatpush1.msra.mxu0 0.0
        %1671 = vmatprep.mubr.f32.mxu0 0.0
        %1672 = vmatmul.mubr.f32.gmra.mrb[0].mxu0 %v1605
        %v1673 = vpop.f32.mrb[0].mxu0
        %v1674 = vadd.f32 0.0, %v1673
        %v1675 = vpop.f32.mrb[0].mxu0
        %v1676 = vadd.f32 0.0, %v1675
        %1677 = vdwg.mxu0
        %v1678 = vadd.f32 %v1589, %v1674
        %v1679 = vadd.f32 %v1590, %v1676
        %v1680 = vadd.f32 %v1237, %v1678
        %v1681 = vadd.f32 %v1238, %v1679
        %s1682 = scalar_lea.vmem %s1, 24
        %v1683 = vld [vmem:[%s1682] sm:$0xff]
        %s1684 = scalar_lea.vmem %s1, 64
        %v1685 = vld [vmem:[%s1684] sm:$0xff]
        %1686 = vrot.lane.b32.xlu0 %v330, 109
        %v1687 = vpop.permute.xlu0 %1686
        %1688 = vrot.lane.b32.xlu0 %v331, 109
        %v1689 = vpop.permute.xlu0 %1688
        %1690 = vrot.lane.b32.xlu0 %v333, 109
        %v1691 = vpop.permute.xlu0 %1690
        %vm1692 = vcmask 891904
        %v1693 = vsel %vm1692, %v1687, %v1689
        %v1694 = vsel %vm1692, %v1689, %v1691
        %v1698 = vsel %vm350, %v1685, 0
        %1700 = vmatprep.subr.mxu0 %v1694
        %1701 = vmatpush1.msra.mxu0 %v1693
        %1702 = vmatprep.subr.mxu0 0.0
        %1703 = vmatpush1.msra.mxu0 0.0
        %1704 = vmatprep.subr.mxu0 0.0
        %1705 = vmatpush1.msra.mxu0 0.0
        %1706 = vmatprep.subr.mxu0 0.0
        %1707 = vmatpush1.msra.mxu0 0.0
        %1708 = vmatprep.subr.mxu0 0.0
        %1709 = vmatpush1.msra.mxu0 0.0
        %1710 = vmatprep.subr.mxu0 0.0
        %1711 = vmatpush1.msra.mxu0 0.0
        %1712 = vmatprep.subr.mxu0 0.0
        %1713 = vmatpush1.msra.mxu0 0.0
        %1714 = vmatprep.subr.mxu0 0.0
        %1715 = vmatpush1.msra.mxu0 0.0
        %1716 = vmatprep.subr.mxu0 0.0
        %1717 = vmatpush1.msra.mxu0 0.0
        %1718 = vmatprep.subr.mxu0 0.0
        %1719 = vmatpush1.msra.mxu0 0.0
        %1720 = vmatprep.subr.mxu0 0.0
        %1721 = vmatpush1.msra.mxu0 0.0
        %1722 = vmatprep.subr.mxu0 0.0
        %1723 = vmatpush1.msra.mxu0 0.0
        %1724 = vmatprep.subr.mxu0 0.0
        %1725 = vmatpush1.msra.mxu0 0.0
        %1726 = vmatprep.subr.mxu0 0.0
        %1727 = vmatpush1.msra.mxu0 0.0
        %1728 = vmatprep.subr.mxu0 0.0
        %1729 = vmatpush1.msra.mxu0 0.0
        %1730 = vmatprep.subr.mxu0 0.0
        %1731 = vmatpush1.msra.mxu0 0.0
        %1732 = vmatprep.subr.mxu0 0.0
        %1733 = vmatpush1.msra.mxu0 0.0
        %1734 = vmatprep.subr.mxu0 0.0
        %1735 = vmatpush1.msra.mxu0 0.0
        %1736 = vmatprep.subr.mxu0 0.0
        %1737 = vmatpush1.msra.mxu0 0.0
        %1738 = vmatprep.subr.mxu0 0.0
        %1739 = vmatpush1.msra.mxu0 0.0
        %1740 = vmatprep.subr.mxu0 0.0
        %1741 = vmatpush1.msra.mxu0 0.0
        %1742 = vmatprep.subr.mxu0 0.0
        %1743 = vmatpush1.msra.mxu0 0.0
        %1744 = vmatprep.subr.mxu0 0.0
        %1745 = vmatpush1.msra.mxu0 0.0
        %1746 = vmatprep.subr.mxu0 0.0
        %1747 = vmatpush1.msra.mxu0 0.0
        %1748 = vmatprep.subr.mxu0 0.0
        %1749 = vmatpush1.msra.mxu0 0.0
        %1750 = vmatprep.subr.mxu0 0.0
        %1751 = vmatpush1.msra.mxu0 0.0
        %1752 = vmatprep.subr.mxu0 0.0
        %1753 = vmatpush1.msra.mxu0 0.0
        %1754 = vmatprep.subr.mxu0 0.0
        %1755 = vmatpush1.msra.mxu0 0.0
        %1756 = vmatprep.subr.mxu0 0.0
        %1757 = vmatpush1.msra.mxu0 0.0
        %1758 = vmatprep.subr.mxu0 0.0
        %1759 = vmatpush1.msra.mxu0 0.0
        %1760 = vmatprep.subr.mxu0 0.0
        %1761 = vmatpush1.msra.mxu0 0.0
        %1762 = vmatprep.subr.mxu0 0.0
        %1763 = vmatpush1.msra.mxu0 0.0
        %1764 = vmatprep.mubr.f32.mxu0 0.0
        %1765 = vmatmul.mubr.f32.gmra.mrb[0].mxu0 %v1698
        %v1766 = vpop.f32.mrb[0].mxu0
        %v1767 = vadd.f32 0.0, %v1766
        %v1768 = vpop.f32.mrb[0].mxu0
        %v1769 = vadd.f32 0.0, %v1768
        %1770 = vdwg.mxu0
        %1771 = vrot.lane.b32.xlu0 %v330, 125
        %v1772 = vpop.permute.xlu0 %1771
        %1773 = vrot.lane.b32.xlu0 %v331, 125
        %v1774 = vpop.permute.xlu0 %1773
        %1775 = vrot.lane.b32.xlu0 %v333, 125
        %v1776 = vpop.permute.xlu0 %1775
        %vm1777 = vcmask 1022976
        %v1778 = vsel %vm1777, %v1772, %v1774
        %v1779 = vsel %vm1777, %v1774, %v1776
        %v1783 = vsel %vm350, %v1683, 0
        %1785 = vmatprep.subr.mxu0 %v1779
        %1786 = vmatpush1.msra.mxu0 %v1778
        %1787 = vmatprep.subr.mxu0 0.0
        %1788 = vmatpush1.msra.mxu0 0.0
        %1789 = vmatprep.subr.mxu0 0.0
        %1790 = vmatpush1.msra.mxu0 0.0
        %1791 = vmatprep.subr.mxu0 0.0
        %1792 = vmatpush1.msra.mxu0 0.0
        %1793 = vmatprep.subr.mxu0 0.0
        %1794 = vmatpush1.msra.mxu0 0.0
        %1795 = vmatprep.subr.mxu0 0.0
        %1796 = vmatpush1.msra.mxu0 0.0
        %1797 = vmatprep.subr.mxu0 0.0
        %1798 = vmatpush1.msra.mxu0 0.0
        %1799 = vmatprep.subr.mxu0 0.0
        %1800 = vmatpush1.msra.mxu0 0.0
        %1801 = vmatprep.subr.mxu0 0.0
        %1802 = vmatpush1.msra.mxu0 0.0
        %1803 = vmatprep.subr.mxu0 0.0
        %1804 = vmatpush1.msra.mxu0 0.0
        %1805 = vmatprep.subr.mxu0 0.0
        %1806 = vmatpush1.msra.mxu0 0.0
        %1807 = vmatprep.subr.mxu0 0.0
        %1808 = vmatpush1.msra.mxu0 0.0
        %1809 = vmatprep.subr.mxu0 0.0
        %1810 = vmatpush1.msra.mxu0 0.0
        %1811 = vmatprep.subr.mxu0 0.0
        %1812 = vmatpush1.msra.mxu0 0.0
        %1813 = vmatprep.subr.mxu0 0.0
        %1814 = vmatpush1.msra.mxu0 0.0
        %1815 = vmatprep.subr.mxu0 0.0
        %1816 = vmatpush1.msra.mxu0 0.0
        %1817 = vmatprep.subr.mxu0 0.0
        %1818 = vmatpush1.msra.mxu0 0.0
        %1819 = vmatprep.subr.mxu0 0.0
        %1820 = vmatpush1.msra.mxu0 0.0
        %1821 = vmatprep.subr.mxu0 0.0
        %1822 = vmatpush1.msra.mxu0 0.0
        %1823 = vmatprep.subr.mxu0 0.0
        %1824 = vmatpush1.msra.mxu0 0.0
        %1825 = vmatprep.subr.mxu0 0.0
        %1826 = vmatpush1.msra.mxu0 0.0
        %1827 = vmatprep.subr.mxu0 0.0
        %1828 = vmatpush1.msra.mxu0 0.0
        %1829 = vmatprep.subr.mxu0 0.0
        %1830 = vmatpush1.msra.mxu0 0.0
        %1831 = vmatprep.subr.mxu0 0.0
        %1832 = vmatpush1.msra.mxu0 0.0
        %1833 = vmatprep.subr.mxu0 0.0
        %1834 = vmatpush1.msra.mxu0 0.0
        %1835 = vmatprep.subr.mxu0 0.0
        %1836 = vmatpush1.msra.mxu0 0.0
        %1837 = vmatprep.subr.mxu0 0.0
        %1838 = vmatpush1.msra.mxu0 0.0
        %1839 = vmatprep.subr.mxu0 0.0
        %1840 = vmatpush1.msra.mxu0 0.0
        %1841 = vmatprep.subr.mxu0 0.0
        %1842 = vmatpush1.msra.mxu0 0.0
        %1843 = vmatprep.subr.mxu0 0.0
        %1844 = vmatpush1.msra.mxu0 0.0
        %1845 = vmatprep.subr.mxu0 0.0
        %1846 = vmatpush1.msra.mxu0 0.0
        %1847 = vmatprep.subr.mxu0 0.0
        %1848 = vmatpush1.msra.mxu0 0.0
        %1849 = vmatprep.mubr.f32.mxu0 0.0
        %1850 = vmatmul.mubr.f32.gmra.mrb[0].mxu0 %v1783
        %v1851 = vpop.f32.mrb[0].mxu0
        %v1852 = vadd.f32 %v1767, %v1851
        %v1853 = vpop.f32.mrb[0].mxu0
        %v1854 = vadd.f32 %v1769, %v1853
        %1855 = vdwg.mxu0
        %s1856 = scalar_lea.vmem %s1, 104
        %v1857 = vld [vmem:[%s1856] sm:$0xff]
        %1858 = vrot.lane.b32.xlu0 %v330, 93
        %v1859 = vpop.permute.xlu0 %1858
        %1860 = vrot.lane.b32.xlu0 %v331, 93
        %v1861 = vpop.permute.xlu0 %1860
        %1862 = vrot.lane.b32.xlu0 %v333, 93
        %v1863 = vpop.permute.xlu0 %1862
        %vm1864 = vcmask 760832
        %v1865 = vsel %vm1864, %v1859, %v1861
        %v1866 = vsel %vm1864, %v1861, %v1863
        %v1870 = vsel %vm350, %v1857, 0
        %1872 = vmatprep.subr.mxu0 %v1866
        %1873 = vmatpush1.msra.mxu0 %v1865
        %1874 = vmatprep.subr.mxu0 0.0
        %1875 = vmatpush1.msra.mxu0 0.0
        %1876 = vmatprep.subr.mxu0 0.0
        %1877 = vmatpush1.msra.mxu0 0.0
        %1878 = vmatprep.subr.mxu0 0.0
        %1879 = vmatpush1.msra.mxu0 0.0
        %1880 = vmatprep.subr.mxu0 0.0
        %1881 = vmatpush1.msra.mxu0 0.0
        %1882 = vmatprep.subr.mxu0 0.0
        %1883 = vmatpush1.msra.mxu0 0.0
        %1884 = vmatprep.subr.mxu0 0.0
        %1885 = vmatpush1.msra.mxu0 0.0
        %1886 = vmatprep.subr.mxu0 0.0
        %1887 = vmatpush1.msra.mxu0 0.0
        %1888 = vmatprep.subr.mxu0 0.0
        %1889 = vmatpush1.msra.mxu0 0.0
        %1890 = vmatprep.subr.mxu0 0.0
        %1891 = vmatpush1.msra.mxu0 0.0
        %1892 = vmatprep.subr.mxu0 0.0
        %1893 = vmatpush1.msra.mxu0 0.0
        %1894 = vmatprep.subr.mxu0 0.0
        %1895 = vmatpush1.msra.mxu0 0.0
        %1896 = vmatprep.subr.mxu0 0.0
        %1897 = vmatpush1.msra.mxu0 0.0
        %1898 = vmatprep.subr.mxu0 0.0
        %1899 = vmatpush1.msra.mxu0 0.0
        %1900 = vmatprep.subr.mxu0 0.0
        %1901 = vmatpush1.msra.mxu0 0.0
        %1902 = vmatprep.subr.mxu0 0.0
        %1903 = vmatpush1.msra.mxu0 0.0
        %1904 = vmatprep.subr.mxu0 0.0
        %1905 = vmatpush1.msra.mxu0 0.0
        %1906 = vmatprep.subr.mxu0 0.0
        %1907 = vmatpush1.msra.mxu0 0.0
        %1908 = vmatprep.subr.mxu0 0.0
        %1909 = vmatpush1.msra.mxu0 0.0
        %1910 = vmatprep.subr.mxu0 0.0
        %1911 = vmatpush1.msra.mxu0 0.0
        %1912 = vmatprep.subr.mxu0 0.0
        %1913 = vmatpush1.msra.mxu0 0.0
        %1914 = vmatprep.subr.mxu0 0.0
        %1915 = vmatpush1.msra.mxu0 0.0
        %1916 = vmatprep.subr.mxu0 0.0
        %1917 = vmatpush1.msra.mxu0 0.0
        %1918 = vmatprep.subr.mxu0 0.0
        %1919 = vmatpush1.msra.mxu0 0.0
        %1920 = vmatprep.subr.mxu0 0.0
        %1921 = vmatpush1.msra.mxu0 0.0
        %1922 = vmatprep.subr.mxu0 0.0
        %1923 = vmatpush1.msra.mxu0 0.0
        %1924 = vmatprep.subr.mxu0 0.0
        %1925 = vmatpush1.msra.mxu0 0.0
        %1926 = vmatprep.subr.mxu0 0.0
        %1927 = vmatpush1.msra.mxu0 0.0
        %1928 = vmatprep.subr.mxu0 0.0
        %1929 = vmatpush1.msra.mxu0 0.0
        %1930 = vmatprep.subr.mxu0 0.0
        %1931 = vmatpush1.msra.mxu0 0.0
        %1932 = vmatprep.subr.mxu0 0.0
        %1933 = vmatpush1.msra.mxu0 0.0
        %1934 = vmatprep.subr.mxu0 0.0
        %1935 = vmatpush1.msra.mxu0 0.0
        %1936 = vmatprep.mubr.f32.mxu0 0.0
        %1937 = vmatmul.mubr.f32.gmra.mrb[0].mxu0 %v1870
        %v1938 = vpop.f32.mrb[0].mxu0
        %v1939 = vadd.f32 0.0, %v1938
        %v1940 = vpop.f32.mrb[0].mxu0
        %v1941 = vadd.f32 0.0, %v1940
        %1942 = vdwg.mxu0
        %v1943 = vadd.f32 %v1852, %v1939
        %v1944 = vadd.f32 %v1854, %v1941
        %s1945 = scalar_lea.vmem %s1, 144
        %v1946 = vld [vmem:[%s1945] sm:$0xff]
        %1947 = vrot.lane.b32.xlu0 %v330, 77
        %v1948 = vpop.permute.xlu0 %1947
        %1949 = vrot.lane.b32.xlu0 %v331, 77
        %v1950 = vpop.permute.xlu0 %1949
        %1951 = vrot.lane.b32.xlu0 %v333, 77
        %v1952 = vpop.permute.xlu0 %1951
        %vm1953 = vcmask 629760
        %v1954 = vsel %vm1953, %v1948, %v1950
        %v1955 = vsel %vm1953, %v1950, %v1952
        %v1959 = vsel %vm350, %v1946, 0
        %1961 = vmatprep.subr.mxu0 %v1955
        %1962 = vmatpush1.msra.mxu0 %v1954
        %1963 = vmatprep.subr.mxu0 0.0
        %1964 = vmatpush1.msra.mxu0 0.0
        %1965 = vmatprep.subr.mxu0 0.0
        %1966 = vmatpush1.msra.mxu0 0.0
        %1967 = vmatprep.subr.mxu0 0.0
        %1968 = vmatpush1.msra.mxu0 0.0
        %1969 = vmatprep.subr.mxu0 0.0
        %1970 = vmatpush1.msra.mxu0 0.0
        %1971 = vmatprep.subr.mxu0 0.0
        %1972 = vmatpush1.msra.mxu0 0.0
        %1973 = vmatprep.subr.mxu0 0.0
        %1974 = vmatpush1.msra.mxu0 0.0
        %1975 = vmatprep.subr.mxu0 0.0
        %1976 = vmatpush1.msra.mxu0 0.0
        %1977 = vmatprep.subr.mxu0 0.0
        %1978 = vmatpush1.msra.mxu0 0.0
        %1979 = vmatprep.subr.mxu0 0.0
        %1980 = vmatpush1.msra.mxu0 0.0
        %1981 = vmatprep.subr.mxu0 0.0
        %1982 = vmatpush1.msra.mxu0 0.0
        %1983 = vmatprep.subr.mxu0 0.0
        %1984 = vmatpush1.msra.mxu0 0.0
        %1985 = vmatprep.subr.mxu0 0.0
        %1986 = vmatpush1.msra.mxu0 0.0
        %1987 = vmatprep.subr.mxu0 0.0
        %1988 = vmatpush1.msra.mxu0 0.0
        %1989 = vmatprep.subr.mxu0 0.0
        %1990 = vmatpush1.msra.mxu0 0.0
        %1991 = vmatprep.subr.mxu0 0.0
        %1992 = vmatpush1.msra.mxu0 0.0
        %1993 = vmatprep.subr.mxu0 0.0
        %1994 = vmatpush1.msra.mxu0 0.0
        %1995 = vmatprep.subr.mxu0 0.0
        %1996 = vmatpush1.msra.mxu0 0.0
        %1997 = vmatprep.subr.mxu0 0.0
        %1998 = vmatpush1.msra.mxu0 0.0
        %1999 = vmatprep.subr.mxu0 0.0
        %2000 = vmatpush1.msra.mxu0 0.0
        %2001 = vmatprep.subr.mxu0 0.0
        %2002 = vmatpush1.msra.mxu0 0.0
        %2003 = vmatprep.subr.mxu0 0.0
        %2004 = vmatpush1.msra.mxu0 0.0
        %2005 = vmatprep.subr.mxu0 0.0
        %2006 = vmatpush1.msra.mxu0 0.0
        %2007 = vmatprep.subr.mxu0 0.0
        %2008 = vmatpush1.msra.mxu0 0.0
        %2009 = vmatprep.subr.mxu0 0.0
        %2010 = vmatpush1.msra.mxu0 0.0
        %2011 = vmatprep.subr.mxu0 0.0
        %2012 = vmatpush1.msra.mxu0 0.0
        %2013 = vmatprep.subr.mxu0 0.0
        %2014 = vmatpush1.msra.mxu0 0.0
        %2015 = vmatprep.subr.mxu0 0.0
        %2016 = vmatpush1.msra.mxu0 0.0
        %2017 = vmatprep.subr.mxu0 0.0
        %2018 = vmatpush1.msra.mxu0 0.0
        %2019 = vmatprep.subr.mxu0 0.0
        %2020 = vmatpush1.msra.mxu0 0.0
        %2021 = vmatprep.subr.mxu0 0.0
        %2022 = vmatpush1.msra.mxu0 0.0
        %2023 = vmatprep.subr.mxu0 0.0
        %2024 = vmatpush1.msra.mxu0 0.0
        %2025 = vmatprep.mubr.f32.mxu0 0.0
        %2026 = vmatmul.mubr.f32.gmra.mrb[0].mxu0 %v1959
        %v2027 = vpop.f32.mrb[0].mxu0
        %v2028 = vadd.f32 0.0, %v2027
        %v2029 = vpop.f32.mrb[0].mxu0
        %v2030 = vadd.f32 0.0, %v2029
        %2031 = vdwg.mxu0
        %v2032 = vadd.f32 %v1943, %v2028
        %v2033 = vadd.f32 %v1944, %v2030
        %s2034 = scalar_lea.vmem %s1, 184
        %v2035 = vld [vmem:[%s2034] sm:$0xff]
        %2036 = vrot.lane.b32.xlu0 %v330, 61
        %v2037 = vpop.permute.xlu0 %2036
        %2038 = vrot.lane.b32.xlu0 %v331, 61
        %v2039 = vpop.permute.xlu0 %2038
        %2040 = vrot.lane.b32.xlu0 %v333, 61
        %v2041 = vpop.permute.xlu0 %2040
        %vm2042 = vcmask 498688
        %v2043 = vsel %vm2042, %v2037, %v2039
        %v2044 = vsel %vm2042, %v2039, %v2041
        %v2048 = vsel %vm350, %v2035, 0
        %2050 = vmatprep.subr.mxu0 %v2044
        %2051 = vmatpush1.msra.mxu0 %v2043
        %2052 = vmatprep.subr.mxu0 0.0
        %2053 = vmatpush1.msra.mxu0 0.0
        %2054 = vmatprep.subr.mxu0 0.0
        %2055 = vmatpush1.msra.mxu0 0.0
        %2056 = vmatprep.subr.mxu0 0.0
        %2057 = vmatpush1.msra.mxu0 0.0
        %2058 = vmatprep.subr.mxu0 0.0
        %2059 = vmatpush1.msra.mxu0 0.0
        %2060 = vmatprep.subr.mxu0 0.0
        %2061 = vmatpush1.msra.mxu0 0.0
        %2062 = vmatprep.subr.mxu0 0.0
        %2063 = vmatpush1.msra.mxu0 0.0
        %2064 = vmatprep.subr.mxu0 0.0
        %2065 = vmatpush1.msra.mxu0 0.0
        %2066 = vmatprep.subr.mxu0 0.0
        %2067 = vmatpush1.msra.mxu0 0.0
        %2068 = vmatprep.subr.mxu0 0.0
        %2069 = vmatpush1.msra.mxu0 0.0
        %2070 = vmatprep.subr.mxu0 0.0
        %2071 = vmatpush1.msra.mxu0 0.0
        %2072 = vmatprep.subr.mxu0 0.0
        %2073 = vmatpush1.msra.mxu0 0.0
        %2074 = vmatprep.subr.mxu0 0.0
        %2075 = vmatpush1.msra.mxu0 0.0
        %2076 = vmatprep.subr.mxu0 0.0
        %2077 = vmatpush1.msra.mxu0 0.0
        %2078 = vmatprep.subr.mxu0 0.0
        %2079 = vmatpush1.msra.mxu0 0.0
        %2080 = vmatprep.subr.mxu0 0.0
        %2081 = vmatpush1.msra.mxu0 0.0
        %2082 = vmatprep.subr.mxu0 0.0
        %2083 = vmatpush1.msra.mxu0 0.0
        %2084 = vmatprep.subr.mxu0 0.0
        %2085 = vmatpush1.msra.mxu0 0.0
        %2086 = vmatprep.subr.mxu0 0.0
        %2087 = vmatpush1.msra.mxu0 0.0
        %2088 = vmatprep.subr.mxu0 0.0
        %2089 = vmatpush1.msra.mxu0 0.0
        %2090 = vmatprep.subr.mxu0 0.0
        %2091 = vmatpush1.msra.mxu0 0.0
        %2092 = vmatprep.subr.mxu0 0.0
        %2093 = vmatpush1.msra.mxu0 0.0
        %2094 = vmatprep.subr.mxu0 0.0
        %2095 = vmatpush1.msra.mxu0 0.0
        %2096 = vmatprep.subr.mxu0 0.0
        %2097 = vmatpush1.msra.mxu0 0.0
        %2098 = vmatprep.subr.mxu0 0.0
        %2099 = vmatpush1.msra.mxu0 0.0
        %2100 = vmatprep.subr.mxu0 0.0
        %2101 = vmatpush1.msra.mxu0 0.0
        %2102 = vmatprep.subr.mxu0 0.0
        %2103 = vmatpush1.msra.mxu0 0.0
        %2104 = vmatprep.subr.mxu0 0.0
        %2105 = vmatpush1.msra.mxu0 0.0
        %2106 = vmatprep.subr.mxu0 0.0
        %2107 = vmatpush1.msra.mxu0 0.0
        %2108 = vmatprep.subr.mxu0 0.0
        %2109 = vmatpush1.msra.mxu0 0.0
        %2110 = vmatprep.subr.mxu0 0.0
        %2111 = vmatpush1.msra.mxu0 0.0
        %2112 = vmatprep.subr.mxu0 0.0
        %2113 = vmatpush1.msra.mxu0 0.0
        %2114 = vmatprep.mubr.f32.mxu0 0.0
        %2115 = vmatmul.mubr.f32.gmra.mrb[0].mxu0 %v2048
        %v2116 = vpop.f32.mrb[0].mxu0
        %v2117 = vadd.f32 0.0, %v2116
        %v2118 = vpop.f32.mrb[0].mxu0
        %v2119 = vadd.f32 0.0, %v2118
        %2120 = vdwg.mxu0
        %v2121 = vadd.f32 %v2032, %v2117
        %v2122 = vadd.f32 %v2033, %v2119
        %v2123 = vadd.s32 %v328, 1
        %v2124 = vadd.s32 %v329, 1
        %vm2125 = vcmp.ge.s32.totalorder %v2123, 0
        %vm2126 = vcmp.ge.s32.totalorder %v2124, 0
        %vm2127 = vcmp.lt.s32.totalorder %v2123, 16
        %vm2128 = vcmp.lt.s32.totalorder %v2124, 16
        %vm2129 = vmand %vm2125, %vm2127
        %vm2130 = vmand %vm2126, %vm2128
        %v2131 = vsel %vm2129, 1, 0
        %v2132 = vsel %vm2130, 1, 0
        %v2133 = vcvt.s32.f32 %v2131
        %v2134 = vcvt.s32.f32 %v2132
        %v2135 = vmul.f32 %v2121, %v2133
        %v2136 = vmul.f32 %v2122, %v2134
        %v2137 = vadd.f32 %v1680, %v2135
        %v2138 = vadd.f32 %v1681, %v2136
        %s2139 = scalar_lea.vmem %s1, 32
        %v2140 = vld [vmem:[%s2139] sm:$0xff]
        %s2141 = scalar_lea.vmem %s1, 72
        %v2142 = vld [vmem:[%s2141] sm:$0xff]
        %2143 = vrot.lane.b32.xlu0 %v330, 108
        %v2144 = vpop.permute.xlu0 %2143
        %2145 = vrot.lane.b32.xlu0 %v331, 108
        %v2146 = vpop.permute.xlu0 %2145
        %2147 = vrot.lane.b32.xlu0 %v333, 108
        %v2148 = vpop.permute.xlu0 %2147
        %vm2149 = vcmask 883712
        %v2150 = vsel %vm2149, %v2144, %v2146
        %v2151 = vsel %vm2149, %v2146, %v2148
        %v2155 = vsel %vm350, %v2142, 0
        %2157 = vmatprep.subr.mxu0 %v2151
        %2158 = vmatpush1.msra.mxu0 %v2150
        %2159 = vmatprep.subr.mxu0 0.0
        %2160 = vmatpush1.msra.mxu0 0.0
        %2161 = vmatprep.subr.mxu0 0.0
        %2162 = vmatpush1.msra.mxu0 0.0
        %2163 = vmatprep.subr.mxu0 0.0
        %2164 = vmatpush1.msra.mxu0 0.0
        %2165 = vmatprep.subr.mxu0 0.0
        %2166 = vmatpush1.msra.mxu0 0.0
        %2167 = vmatprep.subr.mxu0 0.0
        %2168 = vmatpush1.msra.mxu0 0.0
        %2169 = vmatprep.subr.mxu0 0.0
        %2170 = vmatpush1.msra.mxu0 0.0
        %2171 = vmatprep.subr.mxu0 0.0
        %2172 = vmatpush1.msra.mxu0 0.0
        %2173 = vmatprep.subr.mxu0 0.0
        %2174 = vmatpush1.msra.mxu0 0.0
        %2175 = vmatprep.subr.mxu0 0.0
        %2176 = vmatpush1.msra.mxu0 0.0
        %2177 = vmatprep.subr.mxu0 0.0
        %2178 = vmatpush1.msra.mxu0 0.0
        %2179 = vmatprep.subr.mxu0 0.0
        %2180 = vmatpush1.msra.mxu0 0.0
        %2181 = vmatprep.subr.mxu0 0.0
        %2182 = vmatpush1.msra.mxu0 0.0
        %2183 = vmatprep.subr.mxu0 0.0
        %2184 = vmatpush1.msra.mxu0 0.0
        %2185 = vmatprep.subr.mxu0 0.0
        %2186 = vmatpush1.msra.mxu0 0.0
        %2187 = vmatprep.subr.mxu0 0.0
        %2188 = vmatpush1.msra.mxu0 0.0
        %2189 = vmatprep.subr.mxu0 0.0
        %2190 = vmatpush1.msra.mxu0 0.0
        %2191 = vmatprep.subr.mxu0 0.0
        %2192 = vmatpush1.msra.mxu0 0.0
        %2193 = vmatprep.subr.mxu0 0.0
        %2194 = vmatpush1.msra.mxu0 0.0
        %2195 = vmatprep.subr.mxu0 0.0
        %2196 = vmatpush1.msra.mxu0 0.0
        %2197 = vmatprep.subr.mxu0 0.0
        %2198 = vmatpush1.msra.mxu0 0.0
        %2199 = vmatprep.subr.mxu0 0.0
        %2200 = vmatpush1.msra.mxu0 0.0
        %2201 = vmatprep.subr.mxu0 0.0
        %2202 = vmatpush1.msra.mxu0 0.0
        %2203 = vmatprep.subr.mxu0 0.0
        %2204 = vmatpush1.msra.mxu0 0.0
        %2205 = vmatprep.subr.mxu0 0.0
        %2206 = vmatpush1.msra.mxu0 0.0
        %2207 = vmatprep.subr.mxu0 0.0
        %2208 = vmatpush1.msra.mxu0 0.0
        %2209 = vmatprep.subr.mxu0 0.0
        %2210 = vmatpush1.msra.mxu0 0.0
        %2211 = vmatprep.subr.mxu0 0.0
        %2212 = vmatpush1.msra.mxu0 0.0
        %2213 = vmatprep.subr.mxu0 0.0
        %2214 = vmatpush1.msra.mxu0 0.0
        %2215 = vmatprep.subr.mxu0 0.0
        %2216 = vmatpush1.msra.mxu0 0.0
        %2217 = vmatprep.subr.mxu0 0.0
        %2218 = vmatpush1.msra.mxu0 0.0
        %2219 = vmatprep.subr.mxu0 0.0
        %2220 = vmatpush1.msra.mxu0 0.0
        %2221 = vmatprep.mubr.f32.mxu0 0.0
        %2222 = vmatmul.mubr.f32.gmra.mrb[0].mxu0 %v2155
        %v2223 = vpop.f32.mrb[0].mxu0
        %v2224 = vadd.f32 0.0, %v2223
        %v2225 = vpop.f32.mrb[0].mxu0
        %v2226 = vadd.f32 0.0, %v2225
        %2227 = vdwg.mxu0
        %2228 = vrot.lane.b32.xlu0 %v330, 124
        %v2229 = vpop.permute.xlu0 %2228
        %2230 = vrot.lane.b32.xlu0 %v331, 124
        %v2231 = vpop.permute.xlu0 %2230
        %2232 = vrot.lane.b32.xlu0 %v333, 124
        %v2233 = vpop.permute.xlu0 %2232
        %vm2234 = vcmask 1014784
        %v2235 = vsel %vm2234, %v2229, %v2231
        %v2236 = vsel %vm2234, %v2231, %v2233
        %v2240 = vsel %vm350, %v2140, 0
        %2242 = vmatprep.subr.mxu0 %v2236
        %2243 = vmatpush1.msra.mxu0 %v2235
        %2244 = vmatprep.subr.mxu0 0.0
        %2245 = vmatpush1.msra.mxu0 0.0
        %2246 = vmatprep.subr.mxu0 0.0
        %2247 = vmatpush1.msra.mxu0 0.0
        %2248 = vmatprep.subr.mxu0 0.0
        %2249 = vmatpush1.msra.mxu0 0.0
        %2250 = vmatprep.subr.mxu0 0.0
        %2251 = vmatpush1.msra.mxu0 0.0
        %2252 = vmatprep.subr.mxu0 0.0
        %2253 = vmatpush1.msra.mxu0 0.0
        %2254 = vmatprep.subr.mxu0 0.0
        %2255 = vmatpush1.msra.mxu0 0.0
        %2256 = vmatprep.subr.mxu0 0.0
        %2257 = vmatpush1.msra.mxu0 0.0
        %2258 = vmatprep.subr.mxu0 0.0
        %2259 = vmatpush1.msra.mxu0 0.0
        %2260 = vmatprep.subr.mxu0 0.0
        %2261 = vmatpush1.msra.mxu0 0.0
        %2262 = vmatprep.subr.mxu0 0.0
        %2263 = vmatpush1.msra.mxu0 0.0
        %2264 = vmatprep.subr.mxu0 0.0
        %2265 = vmatpush1.msra.mxu0 0.0
        %2266 = vmatprep.subr.mxu0 0.0
        %2267 = vmatpush1.msra.mxu0 0.0
        %2268 = vmatprep.subr.mxu0 0.0
        %2269 = vmatpush1.msra.mxu0 0.0
        %2270 = vmatprep.subr.mxu0 0.0
        %2271 = vmatpush1.msra.mxu0 0.0
        %2272 = vmatprep.subr.mxu0 0.0
        %2273 = vmatpush1.msra.mxu0 0.0
        %2274 = vmatprep.subr.mxu0 0.0
        %2275 = vmatpush1.msra.mxu0 0.0
        %2276 = vmatprep.subr.mxu0 0.0
        %2277 = vmatpush1.msra.mxu0 0.0
        %2278 = vmatprep.subr.mxu0 0.0
        %2279 = vmatpush1.msra.mxu0 0.0
        %2280 = vmatprep.subr.mxu0 0.0
        %2281 = vmatpush1.msra.mxu0 0.0
        %2282 = vmatprep.subr.mxu0 0.0
        %2283 = vmatpush1.msra.mxu0 0.0
        %2284 = vmatprep.subr.mxu0 0.0
        %2285 = vmatpush1.msra.mxu0 0.0
        %2286 = vmatprep.subr.mxu0 0.0
        %2287 = vmatpush1.msra.mxu0 0.0
        %2288 = vmatprep.subr.mxu0 0.0
        %2289 = vmatpush1.msra.mxu0 0.0
        %2290 = vmatprep.subr.mxu0 0.0
        %2291 = vmatpush1.msra.mxu0 0.0
        %2292 = vmatprep.subr.mxu0 0.0
        %2293 = vmatpush1.msra.mxu0 0.0
        %2294 = vmatprep.subr.mxu0 0.0
        %2295 = vmatpush1.msra.mxu0 0.0
        %2296 = vmatprep.subr.mxu0 0.0
        %2297 = vmatpush1.msra.mxu0 0.0
        %2298 = vmatprep.subr.mxu0 0.0
        %2299 = vmatpush1.msra.mxu0 0.0
        %2300 = vmatprep.subr.mxu0 0.0
        %2301 = vmatpush1.msra.mxu0 0.0
        %2302 = vmatprep.subr.mxu0 0.0
        %2303 = vmatpush1.msra.mxu0 0.0
        %2304 = vmatprep.subr.mxu0 0.0
        %2305 = vmatpush1.msra.mxu0 0.0
        %2306 = vmatprep.mubr.f32.mxu0 0.0
        %2307 = vmatmul.mubr.f32.gmra.mrb[0].mxu0 %v2240
        %v2308 = vpop.f32.mrb[0].mxu0
        %v2309 = vadd.f32 %v2224, %v2308
        %v2310 = vpop.f32.mrb[0].mxu0
        %v2311 = vadd.f32 %v2226, %v2310
        %2312 = vdwg.mxu0
        %s2313 = scalar_lea.vmem %s1, 112
        %v2314 = vld [vmem:[%s2313] sm:$0xff]
        %2315 = vrot.lane.b32.xlu0 %v330, 92
        %v2316 = vpop.permute.xlu0 %2315
        %2317 = vrot.lane.b32.xlu0 %v331, 92
        %v2318 = vpop.permute.xlu0 %2317
        %2319 = vrot.lane.b32.xlu0 %v333, 92
        %v2320 = vpop.permute.xlu0 %2319
        %vm2321 = vcmask 752640
        %v2322 = vsel %vm2321, %v2316, %v2318
        %v2323 = vsel %vm2321, %v2318, %v2320
        %v2327 = vsel %vm350, %v2314, 0
        %2329 = vmatprep.subr.mxu0 %v2323
        %2330 = vmatpush1.msra.mxu0 %v2322
        %2331 = vmatprep.subr.mxu0 0.0
        %2332 = vmatpush1.msra.mxu0 0.0
        %2333 = vmatprep.subr.mxu0 0.0
        %2334 = vmatpush1.msra.mxu0 0.0
        %2335 = vmatprep.subr.mxu0 0.0
        %2336 = vmatpush1.msra.mxu0 0.0
        %2337 = vmatprep.subr.mxu0 0.0
        %2338 = vmatpush1.msra.mxu0 0.0
        %2339 = vmatprep.subr.mxu0 0.0
        %2340 = vmatpush1.msra.mxu0 0.0
        %2341 = vmatprep.subr.mxu0 0.0
        %2342 = vmatpush1.msra.mxu0 0.0
        %2343 = vmatprep.subr.mxu0 0.0
        %2344 = vmatpush1.msra.mxu0 0.0
        %2345 = vmatprep.subr.mxu0 0.0
        %2346 = vmatpush1.msra.mxu0 0.0
        %2347 = vmatprep.subr.mxu0 0.0
        %2348 = vmatpush1.msra.mxu0 0.0
        %2349 = vmatprep.subr.mxu0 0.0
        %2350 = vmatpush1.msra.mxu0 0.0
        %2351 = vmatprep.subr.mxu0 0.0
        %2352 = vmatpush1.msra.mxu0 0.0
        %2353 = vmatprep.subr.mxu0 0.0
        %2354 = vmatpush1.msra.mxu0 0.0
        %2355 = vmatprep.subr.mxu0 0.0
        %2356 = vmatpush1.msra.mxu0 0.0
        %2357 = vmatprep.subr.mxu0 0.0
        %2358 = vmatpush1.msra.mxu0 0.0
        %2359 = vmatprep.subr.mxu0 0.0
        %2360 = vmatpush1.msra.mxu0 0.0
        %2361 = vmatprep.subr.mxu0 0.0
        %2362 = vmatpush1.msra.mxu0 0.0
        %2363 = vmatprep.subr.mxu0 0.0
        %2364 = vmatpush1.msra.mxu0 0.0
        %2365 = vmatprep.subr.mxu0 0.0
        %2366 = vmatpush1.msra.mxu0 0.0
        %2367 = vmatprep.subr.mxu0 0.0
        %2368 = vmatpush1.msra.mxu0 0.0
        %2369 = vmatprep.subr.mxu0 0.0
        %2370 = vmatpush1.msra.mxu0 0.0
        %2371 = vmatprep.subr.mxu0 0.0
        %2372 = vmatpush1.msra.mxu0 0.0
        %2373 = vmatprep.subr.mxu0 0.0
        %2374 = vmatpush1.msra.mxu0 0.0
        %2375 = vmatprep.subr.mxu0 0.0
        %2376 = vmatpush1.msra.mxu0 0.0
        %2377 = vmatprep.subr.mxu0 0.0
        %2378 = vmatpush1.msra.mxu0 0.0
        %2379 = vmatprep.subr.mxu0 0.0
        %2380 = vmatpush1.msra.mxu0 0.0
        %2381 = vmatprep.subr.mxu0 0.0
        %2382 = vmatpush1.msra.mxu0 0.0
        %2383 = vmatprep.subr.mxu0 0.0
        %2384 = vmatpush1.msra.mxu0 0.0
        %2385 = vmatprep.subr.mxu0 0.0
        %2386 = vmatpush1.msra.mxu0 0.0
        %2387 = vmatprep.subr.mxu0 0.0
        %2388 = vmatpush1.msra.mxu0 0.0
        %2389 = vmatprep.subr.mxu0 0.0
        %2390 = vmatpush1.msra.mxu0 0.0
        %2391 = vmatprep.subr.mxu0 0.0
        %2392 = vmatpush1.msra.mxu0 0.0
        %2393 = vmatprep.mubr.f32.mxu0 0.0
        %2394 = vmatmul.mubr.f32.gmra.mrb[0].mxu0 %v2327
        %v2395 = vpop.f32.mrb[0].mxu0
        %v2396 = vadd.f32 0.0, %v2395
        %v2397 = vpop.f32.mrb[0].mxu0
        %v2398 = vadd.f32 0.0, %v2397
        %2399 = vdwg.mxu0
        %v2400 = vadd.f32 %v2309, %v2396
        %v2401 = vadd.f32 %v2311, %v2398
        %s2402 = scalar_lea.vmem %s1, 152
        %v2403 = vld [vmem:[%s2402] sm:$0xff]
        %2404 = vrot.lane.b32.xlu0 %v330, 76
        %v2405 = vpop.permute.xlu0 %2404
        %2406 = vrot.lane.b32.xlu0 %v331, 76
        %v2407 = vpop.permute.xlu0 %2406
        %2408 = vrot.lane.b32.xlu0 %v333, 76
        %v2409 = vpop.permute.xlu0 %2408
        %vm2410 = vcmask 621568
        %v2411 = vsel %vm2410, %v2405, %v2407
        %v2412 = vsel %vm2410, %v2407, %v2409
        %v2416 = vsel %vm350, %v2403, 0
        %2418 = vmatprep.subr.mxu0 %v2412
        %2419 = vmatpush1.msra.mxu0 %v2411
        %2420 = vmatprep.subr.mxu0 0.0
        %2421 = vmatpush1.msra.mxu0 0.0
        %2422 = vmatprep.subr.mxu0 0.0
        %2423 = vmatpush1.msra.mxu0 0.0
        %2424 = vmatprep.subr.mxu0 0.0
        %2425 = vmatpush1.msra.mxu0 0.0
        %2426 = vmatprep.subr.mxu0 0.0
        %2427 = vmatpush1.msra.mxu0 0.0
        %2428 = vmatprep.subr.mxu0 0.0
        %2429 = vmatpush1.msra.mxu0 0.0
        %2430 = vmatprep.subr.mxu0 0.0
        %2431 = vmatpush1.msra.mxu0 0.0
        %2432 = vmatprep.subr.mxu0 0.0
        %2433 = vmatpush1.msra.mxu0 0.0
        %2434 = vmatprep.subr.mxu0 0.0
        %2435 = vmatpush1.msra.mxu0 0.0
        %2436 = vmatprep.subr.mxu0 0.0
        %2437 = vmatpush1.msra.mxu0 0.0
        %2438 = vmatprep.subr.mxu0 0.0
        %2439 = vmatpush1.msra.mxu0 0.0
        %2440 = vmatprep.subr.mxu0 0.0
        %2441 = vmatpush1.msra.mxu0 0.0
        %2442 = vmatprep.subr.mxu0 0.0
        %2443 = vmatpush1.msra.mxu0 0.0
        %2444 = vmatprep.subr.mxu0 0.0
        %2445 = vmatpush1.msra.mxu0 0.0
        %2446 = vmatprep.subr.mxu0 0.0
        %2447 = vmatpush1.msra.mxu0 0.0
        %2448 = vmatprep.subr.mxu0 0.0
        %2449 = vmatpush1.msra.mxu0 0.0
        %2450 = vmatprep.subr.mxu0 0.0
        %2451 = vmatpush1.msra.mxu0 0.0
        %2452 = vmatprep.subr.mxu0 0.0
        %2453 = vmatpush1.msra.mxu0 0.0
        %2454 = vmatprep.subr.mxu0 0.0
        %2455 = vmatpush1.msra.mxu0 0.0
        %2456 = vmatprep.subr.mxu0 0.0
        %2457 = vmatpush1.msra.mxu0 0.0
        %2458 = vmatprep.subr.mxu0 0.0
        %2459 = vmatpush1.msra.mxu0 0.0
        %2460 = vmatprep.subr.mxu0 0.0
        %2461 = vmatpush1.msra.mxu0 0.0
        %2462 = vmatprep.subr.mxu0 0.0
        %2463 = vmatpush1.msra.mxu0 0.0
        %2464 = vmatprep.subr.mxu0 0.0
        %2465 = vmatpush1.msra.mxu0 0.0
        %2466 = vmatprep.subr.mxu0 0.0
        %2467 = vmatpush1.msra.mxu0 0.0
        %2468 = vmatprep.subr.mxu0 0.0
        %2469 = vmatpush1.msra.mxu0 0.0
        %2470 = vmatprep.subr.mxu0 0.0
        %2471 = vmatpush1.msra.mxu0 0.0
        %2472 = vmatprep.subr.mxu0 0.0
        %2473 = vmatpush1.msra.mxu0 0.0
        %2474 = vmatprep.subr.mxu0 0.0
        %2475 = vmatpush1.msra.mxu0 0.0
        %2476 = vmatprep.subr.mxu0 0.0
        %2477 = vmatpush1.msra.mxu0 0.0
        %2478 = vmatprep.subr.mxu0 0.0
        %2479 = vmatpush1.msra.mxu0 0.0
        %2480 = vmatprep.subr.mxu0 0.0
        %2481 = vmatpush1.msra.mxu0 0.0
        %2482 = vmatprep.mubr.f32.mxu0 0.0
        %2483 = vmatmul.mubr.f32.gmra.mrb[0].mxu0 %v2416
        %v2484 = vpop.f32.mrb[0].mxu0
        %v2485 = vadd.f32 0.0, %v2484
        %v2486 = vpop.f32.mrb[0].mxu0
        %v2487 = vadd.f32 0.0, %v2486
        %2488 = vdwg.mxu0
        %v2489 = vadd.f32 %v2400, %v2485
        %v2490 = vadd.f32 %v2401, %v2487
        %s2491 = scalar_lea.vmem %s1, 192
        %v2492 = vld [vmem:[%s2491] sm:$0xff]
        %2493 = vrot.lane.b32.xlu0 %v330, 60
        %v2494 = vpop.permute.xlu0 %2493
        %2495 = vrot.lane.b32.xlu0 %v331, 60
        %v2496 = vpop.permute.xlu0 %2495
        %2497 = vrot.lane.b32.xlu0 %v333, 60
        %v2498 = vpop.permute.xlu0 %2497
        %vm2499 = vcmask 490496
        %v2500 = vsel %vm2499, %v2494, %v2496
        %v2501 = vsel %vm2499, %v2496, %v2498
        %v2505 = vsel %vm350, %v2492, 0
        %2507 = vmatprep.subr.mxu0 %v2501
        %2508 = vmatpush1.msra.mxu0 %v2500
        %2509 = vmatprep.subr.mxu0 0.0
        %2510 = vmatpush1.msra.mxu0 0.0
        %2511 = vmatprep.subr.mxu0 0.0
        %2512 = vmatpush1.msra.mxu0 0.0
        %2513 = vmatprep.subr.mxu0 0.0
        %2514 = vmatpush1.msra.mxu0 0.0
        %2515 = vmatprep.subr.mxu0 0.0
        %2516 = vmatpush1.msra.mxu0 0.0
        %2517 = vmatprep.subr.mxu0 0.0
        %2518 = vmatpush1.msra.mxu0 0.0
        %2519 = vmatprep.subr.mxu0 0.0
        %2520 = vmatpush1.msra.mxu0 0.0
        %2521 = vmatprep.subr.mxu0 0.0
        %2522 = vmatpush1.msra.mxu0 0.0
        %2523 = vmatprep.subr.mxu0 0.0
        %2524 = vmatpush1.msra.mxu0 0.0
        %2525 = vmatprep.subr.mxu0 0.0
        %2526 = vmatpush1.msra.mxu0 0.0
        %2527 = vmatprep.subr.mxu0 0.0
        %2528 = vmatpush1.msra.mxu0 0.0
        %2529 = vmatprep.subr.mxu0 0.0
        %2530 = vmatpush1.msra.mxu0 0.0
        %2531 = vmatprep.subr.mxu0 0.0
        %2532 = vmatpush1.msra.mxu0 0.0
        %2533 = vmatprep.subr.mxu0 0.0
        %2534 = vmatpush1.msra.mxu0 0.0
        %2535 = vmatprep.subr.mxu0 0.0
        %2536 = vmatpush1.msra.mxu0 0.0
        %2537 = vmatprep.subr.mxu0 0.0
        %2538 = vmatpush1.msra.mxu0 0.0
        %2539 = vmatprep.subr.mxu0 0.0
        %2540 = vmatpush1.msra.mxu0 0.0
        %2541 = vmatprep.subr.mxu0 0.0
        %2542 = vmatpush1.msra.mxu0 0.0
        %2543 = vmatprep.subr.mxu0 0.0
        %2544 = vmatpush1.msra.mxu0 0.0
        %2545 = vmatprep.subr.mxu0 0.0
        %2546 = vmatpush1.msra.mxu0 0.0
        %2547 = vmatprep.subr.mxu0 0.0
        %2548 = vmatpush1.msra.mxu0 0.0
        %2549 = vmatprep.subr.mxu0 0.0
        %2550 = vmatpush1.msra.mxu0 0.0
        %2551 = vmatprep.subr.mxu0 0.0
        %2552 = vmatpush1.msra.mxu0 0.0
        %2553 = vmatprep.subr.mxu0 0.0
        %2554 = vmatpush1.msra.mxu0 0.0
        %2555 = vmatprep.subr.mxu0 0.0
        %2556 = vmatpush1.msra.mxu0 0.0
        %2557 = vmatprep.subr.mxu0 0.0
        %2558 = vmatpush1.msra.mxu0 0.0
        %2559 = vmatprep.subr.mxu0 0.0
        %2560 = vmatpush1.msra.mxu0 0.0
        %2561 = vmatprep.subr.mxu0 0.0
        %2562 = vmatpush1.msra.mxu0 0.0
        %2563 = vmatprep.subr.mxu0 0.0
        %2564 = vmatpush1.msra.mxu0 0.0
        %2565 = vmatprep.subr.mxu0 0.0
        %2566 = vmatpush1.msra.mxu0 0.0
        %2567 = vmatprep.subr.mxu0 0.0
        %2568 = vmatpush1.msra.mxu0 0.0
        %2569 = vmatprep.subr.mxu0 0.0
        %2570 = vmatpush1.msra.mxu0 0.0
        %2571 = vmatprep.mubr.f32.mxu0 0.0
        %2572 = vmatmul.mubr.f32.gmra.mrb[0].mxu0 %v2505
        %v2573 = vpop.f32.mrb[0].mxu0
        %v2574 = vadd.f32 0.0, %v2573
        %v2575 = vpop.f32.mrb[0].mxu0
        %v2576 = vadd.f32 0.0, %v2575
        %2577 = vdwg.mxu0
        %v2578 = vadd.f32 %v2489, %v2574
        %v2579 = vadd.f32 %v2490, %v2576
        %v2580 = vadd.s32 %v328, 2
        %v2581 = vadd.s32 %v329, 2
        %vm2582 = vcmp.ge.s32.totalorder %v2580, 0
        %vm2583 = vcmp.ge.s32.totalorder %v2581, 0
        %vm2584 = vcmp.lt.s32.totalorder %v2580, 16
        %vm2585 = vcmp.lt.s32.totalorder %v2581, 16
        %vm2586 = vmand %vm2582, %vm2584
        %vm2587 = vmand %vm2583, %vm2585
        %v2588 = vsel %vm2586, 1, 0
        %v2589 = vsel %vm2587, 1, 0
        %v2590 = vcvt.s32.f32 %v2588
        %v2591 = vcvt.s32.f32 %v2589
        %v2592 = vmul.f32 %v2578, %v2590
        %v2593 = vmul.f32 %v2579, %v2591
        %v2594 = vadd.f32 %v2137, %v2592
        %v2595 = vadd.f32 %v2138, %v2593
        %v2596 = vld [vmem:[%s2] sm:$0xff]
        %v2597 = vld [vmem:[%s2 + $0x8] sm:$0xff]
        %v2598 = vld [vmem:[%s2 + $0x10] sm:$0xff]
        %v2599 = vld [vmem:[%s2 + $0x18] sm:$0xff]
        %v2600 = vld [vmem:[%s2 + $0x20] sm:$0xff]
        %v2601 = vld [vmem:[%s2 + $0x28] sm:$0xff]
        %v2602 = vld [vmem:[%s2 + $0x30] sm:$0xff]
        %v2603 = vld [vmem:[%s2 + $0x38] sm:$0xff]
        %v2604 = vld [vmem:[%s3] sm:$0xff]
        %v2605 = vld [vmem:[%s3 + $0x8] sm:$0xff]
        %v2606 = vld [vmem:[%s3 + $0x10] sm:$0xff]
        %v2607 = vld [vmem:[%s3 + $0x18] sm:$0xff]
        %v2608 = vld [vmem:[%s3 + $0x20] sm:$0xff]
        %v2609 = vld [vmem:[%s3 + $0x28] sm:$0xff]
        %v2610 = vld [vmem:[%s3 + $0x30] sm:$0xff]
        %v2611 = vld [vmem:[%s3 + $0x38] sm:$0xff]
        %v2612 = vsub.f32 %v2594, %v277
        %v2613 = vsub.f32 %v2595, %v278
        %v2615 = vsel %vm350, %v2604, 0
        %v2618 = vsel %vm350, %v2605, 0
        %v2621 = vsel %vm350, %v2606, 0
        %v2624 = vsel %vm350, %v2607, 0
        %v2627 = vsel %vm350, %v2608, 0
        %v2630 = vsel %vm350, %v2609, 0
        %v2633 = vsel %vm350, %v2610, 0
        %v2636 = vsel %vm350, %v2611, 0
        %2638 = vmatprep.subr.mxu0 %v2613
        %2639 = vmatpush1.msra.mxu0 %v2612
        %2640 = vmatprep.subr.mxu0 0.0
        %2641 = vmatpush1.msra.mxu0 0.0
        %2642 = vmatprep.subr.mxu0 0.0
        %2643 = vmatpush1.msra.mxu0 0.0
        %2644 = vmatprep.subr.mxu0 0.0
        %2645 = vmatpush1.msra.mxu0 0.0
        %2646 = vmatprep.subr.mxu0 0.0
        %2647 = vmatpush1.msra.mxu0 0.0
        %2648 = vmatprep.subr.mxu0 0.0
        %2649 = vmatpush1.msra.mxu0 0.0
        %2650 = vmatprep.subr.mxu0 0.0
        %2651 = vmatpush1.msra.mxu0 0.0
        %2652 = vmatprep.subr.mxu0 0.0
        %2653 = vmatpush1.msra.mxu0 0.0
        %2654 = vmatprep.subr.mxu0 0.0
        %2655 = vmatpush1.msra.mxu0 0.0
        %2656 = vmatprep.subr.mxu0 0.0
        %2657 = vmatpush1.msra.mxu0 0.0
        %2658 = vmatprep.subr.mxu0 0.0
        %2659 = vmatpush1.msra.mxu0 0.0
        %2660 = vmatprep.subr.mxu0 0.0
        %2661 = vmatpush1.msra.mxu0 0.0
        %2662 = vmatprep.subr.mxu0 0.0
        %2663 = vmatpush1.msra.mxu0 0.0
        %2664 = vmatprep.subr.mxu0 0.0
        %2665 = vmatpush1.msra.mxu0 0.0
        %2666 = vmatprep.subr.mxu0 0.0
        %2667 = vmatpush1.msra.mxu0 0.0
        %2668 = vmatprep.subr.mxu0 0.0
        %2669 = vmatpush1.msra.mxu0 0.0
        %2670 = vmatprep.subr.mxu0 0.0
        %2671 = vmatpush1.msra.mxu0 0.0
        %2672 = vmatprep.subr.mxu0 0.0
        %2673 = vmatpush1.msra.mxu0 0.0
        %2674 = vmatprep.subr.mxu0 0.0
        %2675 = vmatpush1.msra.mxu0 0.0
        %2676 = vmatprep.subr.mxu0 0.0
        %2677 = vmatpush1.msra.mxu0 0.0
        %2678 = vmatprep.subr.mxu0 0.0
        %2679 = vmatpush1.msra.mxu0 0.0
        %2680 = vmatprep.subr.mxu0 0.0
        %2681 = vmatpush1.msra.mxu0 0.0
        %2682 = vmatprep.subr.mxu0 0.0
        %2683 = vmatpush1.msra.mxu0 0.0
        %2684 = vmatprep.subr.mxu0 0.0
        %2685 = vmatpush1.msra.mxu0 0.0
        %2686 = vmatprep.subr.mxu0 0.0
        %2687 = vmatpush1.msra.mxu0 0.0
        %2688 = vmatprep.subr.mxu0 0.0
        %2689 = vmatpush1.msra.mxu0 0.0
        %2690 = vmatprep.subr.mxu0 0.0
        %2691 = vmatpush1.msra.mxu0 0.0
        %2692 = vmatprep.subr.mxu0 0.0
        %2693 = vmatpush1.msra.mxu0 0.0
        %2694 = vmatprep.subr.mxu0 0.0
        %2695 = vmatpush1.msra.mxu0 0.0
        %2696 = vmatprep.subr.mxu0 0.0
        %2697 = vmatpush1.msra.mxu0 0.0
        %2698 = vmatprep.subr.mxu0 0.0
        %2699 = vmatpush1.msra.mxu0 0.0
        %2700 = vmatprep.subr.mxu0 0.0
        %2701 = vmatpush1.msra.mxu0 0.0
        %2702 = vmatprep.mubr.f32.mxu0 0.0
        %2703 = vmatmul.mubr.f32.gmra.mrb[0].mxu0 %v2615
        %v2704 = vpop.f32.mrb[0].mxu0
        %v2705 = vadd.f32 0.0, %v2704
        %v2706 = vpop.f32.mrb[0].mxu0
        %v2707 = vadd.f32 0.0, %v2706
        %2708 = vmatprep.mubr.f32.mxu0 0.0
        %2709 = vmatmul.mubr.f32.gmra.mrb[0].mxu0 %v2618
        %v2710 = vpop.f32.mrb[0].mxu0
        %v2711 = vadd.f32 0.0, %v2710
        %v2712 = vpop.f32.mrb[0].mxu0
        %v2713 = vadd.f32 0.0, %v2712
        %2714 = vmatprep.mubr.f32.mxu0 0.0
        %2715 = vmatmul.mubr.f32.gmra.mrb[0].mxu0 %v2621
        %v2716 = vpop.f32.mrb[0].mxu0
        %v2717 = vadd.f32 0.0, %v2716
        %v2718 = vpop.f32.mrb[0].mxu0
        %v2719 = vadd.f32 0.0, %v2718
        %2720 = vmatprep.mubr.f32.mxu0 0.0
        %2721 = vmatmul.mubr.f32.gmra.mrb[0].mxu0 %v2624
        %v2722 = vpop.f32.mrb[0].mxu0
        %v2723 = vadd.f32 0.0, %v2722
        %v2724 = vpop.f32.mrb[0].mxu0
        %v2725 = vadd.f32 0.0, %v2724
        %2726 = vmatprep.mubr.f32.mxu0 0.0
        %2727 = vmatmul.mubr.f32.gmra.mrb[0].mxu0 %v2627
        %v2728 = vpop.f32.mrb[0].mxu0
        %v2729 = vadd.f32 0.0, %v2728
        %v2730 = vpop.f32.mrb[0].mxu0
        %v2731 = vadd.f32 0.0, %v2730
        %2732 = vmatprep.mubr.f32.mxu0 0.0
        %2733 = vmatmul.mubr.f32.gmra.mrb[0].mxu0 %v2630
        %v2734 = vpop.f32.mrb[0].mxu0
        %v2735 = vadd.f32 0.0, %v2734
        %v2736 = vpop.f32.mrb[0].mxu0
        %v2737 = vadd.f32 0.0, %v2736
        %2738 = vmatprep.mubr.f32.mxu0 0.0
        %2739 = vmatmul.mubr.f32.gmra.mrb[0].mxu0 %v2633
        %v2740 = vpop.f32.mrb[0].mxu0
        %v2741 = vadd.f32 0.0, %v2740
        %v2742 = vpop.f32.mrb[0].mxu0
        %v2743 = vadd.f32 0.0, %v2742
        %2744 = vmatprep.mubr.f32.mxu0 0.0
        %2745 = vmatmul.mubr.f32.gmra.mrb[0].mxu0 %v2636
        %v2746 = vpop.f32.mrb[0].mxu0
        %v2747 = vadd.f32 0.0, %v2746
        %v2748 = vpop.f32.mrb[0].mxu0
        %v2749 = vadd.f32 0.0, %v2748
        %2750 = vdwg.mxu0
        %vm2751 = vcmask 261120
        %v2753 = vsel %vm2751, %v2596, 0
        %v2756 = vsel %vm2751, %v2597, 0
        %v2759 = vsel %vm2751, %v2598, 0
        %v2762 = vsel %vm2751, %v2599, 0
        %v2765 = vsel %vm2751, %v2600, 0
        %v2768 = vsel %vm2751, %v2601, 0
        %v2771 = vsel %vm2751, %v2602, 0
        %v2774 = vsel %vm2751, %v2603, 0
        %2776 = vmatprep.subr.mxu0 %v278
        %2777 = vmatpush1.msra.mxu0 %v277
        %2778 = vmatprep.subr.mxu0 %v280
        %2779 = vmatpush1.msra.mxu0 %v279
        %2780 = vmatprep.subr.mxu0 %v282
        %2781 = vmatpush1.msra.mxu0 %v281
        %2782 = vmatprep.subr.mxu0 %v284
        %2783 = vmatpush1.msra.mxu0 %v283
        %2784 = vmatprep.subr.mxu0 0.0
        %2785 = vmatpush1.msra.mxu0 0.0
        %2786 = vmatprep.subr.mxu0 0.0
        %2787 = vmatpush1.msra.mxu0 0.0
        %2788 = vmatprep.subr.mxu0 0.0
        %2789 = vmatpush1.msra.mxu0 0.0
        %2790 = vmatprep.subr.mxu0 0.0
        %2791 = vmatpush1.msra.mxu0 0.0
        %2792 = vmatprep.subr.mxu0 0.0
        %2793 = vmatpush1.msra.mxu0 0.0
        %2794 = vmatprep.subr.mxu0 0.0
        %2795 = vmatpush1.msra.mxu0 0.0
        %2796 = vmatprep.subr.mxu0 0.0
        %2797 = vmatpush1.msra.mxu0 0.0
        %2798 = vmatprep.subr.mxu0 0.0
        %2799 = vmatpush1.msra.mxu0 0.0
        %2800 = vmatprep.subr.mxu0 0.0
        %2801 = vmatpush1.msra.mxu0 0.0
        %2802 = vmatprep.subr.mxu0 0.0
        %2803 = vmatpush1.msra.mxu0 0.0
        %2804 = vmatprep.subr.mxu0 0.0
        %2805 = vmatpush1.msra.mxu0 0.0
        %2806 = vmatprep.subr.mxu0 0.0
        %2807 = vmatpush1.msra.mxu0 0.0
        %2808 = vmatprep.subr.mxu0 0.0
        %2809 = vmatpush1.msra.mxu0 0.0
        %2810 = vmatprep.subr.mxu0 0.0
        %2811 = vmatpush1.msra.mxu0 0.0
        %2812 = vmatprep.subr.mxu0 0.0
        %2813 = vmatpush1.msra.mxu0 0.0
        %2814 = vmatprep.subr.mxu0 0.0
        %2815 = vmatpush1.msra.mxu0 0.0
        %2816 = vmatprep.subr.mxu0 0.0
        %2817 = vmatpush1.msra.mxu0 0.0
        %2818 = vmatprep.subr.mxu0 0.0
        %2819 = vmatpush1.msra.mxu0 0.0
        %2820 = vmatprep.subr.mxu0 0.0
        %2821 = vmatpush1.msra.mxu0 0.0
        %2822 = vmatprep.subr.mxu0 0.0
        %2823 = vmatpush1.msra.mxu0 0.0
        %2824 = vmatprep.subr.mxu0 0.0
        %2825 = vmatpush1.msra.mxu0 0.0
        %2826 = vmatprep.subr.mxu0 0.0
        %2827 = vmatpush1.msra.mxu0 0.0
        %2828 = vmatprep.subr.mxu0 0.0
        %2829 = vmatpush1.msra.mxu0 0.0
        %2830 = vmatprep.subr.mxu0 0.0
        %2831 = vmatpush1.msra.mxu0 0.0
        %2832 = vmatprep.subr.mxu0 0.0
        %2833 = vmatpush1.msra.mxu0 0.0
        %2834 = vmatprep.subr.mxu0 0.0
        %2835 = vmatpush1.msra.mxu0 0.0
        %2836 = vmatprep.subr.mxu0 0.0
        %2837 = vmatpush1.msra.mxu0 0.0
        %2838 = vmatprep.subr.mxu0 0.0
        %2839 = vmatpush1.msra.mxu0 0.0
        %2840 = vmatprep.mubr.f32.mxu0 0.0
        %2841 = vmatmul.mubr.f32.gmra.mrb[0].mxu0 %v2753
        %v2842 = vpop.f32.mrb[0].mxu0
        %v2843 = vadd.f32 %v2705, %v2842
        %v2844 = vpop.f32.mrb[0].mxu0
        %v2845 = vadd.f32 %v2707, %v2844
        %2846 = vmatprep.mubr.f32.mxu0 0.0
        %2847 = vmatmul.mubr.f32.gmra.mrb[0].mxu0 %v2756
        %v2848 = vpop.f32.mrb[0].mxu0
        %v2849 = vadd.f32 %v2711, %v2848
        %v2850 = vpop.f32.mrb[0].mxu0
        %v2851 = vadd.f32 %v2713, %v2850
        %2852 = vmatprep.mubr.f32.mxu0 0.0
        %2853 = vmatmul.mubr.f32.gmra.mrb[0].mxu0 %v2759
        %v2854 = vpop.f32.mrb[0].mxu0
        %v2855 = vadd.f32 %v2717, %v2854
        %v2856 = vpop.f32.mrb[0].mxu0
        %v2857 = vadd.f32 %v2719, %v2856
        %2858 = vmatprep.mubr.f32.mxu0 0.0
        %2859 = vmatmul.mubr.f32.gmra.mrb[0].mxu0 %v2762
        %v2860 = vpop.f32.mrb[0].mxu0
        %v2861 = vadd.f32 %v2723, %v2860
        %v2862 = vpop.f32.mrb[0].mxu0
        %v2863 = vadd.f32 %v2725, %v2862
        %2864 = vmatprep.mubr.f32.mxu0 0.0
        %2865 = vmatmul.mubr.f32.gmra.mrb[0].mxu0 %v2765
        %v2866 = vpop.f32.mrb[0].mxu0
        %v2867 = vadd.f32 %v2729, %v2866
        %v2868 = vpop.f32.mrb[0].mxu0
        %v2869 = vadd.f32 %v2731, %v2868
        %2870 = vmatprep.mubr.f32.mxu0 0.0
        %2871 = vmatmul.mubr.f32.gmra.mrb[0].mxu0 %v2768
        %v2872 = vpop.f32.mrb[0].mxu0
        %v2873 = vadd.f32 %v2735, %v2872
        %v2874 = vpop.f32.mrb[0].mxu0
        %v2875 = vadd.f32 %v2737, %v2874
        %2876 = vmatprep.mubr.f32.mxu0 0.0
        %2877 = vmatmul.mubr.f32.gmra.mrb[0].mxu0 %v2771
        %v2878 = vpop.f32.mrb[0].mxu0
        %v2879 = vadd.f32 %v2741, %v2878
        %v2880 = vpop.f32.mrb[0].mxu0
        %v2881 = vadd.f32 %v2743, %v2880
        %2882 = vmatprep.mubr.f32.mxu0 0.0
        %2883 = vmatmul.mubr.f32.gmra.mrb[0].mxu0 %v2774
        %v2884 = vpop.f32.mrb[0].mxu0
        %v2885 = vadd.f32 %v2747, %v2884
        %v2886 = vpop.f32.mrb[0].mxu0
        %v2887 = vadd.f32 %v2749, %v2886
        %2888 = vdwg.mxu0
        %v2889 = vmax.f32 %v2843, 0.0
        %v2890 = vmax.f32 %v2845, 0.0
        %v2891 = vmax.f32 %v2849, 0.0
        %v2892 = vmax.f32 %v2851, 0.0
        %v2893 = vmax.f32 %v2855, 0.0
        %v2894 = vmax.f32 %v2857, 0.0
        %v2895 = vmax.f32 %v2861, 0.0
        %v2896 = vmax.f32 %v2863, 0.0
        %v2897 = vmax.f32 %v2867, 0.0
        %v2898 = vmax.f32 %v2869, 0.0
        %v2899 = vmax.f32 %v2873, 0.0
        %v2900 = vmax.f32 %v2875, 0.0
        %v2901 = vmax.f32 %v2879, 0.0
        %v2902 = vmax.f32 %v2881, 0.0
        %v2903 = vmax.f32 %v2885, 0.0
        %v2904 = vmax.f32 %v2887, 0.0
        %2905 = vst.msk [vmem:[#allocation3] sm:$0xff] %vm285, 0.0
        %2906 = vst.msk [vmem:[#allocation3 + $0x18] sm:$0xff] %vm285, 0.0
        %2907 = vst.msk [vmem:[#allocation3 + $0x10] sm:$0xff] %vm287, 0.0
        %2908 = vst.msk [vmem:[#allocation3 + $0x28] sm:$0xff] %vm287, 0.0
        %2913 = vrot.lane.b32.xlu0 %v2889, 34
        %v2914 = vpop.permute.xlu0 %2913
        %2915 = vrot.lane.b32.xlu0 %v2890, 34
        %v2916 = vpop.permute.xlu0 %2915
        %2917 = vrot.lane.b32.xlu0 %v2891, 34
        %v2918 = vpop.permute.xlu0 %2917
        %2919 = vrot.lane.b32.xlu0 %v2892, 34
        %v2920 = vpop.permute.xlu0 %2919
        %v2921 = vsel %vm285, %v2914, %v2916
        %v2922 = vsel %vm285, %v2918, %v2920
        %2929 = vst.msk [vmem:[#allocation3] sm:$0xff] %vm299, %v2914
        %2930 = vst [vmem:[#allocation3 + $0x8] sm:$0xff] %v2921
        %2931 = vst.msk [vmem:[#allocation3 + $0x10] sm:$0xff] %vm285, %v2916
        %2932 = vst.msk [vmem:[#allocation3 + $0x18] sm:$0xff] %vm299, %v2918
        %2933 = vst [vmem:[#allocation3 + $0x20] sm:$0xff] %v2922
        %2934 = vst.msk [vmem:[#allocation3 + $0x28] sm:$0xff] %vm285, %v2920
        %v2935 = vld [vmem:[#allocation3] sm:$0xff]
        %v2936 = vld [vmem:[#allocation3 + $0x8] sm:$0xff]
        %v2937 = vld [vmem:[#allocation3 + $0x18] sm:$0xff]
        %v2938 = vld [vmem:[#allocation3 + $0x20] sm:$0xff]
        %v2939 = vld [vmem:[%s4] sm:$0xff]
        %v2940 = vld [vmem:[%s4 + $0x8] sm:$0xff]
        %v2941 = vld [vmem:[#allocation3 + $0x10] sm:$0xff]
        %v2942 = vld [vmem:[#allocation3 + $0x28] sm:$0xff]
        %s2943 = scalar_lea.vmem %s4, 80
        %v2944 = vld [vmem:[%s2943] sm:$0xff]
        %v2945 = vld [vmem:[%s2943 + $0x8] sm:$0xff]
        %2952 = vrot.lane.b32.xlu0 %v2935, 112
        %v2953 = vpop.permute.xlu0 %2952
        %2954 = vrot.lane.b32.xlu0 %v2936, 112
        %v2955 = vpop.permute.xlu0 %2954
        %2956 = vrot.lane.b32.xlu0 %v2941, 112
        %v2957 = vpop.permute.xlu0 %2956
        %2958 = vrot.lane.b32.xlu0 %v2937, 112
        %v2959 = vpop.permute.xlu0 %2958
        %2960 = vrot.lane.b32.xlu0 %v2938, 112
        %v2961 = vpop.permute.xlu0 %2960
        %2962 = vrot.lane.b32.xlu0 %v2942, 112
        %v2963 = vpop.permute.xlu0 %2962
        %v2964 = vsel %vm345, %v2953, %v2955
        %v2965 = vsel %vm345, %v2955, %v2957
        %v2966 = vsel %vm345, %v2959, %v2961
        %v2967 = vsel %vm345, %v2961, %v2963
        %vm2972 = vcmask 130048
        %v2974 = vsel %vm2972, %v2944, 0
        %v2977 = vsel %vm2972, %v2945, 0
        %2979 = vmatprep.subr.mxu0 %v2965
        %2980 = vmatpush1.msra.mxu0 %v2964
        %2981 = vmatprep.subr.mxu0 %v2967
        %2982 = vmatpush1.msra.mxu0 %v2966
        %2983 = vmatprep.subr.mxu0 0.0
        %2984 = vmatpush1.msra.mxu0 0.0
        %2985 = vmatprep.subr.mxu0 0.0
        %2986 = vmatpush1.msra.mxu0 0.0
        %2987 = vmatprep.subr.mxu0 0.0
        %2988 = vmatpush1.msra.mxu0 0.0
        %2989 = vmatprep.subr.mxu0 0.0
        %2990 = vmatpush1.msra.mxu0 0.0
        %2991 = vmatprep.subr.mxu0 0.0
        %2992 = vmatpush1.msra.mxu0 0.0
        %2993 = vmatprep.subr.mxu0 0.0
        %2994 = vmatpush1.msra.mxu0 0.0
        %2995 = vmatprep.subr.mxu0 0.0
        %2996 = vmatpush1.msra.mxu0 0.0
        %2997 = vmatprep.subr.mxu0 0.0
        %2998 = vmatpush1.msra.mxu0 0.0
        %2999 = vmatprep.subr.mxu0 0.0
        %3000 = vmatpush1.msra.mxu0 0.0
        %3001 = vmatprep.subr.mxu0 0.0
        %3002 = vmatpush1.msra.mxu0 0.0
        %3003 = vmatprep.subr.mxu0 0.0
        %3004 = vmatpush1.msra.mxu0 0.0
        %3005 = vmatprep.subr.mxu0 0.0
        %3006 = vmatpush1.msra.mxu0 0.0
        %3007 = vmatprep.subr.mxu0 0.0
        %3008 = vmatpush1.msra.mxu0 0.0
        %3009 = vmatprep.subr.mxu0 0.0
        %3010 = vmatpush1.msra.mxu0 0.0
        %3011 = vmatprep.subr.mxu0 0.0
        %3012 = vmatpush1.msra.mxu0 0.0
        %3013 = vmatprep.subr.mxu0 0.0
        %3014 = vmatpush1.msra.mxu0 0.0
        %3015 = vmatprep.subr.mxu0 0.0
        %3016 = vmatpush1.msra.mxu0 0.0
        %3017 = vmatprep.subr.mxu0 0.0
        %3018 = vmatpush1.msra.mxu0 0.0
        %3019 = vmatprep.subr.mxu0 0.0
        %3020 = vmatpush1.msra.mxu0 0.0
        %3021 = vmatprep.subr.mxu0 0.0
        %3022 = vmatpush1.msra.mxu0 0.0
        %3023 = vmatprep.subr.mxu0 0.0
        %3024 = vmatpush1.msra.mxu0 0.0
        %3025 = vmatprep.subr.mxu0 0.0
        %3026 = vmatpush1.msra.mxu0 0.0
        %3027 = vmatprep.subr.mxu0 0.0
        %3028 = vmatpush1.msra.mxu0 0.0
        %3029 = vmatprep.subr.mxu0 0.0
        %3030 = vmatpush1.msra.mxu0 0.0
        %3031 = vmatprep.subr.mxu0 0.0
        %3032 = vmatpush1.msra.mxu0 0.0
        %3033 = vmatprep.subr.mxu0 0.0
        %3034 = vmatpush1.msra.mxu0 0.0
        %3035 = vmatprep.subr.mxu0 0.0
        %3036 = vmatpush1.msra.mxu0 0.0
        %3037 = vmatprep.subr.mxu0 0.0
        %3038 = vmatpush1.msra.mxu0 0.0
        %3039 = vmatprep.subr.mxu0 0.0
        %3040 = vmatpush1.msra.mxu0 0.0
        %3041 = vmatprep.subr.mxu0 0.0
        %3042 = vmatpush1.msra.mxu0 0.0
        %3043 = vmatprep.mubr.f32.mxu0 0.0
        %3044 = vmatmul.mubr.f32.gmra.mrb[0].mxu0 %v2974
        %v3045 = vpop.f32.mrb[0].mxu0
        %v3046 = vadd.f32 0.0, %v3045
        %v3047 = vpop.f32.mrb[0].mxu0
        %v3048 = vadd.f32 0.0, %v3047
        %3049 = vmatprep.mubr.f32.mxu0 0.0
        %3050 = vmatmul.mubr.f32.gmra.mrb[0].mxu0 %v2977
        %v3051 = vpop.f32.mrb[0].mxu0
        %v3052 = vadd.f32 0.0, %v3051
        %v3053 = vpop.f32.mrb[0].mxu0
        %v3054 = vadd.f32 0.0, %v3053
        %3055 = vdwg.mxu0
        %v3057 = vsel %vm2972, %v2939, 0
        %v3060 = vsel %vm2972, %v2940, 0
        %3062 = vmatprep.subr.mxu0 %v2936
        %3063 = vmatpush1.msra.mxu0 %v2935
        %3064 = vmatprep.subr.mxu0 %v2938
        %3065 = vmatpush1.msra.mxu0 %v2937
        %3066 = vmatprep.subr.mxu0 0.0
        %3067 = vmatpush1.msra.mxu0 0.0
        %3068 = vmatprep.subr.mxu0 0.0
        %3069 = vmatpush1.msra.mxu0 0.0
        %3070 = vmatprep.subr.mxu0 0.0
        %3071 = vmatpush1.msra.mxu0 0.0
        %3072 = vmatprep.subr.mxu0 0.0
        %3073 = vmatpush1.msra.mxu0 0.0
        %3074 = vmatprep.subr.mxu0 0.0
        %3075 = vmatpush1.msra.mxu0 0.0
        %3076 = vmatprep.subr.mxu0 0.0
        %3077 = vmatpush1.msra.mxu0 0.0
        %3078 = vmatprep.subr.mxu0 0.0
        %3079 = vmatpush1.msra.mxu0 0.0
        %3080 = vmatprep.subr.mxu0 0.0
        %3081 = vmatpush1.msra.mxu0 0.0
        %3082 = vmatprep.subr.mxu0 0.0
        %3083 = vmatpush1.msra.mxu0 0.0
        %3084 = vmatprep.subr.mxu0 0.0
        %3085 = vmatpush1.msra.mxu0 0.0
        %3086 = vmatprep.subr.mxu0 0.0
        %3087 = vmatpush1.msra.mxu0 0.0
        %3088 = vmatprep.subr.mxu0 0.0
        %3089 = vmatpush1.msra.mxu0 0.0
        %3090 = vmatprep.subr.mxu0 0.0
        %3091 = vmatpush1.msra.mxu0 0.0
        %3092 = vmatprep.subr.mxu0 0.0
        %3093 = vmatpush1.msra.mxu0 0.0
        %3094 = vmatprep.subr.mxu0 0.0
        %3095 = vmatpush1.msra.mxu0 0.0
        %3096 = vmatprep.subr.mxu0 0.0
        %3097 = vmatpush1.msra.mxu0 0.0
        %3098 = vmatprep.subr.mxu0 0.0
        %3099 = vmatpush1.msra.mxu0 0.0
        %3100 = vmatprep.subr.mxu0 0.0
        %3101 = vmatpush1.msra.mxu0 0.0
        %3102 = vmatprep.subr.mxu0 0.0
        %3103 = vmatpush1.msra.mxu0 0.0
        %3104 = vmatprep.subr.mxu0 0.0
        %3105 = vmatpush1.msra.mxu0 0.0
        %3106 = vmatprep.subr.mxu0 0.0
        %3107 = vmatpush1.msra.mxu0 0.0
        %3108 = vmatprep.subr.mxu0 0.0
        %3109 = vmatpush1.msra.mxu0 0.0
        %3110 = vmatprep.subr.mxu0 0.0
        %3111 = vmatpush1.msra.mxu0 0.0
        %3112 = vmatprep.subr.mxu0 0.0
        %3113 = vmatpush1.msra.mxu0 0.0
        %3114 = vmatprep.subr.mxu0 0.0
        %3115 = vmatpush1.msra.mxu0 0.0
        %3116 = vmatprep.subr.mxu0 0.0
        %3117 = vmatpush1.msra.mxu0 0.0
        %3118 = vmatprep.subr.mxu0 0.0
        %3119 = vmatpush1.msra.mxu0 0.0
        %3120 = vmatprep.subr.mxu0 0.0
        %3121 = vmatpush1.msra.mxu0 0.0
        %3122 = vmatprep.subr.mxu0 0.0
        %3123 = vmatpush1.msra.mxu0 0.0
        %3124 = vmatprep.subr.mxu0 0.0
        %3125 = vmatpush1.msra.mxu0 0.0
        %3126 = vmatprep.mubr.f32.mxu0 0.0
        %3127 = vmatmul.mubr.f32.gmra.mrb[0].mxu0 %v3057
        %v3128 = vpop.f32.mrb[0].mxu0
        %v3129 = vadd.f32 %v3046, %v3128
        %v3130 = vpop.f32.mrb[0].mxu0
        %v3131 = vadd.f32 %v3048, %v3130
        %3132 = vmatprep.mubr.f32.mxu0 0.0
        %3133 = vmatmul.mubr.f32.gmra.mrb[0].mxu0 %v3060
        %v3134 = vpop.f32.mrb[0].mxu0
        %v3135 = vadd.f32 %v3052, %v3134
        %v3136 = vpop.f32.mrb[0].mxu0
        %v3137 = vadd.f32 %v3054, %v3136
        %3138 = vdwg.mxu0
        %s3139 = scalar_lea.vmem %s4, 160
        %v3140 = vld [vmem:[%s3139] sm:$0xff]
        %v3141 = vld [vmem:[%s3139 + $0x8] sm:$0xff]
        %3142 = vrot.lane.b32.xlu0 %v2935, 96
        %v3143 = vpop.permute.xlu0 %3142
        %3144 = vrot.lane.b32.xlu0 %v2936, 96
        %v3145 = vpop.permute.xlu0 %3144
        %3146 = vrot.lane.b32.xlu0 %v2941, 96
        %v3147 = vpop.permute.xlu0 %3146
        %3148 = vrot.lane.b32.xlu0 %v2937, 96
        %v3149 = vpop.permute.xlu0 %3148
        %3150 = vrot.lane.b32.xlu0 %v2938, 96
        %v3151 = vpop.permute.xlu0 %3150
        %3152 = vrot.lane.b32.xlu0 %v2942, 96
        %v3153 = vpop.permute.xlu0 %3152
        %v3154 = vsel %vm507, %v3143, %v3145
        %v3155 = vsel %vm507, %v3145, %v3147
        %v3156 = vsel %vm507, %v3149, %v3151
        %v3157 = vsel %vm507, %v3151, %v3153
        %v3163 = vsel %vm2972, %v3140, 0
        %v3166 = vsel %vm2972, %v3141, 0
        %3168 = vmatprep.subr.mxu0 %v3155
        %3169 = vmatpush1.msra.mxu0 %v3154
        %3170 = vmatprep.subr.mxu0 %v3157
        %3171 = vmatpush1.msra.mxu0 %v3156
        %3172 = vmatprep.subr.mxu0 0.0
        %3173 = vmatpush1.msra.mxu0 0.0
        %3174 = vmatprep.subr.mxu0 0.0
        %3175 = vmatpush1.msra.mxu0 0.0
        %3176 = vmatprep.subr.mxu0 0.0
        %3177 = vmatpush1.msra.mxu0 0.0
        %3178 = vmatprep.subr.mxu0 0.0
        %3179 = vmatpush1.msra.mxu0 0.0
        %3180 = vmatprep.subr.mxu0 0.0
        %3181 = vmatpush1.msra.mxu0 0.0
        %3182 = vmatprep.subr.mxu0 0.0
        %3183 = vmatpush1.msra.mxu0 0.0
        %3184 = vmatprep.subr.mxu0 0.0
        %3185 = vmatpush1.msra.mxu0 0.0
        %3186 = vmatprep.subr.mxu0 0.0
        %3187 = vmatpush1.msra.mxu0 0.0
        %3188 = vmatprep.subr.mxu0 0.0
        %3189 = vmatpush1.msra.mxu0 0.0
        %3190 = vmatprep.subr.mxu0 0.0
        %3191 = vmatpush1.msra.mxu0 0.0
        %3192 = vmatprep.subr.mxu0 0.0
        %3193 = vmatpush1.msra.mxu0 0.0
        %3194 = vmatprep.subr.mxu0 0.0
        %3195 = vmatpush1.msra.mxu0 0.0
        %3196 = vmatprep.subr.mxu0 0.0
        %3197 = vmatpush1.msra.mxu0 0.0
        %3198 = vmatprep.subr.mxu0 0.0
        %3199 = vmatpush1.msra.mxu0 0.0
        %3200 = vmatprep.subr.mxu0 0.0
        %3201 = vmatpush1.msra.mxu0 0.0
        %3202 = vmatprep.subr.mxu0 0.0
        %3203 = vmatpush1.msra.mxu0 0.0
        %3204 = vmatprep.subr.mxu0 0.0
        %3205 = vmatpush1.msra.mxu0 0.0
        %3206 = vmatprep.subr.mxu0 0.0
        %3207 = vmatpush1.msra.mxu0 0.0
        %3208 = vmatprep.subr.mxu0 0.0
        %3209 = vmatpush1.msra.mxu0 0.0
        %3210 = vmatprep.subr.mxu0 0.0
        %3211 = vmatpush1.msra.mxu0 0.0
        %3212 = vmatprep.subr.mxu0 0.0
        %3213 = vmatpush1.msra.mxu0 0.0
        %3214 = vmatprep.subr.mxu0 0.0
        %3215 = vmatpush1.msra.mxu0 0.0
        %3216 = vmatprep.subr.mxu0 0.0
        %3217 = vmatpush1.msra.mxu0 0.0
        %3218 = vmatprep.subr.mxu0 0.0
        %3219 = vmatpush1.msra.mxu0 0.0
        %3220 = vmatprep.subr.mxu0 0.0
        %3221 = vmatpush1.msra.mxu0 0.0
        %3222 = vmatprep.subr.mxu0 0.0
        %3223 = vmatpush1.msra.mxu0 0.0
        %3224 = vmatprep.subr.mxu0 0.0
        %3225 = vmatpush1.msra.mxu0 0.0
        %3226 = vmatprep.subr.mxu0 0.0
        %3227 = vmatpush1.msra.mxu0 0.0
        %3228 = vmatprep.subr.mxu0 0.0
        %3229 = vmatpush1.msra.mxu0 0.0
        %3230 = vmatprep.subr.mxu0 0.0
        %3231 = vmatpush1.msra.mxu0 0.0
        %3232 = vmatprep.mubr.f32.mxu0 0.0
        %3233 = vmatmul.mubr.f32.gmra.mrb[0].mxu0 %v3163
        %v3234 = vpop.f32.mrb[0].mxu0
        %v3235 = vadd.f32 0.0, %v3234
        %v3236 = vpop.f32.mrb[0].mxu0
        %v3237 = vadd.f32 0.0, %v3236
        %3238 = vmatprep.mubr.f32.mxu0 0.0
        %3239 = vmatmul.mubr.f32.gmra.mrb[0].mxu0 %v3166
        %v3240 = vpop.f32.mrb[0].mxu0
        %v3241 = vadd.f32 0.0, %v3240
        %v3242 = vpop.f32.mrb[0].mxu0
        %v3243 = vadd.f32 0.0, %v3242
        %3244 = vdwg.mxu0
        %v3245 = vadd.f32 %v3129, %v3235
        %v3246 = vadd.f32 %v3131, %v3237
        %v3247 = vadd.f32 %v3135, %v3241
        %v3248 = vadd.f32 %v3137, %v3243
        %s3249 = scalar_lea.vmem %s4, 240
        %v3250 = vld [vmem:[%s3249] sm:$0xff]
        %v3251 = vld [vmem:[%s3249 + $0x8] sm:$0xff]
        %3252 = vrot.lane.b32.xlu0 %v2935, 80
        %v3253 = vpop.permute.xlu0 %3252
        %3254 = vrot.lane.b32.xlu0 %v2936, 80
        %v3255 = vpop.permute.xlu0 %3254
        %3256 = vrot.lane.b32.xlu0 %v2941, 80
        %v3257 = vpop.permute.xlu0 %3256
        %3258 = vrot.lane.b32.xlu0 %v2937, 80
        %v3259 = vpop.permute.xlu0 %3258
        %3260 = vrot.lane.b32.xlu0 %v2938, 80
        %v3261 = vpop.permute.xlu0 %3260
        %3262 = vrot.lane.b32.xlu0 %v2942, 80
        %v3263 = vpop.permute.xlu0 %3262
        %v3264 = vsel %vm596, %v3253, %v3255
        %v3265 = vsel %vm596, %v3255, %v3257
        %v3266 = vsel %vm596, %v3259, %v3261
        %v3267 = vsel %vm596, %v3261, %v3263
        %v3273 = vsel %vm2972, %v3250, 0
        %v3276 = vsel %vm2972, %v3251, 0
        %3278 = vmatprep.subr.mxu0 %v3265
        %3279 = vmatpush1.msra.mxu0 %v3264
        %3280 = vmatprep.subr.mxu0 %v3267
        %3281 = vmatpush1.msra.mxu0 %v3266
        %3282 = vmatprep.subr.mxu0 0.0
        %3283 = vmatpush1.msra.mxu0 0.0
        %3284 = vmatprep.subr.mxu0 0.0
        %3285 = vmatpush1.msra.mxu0 0.0
        %3286 = vmatprep.subr.mxu0 0.0
        %3287 = vmatpush1.msra.mxu0 0.0
        %3288 = vmatprep.subr.mxu0 0.0
        %3289 = vmatpush1.msra.mxu0 0.0
        %3290 = vmatprep.subr.mxu0 0.0
        %3291 = vmatpush1.msra.mxu0 0.0
        %3292 = vmatprep.subr.mxu0 0.0
        %3293 = vmatpush1.msra.mxu0 0.0
        %3294 = vmatprep.subr.mxu0 0.0
        %3295 = vmatpush1.msra.mxu0 0.0
        %3296 = vmatprep.subr.mxu0 0.0
        %3297 = vmatpush1.msra.mxu0 0.0
        %3298 = vmatprep.subr.mxu0 0.0
        %3299 = vmatpush1.msra.mxu0 0.0
        %3300 = vmatprep.subr.mxu0 0.0
        %3301 = vmatpush1.msra.mxu0 0.0
        %3302 = vmatprep.subr.mxu0 0.0
        %3303 = vmatpush1.msra.mxu0 0.0
        %3304 = vmatprep.subr.mxu0 0.0
        %3305 = vmatpush1.msra.mxu0 0.0
        %3306 = vmatprep.subr.mxu0 0.0
        %3307 = vmatpush1.msra.mxu0 0.0
        %3308 = vmatprep.subr.mxu0 0.0
        %3309 = vmatpush1.msra.mxu0 0.0
        %3310 = vmatprep.subr.mxu0 0.0
        %3311 = vmatpush1.msra.mxu0 0.0
        %3312 = vmatprep.subr.mxu0 0.0
        %3313 = vmatpush1.msra.mxu0 0.0
        %3314 = vmatprep.subr.mxu0 0.0
        %3315 = vmatpush1.msra.mxu0 0.0
        %3316 = vmatprep.subr.mxu0 0.0
        %3317 = vmatpush1.msra.mxu0 0.0
        %3318 = vmatprep.subr.mxu0 0.0
        %3319 = vmatpush1.msra.mxu0 0.0
        %3320 = vmatprep.subr.mxu0 0.0
        %3321 = vmatpush1.msra.mxu0 0.0
        %3322 = vmatprep.subr.mxu0 0.0
        %3323 = vmatpush1.msra.mxu0 0.0
        %3324 = vmatprep.subr.mxu0 0.0
        %3325 = vmatpush1.msra.mxu0 0.0
        %3326 = vmatprep.subr.mxu0 0.0
        %3327 = vmatpush1.msra.mxu0 0.0
        %3328 = vmatprep.subr.mxu0 0.0
        %3329 = vmatpush1.msra.mxu0 0.0
        %3330 = vmatprep.subr.mxu0 0.0
        %3331 = vmatpush1.msra.mxu0 0.0
        %3332 = vmatprep.subr.mxu0 0.0
        %3333 = vmatpush1.msra.mxu0 0.0
        %3334 = vmatprep.subr.mxu0 0.0
        %3335 = vmatpush1.msra.mxu0 0.0
        %3336 = vmatprep.subr.mxu0 0.0
        %3337 = vmatpush1.msra.mxu0 0.0
        %3338 = vmatprep.subr.mxu0 0.0
        %3339 = vmatpush1.msra.mxu0 0.0
        %3340 = vmatprep.subr.mxu0 0.0
        %3341 = vmatpush1.msra.mxu0 0.0
        %3342 = vmatprep.mubr.f32.mxu0 0.0
        %3343 = vmatmul.mubr.f32.gmra.mrb[0].mxu0 %v3273
        %v3344 = vpop.f32.mrb[0].mxu0
        %v3345 = vadd.f32 0.0, %v3344
        %v3346 = vpop.f32.mrb[0].mxu0
        %v3347 = vadd.f32 0.0, %v3346
        %3348 = vmatprep.mubr.f32.mxu0 0.0
        %3349 = vmatmul.mubr.f32.gmra.mrb[0].mxu0 %v3276
        %v3350 = vpop.f32.mrb[0].mxu0
        %v3351 = vadd.f32 0.0, %v3350
        %v3352 = vpop.f32.mrb[0].mxu0
        %v3353 = vadd.f32 0.0, %v3352
        %3354 = vdwg.mxu0
        %v3355 = vadd.f32 %v3245, %v3345
        %v3356 = vadd.f32 %v3246, %v3347
        %v3357 = vadd.f32 %v3247, %v3351
        %v3358 = vadd.f32 %v3248, %v3353
        %s3359 = scalar_lea.vmem %s4, 320
        %v3360 = vld [vmem:[%s3359] sm:$0xff]
        %v3361 = vld [vmem:[%s3359 + $0x8] sm:$0xff]
        %3362 = vrot.lane.b32.xlu0 %v2935, 64
        %v3363 = vpop.permute.xlu0 %3362
        %3364 = vrot.lane.b32.xlu0 %v2936, 64
        %v3365 = vpop.permute.xlu0 %3364
        %3366 = vrot.lane.b32.xlu0 %v2941, 64
        %v3367 = vpop.permute.xlu0 %3366
        %3368 = vrot.lane.b32.xlu0 %v2937, 64
        %v3369 = vpop.permute.xlu0 %3368
        %3370 = vrot.lane.b32.xlu0 %v2938, 64
        %v3371 = vpop.permute.xlu0 %3370
        %3372 = vrot.lane.b32.xlu0 %v2942, 64
        %v3373 = vpop.permute.xlu0 %3372
        %v3374 = vsel %vm685, %v3363, %v3365
        %v3375 = vsel %vm685, %v3365, %v3367
        %v3376 = vsel %vm685, %v3369, %v3371
        %v3377 = vsel %vm685, %v3371, %v3373
        %v3383 = vsel %vm2972, %v3360, 0
        %v3386 = vsel %vm2972, %v3361, 0
        %3388 = vmatprep.subr.mxu0 %v3375
        %3389 = vmatpush1.msra.mxu0 %v3374
        %3390 = vmatprep.subr.mxu0 %v3377
        %3391 = vmatpush1.msra.mxu0 %v3376
        %3392 = vmatprep.subr.mxu0 0.0
        %3393 = vmatpush1.msra.mxu0 0.0
        %3394 = vmatprep.subr.mxu0 0.0
        %3395 = vmatpush1.msra.mxu0 0.0
        %3396 = vmatprep.subr.mxu0 0.0
        %3397 = vmatpush1.msra.mxu0 0.0
        %3398 = vmatprep.subr.mxu0 0.0
        %3399 = vmatpush1.msra.mxu0 0.0
        %3400 = vmatprep.subr.mxu0 0.0
        %3401 = vmatpush1.msra.mxu0 0.0
        %3402 = vmatprep.subr.mxu0 0.0
        %3403 = vmatpush1.msra.mxu0 0.0
        %3404 = vmatprep.subr.mxu0 0.0
        %3405 = vmatpush1.msra.mxu0 0.0
        %3406 = vmatprep.subr.mxu0 0.0
        %3407 = vmatpush1.msra.mxu0 0.0
        %3408 = vmatprep.subr.mxu0 0.0
        %3409 = vmatpush1.msra.mxu0 0.0
        %3410 = vmatprep.subr.mxu0 0.0
        %3411 = vmatpush1.msra.mxu0 0.0
        %3412 = vmatprep.subr.mxu0 0.0
        %3413 = vmatpush1.msra.mxu0 0.0
        %3414 = vmatprep.subr.mxu0 0.0
        %3415 = vmatpush1.msra.mxu0 0.0
        %3416 = vmatprep.subr.mxu0 0.0
        %3417 = vmatpush1.msra.mxu0 0.0
        %3418 = vmatprep.subr.mxu0 0.0
        %3419 = vmatpush1.msra.mxu0 0.0
        %3420 = vmatprep.subr.mxu0 0.0
        %3421 = vmatpush1.msra.mxu0 0.0
        %3422 = vmatprep.subr.mxu0 0.0
        %3423 = vmatpush1.msra.mxu0 0.0
        %3424 = vmatprep.subr.mxu0 0.0
        %3425 = vmatpush1.msra.mxu0 0.0
        %3426 = vmatprep.subr.mxu0 0.0
        %3427 = vmatpush1.msra.mxu0 0.0
        %3428 = vmatprep.subr.mxu0 0.0
        %3429 = vmatpush1.msra.mxu0 0.0
        %3430 = vmatprep.subr.mxu0 0.0
        %3431 = vmatpush1.msra.mxu0 0.0
        %3432 = vmatprep.subr.mxu0 0.0
        %3433 = vmatpush1.msra.mxu0 0.0
        %3434 = vmatprep.subr.mxu0 0.0
        %3435 = vmatpush1.msra.mxu0 0.0
        %3436 = vmatprep.subr.mxu0 0.0
        %3437 = vmatpush1.msra.mxu0 0.0
        %3438 = vmatprep.subr.mxu0 0.0
        %3439 = vmatpush1.msra.mxu0 0.0
        %3440 = vmatprep.subr.mxu0 0.0
        %3441 = vmatpush1.msra.mxu0 0.0
        %3442 = vmatprep.subr.mxu0 0.0
        %3443 = vmatpush1.msra.mxu0 0.0
        %3444 = vmatprep.subr.mxu0 0.0
        %3445 = vmatpush1.msra.mxu0 0.0
        %3446 = vmatprep.subr.mxu0 0.0
        %3447 = vmatpush1.msra.mxu0 0.0
        %3448 = vmatprep.subr.mxu0 0.0
        %3449 = vmatpush1.msra.mxu0 0.0
        %3450 = vmatprep.subr.mxu0 0.0
        %3451 = vmatpush1.msra.mxu0 0.0
        %3452 = vmatprep.mubr.f32.mxu0 0.0
        %3453 = vmatmul.mubr.f32.gmra.mrb[0].mxu0 %v3383
        %v3454 = vpop.f32.mrb[0].mxu0
        %v3455 = vadd.f32 0.0, %v3454
        %v3456 = vpop.f32.mrb[0].mxu0
        %v3457 = vadd.f32 0.0, %v3456
        %3458 = vmatprep.mubr.f32.mxu0 0.0
        %3459 = vmatmul.mubr.f32.gmra.mrb[0].mxu0 %v3386
        %v3460 = vpop.f32.mrb[0].mxu0
        %v3461 = vadd.f32 0.0, %v3460
        %v3462 = vpop.f32.mrb[0].mxu0
        %v3463 = vadd.f32 0.0, %v3462
        %3464 = vdwg.mxu0
        %v3465 = vadd.f32 %v3355, %v3455
        %v3466 = vadd.f32 %v3356, %v3457
        %v3467 = vadd.f32 %v3357, %v3461
        %v3468 = vadd.f32 %v3358, %v3463
        %v3469 = vmul.f32 %v3465, %v776
        %v3470 = vmul.f32 %v3466, %v777
        %v3471 = vmul.f32 %v3467, %v776
        %v3472 = vmul.f32 %v3468, %v777
        %v3473 = vadd.f32 %v3469, 0.0
        %v3474 = vadd.f32 %v3470, 0.0
        %v3475 = vadd.f32 %v3471, 0.0
        %v3476 = vadd.f32 %v3472, 0.0
        %s3477 = scalar_lea.vmem %s4, 16
        %v3478 = vld [vmem:[%s3477] sm:$0xff]
        %v3479 = vld [vmem:[%s3477 + $0x8] sm:$0xff]
        %s3480 = scalar_lea.vmem %s4, 96
        %v3481 = vld [vmem:[%s3480] sm:$0xff]
        %v3482 = vld [vmem:[%s3480 + $0x8] sm:$0xff]
        %3483 = vrot.lane.b32.xlu0 %v2935, 111
        %v3484 = vpop.permute.xlu0 %3483
        %3485 = vrot.lane.b32.xlu0 %v2936, 111
        %v3486 = vpop.permute.xlu0 %3485
        %3487 = vrot.lane.b32.xlu0 %v2941, 111
        %v3488 = vpop.permute.xlu0 %3487
        %3489 = vrot.lane.b32.xlu0 %v2937, 111
        %v3490 = vpop.permute.xlu0 %3489
        %3491 = vrot.lane.b32.xlu0 %v2938, 111
        %v3492 = vpop.permute.xlu0 %3491
        %3493 = vrot.lane.b32.xlu0 %v2942, 111
        %v3494 = vpop.permute.xlu0 %3493
        %v3495 = vsel %vm792, %v3484, %v3486
        %v3496 = vsel %vm792, %v3486, %v3488
        %v3497 = vsel %vm792, %v3490, %v3492
        %v3498 = vsel %vm792, %v3492, %v3494
        %v3504 = vsel %vm2972, %v3481, 0
        %v3507 = vsel %vm2972, %v3482, 0
        %3509 = vmatprep.subr.mxu0 %v3496
        %3510 = vmatpush1.msra.mxu0 %v3495
        %3511 = vmatprep.subr.mxu0 %v3498
        %3512 = vmatpush1.msra.mxu0 %v3497
        %3513 = vmatprep.subr.mxu0 0.0
        %3514 = vmatpush1.msra.mxu0 0.0
        %3515 = vmatprep.subr.mxu0 0.0
        %3516 = vmatpush1.msra.mxu0 0.0
        %3517 = vmatprep.subr.mxu0 0.0
        %3518 = vmatpush1.msra.mxu0 0.0
        %3519 = vmatprep.subr.mxu0 0.0
        %3520 = vmatpush1.msra.mxu0 0.0
        %3521 = vmatprep.subr.mxu0 0.0
        %3522 = vmatpush1.msra.mxu0 0.0
        %3523 = vmatprep.subr.mxu0 0.0
        %3524 = vmatpush1.msra.mxu0 0.0
        %3525 = vmatprep.subr.mxu0 0.0
        %3526 = vmatpush1.msra.mxu0 0.0
        %3527 = vmatprep.subr.mxu0 0.0
        %3528 = vmatpush1.msra.mxu0 0.0
        %3529 = vmatprep.subr.mxu0 0.0
        %3530 = vmatpush1.msra.mxu0 0.0
        %3531 = vmatprep.subr.mxu0 0.0
        %3532 = vmatpush1.msra.mxu0 0.0
        %3533 = vmatprep.subr.mxu0 0.0
        %3534 = vmatpush1.msra.mxu0 0.0
        %3535 = vmatprep.subr.mxu0 0.0
        %3536 = vmatpush1.msra.mxu0 0.0
        %3537 = vmatprep.subr.mxu0 0.0
        %3538 = vmatpush1.msra.mxu0 0.0
        %3539 = vmatprep.subr.mxu0 0.0
        %3540 = vmatpush1.msra.mxu0 0.0
        %3541 = vmatprep.subr.mxu0 0.0
        %3542 = vmatpush1.msra.mxu0 0.0
        %3543 = vmatprep.subr.mxu0 0.0
        %3544 = vmatpush1.msra.mxu0 0.0
        %3545 = vmatprep.subr.mxu0 0.0
        %3546 = vmatpush1.msra.mxu0 0.0
        %3547 = vmatprep.subr.mxu0 0.0
        %3548 = vmatpush1.msra.mxu0 0.0
        %3549 = vmatprep.subr.mxu0 0.0
        %3550 = vmatpush1.msra.mxu0 0.0
        %3551 = vmatprep.subr.mxu0 0.0
        %3552 = vmatpush1.msra.mxu0 0.0
        %3553 = vmatprep.subr.mxu0 0.0
        %3554 = vmatpush1.msra.mxu0 0.0
        %3555 = vmatprep.subr.mxu0 0.0
        %3556 = vmatpush1.msra.mxu0 0.0
        %3557 = vmatprep.subr.mxu0 0.0
        %3558 = vmatpush1.msra.mxu0 0.0
        %3559 = vmatprep.subr.mxu0 0.0
        %3560 = vmatpush1.msra.mxu0 0.0
        %3561 = vmatprep.subr.mxu0 0.0
        %3562 = vmatpush1.msra.mxu0 0.0
        %3563 = vmatprep.subr.mxu0 0.0
        %3564 = vmatpush1.msra.mxu0 0.0
        %3565 = vmatprep.subr.mxu0 0.0
        %3566 = vmatpush1.msra.mxu0 0.0
        %3567 = vmatprep.subr.mxu0 0.0
        %3568 = vmatpush1.msra.mxu0 0.0
        %3569 = vmatprep.subr.mxu0 0.0
        %3570 = vmatpush1.msra.mxu0 0.0
        %3571 = vmatprep.subr.mxu0 0.0
        %3572 = vmatpush1.msra.mxu0 0.0
        %3573 = vmatprep.mubr.f32.mxu0 0.0
        %3574 = vmatmul.mubr.f32.gmra.mrb[0].mxu0 %v3504
        %v3575 = vpop.f32.mrb[0].mxu0
        %v3576 = vadd.f32 0.0, %v3575
        %v3577 = vpop.f32.mrb[0].mxu0
        %v3578 = vadd.f32 0.0, %v3577
        %3579 = vmatprep.mubr.f32.mxu0 0.0
        %3580 = vmatmul.mubr.f32.gmra.mrb[0].mxu0 %v3507
        %v3581 = vpop.f32.mrb[0].mxu0
        %v3582 = vadd.f32 0.0, %v3581
        %v3583 = vpop.f32.mrb[0].mxu0
        %v3584 = vadd.f32 0.0, %v3583
        %3585 = vdwg.mxu0
        %3586 = vrot.lane.b32.xlu0 %v2935, 127
        %v3587 = vpop.permute.xlu0 %3586
        %3588 = vrot.lane.b32.xlu0 %v2936, 127
        %v3589 = vpop.permute.xlu0 %3588
        %3590 = vrot.lane.b32.xlu0 %v2941, 127
        %v3591 = vpop.permute.xlu0 %3590
        %3592 = vrot.lane.b32.xlu0 %v2937, 127
        %v3593 = vpop.permute.xlu0 %3592
        %3594 = vrot.lane.b32.xlu0 %v2938, 127
        %v3595 = vpop.permute.xlu0 %3594
        %3596 = vrot.lane.b32.xlu0 %v2942, 127
        %v3597 = vpop.permute.xlu0 %3596
        %v3598 = vsel %vm877, %v3587, %v3589
        %v3599 = vsel %vm877, %v3589, %v3591
        %v3600 = vsel %vm877, %v3593, %v3595
        %v3601 = vsel %vm877, %v3595, %v3597
        %v3607 = vsel %vm2972, %v3478, 0
        %v3610 = vsel %vm2972, %v3479, 0
        %3612 = vmatprep.subr.mxu0 %v3599
        %3613 = vmatpush1.msra.mxu0 %v3598
        %3614 = vmatprep.subr.mxu0 %v3601
        %3615 = vmatpush1.msra.mxu0 %v3600
        %3616 = vmatprep.subr.mxu0 0.0
        %3617 = vmatpush1.msra.mxu0 0.0
        %3618 = vmatprep.subr.mxu0 0.0
        %3619 = vmatpush1.msra.mxu0 0.0
        %3620 = vmatprep.subr.mxu0 0.0
        %3621 = vmatpush1.msra.mxu0 0.0
        %3622 = vmatprep.subr.mxu0 0.0
        %3623 = vmatpush1.msra.mxu0 0.0
        %3624 = vmatprep.subr.mxu0 0.0
        %3625 = vmatpush1.msra.mxu0 0.0
        %3626 = vmatprep.subr.mxu0 0.0
        %3627 = vmatpush1.msra.mxu0 0.0
        %3628 = vmatprep.subr.mxu0 0.0
        %3629 = vmatpush1.msra.mxu0 0.0
        %3630 = vmatprep.subr.mxu0 0.0
        %3631 = vmatpush1.msra.mxu0 0.0
        %3632 = vmatprep.subr.mxu0 0.0
        %3633 = vmatpush1.msra.mxu0 0.0
        %3634 = vmatprep.subr.mxu0 0.0
        %3635 = vmatpush1.msra.mxu0 0.0
        %3636 = vmatprep.subr.mxu0 0.0
        %3637 = vmatpush1.msra.mxu0 0.0
        %3638 = vmatprep.subr.mxu0 0.0
        %3639 = vmatpush1.msra.mxu0 0.0
        %3640 = vmatprep.subr.mxu0 0.0
        %3641 = vmatpush1.msra.mxu0 0.0
        %3642 = vmatprep.subr.mxu0 0.0
        %3643 = vmatpush1.msra.mxu0 0.0
        %3644 = vmatprep.subr.mxu0 0.0
        %3645 = vmatpush1.msra.mxu0 0.0
        %3646 = vmatprep.subr.mxu0 0.0
        %3647 = vmatpush1.msra.mxu0 0.0
        %3648 = vmatprep.subr.mxu0 0.0
        %3649 = vmatpush1.msra.mxu0 0.0
        %3650 = vmatprep.subr.mxu0 0.0
        %3651 = vmatpush1.msra.mxu0 0.0
        %3652 = vmatprep.subr.mxu0 0.0
        %3653 = vmatpush1.msra.mxu0 0.0
        %3654 = vmatprep.subr.mxu0 0.0
        %3655 = vmatpush1.msra.mxu0 0.0
        %3656 = vmatprep.subr.mxu0 0.0
        %3657 = vmatpush1.msra.mxu0 0.0
        %3658 = vmatprep.subr.mxu0 0.0
        %3659 = vmatpush1.msra.mxu0 0.0
        %3660 = vmatprep.subr.mxu0 0.0
        %3661 = vmatpush1.msra.mxu0 0.0
        %3662 = vmatprep.subr.mxu0 0.0
        %3663 = vmatpush1.msra.mxu0 0.0
        %3664 = vmatprep.subr.mxu0 0.0
        %3665 = vmatpush1.msra.mxu0 0.0
        %3666 = vmatprep.subr.mxu0 0.0
        %3667 = vmatpush1.msra.mxu0 0.0
        %3668 = vmatprep.subr.mxu0 0.0
        %3669 = vmatpush1.msra.mxu0 0.0
        %3670 = vmatprep.subr.mxu0 0.0
        %3671 = vmatpush1.msra.mxu0 0.0
        %3672 = vmatprep.subr.mxu0 0.0
        %3673 = vmatpush1.msra.mxu0 0.0
        %3674 = vmatprep.subr.mxu0 0.0
        %3675 = vmatpush1.msra.mxu0 0.0
        %3676 = vmatprep.mubr.f32.mxu0 0.0
        %3677 = vmatmul.mubr.f32.gmra.mrb[0].mxu0 %v3607
        %v3678 = vpop.f32.mrb[0].mxu0
        %v3679 = vadd.f32 %v3576, %v3678
        %v3680 = vpop.f32.mrb[0].mxu0
        %v3681 = vadd.f32 %v3578, %v3680
        %3682 = vmatprep.mubr.f32.mxu0 0.0
        %3683 = vmatmul.mubr.f32.gmra.mrb[0].mxu0 %v3610
        %v3684 = vpop.f32.mrb[0].mxu0
        %v3685 = vadd.f32 %v3582, %v3684
        %v3686 = vpop.f32.mrb[0].mxu0
        %v3687 = vadd.f32 %v3584, %v3686
        %3688 = vdwg.mxu0
        %s3689 = scalar_lea.vmem %s4, 176
        %v3690 = vld [vmem:[%s3689] sm:$0xff]
        %v3691 = vld [vmem:[%s3689 + $0x8] sm:$0xff]
        %3692 = vrot.lane.b32.xlu0 %v2935, 95
        %v3693 = vpop.permute.xlu0 %3692
        %3694 = vrot.lane.b32.xlu0 %v2936, 95
        %v3695 = vpop.permute.xlu0 %3694
        %3696 = vrot.lane.b32.xlu0 %v2941, 95
        %v3697 = vpop.permute.xlu0 %3696
        %3698 = vrot.lane.b32.xlu0 %v2937, 95
        %v3699 = vpop.permute.xlu0 %3698
        %3700 = vrot.lane.b32.xlu0 %v2938, 95
        %v3701 = vpop.permute.xlu0 %3700
        %3702 = vrot.lane.b32.xlu0 %v2942, 95
        %v3703 = vpop.permute.xlu0 %3702
        %v3704 = vsel %vm964, %v3693, %v3695
        %v3705 = vsel %vm964, %v3695, %v3697
        %v3706 = vsel %vm964, %v3699, %v3701
        %v3707 = vsel %vm964, %v3701, %v3703
        %v3713 = vsel %vm2972, %v3690, 0
        %v3716 = vsel %vm2972, %v3691, 0
        %3718 = vmatprep.subr.mxu0 %v3705
        %3719 = vmatpush1.msra.mxu0 %v3704
        %3720 = vmatprep.subr.mxu0 %v3707
        %3721 = vmatpush1.msra.mxu0 %v3706
        %3722 = vmatprep.subr.mxu0 0.0
        %3723 = vmatpush1.msra.mxu0 0.0
        %3724 = vmatprep.subr.mxu0 0.0
        %3725 = vmatpush1.msra.mxu0 0.0
        %3726 = vmatprep.subr.mxu0 0.0
        %3727 = vmatpush1.msra.mxu0 0.0
        %3728 = vmatprep.subr.mxu0 0.0
        %3729 = vmatpush1.msra.mxu0 0.0
        %3730 = vmatprep.subr.mxu0 0.0
        %3731 = vmatpush1.msra.mxu0 0.0
        %3732 = vmatprep.subr.mxu0 0.0
        %3733 = vmatpush1.msra.mxu0 0.0
        %3734 = vmatprep.subr.mxu0 0.0
        %3735 = vmatpush1.msra.mxu0 0.0
        %3736 = vmatprep.subr.mxu0 0.0
        %3737 = vmatpush1.msra.mxu0 0.0
        %3738 = vmatprep.subr.mxu0 0.0
        %3739 = vmatpush1.msra.mxu0 0.0
        %3740 = vmatprep.subr.mxu0 0.0
        %3741 = vmatpush1.msra.mxu0 0.0
        %3742 = vmatprep.subr.mxu0 0.0
        %3743 = vmatpush1.msra.mxu0 0.0
        %3744 = vmatprep.subr.mxu0 0.0
        %3745 = vmatpush1.msra.mxu0 0.0
        %3746 = vmatprep.subr.mxu0 0.0
        %3747 = vmatpush1.msra.mxu0 0.0
        %3748 = vmatprep.subr.mxu0 0.0
        %3749 = vmatpush1.msra.mxu0 0.0
        %3750 = vmatprep.subr.mxu0 0.0
        %3751 = vmatpush1.msra.mxu0 0.0
        %3752 = vmatprep.subr.mxu0 0.0
        %3753 = vmatpush1.msra.mxu0 0.0
        %3754 = vmatprep.subr.mxu0 0.0
        %3755 = vmatpush1.msra.mxu0 0.0
        %3756 = vmatprep.subr.mxu0 0.0
        %3757 = vmatpush1.msra.mxu0 0.0
        %3758 = vmatprep.subr.mxu0 0.0
        %3759 = vmatpush1.msra.mxu0 0.0
        %3760 = vmatprep.subr.mxu0 0.0
        %3761 = vmatpush1.msra.mxu0 0.0
        %3762 = vmatprep.subr.mxu0 0.0
        %3763 = vmatpush1.msra.mxu0 0.0
        %3764 = vmatprep.subr.mxu0 0.0
        %3765 = vmatpush1.msra.mxu0 0.0
        %3766 = vmatprep.subr.mxu0 0.0
        %3767 = vmatpush1.msra.mxu0 0.0
        %3768 = vmatprep.subr.mxu0 0.0
        %3769 = vmatpush1.msra.mxu0 0.0
        %3770 = vmatprep.subr.mxu0 0.0
        %3771 = vmatpush1.msra.mxu0 0.0
        %3772 = vmatprep.subr.mxu0 0.0
        %3773 = vmatpush1.msra.mxu0 0.0
        %3774 = vmatprep.subr.mxu0 0.0
        %3775 = vmatpush1.msra.mxu0 0.0
        %3776 = vmatprep.subr.mxu0 0.0
        %3777 = vmatpush1.msra.mxu0 0.0
        %3778 = vmatprep.subr.mxu0 0.0
        %3779 = vmatpush1.msra.mxu0 0.0
        %3780 = vmatprep.subr.mxu0 0.0
        %3781 = vmatpush1.msra.mxu0 0.0
        %3782 = vmatprep.mubr.f32.mxu0 0.0
        %3783 = vmatmul.mubr.f32.gmra.mrb[0].mxu0 %v3713
        %v3784 = vpop.f32.mrb[0].mxu0
        %v3785 = vadd.f32 0.0, %v3784
        %v3786 = vpop.f32.mrb[0].mxu0
        %v3787 = vadd.f32 0.0, %v3786
        %3788 = vmatprep.mubr.f32.mxu0 0.0
        %3789 = vmatmul.mubr.f32.gmra.mrb[0].mxu0 %v3716
        %v3790 = vpop.f32.mrb[0].mxu0
        %v3791 = vadd.f32 0.0, %v3790
        %v3792 = vpop.f32.mrb[0].mxu0
        %v3793 = vadd.f32 0.0, %v3792
        %3794 = vdwg.mxu0
        %v3795 = vadd.f32 %v3679, %v3785
        %v3796 = vadd.f32 %v3681, %v3787
        %v3797 = vadd.f32 %v3685, %v3791
        %v3798 = vadd.f32 %v3687, %v3793
        %s3799 = scalar_lea.vmem %s4, 256
        %v3800 = vld [vmem:[%s3799] sm:$0xff]
        %v3801 = vld [vmem:[%s3799 + $0x8] sm:$0xff]
        %3802 = vrot.lane.b32.xlu0 %v2935, 79
        %v3803 = vpop.permute.xlu0 %3802
        %3804 = vrot.lane.b32.xlu0 %v2936, 79
        %v3805 = vpop.permute.xlu0 %3804
        %3806 = vrot.lane.b32.xlu0 %v2941, 79
        %v3807 = vpop.permute.xlu0 %3806
        %3808 = vrot.lane.b32.xlu0 %v2937, 79
        %v3809 = vpop.permute.xlu0 %3808
        %3810 = vrot.lane.b32.xlu0 %v2938, 79
        %v3811 = vpop.permute.xlu0 %3810
        %3812 = vrot.lane.b32.xlu0 %v2942, 79
        %v3813 = vpop.permute.xlu0 %3812
        %v3814 = vsel %vm1053, %v3803, %v3805
        %v3815 = vsel %vm1053, %v3805, %v3807
        %v3816 = vsel %vm1053, %v3809, %v3811
        %v3817 = vsel %vm1053, %v3811, %v3813
        %v3823 = vsel %vm2972, %v3800, 0
        %v3826 = vsel %vm2972, %v3801, 0
        %3828 = vmatprep.subr.mxu0 %v3815
        %3829 = vmatpush1.msra.mxu0 %v3814
        %3830 = vmatprep.subr.mxu0 %v3817
        %3831 = vmatpush1.msra.mxu0 %v3816
        %3832 = vmatprep.subr.mxu0 0.0
        %3833 = vmatpush1.msra.mxu0 0.0
        %3834 = vmatprep.subr.mxu0 0.0
        %3835 = vmatpush1.msra.mxu0 0.0
        %3836 = vmatprep.subr.mxu0 0.0
        %3837 = vmatpush1.msra.mxu0 0.0
        %3838 = vmatprep.subr.mxu0 0.0
        %3839 = vmatpush1.msra.mxu0 0.0
        %3840 = vmatprep.subr.mxu0 0.0
        %3841 = vmatpush1.msra.mxu0 0.0
        %3842 = vmatprep.subr.mxu0 0.0
        %3843 = vmatpush1.msra.mxu0 0.0
        %3844 = vmatprep.subr.mxu0 0.0
        %3845 = vmatpush1.msra.mxu0 0.0
        %3846 = vmatprep.subr.mxu0 0.0
        %3847 = vmatpush1.msra.mxu0 0.0
        %3848 = vmatprep.subr.mxu0 0.0
        %3849 = vmatpush1.msra.mxu0 0.0
        %3850 = vmatprep.subr.mxu0 0.0
        %3851 = vmatpush1.msra.mxu0 0.0
        %3852 = vmatprep.subr.mxu0 0.0
        %3853 = vmatpush1.msra.mxu0 0.0
        %3854 = vmatprep.subr.mxu0 0.0
        %3855 = vmatpush1.msra.mxu0 0.0
        %3856 = vmatprep.subr.mxu0 0.0
        %3857 = vmatpush1.msra.mxu0 0.0
        %3858 = vmatprep.subr.mxu0 0.0
        %3859 = vmatpush1.msra.mxu0 0.0
        %3860 = vmatprep.subr.mxu0 0.0
        %3861 = vmatpush1.msra.mxu0 0.0
        %3862 = vmatprep.subr.mxu0 0.0
        %3863 = vmatpush1.msra.mxu0 0.0
        %3864 = vmatprep.subr.mxu0 0.0
        %3865 = vmatpush1.msra.mxu0 0.0
        %3866 = vmatprep.subr.mxu0 0.0
        %3867 = vmatpush1.msra.mxu0 0.0
        %3868 = vmatprep.subr.mxu0 0.0
        %3869 = vmatpush1.msra.mxu0 0.0
        %3870 = vmatprep.subr.mxu0 0.0
        %3871 = vmatpush1.msra.mxu0 0.0
        %3872 = vmatprep.subr.mxu0 0.0
        %3873 = vmatpush1.msra.mxu0 0.0
        %3874 = vmatprep.subr.mxu0 0.0
        %3875 = vmatpush1.msra.mxu0 0.0
        %3876 = vmatprep.subr.mxu0 0.0
        %3877 = vmatpush1.msra.mxu0 0.0
        %3878 = vmatprep.subr.mxu0 0.0
        %3879 = vmatpush1.msra.mxu0 0.0
        %3880 = vmatprep.subr.mxu0 0.0
        %3881 = vmatpush1.msra.mxu0 0.0
        %3882 = vmatprep.subr.mxu0 0.0
        %3883 = vmatpush1.msra.mxu0 0.0
        %3884 = vmatprep.subr.mxu0 0.0
        %3885 = vmatpush1.msra.mxu0 0.0
        %3886 = vmatprep.subr.mxu0 0.0
        %3887 = vmatpush1.msra.mxu0 0.0
        %3888 = vmatprep.subr.mxu0 0.0
        %3889 = vmatpush1.msra.mxu0 0.0
        %3890 = vmatprep.subr.mxu0 0.0
        %3891 = vmatpush1.msra.mxu0 0.0
        %3892 = vmatprep.mubr.f32.mxu0 0.0
        %3893 = vmatmul.mubr.f32.gmra.mrb[0].mxu0 %v3823
        %v3894 = vpop.f32.mrb[0].mxu0
        %v3895 = vadd.f32 0.0, %v3894
        %v3896 = vpop.f32.mrb[0].mxu0
        %v3897 = vadd.f32 0.0, %v3896
        %3898 = vmatprep.mubr.f32.mxu0 0.0
        %3899 = vmatmul.mubr.f32.gmra.mrb[0].mxu0 %v3826
        %v3900 = vpop.f32.mrb[0].mxu0
        %v3901 = vadd.f32 0.0, %v3900
        %v3902 = vpop.f32.mrb[0].mxu0
        %v3903 = vadd.f32 0.0, %v3902
        %3904 = vdwg.mxu0
        %v3905 = vadd.f32 %v3795, %v3895
        %v3906 = vadd.f32 %v3796, %v3897
        %v3907 = vadd.f32 %v3797, %v3901
        %v3908 = vadd.f32 %v3798, %v3903
        %s3909 = scalar_lea.vmem %s4, 336
        %v3910 = vld [vmem:[%s3909] sm:$0xff]
        %v3911 = vld [vmem:[%s3909 + $0x8] sm:$0xff]
        %3912 = vrot.lane.b32.xlu0 %v2935, 63
        %v3913 = vpop.permute.xlu0 %3912
        %3914 = vrot.lane.b32.xlu0 %v2936, 63
        %v3915 = vpop.permute.xlu0 %3914
        %3916 = vrot.lane.b32.xlu0 %v2941, 63
        %v3917 = vpop.permute.xlu0 %3916
        %3918 = vrot.lane.b32.xlu0 %v2937, 63
        %v3919 = vpop.permute.xlu0 %3918
        %3920 = vrot.lane.b32.xlu0 %v2938, 63
        %v3921 = vpop.permute.xlu0 %3920
        %3922 = vrot.lane.b32.xlu0 %v2942, 63
        %v3923 = vpop.permute.xlu0 %3922
        %v3924 = vsel %vm1142, %v3913, %v3915
        %v3925 = vsel %vm1142, %v3915, %v3917
        %v3926 = vsel %vm1142, %v3919, %v3921
        %v3927 = vsel %vm1142, %v3921, %v3923
        %v3933 = vsel %vm2972, %v3910, 0
        %v3936 = vsel %vm2972, %v3911, 0
        %3938 = vmatprep.subr.mxu0 %v3925
        %3939 = vmatpush1.msra.mxu0 %v3924
        %3940 = vmatprep.subr.mxu0 %v3927
        %3941 = vmatpush1.msra.mxu0 %v3926
        %3942 = vmatprep.subr.mxu0 0.0
        %3943 = vmatpush1.msra.mxu0 0.0
        %3944 = vmatprep.subr.mxu0 0.0
        %3945 = vmatpush1.msra.mxu0 0.0
        %3946 = vmatprep.subr.mxu0 0.0
        %3947 = vmatpush1.msra.mxu0 0.0
        %3948 = vmatprep.subr.mxu0 0.0
        %3949 = vmatpush1.msra.mxu0 0.0
        %3950 = vmatprep.subr.mxu0 0.0
        %3951 = vmatpush1.msra.mxu0 0.0
        %3952 = vmatprep.subr.mxu0 0.0
        %3953 = vmatpush1.msra.mxu0 0.0
        %3954 = vmatprep.subr.mxu0 0.0
        %3955 = vmatpush1.msra.mxu0 0.0
        %3956 = vmatprep.subr.mxu0 0.0
        %3957 = vmatpush1.msra.mxu0 0.0
        %3958 = vmatprep.subr.mxu0 0.0
        %3959 = vmatpush1.msra.mxu0 0.0
        %3960 = vmatprep.subr.mxu0 0.0
        %3961 = vmatpush1.msra.mxu0 0.0
        %3962 = vmatprep.subr.mxu0 0.0
        %3963 = vmatpush1.msra.mxu0 0.0
        %3964 = vmatprep.subr.mxu0 0.0
        %3965 = vmatpush1.msra.mxu0 0.0
        %3966 = vmatprep.subr.mxu0 0.0
        %3967 = vmatpush1.msra.mxu0 0.0
        %3968 = vmatprep.subr.mxu0 0.0
        %3969 = vmatpush1.msra.mxu0 0.0
        %3970 = vmatprep.subr.mxu0 0.0
        %3971 = vmatpush1.msra.mxu0 0.0
        %3972 = vmatprep.subr.mxu0 0.0
        %3973 = vmatpush1.msra.mxu0 0.0
        %3974 = vmatprep.subr.mxu0 0.0
        %3975 = vmatpush1.msra.mxu0 0.0
        %3976 = vmatprep.subr.mxu0 0.0
        %3977 = vmatpush1.msra.mxu0 0.0
        %3978 = vmatprep.subr.mxu0 0.0
        %3979 = vmatpush1.msra.mxu0 0.0
        %3980 = vmatprep.subr.mxu0 0.0
        %3981 = vmatpush1.msra.mxu0 0.0
        %3982 = vmatprep.subr.mxu0 0.0
        %3983 = vmatpush1.msra.mxu0 0.0
        %3984 = vmatprep.subr.mxu0 0.0
        %3985 = vmatpush1.msra.mxu0 0.0
        %3986 = vmatprep.subr.mxu0 0.0
        %3987 = vmatpush1.msra.mxu0 0.0
        %3988 = vmatprep.subr.mxu0 0.0
        %3989 = vmatpush1.msra.mxu0 0.0
        %3990 = vmatprep.subr.mxu0 0.0
        %3991 = vmatpush1.msra.mxu0 0.0
        %3992 = vmatprep.subr.mxu0 0.0
        %3993 = vmatpush1.msra.mxu0 0.0
        %3994 = vmatprep.subr.mxu0 0.0
        %3995 = vmatpush1.msra.mxu0 0.0
        %3996 = vmatprep.subr.mxu0 0.0
        %3997 = vmatpush1.msra.mxu0 0.0
        %3998 = vmatprep.subr.mxu0 0.0
        %3999 = vmatpush1.msra.mxu0 0.0
        %4000 = vmatprep.subr.mxu0 0.0
        %4001 = vmatpush1.msra.mxu0 0.0
        %4002 = vmatprep.mubr.f32.mxu0 0.0
        %4003 = vmatmul.mubr.f32.gmra.mrb[0].mxu0 %v3933
        %v4004 = vpop.f32.mrb[0].mxu0
        %v4005 = vadd.f32 0.0, %v4004
        %v4006 = vpop.f32.mrb[0].mxu0
        %v4007 = vadd.f32 0.0, %v4006
        %4008 = vmatprep.mubr.f32.mxu0 0.0
        %4009 = vmatmul.mubr.f32.gmra.mrb[0].mxu0 %v3936
        %v4010 = vpop.f32.mrb[0].mxu0
        %v4011 = vadd.f32 0.0, %v4010
        %v4012 = vpop.f32.mrb[0].mxu0
        %v4013 = vadd.f32 0.0, %v4012
        %4014 = vdwg.mxu0
        %v4015 = vadd.f32 %v3905, %v4005
        %v4016 = vadd.f32 %v3906, %v4007
        %v4017 = vadd.f32 %v3907, %v4011
        %v4018 = vadd.f32 %v3908, %v4013
        %v4019 = vmul.f32 %v4015, %v1233
        %v4020 = vmul.f32 %v4016, %v1234
        %v4021 = vmul.f32 %v4017, %v1233
        %v4022 = vmul.f32 %v4018, %v1234
        %v4023 = vadd.f32 %v3473, %v4019
        %v4024 = vadd.f32 %v3474, %v4020
        %v4025 = vadd.f32 %v3475, %v4021
        %v4026 = vadd.f32 %v3476, %v4022
        %s4027 = scalar_lea.vmem %s4, 32
        %v4028 = vld [vmem:[%s4027] sm:$0xff]
        %v4029 = vld [vmem:[%s4027 + $0x8] sm:$0xff]
        %s4030 = scalar_lea.vmem %s4, 112
        %v4031 = vld [vmem:[%s4030] sm:$0xff]
        %v4032 = vld [vmem:[%s4030 + $0x8] sm:$0xff]
        %4033 = vrot.lane.b32.xlu0 %v2935, 110
        %v4034 = vpop.permute.xlu0 %4033
        %4035 = vrot.lane.b32.xlu0 %v2936, 110
        %v4036 = vpop.permute.xlu0 %4035
        %4037 = vrot.lane.b32.xlu0 %v2941, 110
        %v4038 = vpop.permute.xlu0 %4037
        %4039 = vrot.lane.b32.xlu0 %v2937, 110
        %v4040 = vpop.permute.xlu0 %4039
        %4041 = vrot.lane.b32.xlu0 %v2938, 110
        %v4042 = vpop.permute.xlu0 %4041
        %4043 = vrot.lane.b32.xlu0 %v2942, 110
        %v4044 = vpop.permute.xlu0 %4043
        %v4045 = vsel %vm1249, %v4034, %v4036
        %v4046 = vsel %vm1249, %v4036, %v4038
        %v4047 = vsel %vm1249, %v4040, %v4042
        %v4048 = vsel %vm1249, %v4042, %v4044
        %v4054 = vsel %vm2972, %v4031, 0
        %v4057 = vsel %vm2972, %v4032, 0
        %4059 = vmatprep.subr.mxu0 %v4046
        %4060 = vmatpush1.msra.mxu0 %v4045
        %4061 = vmatprep.subr.mxu0 %v4048
        %4062 = vmatpush1.msra.mxu0 %v4047
        %4063 = vmatprep.subr.mxu0 0.0
        %4064 = vmatpush1.msra.mxu0 0.0
        %4065 = vmatprep.subr.mxu0 0.0
        %4066 = vmatpush1.msra.mxu0 0.0
        %4067 = vmatprep.subr.mxu0 0.0
        %4068 = vmatpush1.msra.mxu0 0.0
        %4069 = vmatprep.subr.mxu0 0.0
        %4070 = vmatpush1.msra.mxu0 0.0
        %4071 = vmatprep.subr.mxu0 0.0
        %4072 = vmatpush1.msra.mxu0 0.0
        %4073 = vmatprep.subr.mxu0 0.0
        %4074 = vmatpush1.msra.mxu0 0.0
        %4075 = vmatprep.subr.mxu0 0.0
        %4076 = vmatpush1.msra.mxu0 0.0
        %4077 = vmatprep.subr.mxu0 0.0
        %4078 = vmatpush1.msra.mxu0 0.0
        %4079 = vmatprep.subr.mxu0 0.0
        %4080 = vmatpush1.msra.mxu0 0.0
        %4081 = vmatprep.subr.mxu0 0.0
        %4082 = vmatpush1.msra.mxu0 0.0
        %4083 = vmatprep.subr.mxu0 0.0
        %4084 = vmatpush1.msra.mxu0 0.0
        %4085 = vmatprep.subr.mxu0 0.0
        %4086 = vmatpush1.msra.mxu0 0.0
        %4087 = vmatprep.subr.mxu0 0.0
        %4088 = vmatpush1.msra.mxu0 0.0
        %4089 = vmatprep.subr.mxu0 0.0
        %4090 = vmatpush1.msra.mxu0 0.0
        %4091 = vmatprep.subr.mxu0 0.0
        %4092 = vmatpush1.msra.mxu0 0.0
        %4093 = vmatprep.subr.mxu0 0.0
        %4094 = vmatpush1.msra.mxu0 0.0
        %4095 = vmatprep.subr.mxu0 0.0
        %4096 = vmatpush1.msra.mxu0 0.0
        %4097 = vmatprep.subr.mxu0 0.0
        %4098 = vmatpush1.msra.mxu0 0.0
        %4099 = vmatprep.subr.mxu0 0.0
        %4100 = vmatpush1.msra.mxu0 0.0
        %4101 = vmatprep.subr.mxu0 0.0
        %4102 = vmatpush1.msra.mxu0 0.0
        %4103 = vmatprep.subr.mxu0 0.0
        %4104 = vmatpush1.msra.mxu0 0.0
        %4105 = vmatprep.subr.mxu0 0.0
        %4106 = vmatpush1.msra.mxu0 0.0
        %4107 = vmatprep.subr.mxu0 0.0
        %4108 = vmatpush1.msra.mxu0 0.0
        %4109 = vmatprep.subr.mxu0 0.0
        %4110 = vmatpush1.msra.mxu0 0.0
        %4111 = vmatprep.subr.mxu0 0.0
        %4112 = vmatpush1.msra.mxu0 0.0
        %4113 = vmatprep.subr.mxu0 0.0
        %4114 = vmatpush1.msra.mxu0 0.0
        %4115 = vmatprep.subr.mxu0 0.0
        %4116 = vmatpush1.msra.mxu0 0.0
        %4117 = vmatprep.subr.mxu0 0.0
        %4118 = vmatpush1.msra.mxu0 0.0
        %4119 = vmatprep.subr.mxu0 0.0
        %4120 = vmatpush1.msra.mxu0 0.0
        %4121 = vmatprep.subr.mxu0 0.0
        %4122 = vmatpush1.msra.mxu0 0.0
        %4123 = vmatprep.mubr.f32.mxu0 0.0
        %4124 = vmatmul.mubr.f32.gmra.mrb[0].mxu0 %v4054
        %v4125 = vpop.f32.mrb[0].mxu0
        %v4126 = vadd.f32 0.0, %v4125
        %v4127 = vpop.f32.mrb[0].mxu0
        %v4128 = vadd.f32 0.0, %v4127
        %4129 = vmatprep.mubr.f32.mxu0 0.0
        %4130 = vmatmul.mubr.f32.gmra.mrb[0].mxu0 %v4057
        %v4131 = vpop.f32.mrb[0].mxu0
        %v4132 = vadd.f32 0.0, %v4131
        %v4133 = vpop.f32.mrb[0].mxu0
        %v4134 = vadd.f32 0.0, %v4133
        %4135 = vdwg.mxu0
        %4136 = vrot.lane.b32.xlu0 %v2935, 126
        %v4137 = vpop.permute.xlu0 %4136
        %4138 = vrot.lane.b32.xlu0 %v2936, 126
        %v4139 = vpop.permute.xlu0 %4138
        %4140 = vrot.lane.b32.xlu0 %v2941, 126
        %v4141 = vpop.permute.xlu0 %4140
        %4142 = vrot.lane.b32.xlu0 %v2937, 126
        %v4143 = vpop.permute.xlu0 %4142
        %4144 = vrot.lane.b32.xlu0 %v2938, 126
        %v4145 = vpop.permute.xlu0 %4144
        %4146 = vrot.lane.b32.xlu0 %v2942, 126
        %v4147 = vpop.permute.xlu0 %4146
        %v4148 = vsel %vm1334, %v4137, %v4139
        %v4149 = vsel %vm1334, %v4139, %v4141
        %v4150 = vsel %vm1334, %v4143, %v4145
        %v4151 = vsel %vm1334, %v4145, %v4147
        %v4157 = vsel %vm2972, %v4028, 0
        %v4160 = vsel %vm2972, %v4029, 0
        %4162 = vmatprep.subr.mxu0 %v4149
        %4163 = vmatpush1.msra.mxu0 %v4148
        %4164 = vmatprep.subr.mxu0 %v4151
        %4165 = vmatpush1.msra.mxu0 %v4150
        %4166 = vmatprep.subr.mxu0 0.0
        %4167 = vmatpush1.msra.mxu0 0.0
        %4168 = vmatprep.subr.mxu0 0.0
        %4169 = vmatpush1.msra.mxu0 0.0
        %4170 = vmatprep.subr.mxu0 0.0
        %4171 = vmatpush1.msra.mxu0 0.0
        %4172 = vmatprep.subr.mxu0 0.0
        %4173 = vmatpush1.msra.mxu0 0.0
        %4174 = vmatprep.subr.mxu0 0.0
        %4175 = vmatpush1.msra.mxu0 0.0
        %4176 = vmatprep.subr.mxu0 0.0
        %4177 = vmatpush1.msra.mxu0 0.0
        %4178 = vmatprep.subr.mxu0 0.0
        %4179 = vmatpush1.msra.mxu0 0.0
        %4180 = vmatprep.subr.mxu0 0.0
        %4181 = vmatpush1.msra.mxu0 0.0
        %4182 = vmatprep.subr.mxu0 0.0
        %4183 = vmatpush1.msra.mxu0 0.0
        %4184 = vmatprep.subr.mxu0 0.0
        %4185 = vmatpush1.msra.mxu0 0.0
        %4186 = vmatprep.subr.mxu0 0.0
        %4187 = vmatpush1.msra.mxu0 0.0
        %4188 = vmatprep.subr.mxu0 0.0
        %4189 = vmatpush1.msra.mxu0 0.0
        %4190 = vmatprep.subr.mxu0 0.0
        %4191 = vmatpush1.msra.mxu0 0.0
        %4192 = vmatprep.subr.mxu0 0.0
        %4193 = vmatpush1.msra.mxu0 0.0
        %4194 = vmatprep.subr.mxu0 0.0
        %4195 = vmatpush1.msra.mxu0 0.0
        %4196 = vmatprep.subr.mxu0 0.0
        %4197 = vmatpush1.msra.mxu0 0.0
        %4198 = vmatprep.subr.mxu0 0.0
        %4199 = vmatpush1.msra.mxu0 0.0
        %4200 = vmatprep.subr.mxu0 0.0
        %4201 = vmatpush1.msra.mxu0 0.0
        %4202 = vmatprep.subr.mxu0 0.0
        %4203 = vmatpush1.msra.mxu0 0.0
        %4204 = vmatprep.subr.mxu0 0.0
        %4205 = vmatpush1.msra.mxu0 0.0
        %4206 = vmatprep.subr.mxu0 0.0
        %4207 = vmatpush1.msra.mxu0 0.0
        %4208 = vmatprep.subr.mxu0 0.0
        %4209 = vmatpush1.msra.mxu0 0.0
        %4210 = vmatprep.subr.mxu0 0.0
        %4211 = vmatpush1.msra.mxu0 0.0
        %4212 = vmatprep.subr.mxu0 0.0
        %4213 = vmatpush1.msra.mxu0 0.0
        %4214 = vmatprep.subr.mxu0 0.0
        %4215 = vmatpush1.msra.mxu0 0.0
        %4216 = vmatprep.subr.mxu0 0.0
        %4217 = vmatpush1.msra.mxu0 0.0
        %4218 = vmatprep.subr.mxu0 0.0
        %4219 = vmatpush1.msra.mxu0 0.0
        %4220 = vmatprep.subr.mxu0 0.0
        %4221 = vmatpush1.msra.mxu0 0.0
        %4222 = vmatprep.subr.mxu0 0.0
        %4223 = vmatpush1.msra.mxu0 0.0
        %4224 = vmatprep.subr.mxu0 0.0
        %4225 = vmatpush1.msra.mxu0 0.0
        %4226 = vmatprep.mubr.f32.mxu0 0.0
        %4227 = vmatmul.mubr.f32.gmra.mrb[0].mxu0 %v4157
        %v4228 = vpop.f32.mrb[0].mxu0
        %v4229 = vadd.f32 %v4126, %v4228
        %v4230 = vpop.f32.mrb[0].mxu0
        %v4231 = vadd.f32 %v4128, %v4230
        %4232 = vmatprep.mubr.f32.mxu0 0.0
        %4233 = vmatmul.mubr.f32.gmra.mrb[0].mxu0 %v4160
        %v4234 = vpop.f32.mrb[0].mxu0
        %v4235 = vadd.f32 %v4132, %v4234
        %v4236 = vpop.f32.mrb[0].mxu0
        %v4237 = vadd.f32 %v4134, %v4236
        %4238 = vdwg.mxu0
        %s4239 = scalar_lea.vmem %s4, 192
        %v4240 = vld [vmem:[%s4239] sm:$0xff]
        %v4241 = vld [vmem:[%s4239 + $0x8] sm:$0xff]
        %4242 = vrot.lane.b32.xlu0 %v2935, 94
        %v4243 = vpop.permute.xlu0 %4242
        %4244 = vrot.lane.b32.xlu0 %v2936, 94
        %v4245 = vpop.permute.xlu0 %4244
        %4246 = vrot.lane.b32.xlu0 %v2941, 94
        %v4247 = vpop.permute.xlu0 %4246
        %4248 = vrot.lane.b32.xlu0 %v2937, 94
        %v4249 = vpop.permute.xlu0 %4248
        %4250 = vrot.lane.b32.xlu0 %v2938, 94
        %v4251 = vpop.permute.xlu0 %4250
        %4252 = vrot.lane.b32.xlu0 %v2942, 94
        %v4253 = vpop.permute.xlu0 %4252
        %v4254 = vsel %vm1421, %v4243, %v4245
        %v4255 = vsel %vm1421, %v4245, %v4247
        %v4256 = vsel %vm1421, %v4249, %v4251
        %v4257 = vsel %vm1421, %v4251, %v4253
        %v4263 = vsel %vm2972, %v4240, 0
        %v4266 = vsel %vm2972, %v4241, 0
        %4268 = vmatprep.subr.mxu0 %v4255
        %4269 = vmatpush1.msra.mxu0 %v4254
        %4270 = vmatprep.subr.mxu0 %v4257
        %4271 = vmatpush1.msra.mxu0 %v4256
        %4272 = vmatprep.subr.mxu0 0.0
        %4273 = vmatpush1.msra.mxu0 0.0
        %4274 = vmatprep.subr.mxu0 0.0
        %4275 = vmatpush1.msra.mxu0 0.0
        %4276 = vmatprep.subr.mxu0 0.0
        %4277 = vmatpush1.msra.mxu0 0.0
        %4278 = vmatprep.subr.mxu0 0.0
        %4279 = vmatpush1.msra.mxu0 0.0
        %4280 = vmatprep.subr.mxu0 0.0
        %4281 = vmatpush1.msra.mxu0 0.0
        %4282 = vmatprep.subr.mxu0 0.0
        %4283 = vmatpush1.msra.mxu0 0.0
        %4284 = vmatprep.subr.mxu0 0.0
        %4285 = vmatpush1.msra.mxu0 0.0
        %4286 = vmatprep.subr.mxu0 0.0
        %4287 = vmatpush1.msra.mxu0 0.0
        %4288 = vmatprep.subr.mxu0 0.0
        %4289 = vmatpush1.msra.mxu0 0.0
        %4290 = vmatprep.subr.mxu0 0.0
        %4291 = vmatpush1.msra.mxu0 0.0
        %4292 = vmatprep.subr.mxu0 0.0
        %4293 = vmatpush1.msra.mxu0 0.0
        %4294 = vmatprep.subr.mxu0 0.0
        %4295 = vmatpush1.msra.mxu0 0.0
        %4296 = vmatprep.subr.mxu0 0.0
        %4297 = vmatpush1.msra.mxu0 0.0
        %4298 = vmatprep.subr.mxu0 0.0
        %4299 = vmatpush1.msra.mxu0 0.0
        %4300 = vmatprep.subr.mxu0 0.0
        %4301 = vmatpush1.msra.mxu0 0.0
        %4302 = vmatprep.subr.mxu0 0.0
        %4303 = vmatpush1.msra.mxu0 0.0
        %4304 = vmatprep.subr.mxu0 0.0
        %4305 = vmatpush1.msra.mxu0 0.0
        %4306 = vmatprep.subr.mxu0 0.0
        %4307 = vmatpush1.msra.mxu0 0.0
        %4308 = vmatprep.subr.mxu0 0.0
        %4309 = vmatpush1.msra.mxu0 0.0
        %4310 = vmatprep.subr.mxu0 0.0
        %4311 = vmatpush1.msra.mxu0 0.0
        %4312 = vmatprep.subr.mxu0 0.0
        %4313 = vmatpush1.msra.mxu0 0.0
        %4314 = vmatprep.subr.mxu0 0.0
        %4315 = vmatpush1.msra.mxu0 0.0
        %4316 = vmatprep.subr.mxu0 0.0
        %4317 = vmatpush1.msra.mxu0 0.0
        %4318 = vmatprep.subr.mxu0 0.0
        %4319 = vmatpush1.msra.mxu0 0.0
        %4320 = vmatprep.subr.mxu0 0.0
        %4321 = vmatpush1.msra.mxu0 0.0
        %4322 = vmatprep.subr.mxu0 0.0
        %4323 = vmatpush1.msra.mxu0 0.0
        %4324 = vmatprep.subr.mxu0 0.0
        %4325 = vmatpush1.msra.mxu0 0.0
        %4326 = vmatprep.subr.mxu0 0.0
        %4327 = vmatpush1.msra.mxu0 0.0
        %4328 = vmatprep.subr.mxu0 0.0
        %4329 = vmatpush1.msra.mxu0 0.0
        %4330 = vmatprep.subr.mxu0 0.0
        %4331 = vmatpush1.msra.mxu0 0.0
        %4332 = vmatprep.mubr.f32.mxu0 0.0
        %4333 = vmatmul.mubr.f32.gmra.mrb[0].mxu0 %v4263
        %v4334 = vpop.f32.mrb[0].mxu0
        %v4335 = vadd.f32 0.0, %v4334
        %v4336 = vpop.f32.mrb[0].mxu0
        %v4337 = vadd.f32 0.0, %v4336
        %4338 = vmatprep.mubr.f32.mxu0 0.0
        %4339 = vmatmul.mubr.f32.gmra.mrb[0].mxu0 %v4266
        %v4340 = vpop.f32.mrb[0].mxu0
        %v4341 = vadd.f32 0.0, %v4340
        %v4342 = vpop.f32.mrb[0].mxu0
        %v4343 = vadd.f32 0.0, %v4342
        %4344 = vdwg.mxu0
        %v4345 = vadd.f32 %v4229, %v4335
        %v4346 = vadd.f32 %v4231, %v4337
        %v4347 = vadd.f32 %v4235, %v4341
        %v4348 = vadd.f32 %v4237, %v4343
        %s4349 = scalar_lea.vmem %s4, 272
        %v4350 = vld [vmem:[%s4349] sm:$0xff]
        %v4351 = vld [vmem:[%s4349 + $0x8] sm:$0xff]
        %4352 = vrot.lane.b32.xlu0 %v2935, 78
        %v4353 = vpop.permute.xlu0 %4352
        %4354 = vrot.lane.b32.xlu0 %v2936, 78
        %v4355 = vpop.permute.xlu0 %4354
        %4356 = vrot.lane.b32.xlu0 %v2941, 78
        %v4357 = vpop.permute.xlu0 %4356
        %4358 = vrot.lane.b32.xlu0 %v2937, 78
        %v4359 = vpop.permute.xlu0 %4358
        %4360 = vrot.lane.b32.xlu0 %v2938, 78
        %v4361 = vpop.permute.xlu0 %4360
        %4362 = vrot.lane.b32.xlu0 %v2942, 78
        %v4363 = vpop.permute.xlu0 %4362
        %v4364 = vsel %vm1510, %v4353, %v4355
        %v4365 = vsel %vm1510, %v4355, %v4357
        %v4366 = vsel %vm1510, %v4359, %v4361
        %v4367 = vsel %vm1510, %v4361, %v4363
        %v4373 = vsel %vm2972, %v4350, 0
        %v4376 = vsel %vm2972, %v4351, 0
        %4378 = vmatprep.subr.mxu0 %v4365
        %4379 = vmatpush1.msra.mxu0 %v4364
        %4380 = vmatprep.subr.mxu0 %v4367
        %4381 = vmatpush1.msra.mxu0 %v4366
        %4382 = vmatprep.subr.mxu0 0.0
        %4383 = vmatpush1.msra.mxu0 0.0
        %4384 = vmatprep.subr.mxu0 0.0
        %4385 = vmatpush1.msra.mxu0 0.0
        %4386 = vmatprep.subr.mxu0 0.0
        %4387 = vmatpush1.msra.mxu0 0.0
        %4388 = vmatprep.subr.mxu0 0.0
        %4389 = vmatpush1.msra.mxu0 0.0
        %4390 = vmatprep.subr.mxu0 0.0
        %4391 = vmatpush1.msra.mxu0 0.0
        %4392 = vmatprep.subr.mxu0 0.0
        %4393 = vmatpush1.msra.mxu0 0.0
        %4394 = vmatprep.subr.mxu0 0.0
        %4395 = vmatpush1.msra.mxu0 0.0
        %4396 = vmatprep.subr.mxu0 0.0
        %4397 = vmatpush1.msra.mxu0 0.0
        %4398 = vmatprep.subr.mxu0 0.0
        %4399 = vmatpush1.msra.mxu0 0.0
        %4400 = vmatprep.subr.mxu0 0.0
        %4401 = vmatpush1.msra.mxu0 0.0
        %4402 = vmatprep.subr.mxu0 0.0
        %4403 = vmatpush1.msra.mxu0 0.0
        %4404 = vmatprep.subr.mxu0 0.0
        %4405 = vmatpush1.msra.mxu0 0.0
        %4406 = vmatprep.subr.mxu0 0.0
        %4407 = vmatpush1.msra.mxu0 0.0
        %4408 = vmatprep.subr.mxu0 0.0
        %4409 = vmatpush1.msra.mxu0 0.0
        %4410 = vmatprep.subr.mxu0 0.0
        %4411 = vmatpush1.msra.mxu0 0.0
        %4412 = vmatprep.subr.mxu0 0.0
        %4413 = vmatpush1.msra.mxu0 0.0
        %4414 = vmatprep.subr.mxu0 0.0
        %4415 = vmatpush1.msra.mxu0 0.0
        %4416 = vmatprep.subr.mxu0 0.0
        %4417 = vmatpush1.msra.mxu0 0.0
        %4418 = vmatprep.subr.mxu0 0.0
        %4419 = vmatpush1.msra.mxu0 0.0
        %4420 = vmatprep.subr.mxu0 0.0
        %4421 = vmatpush1.msra.mxu0 0.0
        %4422 = vmatprep.subr.mxu0 0.0
        %4423 = vmatpush1.msra.mxu0 0.0
        %4424 = vmatprep.subr.mxu0 0.0
        %4425 = vmatpush1.msra.mxu0 0.0
        %4426 = vmatprep.subr.mxu0 0.0
        %4427 = vmatpush1.msra.mxu0 0.0
        %4428 = vmatprep.subr.mxu0 0.0
        %4429 = vmatpush1.msra.mxu0 0.0
        %4430 = vmatprep.subr.mxu0 0.0
        %4431 = vmatpush1.msra.mxu0 0.0
        %4432 = vmatprep.subr.mxu0 0.0
        %4433 = vmatpush1.msra.mxu0 0.0
        %4434 = vmatprep.subr.mxu0 0.0
        %4435 = vmatpush1.msra.mxu0 0.0
        %4436 = vmatprep.subr.mxu0 0.0
        %4437 = vmatpush1.msra.mxu0 0.0
        %4438 = vmatprep.subr.mxu0 0.0
        %4439 = vmatpush1.msra.mxu0 0.0
        %4440 = vmatprep.subr.mxu0 0.0
        %4441 = vmatpush1.msra.mxu0 0.0
        %4442 = vmatprep.mubr.f32.mxu0 0.0
        %4443 = vmatmul.mubr.f32.gmra.mrb[0].mxu0 %v4373
        %v4444 = vpop.f32.mrb[0].mxu0
        %v4445 = vadd.f32 0.0, %v4444
        %v4446 = vpop.f32.mrb[0].mxu0
        %v4447 = vadd.f32 0.0, %v4446
        %4448 = vmatprep.mubr.f32.mxu0 0.0
        %4449 = vmatmul.mubr.f32.gmra.mrb[0].mxu0 %v4376
        %v4450 = vpop.f32.mrb[0].mxu0
        %v4451 = vadd.f32 0.0, %v4450
        %v4452 = vpop.f32.mrb[0].mxu0
        %v4453 = vadd.f32 0.0, %v4452
        %4454 = vdwg.mxu0
        %v4455 = vadd.f32 %v4345, %v4445
        %v4456 = vadd.f32 %v4346, %v4447
        %v4457 = vadd.f32 %v4347, %v4451
        %v4458 = vadd.f32 %v4348, %v4453
        %s4459 = scalar_lea.vmem %s4, 352
        %v4460 = vld [vmem:[%s4459] sm:$0xff]
        %v4461 = vld [vmem:[%s4459 + $0x8] sm:$0xff]
        %4462 = vrot.lane.b32.xlu0 %v2935, 62
        %v4463 = vpop.permute.xlu0 %4462
        %4464 = vrot.lane.b32.xlu0 %v2936, 62
        %v4465 = vpop.permute.xlu0 %4464
        %4466 = vrot.lane.b32.xlu0 %v2941, 62
        %v4467 = vpop.permute.xlu0 %4466
        %4468 = vrot.lane.b32.xlu0 %v2937, 62
        %v4469 = vpop.permute.xlu0 %4468
        %4470 = vrot.lane.b32.xlu0 %v2938, 62
        %v4471 = vpop.permute.xlu0 %4470
        %4472 = vrot.lane.b32.xlu0 %v2942, 62
        %v4473 = vpop.permute.xlu0 %4472
        %v4474 = vsel %vm1599, %v4463, %v4465
        %v4475 = vsel %vm1599, %v4465, %v4467
        %v4476 = vsel %vm1599, %v4469, %v4471
        %v4477 = vsel %vm1599, %v4471, %v4473
        %v4483 = vsel %vm2972, %v4460, 0
        %v4486 = vsel %vm2972, %v4461, 0
        %4488 = vmatprep.subr.mxu0 %v4475
        %4489 = vmatpush1.msra.mxu0 %v4474
        %4490 = vmatprep.subr.mxu0 %v4477
        %4491 = vmatpush1.msra.mxu0 %v4476
        %4492 = vmatprep.subr.mxu0 0.0
        %4493 = vmatpush1.msra.mxu0 0.0
        %4494 = vmatprep.subr.mxu0 0.0
        %4495 = vmatpush1.msra.mxu0 0.0
        %4496 = vmatprep.subr.mxu0 0.0
        %4497 = vmatpush1.msra.mxu0 0.0
        %4498 = vmatprep.subr.mxu0 0.0
        %4499 = vmatpush1.msra.mxu0 0.0
        %4500 = vmatprep.subr.mxu0 0.0
        %4501 = vmatpush1.msra.mxu0 0.0
        %4502 = vmatprep.subr.mxu0 0.0
        %4503 = vmatpush1.msra.mxu0 0.0
        %4504 = vmatprep.subr.mxu0 0.0
        %4505 = vmatpush1.msra.mxu0 0.0
        %4506 = vmatprep.subr.mxu0 0.0
        %4507 = vmatpush1.msra.mxu0 0.0
        %4508 = vmatprep.subr.mxu0 0.0
        %4509 = vmatpush1.msra.mxu0 0.0
        %4510 = vmatprep.subr.mxu0 0.0
        %4511 = vmatpush1.msra.mxu0 0.0
        %4512 = vmatprep.subr.mxu0 0.0
        %4513 = vmatpush1.msra.mxu0 0.0
        %4514 = vmatprep.subr.mxu0 0.0
        %4515 = vmatpush1.msra.mxu0 0.0
        %4516 = vmatprep.subr.mxu0 0.0
        %4517 = vmatpush1.msra.mxu0 0.0
        %4518 = vmatprep.subr.mxu0 0.0
        %4519 = vmatpush1.msra.mxu0 0.0
        %4520 = vmatprep.subr.mxu0 0.0
        %4521 = vmatpush1.msra.mxu0 0.0
        %4522 = vmatprep.subr.mxu0 0.0
        %4523 = vmatpush1.msra.mxu0 0.0
        %4524 = vmatprep.subr.mxu0 0.0
        %4525 = vmatpush1.msra.mxu0 0.0
        %4526 = vmatprep.subr.mxu0 0.0
        %4527 = vmatpush1.msra.mxu0 0.0
        %4528 = vmatprep.subr.mxu0 0.0
        %4529 = vmatpush1.msra.mxu0 0.0
        %4530 = vmatprep.subr.mxu0 0.0
        %4531 = vmatpush1.msra.mxu0 0.0
        %4532 = vmatprep.subr.mxu0 0.0
        %4533 = vmatpush1.msra.mxu0 0.0
        %4534 = vmatprep.subr.mxu0 0.0
        %4535 = vmatpush1.msra.mxu0 0.0
        %4536 = vmatprep.subr.mxu0 0.0
        %4537 = vmatpush1.msra.mxu0 0.0
        %4538 = vmatprep.subr.mxu0 0.0
        %4539 = vmatpush1.msra.mxu0 0.0
        %4540 = vmatprep.subr.mxu0 0.0
        %4541 = vmatpush1.msra.mxu0 0.0
        %4542 = vmatprep.subr.mxu0 0.0
        %4543 = vmatpush1.msra.mxu0 0.0
        %4544 = vmatprep.subr.mxu0 0.0
        %4545 = vmatpush1.msra.mxu0 0.0
        %4546 = vmatprep.subr.mxu0 0.0
        %4547 = vmatpush1.msra.mxu0 0.0
        %4548 = vmatprep.subr.mxu0 0.0
        %4549 = vmatpush1.msra.mxu0 0.0
        %4550 = vmatprep.subr.mxu0 0.0
        %4551 = vmatpush1.msra.mxu0 0.0
        %4552 = vmatprep.mubr.f32.mxu0 0.0
        %4553 = vmatmul.mubr.f32.gmra.mrb[0].mxu0 %v4483
        %v4554 = vpop.f32.mrb[0].mxu0
        %v4555 = vadd.f32 0.0, %v4554
        %v4556 = vpop.f32.mrb[0].mxu0
        %v4557 = vadd.f32 0.0, %v4556
        %4558 = vmatprep.mubr.f32.mxu0 0.0
        %4559 = vmatmul.mubr.f32.gmra.mrb[0].mxu0 %v4486
        %v4560 = vpop.f32.mrb[0].mxu0
        %v4561 = vadd.f32 0.0, %v4560
        %v4562 = vpop.f32.mrb[0].mxu0
        %v4563 = vadd.f32 0.0, %v4562
        %4564 = vdwg.mxu0
        %v4565 = vadd.f32 %v4455, %v4555
        %v4566 = vadd.f32 %v4456, %v4557
        %v4567 = vadd.f32 %v4457, %v4561
        %v4568 = vadd.f32 %v4458, %v4563
        %v4569 = vadd.f32 %v4023, %v4565
        %v4570 = vadd.f32 %v4024, %v4566
        %v4571 = vadd.f32 %v4025, %v4567
        %v4572 = vadd.f32 %v4026, %v4568
        %s4573 = scalar_lea.vmem %s4, 48
        %v4574 = vld [vmem:[%s4573] sm:$0xff]
        %v4575 = vld [vmem:[%s4573 + $0x8] sm:$0xff]
        %s4576 = scalar_lea.vmem %s4, 128
        %v4577 = vld [vmem:[%s4576] sm:$0xff]
        %v4578 = vld [vmem:[%s4576 + $0x8] sm:$0xff]
        %4579 = vrot.lane.b32.xlu0 %v2935, 109
        %v4580 = vpop.permute.xlu0 %4579
        %4581 = vrot.lane.b32.xlu0 %v2936, 109
        %v4582 = vpop.permute.xlu0 %4581
        %4583 = vrot.lane.b32.xlu0 %v2941, 109
        %v4584 = vpop.permute.xlu0 %4583
        %4585 = vrot.lane.b32.xlu0 %v2937, 109
        %v4586 = vpop.permute.xlu0 %4585
        %4587 = vrot.lane.b32.xlu0 %v2938, 109
        %v4588 = vpop.permute.xlu0 %4587
        %4589 = vrot.lane.b32.xlu0 %v2942, 109
        %v4590 = vpop.permute.xlu0 %4589
        %v4591 = vsel %vm1692, %v4580, %v4582
        %v4592 = vsel %vm1692, %v4582, %v4584
        %v4593 = vsel %vm1692, %v4586, %v4588
        %v4594 = vsel %vm1692, %v4588, %v4590
        %v4600 = vsel %vm2972, %v4577, 0
        %v4603 = vsel %vm2972, %v4578, 0
        %4605 = vmatprep.subr.mxu0 %v4592
        %4606 = vmatpush1.msra.mxu0 %v4591
        %4607 = vmatprep.subr.mxu0 %v4594
        %4608 = vmatpush1.msra.mxu0 %v4593
        %4609 = vmatprep.subr.mxu0 0.0
        %4610 = vmatpush1.msra.mxu0 0.0
        %4611 = vmatprep.subr.mxu0 0.0
        %4612 = vmatpush1.msra.mxu0 0.0
        %4613 = vmatprep.subr.mxu0 0.0
        %4614 = vmatpush1.msra.mxu0 0.0
        %4615 = vmatprep.subr.mxu0 0.0
        %4616 = vmatpush1.msra.mxu0 0.0
        %4617 = vmatprep.subr.mxu0 0.0
        %4618 = vmatpush1.msra.mxu0 0.0
        %4619 = vmatprep.subr.mxu0 0.0
        %4620 = vmatpush1.msra.mxu0 0.0
        %4621 = vmatprep.subr.mxu0 0.0
        %4622 = vmatpush1.msra.mxu0 0.0
        %4623 = vmatprep.subr.mxu0 0.0
        %4624 = vmatpush1.msra.mxu0 0.0
        %4625 = vmatprep.subr.mxu0 0.0
        %4626 = vmatpush1.msra.mxu0 0.0
        %4627 = vmatprep.subr.mxu0 0.0
        %4628 = vmatpush1.msra.mxu0 0.0
        %4629 = vmatprep.subr.mxu0 0.0
        %4630 = vmatpush1.msra.mxu0 0.0
        %4631 = vmatprep.subr.mxu0 0.0
        %4632 = vmatpush1.msra.mxu0 0.0
        %4633 = vmatprep.subr.mxu0 0.0
        %4634 = vmatpush1.msra.mxu0 0.0
        %4635 = vmatprep.subr.mxu0 0.0
        %4636 = vmatpush1.msra.mxu0 0.0
        %4637 = vmatprep.subr.mxu0 0.0
        %4638 = vmatpush1.msra.mxu0 0.0
        %4639 = vmatprep.subr.mxu0 0.0
        %4640 = vmatpush1.msra.mxu0 0.0
        %4641 = vmatprep.subr.mxu0 0.0
        %4642 = vmatpush1.msra.mxu0 0.0
        %4643 = vmatprep.subr.mxu0 0.0
        %4644 = vmatpush1.msra.mxu0 0.0
        %4645 = vmatprep.subr.mxu0 0.0
        %4646 = vmatpush1.msra.mxu0 0.0
        %4647 = vmatprep.subr.mxu0 0.0
        %4648 = vmatpush1.msra.mxu0 0.0
        %4649 = vmatprep.subr.mxu0 0.0
        %4650 = vmatpush1.msra.mxu0 0.0
        %4651 = vmatprep.subr.mxu0 0.0
        %4652 = vmatpush1.msra.mxu0 0.0
        %4653 = vmatprep.subr.mxu0 0.0
        %4654 = vmatpush1.msra.mxu0 0.0
        %4655 = vmatprep.subr.mxu0 0.0
        %4656 = vmatpush1.msra.mxu0 0.0
        %4657 = vmatprep.subr.mxu0 0.0
        %4658 = vmatpush1.msra.mxu0 0.0
        %4659 = vmatprep.subr.mxu0 0.0
        %4660 = vmatpush1.msra.mxu0 0.0
        %4661 = vmatprep.subr.mxu0 0.0
        %4662 = vmatpush1.msra.mxu0 0.0
        %4663 = vmatprep.subr.mxu0 0.0
        %4664 = vmatpush1.msra.mxu0 0.0
        %4665 = vmatprep.subr.mxu0 0.0
        %4666 = vmatpush1.msra.mxu0 0.0
        %4667 = vmatprep.subr.mxu0 0.0
        %4668 = vmatpush1.msra.mxu0 0.0
        %4669 = vmatprep.mubr.f32.mxu0 0.0
        %4670 = vmatmul.mubr.f32.gmra.mrb[0].mxu0 %v4600
        %v4671 = vpop.f32.mrb[0].mxu0
        %v4672 = vadd.f32 0.0, %v4671
        %v4673 = vpop.f32.mrb[0].mxu0
        %v4674 = vadd.f32 0.0, %v4673
        %4675 = vmatprep.mubr.f32.mxu0 0.0
        %4676 = vmatmul.mubr.f32.gmra.mrb[0].mxu0 %v4603
        %v4677 = vpop.f32.mrb[0].mxu0
        %v4678 = vadd.f32 0.0, %v4677
        %v4679 = vpop.f32.mrb[0].mxu0
        %v4680 = vadd.f32 0.0, %v4679
        %4681 = vdwg.mxu0
        %4682 = vrot.lane.b32.xlu0 %v2935, 125
        %v4683 = vpop.permute.xlu0 %4682
        %4684 = vrot.lane.b32.xlu0 %v2936, 125
        %v4685 = vpop.permute.xlu0 %4684
        %4686 = vrot.lane.b32.xlu0 %v2941, 125
        %v4687 = vpop.permute.xlu0 %4686
        %4688 = vrot.lane.b32.xlu0 %v2937, 125
        %v4689 = vpop.permute.xlu0 %4688
        %4690 = vrot.lane.b32.xlu0 %v2938, 125
        %v4691 = vpop.permute.xlu0 %4690
        %4692 = vrot.lane.b32.xlu0 %v2942, 125
        %v4693 = vpop.permute.xlu0 %4692
        %v4694 = vsel %vm1777, %v4683, %v4685
        %v4695 = vsel %vm1777, %v4685, %v4687
        %v4696 = vsel %vm1777, %v4689, %v4691
        %v4697 = vsel %vm1777, %v4691, %v4693
        %v4703 = vsel %vm2972, %v4574, 0
        %v4706 = vsel %vm2972, %v4575, 0
        %4708 = vmatprep.subr.mxu0 %v4695
        %4709 = vmatpush1.msra.mxu0 %v4694
        %4710 = vmatprep.subr.mxu0 %v4697
        %4711 = vmatpush1.msra.mxu0 %v4696
        %4712 = vmatprep.subr.mxu0 0.0
        %4713 = vmatpush1.msra.mxu0 0.0
        %4714 = vmatprep.subr.mxu0 0.0
        %4715 = vmatpush1.msra.mxu0 0.0
        %4716 = vmatprep.subr.mxu0 0.0
        %4717 = vmatpush1.msra.mxu0 0.0
        %4718 = vmatprep.subr.mxu0 0.0
        %4719 = vmatpush1.msra.mxu0 0.0
        %4720 = vmatprep.subr.mxu0 0.0
        %4721 = vmatpush1.msra.mxu0 0.0
        %4722 = vmatprep.subr.mxu0 0.0
        %4723 = vmatpush1.msra.mxu0 0.0
        %4724 = vmatprep.subr.mxu0 0.0
        %4725 = vmatpush1.msra.mxu0 0.0
        %4726 = vmatprep.subr.mxu0 0.0
        %4727 = vmatpush1.msra.mxu0 0.0
        %4728 = vmatprep.subr.mxu0 0.0
        %4729 = vmatpush1.msra.mxu0 0.0
        %4730 = vmatprep.subr.mxu0 0.0
        %4731 = vmatpush1.msra.mxu0 0.0
        %4732 = vmatprep.subr.mxu0 0.0
        %4733 = vmatpush1.msra.mxu0 0.0
        %4734 = vmatprep.subr.mxu0 0.0
        %4735 = vmatpush1.msra.mxu0 0.0
        %4736 = vmatprep.subr.mxu0 0.0
        %4737 = vmatpush1.msra.mxu0 0.0
        %4738 = vmatprep.subr.mxu0 0.0
        %4739 = vmatpush1.msra.mxu0 0.0
        %4740 = vmatprep.subr.mxu0 0.0
        %4741 = vmatpush1.msra.mxu0 0.0
        %4742 = vmatprep.subr.mxu0 0.0
        %4743 = vmatpush1.msra.mxu0 0.0
        %4744 = vmatprep.subr.mxu0 0.0
        %4745 = vmatpush1.msra.mxu0 0.0
        %4746 = vmatprep.subr.mxu0 0.0
        %4747 = vmatpush1.msra.mxu0 0.0
        %4748 = vmatprep.subr.mxu0 0.0
        %4749 = vmatpush1.msra.mxu0 0.0
        %4750 = vmatprep.subr.mxu0 0.0
        %4751 = vmatpush1.msra.mxu0 0.0
        %4752 = vmatprep.subr.mxu0 0.0
        %4753 = vmatpush1.msra.mxu0 0.0
        %4754 = vmatprep.subr.mxu0 0.0
        %4755 = vmatpush1.msra.mxu0 0.0
        %4756 = vmatprep.subr.mxu0 0.0
        %4757 = vmatpush1.msra.mxu0 0.0
        %4758 = vmatprep.subr.mxu0 0.0
        %4759 = vmatpush1.msra.mxu0 0.0
        %4760 = vmatprep.subr.mxu0 0.0
        %4761 = vmatpush1.msra.mxu0 0.0
        %4762 = vmatprep.subr.mxu0 0.0
        %4763 = vmatpush1.msra.mxu0 0.0
        %4764 = vmatprep.subr.mxu0 0.0
        %4765 = vmatpush1.msra.mxu0 0.0
        %4766 = vmatprep.subr.mxu0 0.0
        %4767 = vmatpush1.msra.mxu0 0.0
        %4768 = vmatprep.subr.mxu0 0.0
        %4769 = vmatpush1.msra.mxu0 0.0
        %4770 = vmatprep.subr.mxu0 0.0
        %4771 = vmatpush1.msra.mxu0 0.0
        %4772 = vmatprep.mubr.f32.mxu0 0.0
        %4773 = vmatmul.mubr.f32.gmra.mrb[0].mxu0 %v4703
        %v4774 = vpop.f32.mrb[0].mxu0
        %v4775 = vadd.f32 %v4672, %v4774
        %v4776 = vpop.f32.mrb[0].mxu0
        %v4777 = vadd.f32 %v4674, %v4776
        %4778 = vmatprep.mubr.f32.mxu0 0.0
        %4779 = vmatmul.mubr.f32.gmra.mrb[0].mxu0 %v4706
        %v4780 = vpop.f32.mrb[0].mxu0
        %v4781 = vadd.f32 %v4678, %v4780
        %v4782 = vpop.f32.mrb[0].mxu0
        %v4783 = vadd.f32 %v4680, %v4782
        %4784 = vdwg.mxu0
        %s4785 = scalar_lea.vmem %s4, 208
        %v4786 = vld [vmem:[%s4785] sm:$0xff]
        %v4787 = vld [vmem:[%s4785 + $0x8] sm:$0xff]
        %4788 = vrot.lane.b32.xlu0 %v2935, 93
        %v4789 = vpop.permute.xlu0 %4788
        %4790 = vrot.lane.b32.xlu0 %v2936, 93
        %v4791 = vpop.permute.xlu0 %4790
        %4792 = vrot.lane.b32.xlu0 %v2941, 93
        %v4793 = vpop.permute.xlu0 %4792
        %4794 = vrot.lane.b32.xlu0 %v2937, 93
        %v4795 = vpop.permute.xlu0 %4794
        %4796 = vrot.lane.b32.xlu0 %v2938, 93
        %v4797 = vpop.permute.xlu0 %4796
        %4798 = vrot.lane.b32.xlu0 %v2942, 93
        %v4799 = vpop.permute.xlu0 %4798
        %v4800 = vsel %vm1864, %v4789, %v4791
        %v4801 = vsel %vm1864, %v4791, %v4793
        %v4802 = vsel %vm1864, %v4795, %v4797
        %v4803 = vsel %vm1864, %v4797, %v4799
        %v4809 = vsel %vm2972, %v4786, 0
        %v4812 = vsel %vm2972, %v4787, 0
        %4814 = vmatprep.subr.mxu0 %v4801
        %4815 = vmatpush1.msra.mxu0 %v4800
        %4816 = vmatprep.subr.mxu0 %v4803
        %4817 = vmatpush1.msra.mxu0 %v4802
        %4818 = vmatprep.subr.mxu0 0.0
        %4819 = vmatpush1.msra.mxu0 0.0
        %4820 = vmatprep.subr.mxu0 0.0
        %4821 = vmatpush1.msra.mxu0 0.0
        %4822 = vmatprep.subr.mxu0 0.0
        %4823 = vmatpush1.msra.mxu0 0.0
        %4824 = vmatprep.subr.mxu0 0.0
        %4825 = vmatpush1.msra.mxu0 0.0
        %4826 = vmatprep.subr.mxu0 0.0
        %4827 = vmatpush1.msra.mxu0 0.0
        %4828 = vmatprep.subr.mxu0 0.0
        %4829 = vmatpush1.msra.mxu0 0.0
        %4830 = vmatprep.subr.mxu0 0.0
        %4831 = vmatpush1.msra.mxu0 0.0
        %4832 = vmatprep.subr.mxu0 0.0
        %4833 = vmatpush1.msra.mxu0 0.0
        %4834 = vmatprep.subr.mxu0 0.0
        %4835 = vmatpush1.msra.mxu0 0.0
        %4836 = vmatprep.subr.mxu0 0.0
        %4837 = vmatpush1.msra.mxu0 0.0
        %4838 = vmatprep.subr.mxu0 0.0
        %4839 = vmatpush1.msra.mxu0 0.0
        %4840 = vmatprep.subr.mxu0 0.0
        %4841 = vmatpush1.msra.mxu0 0.0
        %4842 = vmatprep.subr.mxu0 0.0
        %4843 = vmatpush1.msra.mxu0 0.0
        %4844 = vmatprep.subr.mxu0 0.0
        %4845 = vmatpush1.msra.mxu0 0.0
        %4846 = vmatprep.subr.mxu0 0.0
        %4847 = vmatpush1.msra.mxu0 0.0
        %4848 = vmatprep.subr.mxu0 0.0
        %4849 = vmatpush1.msra.mxu0 0.0
        %4850 = vmatprep.subr.mxu0 0.0
        %4851 = vmatpush1.msra.mxu0 0.0
        %4852 = vmatprep.subr.mxu0 0.0
        %4853 = vmatpush1.msra.mxu0 0.0
        %4854 = vmatprep.subr.mxu0 0.0
        %4855 = vmatpush1.msra.mxu0 0.0
        %4856 = vmatprep.subr.mxu0 0.0
        %4857 = vmatpush1.msra.mxu0 0.0
        %4858 = vmatprep.subr.mxu0 0.0
        %4859 = vmatpush1.msra.mxu0 0.0
        %4860 = vmatprep.subr.mxu0 0.0
        %4861 = vmatpush1.msra.mxu0 0.0
        %4862 = vmatprep.subr.mxu0 0.0
        %4863 = vmatpush1.msra.mxu0 0.0
        %4864 = vmatprep.subr.mxu0 0.0
        %4865 = vmatpush1.msra.mxu0 0.0
        %4866 = vmatprep.subr.mxu0 0.0
        %4867 = vmatpush1.msra.mxu0 0.0
        %4868 = vmatprep.subr.mxu0 0.0
        %4869 = vmatpush1.msra.mxu0 0.0
        %4870 = vmatprep.subr.mxu0 0.0
        %4871 = vmatpush1.msra.mxu0 0.0
        %4872 = vmatprep.subr.mxu0 0.0
        %4873 = vmatpush1.msra.mxu0 0.0
        %4874 = vmatprep.subr.mxu0 0.0
        %4875 = vmatpush1.msra.mxu0 0.0
        %4876 = vmatprep.subr.mxu0 0.0
        %4877 = vmatpush1.msra.mxu0 0.0
        %4878 = vmatprep.mubr.f32.mxu0 0.0
        %4879 = vmatmul.mubr.f32.gmra.mrb[0].mxu0 %v4809
        %v4880 = vpop.f32.mrb[0].mxu0
        %v4881 = vadd.f32 0.0, %v4880
        %v4882 = vpop.f32.mrb[0].mxu0
        %v4883 = vadd.f32 0.0, %v4882
        %4884 = vmatprep.mubr.f32.mxu0 0.0
        %4885 = vmatmul.mubr.f32.gmra.mrb[0].mxu0 %v4812
        %v4886 = vpop.f32.mrb[0].mxu0
        %v4887 = vadd.f32 0.0, %v4886
        %v4888 = vpop.f32.mrb[0].mxu0
        %v4889 = vadd.f32 0.0, %v4888
        %4890 = vdwg.mxu0
        %v4891 = vadd.f32 %v4775, %v4881
        %v4892 = vadd.f32 %v4777, %v4883
        %v4893 = vadd.f32 %v4781, %v4887
        %v4894 = vadd.f32 %v4783, %v4889
        %s4895 = scalar_lea.vmem %s4, 288
        %v4896 = vld [vmem:[%s4895] sm:$0xff]
        %v4897 = vld [vmem:[%s4895 + $0x8] sm:$0xff]
        %4898 = vrot.lane.b32.xlu0 %v2935, 77
        %v4899 = vpop.permute.xlu0 %4898
        %4900 = vrot.lane.b32.xlu0 %v2936, 77
        %v4901 = vpop.permute.xlu0 %4900
        %4902 = vrot.lane.b32.xlu0 %v2941, 77
        %v4903 = vpop.permute.xlu0 %4902
        %4904 = vrot.lane.b32.xlu0 %v2937, 77
        %v4905 = vpop.permute.xlu0 %4904
        %4906 = vrot.lane.b32.xlu0 %v2938, 77
        %v4907 = vpop.permute.xlu0 %4906
        %4908 = vrot.lane.b32.xlu0 %v2942, 77
        %v4909 = vpop.permute.xlu0 %4908
        %v4910 = vsel %vm1953, %v4899, %v4901
        %v4911 = vsel %vm1953, %v4901, %v4903
        %v4912 = vsel %vm1953, %v4905, %v4907
        %v4913 = vsel %vm1953, %v4907, %v4909
        %v4919 = vsel %vm2972, %v4896, 0
        %v4922 = vsel %vm2972, %v4897, 0
        %4924 = vmatprep.subr.mxu0 %v4911
        %4925 = vmatpush1.msra.mxu0 %v4910
        %4926 = vmatprep.subr.mxu0 %v4913
        %4927 = vmatpush1.msra.mxu0 %v4912
        %4928 = vmatprep.subr.mxu0 0.0
        %4929 = vmatpush1.msra.mxu0 0.0
        %4930 = vmatprep.subr.mxu0 0.0
        %4931 = vmatpush1.msra.mxu0 0.0
        %4932 = vmatprep.subr.mxu0 0.0
        %4933 = vmatpush1.msra.mxu0 0.0
        %4934 = vmatprep.subr.mxu0 0.0
        %4935 = vmatpush1.msra.mxu0 0.0
        %4936 = vmatprep.subr.mxu0 0.0
        %4937 = vmatpush1.msra.mxu0 0.0
        %4938 = vmatprep.subr.mxu0 0.0
        %4939 = vmatpush1.msra.mxu0 0.0
        %4940 = vmatprep.subr.mxu0 0.0
        %4941 = vmatpush1.msra.mxu0 0.0
        %4942 = vmatprep.subr.mxu0 0.0
        %4943 = vmatpush1.msra.mxu0 0.0
        %4944 = vmatprep.subr.mxu0 0.0
        %4945 = vmatpush1.msra.mxu0 0.0
        %4946 = vmatprep.subr.mxu0 0.0
        %4947 = vmatpush1.msra.mxu0 0.0
        %4948 = vmatprep.subr.mxu0 0.0
        %4949 = vmatpush1.msra.mxu0 0.0
        %4950 = vmatprep.subr.mxu0 0.0
        %4951 = vmatpush1.msra.mxu0 0.0
        %4952 = vmatprep.subr.mxu0 0.0
        %4953 = vmatpush1.msra.mxu0 0.0
        %4954 = vmatprep.subr.mxu0 0.0
        %4955 = vmatpush1.msra.mxu0 0.0
        %4956 = vmatprep.subr.mxu0 0.0
        %4957 = vmatpush1.msra.mxu0 0.0
        %4958 = vmatprep.subr.mxu0 0.0
        %4959 = vmatpush1.msra.mxu0 0.0
        %4960 = vmatprep.subr.mxu0 0.0
        %4961 = vmatpush1.msra.mxu0 0.0
        %4962 = vmatprep.subr.mxu0 0.0
        %4963 = vmatpush1.msra.mxu0 0.0
        %4964 = vmatprep.subr.mxu0 0.0
        %4965 = vmatpush1.msra.mxu0 0.0
        %4966 = vmatprep.subr.mxu0 0.0
        %4967 = vmatpush1.msra.mxu0 0.0
        %4968 = vmatprep.subr.mxu0 0.0
        %4969 = vmatpush1.msra.mxu0 0.0
        %4970 = vmatprep.subr.mxu0 0.0
        %4971 = vmatpush1.msra.mxu0 0.0
        %4972 = vmatprep.subr.mxu0 0.0
        %4973 = vmatpush1.msra.mxu0 0.0
        %4974 = vmatprep.subr.mxu0 0.0
        %4975 = vmatpush1.msra.mxu0 0.0
        %4976 = vmatprep.subr.mxu0 0.0
        %4977 = vmatpush1.msra.mxu0 0.0
        %4978 = vmatprep.subr.mxu0 0.0
        %4979 = vmatpush1.msra.mxu0 0.0
        %4980 = vmatprep.subr.mxu0 0.0
        %4981 = vmatpush1.msra.mxu0 0.0
        %4982 = vmatprep.subr.mxu0 0.0
        %4983 = vmatpush1.msra.mxu0 0.0
        %4984 = vmatprep.subr.mxu0 0.0
        %4985 = vmatpush1.msra.mxu0 0.0
        %4986 = vmatprep.subr.mxu0 0.0
        %4987 = vmatpush1.msra.mxu0 0.0
        %4988 = vmatprep.mubr.f32.mxu0 0.0
        %4989 = vmatmul.mubr.f32.gmra.mrb[0].mxu0 %v4919
        %v4990 = vpop.f32.mrb[0].mxu0
        %v4991 = vadd.f32 0.0, %v4990
        %v4992 = vpop.f32.mrb[0].mxu0
        %v4993 = vadd.f32 0.0, %v4992
        %4994 = vmatprep.mubr.f32.mxu0 0.0
        %4995 = vmatmul.mubr.f32.gmra.mrb[0].mxu0 %v4922
        %v4996 = vpop.f32.mrb[0].mxu0
        %v4997 = vadd.f32 0.0, %v4996
        %v4998 = vpop.f32.mrb[0].mxu0
        %v4999 = vadd.f32 0.0, %v4998
        %5000 = vdwg.mxu0
        %v5001 = vadd.f32 %v4891, %v4991
        %v5002 = vadd.f32 %v4892, %v4993
        %v5003 = vadd.f32 %v4893, %v4997
        %v5004 = vadd.f32 %v4894, %v4999
        %s5005 = scalar_lea.vmem %s4, 368
        %v5006 = vld [vmem:[%s5005] sm:$0xff]
        %v5007 = vld [vmem:[%s5005 + $0x8] sm:$0xff]
        %5008 = vrot.lane.b32.xlu0 %v2935, 61
        %v5009 = vpop.permute.xlu0 %5008
        %5010 = vrot.lane.b32.xlu0 %v2936, 61
        %v5011 = vpop.permute.xlu0 %5010
        %5012 = vrot.lane.b32.xlu0 %v2941, 61
        %v5013 = vpop.permute.xlu0 %5012
        %5014 = vrot.lane.b32.xlu0 %v2937, 61
        %v5015 = vpop.permute.xlu0 %5014
        %5016 = vrot.lane.b32.xlu0 %v2938, 61
        %v5017 = vpop.permute.xlu0 %5016
        %5018 = vrot.lane.b32.xlu0 %v2942, 61
        %v5019 = vpop.permute.xlu0 %5018
        %v5020 = vsel %vm2042, %v5009, %v5011
        %v5021 = vsel %vm2042, %v5011, %v5013
        %v5022 = vsel %vm2042, %v5015, %v5017
        %v5023 = vsel %vm2042, %v5017, %v5019
        %v5029 = vsel %vm2972, %v5006, 0
        %v5032 = vsel %vm2972, %v5007, 0
        %5034 = vmatprep.subr.mxu0 %v5021
        %5035 = vmatpush1.msra.mxu0 %v5020
        %5036 = vmatprep.subr.mxu0 %v5023
        %5037 = vmatpush1.msra.mxu0 %v5022
        %5038 = vmatprep.subr.mxu0 0.0
        %5039 = vmatpush1.msra.mxu0 0.0
        %5040 = vmatprep.subr.mxu0 0.0
        %5041 = vmatpush1.msra.mxu0 0.0
        %5042 = vmatprep.subr.mxu0 0.0
        %5043 = vmatpush1.msra.mxu0 0.0
        %5044 = vmatprep.subr.mxu0 0.0
        %5045 = vmatpush1.msra.mxu0 0.0
        %5046 = vmatprep.subr.mxu0 0.0
        %5047 = vmatpush1.msra.mxu0 0.0
        %5048 = vmatprep.subr.mxu0 0.0
        %5049 = vmatpush1.msra.mxu0 0.0
        %5050 = vmatprep.subr.mxu0 0.0
        %5051 = vmatpush1.msra.mxu0 0.0
        %5052 = vmatprep.subr.mxu0 0.0
        %5053 = vmatpush1.msra.mxu0 0.0
        %5054 = vmatprep.subr.mxu0 0.0
        %5055 = vmatpush1.msra.mxu0 0.0
        %5056 = vmatprep.subr.mxu0 0.0
        %5057 = vmatpush1.msra.mxu0 0.0
        %5058 = vmatprep.subr.mxu0 0.0
        %5059 = vmatpush1.msra.mxu0 0.0
        %5060 = vmatprep.subr.mxu0 0.0
        %5061 = vmatpush1.msra.mxu0 0.0
        %5062 = vmatprep.subr.mxu0 0.0
        %5063 = vmatpush1.msra.mxu0 0.0
        %5064 = vmatprep.subr.mxu0 0.0
        %5065 = vmatpush1.msra.mxu0 0.0
        %5066 = vmatprep.subr.mxu0 0.0
        %5067 = vmatpush1.msra.mxu0 0.0
        %5068 = vmatprep.subr.mxu0 0.0
        %5069 = vmatpush1.msra.mxu0 0.0
        %5070 = vmatprep.subr.mxu0 0.0
        %5071 = vmatpush1.msra.mxu0 0.0
        %5072 = vmatprep.subr.mxu0 0.0
        %5073 = vmatpush1.msra.mxu0 0.0
        %5074 = vmatprep.subr.mxu0 0.0
        %5075 = vmatpush1.msra.mxu0 0.0
        %5076 = vmatprep.subr.mxu0 0.0
        %5077 = vmatpush1.msra.mxu0 0.0
        %5078 = vmatprep.subr.mxu0 0.0
        %5079 = vmatpush1.msra.mxu0 0.0
        %5080 = vmatprep.subr.mxu0 0.0
        %5081 = vmatpush1.msra.mxu0 0.0
        %5082 = vmatprep.subr.mxu0 0.0
        %5083 = vmatpush1.msra.mxu0 0.0
        %5084 = vmatprep.subr.mxu0 0.0
        %5085 = vmatpush1.msra.mxu0 0.0
        %5086 = vmatprep.subr.mxu0 0.0
        %5087 = vmatpush1.msra.mxu0 0.0
        %5088 = vmatprep.subr.mxu0 0.0
        %5089 = vmatpush1.msra.mxu0 0.0
        %5090 = vmatprep.subr.mxu0 0.0
        %5091 = vmatpush1.msra.mxu0 0.0
        %5092 = vmatprep.subr.mxu0 0.0
        %5093 = vmatpush1.msra.mxu0 0.0
        %5094 = vmatprep.subr.mxu0 0.0
        %5095 = vmatpush1.msra.mxu0 0.0
        %5096 = vmatprep.subr.mxu0 0.0
        %5097 = vmatpush1.msra.mxu0 0.0
        %5098 = vmatprep.mubr.f32.mxu0 0.0
        %5099 = vmatmul.mubr.f32.gmra.mrb[0].mxu0 %v5029
        %v5100 = vpop.f32.mrb[0].mxu0
        %v5101 = vadd.f32 0.0, %v5100
        %v5102 = vpop.f32.mrb[0].mxu0
        %v5103 = vadd.f32 0.0, %v5102
        %5104 = vmatprep.mubr.f32.mxu0 0.0
        %5105 = vmatmul.mubr.f32.gmra.mrb[0].mxu0 %v5032
        %v5106 = vpop.f32.mrb[0].mxu0
        %v5107 = vadd.f32 0.0, %v5106
        %v5108 = vpop.f32.mrb[0].mxu0
        %v5109 = vadd.f32 0.0, %v5108
        %5110 = vdwg.mxu0
        %v5111 = vadd.f32 %v5001, %v5101
        %v5112 = vadd.f32 %v5002, %v5103
        %v5113 = vadd.f32 %v5003, %v5107
        %v5114 = vadd.f32 %v5004, %v5109
        %v5115 = vmul.f32 %v5111, %v2133
        %v5116 = vmul.f32 %v5112, %v2134
        %v5117 = vmul.f32 %v5113, %v2133
        %v5118 = vmul.f32 %v5114, %v2134
        %v5119 = vadd.f32 %v4569, %v5115
        %v5120 = vadd.f32 %v4570, %v5116
        %v5121 = vadd.f32 %v4571, %v5117
        %v5122 = vadd.f32 %v4572, %v5118
        %s5123 = scalar_lea.vmem %s4, 64
        %v5124 = vld [vmem:[%s5123] sm:$0xff]
        %v5125 = vld [vmem:[%s5123 + $0x8] sm:$0xff]
        %s5126 = scalar_lea.vmem %s4, 144
        %v5127 = vld [vmem:[%s5126] sm:$0xff]
        %v5128 = vld [vmem:[%s5126 + $0x8] sm:$0xff]
        %5129 = vrot.lane.b32.xlu0 %v2935, 108
        %v5130 = vpop.permute.xlu0 %5129
        %5131 = vrot.lane.b32.xlu0 %v2936, 108
        %v5132 = vpop.permute.xlu0 %5131
        %5133 = vrot.lane.b32.xlu0 %v2941, 108
        %v5134 = vpop.permute.xlu0 %5133
        %5135 = vrot.lane.b32.xlu0 %v2937, 108
        %v5136 = vpop.permute.xlu0 %5135
        %5137 = vrot.lane.b32.xlu0 %v2938, 108
        %v5138 = vpop.permute.xlu0 %5137
        %5139 = vrot.lane.b32.xlu0 %v2942, 108
        %v5140 = vpop.permute.xlu0 %5139
        %v5141 = vsel %vm2149, %v5130, %v5132
        %v5142 = vsel %vm2149, %v5132, %v5134
        %v5143 = vsel %vm2149, %v5136, %v5138
        %v5144 = vsel %vm2149, %v5138, %v5140
        %v5150 = vsel %vm2972, %v5127, 0
        %v5153 = vsel %vm2972, %v5128, 0
        %5155 = vmatprep.subr.mxu0 %v5142
        %5156 = vmatpush1.msra.mxu0 %v5141
        %5157 = vmatprep.subr.mxu0 %v5144
        %5158 = vmatpush1.msra.mxu0 %v5143
        %5159 = vmatprep.subr.mxu0 0.0
        %5160 = vmatpush1.msra.mxu0 0.0
        %5161 = vmatprep.subr.mxu0 0.0
        %5162 = vmatpush1.msra.mxu0 0.0
        %5163 = vmatprep.subr.mxu0 0.0
        %5164 = vmatpush1.msra.mxu0 0.0
        %5165 = vmatprep.subr.mxu0 0.0
        %5166 = vmatpush1.msra.mxu0 0.0
        %5167 = vmatprep.subr.mxu0 0.0
        %5168 = vmatpush1.msra.mxu0 0.0
        %5169 = vmatprep.subr.mxu0 0.0
        %5170 = vmatpush1.msra.mxu0 0.0
        %5171 = vmatprep.subr.mxu0 0.0
        %5172 = vmatpush1.msra.mxu0 0.0
        %5173 = vmatprep.subr.mxu0 0.0
        %5174 = vmatpush1.msra.mxu0 0.0
        %5175 = vmatprep.subr.mxu0 0.0
        %5176 = vmatpush1.msra.mxu0 0.0
        %5177 = vmatprep.subr.mxu0 0.0
        %5178 = vmatpush1.msra.mxu0 0.0
        %5179 = vmatprep.subr.mxu0 0.0
        %5180 = vmatpush1.msra.mxu0 0.0
        %5181 = vmatprep.subr.mxu0 0.0
        %5182 = vmatpush1.msra.mxu0 0.0
        %5183 = vmatprep.subr.mxu0 0.0
        %5184 = vmatpush1.msra.mxu0 0.0
        %5185 = vmatprep.subr.mxu0 0.0
        %5186 = vmatpush1.msra.mxu0 0.0
        %5187 = vmatprep.subr.mxu0 0.0
        %5188 = vmatpush1.msra.mxu0 0.0
        %5189 = vmatprep.subr.mxu0 0.0
        %5190 = vmatpush1.msra.mxu0 0.0
        %5191 = vmatprep.subr.mxu0 0.0
        %5192 = vmatpush1.msra.mxu0 0.0
        %5193 = vmatprep.subr.mxu0 0.0
        %5194 = vmatpush1.msra.mxu0 0.0
        %5195 = vmatprep.subr.mxu0 0.0
        %5196 = vmatpush1.msra.mxu0 0.0
        %5197 = vmatprep.subr.mxu0 0.0
        %5198 = vmatpush1.msra.mxu0 0.0
        %5199 = vmatprep.subr.mxu0 0.0
        %5200 = vmatpush1.msra.mxu0 0.0
        %5201 = vmatprep.subr.mxu0 0.0
        %5202 = vmatpush1.msra.mxu0 0.0
        %5203 = vmatprep.subr.mxu0 0.0
        %5204 = vmatpush1.msra.mxu0 0.0
        %5205 = vmatprep.subr.mxu0 0.0
        %5206 = vmatpush1.msra.mxu0 0.0
        %5207 = vmatprep.subr.mxu0 0.0
        %5208 = vmatpush1.msra.mxu0 0.0
        %5209 = vmatprep.subr.mxu0 0.0
        %5210 = vmatpush1.msra.mxu0 0.0
        %5211 = vmatprep.subr.mxu0 0.0
        %5212 = vmatpush1.msra.mxu0 0.0
        %5213 = vmatprep.subr.mxu0 0.0
        %5214 = vmatpush1.msra.mxu0 0.0
        %5215 = vmatprep.subr.mxu0 0.0
        %5216 = vmatpush1.msra.mxu0 0.0
        %5217 = vmatprep.subr.mxu0 0.0
        %5218 = vmatpush1.msra.mxu0 0.0
        %5219 = vmatprep.mubr.f32.mxu0 0.0
        %5220 = vmatmul.mubr.f32.gmra.mrb[0].mxu0 %v5150
        %v5221 = vpop.f32.mrb[0].mxu0
        %v5222 = vadd.f32 0.0, %v5221
        %v5223 = vpop.f32.mrb[0].mxu0
        %v5224 = vadd.f32 0.0, %v5223
        %5225 = vmatprep.mubr.f32.mxu0 0.0
        %5226 = vmatmul.mubr.f32.gmra.mrb[0].mxu0 %v5153
        %v5227 = vpop.f32.mrb[0].mxu0
        %v5228 = vadd.f32 0.0, %v5227
        %v5229 = vpop.f32.mrb[0].mxu0
        %v5230 = vadd.f32 0.0, %v5229
        %5231 = vdwg.mxu0
        %5232 = vrot.lane.b32.xlu0 %v2935, 124
        %v5233 = vpop.permute.xlu0 %5232
        %5234 = vrot.lane.b32.xlu0 %v2936, 124
        %v5235 = vpop.permute.xlu0 %5234
        %5236 = vrot.lane.b32.xlu0 %v2941, 124
        %v5237 = vpop.permute.xlu0 %5236
        %5238 = vrot.lane.b32.xlu0 %v2937, 124
        %v5239 = vpop.permute.xlu0 %5238
        %5240 = vrot.lane.b32.xlu0 %v2938, 124
        %v5241 = vpop.permute.xlu0 %5240
        %5242 = vrot.lane.b32.xlu0 %v2942, 124
        %v5243 = vpop.permute.xlu0 %5242
        %v5244 = vsel %vm2234, %v5233, %v5235
        %v5245 = vsel %vm2234, %v5235, %v5237
        %v5246 = vsel %vm2234, %v5239, %v5241
        %v5247 = vsel %vm2234, %v5241, %v5243
        %v5253 = vsel %vm2972, %v5124, 0
        %v5256 = vsel %vm2972, %v5125, 0
        %5258 = vmatprep.subr.mxu0 %v5245
        %5259 = vmatpush1.msra.mxu0 %v5244
        %5260 = vmatprep.subr.mxu0 %v5247
        %5261 = vmatpush1.msra.mxu0 %v5246
        %5262 = vmatprep.subr.mxu0 0.0
        %5263 = vmatpush1.msra.mxu0 0.0
        %5264 = vmatprep.subr.mxu0 0.0
        %5265 = vmatpush1.msra.mxu0 0.0
        %5266 = vmatprep.subr.mxu0 0.0
        %5267 = vmatpush1.msra.mxu0 0.0
        %5268 = vmatprep.subr.mxu0 0.0
        %5269 = vmatpush1.msra.mxu0 0.0
        %5270 = vmatprep.subr.mxu0 0.0
        %5271 = vmatpush1.msra.mxu0 0.0
        %5272 = vmatprep.subr.mxu0 0.0
        %5273 = vmatpush1.msra.mxu0 0.0
        %5274 = vmatprep.subr.mxu0 0.0
        %5275 = vmatpush1.msra.mxu0 0.0
        %5276 = vmatprep.subr.mxu0 0.0
        %5277 = vmatpush1.msra.mxu0 0.0
        %5278 = vmatprep.subr.mxu0 0.0
        %5279 = vmatpush1.msra.mxu0 0.0
        %5280 = vmatprep.subr.mxu0 0.0
        %5281 = vmatpush1.msra.mxu0 0.0
        %5282 = vmatprep.subr.mxu0 0.0
        %5283 = vmatpush1.msra.mxu0 0.0
        %5284 = vmatprep.subr.mxu0 0.0
        %5285 = vmatpush1.msra.mxu0 0.0
        %5286 = vmatprep.subr.mxu0 0.0
        %5287 = vmatpush1.msra.mxu0 0.0
        %5288 = vmatprep.subr.mxu0 0.0
        %5289 = vmatpush1.msra.mxu0 0.0
        %5290 = vmatprep.subr.mxu0 0.0
        %5291 = vmatpush1.msra.mxu0 0.0
        %5292 = vmatprep.subr.mxu0 0.0
        %5293 = vmatpush1.msra.mxu0 0.0
        %5294 = vmatprep.subr.mxu0 0.0
        %5295 = vmatpush1.msra.mxu0 0.0
        %5296 = vmatprep.subr.mxu0 0.0
        %5297 = vmatpush1.msra.mxu0 0.0
        %5298 = vmatprep.subr.mxu0 0.0
        %5299 = vmatpush1.msra.mxu0 0.0
        %5300 = vmatprep.subr.mxu0 0.0
        %5301 = vmatpush1.msra.mxu0 0.0
        %5302 = vmatprep.subr.mxu0 0.0
        %5303 = vmatpush1.msra.mxu0 0.0
        %5304 = vmatprep.subr.mxu0 0.0
        %5305 = vmatpush1.msra.mxu0 0.0
        %5306 = vmatprep.subr.mxu0 0.0
        %5307 = vmatpush1.msra.mxu0 0.0
        %5308 = vmatprep.subr.mxu0 0.0
        %5309 = vmatpush1.msra.mxu0 0.0
        %5310 = vmatprep.subr.mxu0 0.0
        %5311 = vmatpush1.msra.mxu0 0.0
        %5312 = vmatprep.subr.mxu0 0.0
        %5313 = vmatpush1.msra.mxu0 0.0
        %5314 = vmatprep.subr.mxu0 0.0
        %5315 = vmatpush1.msra.mxu0 0.0
        %5316 = vmatprep.subr.mxu0 0.0
        %5317 = vmatpush1.msra.mxu0 0.0
        %5318 = vmatprep.subr.mxu0 0.0
        %5319 = vmatpush1.msra.mxu0 0.0
        %5320 = vmatprep.subr.mxu0 0.0
        %5321 = vmatpush1.msra.mxu0 0.0
        %5322 = vmatprep.mubr.f32.mxu0 0.0
        %5323 = vmatmul.mubr.f32.gmra.mrb[0].mxu0 %v5253
        %v5324 = vpop.f32.mrb[0].mxu0
        %v5325 = vadd.f32 %v5222, %v5324
        %v5326 = vpop.f32.mrb[0].mxu0
        %v5327 = vadd.f32 %v5224, %v5326
        %5328 = vmatprep.mubr.f32.mxu0 0.0
        %5329 = vmatmul.mubr.f32.gmra.mrb[0].mxu0 %v5256
        %v5330 = vpop.f32.mrb[0].mxu0
        %v5331 = vadd.f32 %v5228, %v5330
        %v5332 = vpop.f32.mrb[0].mxu0
        %v5333 = vadd.f32 %v5230, %v5332
        %5334 = vdwg.mxu0
        %s5335 = scalar_lea.vmem %s4, 224
        %v5336 = vld [vmem:[%s5335] sm:$0xff]
        %v5337 = vld [vmem:[%s5335 + $0x8] sm:$0xff]
        %5338 = vrot.lane.b32.xlu0 %v2935, 92
        %v5339 = vpop.permute.xlu0 %5338
        %5340 = vrot.lane.b32.xlu0 %v2936, 92
        %v5341 = vpop.permute.xlu0 %5340
        %5342 = vrot.lane.b32.xlu0 %v2941, 92
        %v5343 = vpop.permute.xlu0 %5342
        %5344 = vrot.lane.b32.xlu0 %v2937, 92
        %v5345 = vpop.permute.xlu0 %5344
        %5346 = vrot.lane.b32.xlu0 %v2938, 92
        %v5347 = vpop.permute.xlu0 %5346
        %5348 = vrot.lane.b32.xlu0 %v2942, 92
        %v5349 = vpop.permute.xlu0 %5348
        %v5350 = vsel %vm2321, %v5339, %v5341
        %v5351 = vsel %vm2321, %v5341, %v5343
        %v5352 = vsel %vm2321, %v5345, %v5347
        %v5353 = vsel %vm2321, %v5347, %v5349
        %v5359 = vsel %vm2972, %v5336, 0
        %v5362 = vsel %vm2972, %v5337, 0
        %5364 = vmatprep.subr.mxu0 %v5351
        %5365 = vmatpush1.msra.mxu0 %v5350
        %5366 = vmatprep.subr.mxu0 %v5353
        %5367 = vmatpush1.msra.mxu0 %v5352
        %5368 = vmatprep.subr.mxu0 0.0
        %5369 = vmatpush1.msra.mxu0 0.0
        %5370 = vmatprep.subr.mxu0 0.0
        %5371 = vmatpush1.msra.mxu0 0.0
        %5372 = vmatprep.subr.mxu0 0.0
        %5373 = vmatpush1.msra.mxu0 0.0
        %5374 = vmatprep.subr.mxu0 0.0
        %5375 = vmatpush1.msra.mxu0 0.0
        %5376 = vmatprep.subr.mxu0 0.0
        %5377 = vmatpush1.msra.mxu0 0.0
        %5378 = vmatprep.subr.mxu0 0.0
        %5379 = vmatpush1.msra.mxu0 0.0
        %5380 = vmatprep.subr.mxu0 0.0
        %5381 = vmatpush1.msra.mxu0 0.0
        %5382 = vmatprep.subr.mxu0 0.0
        %5383 = vmatpush1.msra.mxu0 0.0
        %5384 = vmatprep.subr.mxu0 0.0
        %5385 = vmatpush1.msra.mxu0 0.0
        %5386 = vmatprep.subr.mxu0 0.0
        %5387 = vmatpush1.msra.mxu0 0.0
        %5388 = vmatprep.subr.mxu0 0.0
        %5389 = vmatpush1.msra.mxu0 0.0
        %5390 = vmatprep.subr.mxu0 0.0
        %5391 = vmatpush1.msra.mxu0 0.0
        %5392 = vmatprep.subr.mxu0 0.0
        %5393 = vmatpush1.msra.mxu0 0.0
        %5394 = vmatprep.subr.mxu0 0.0
        %5395 = vmatpush1.msra.mxu0 0.0
        %5396 = vmatprep.subr.mxu0 0.0
        %5397 = vmatpush1.msra.mxu0 0.0
        %5398 = vmatprep.subr.mxu0 0.0
        %5399 = vmatpush1.msra.mxu0 0.0
        %5400 = vmatprep.subr.mxu0 0.0
        %5401 = vmatpush1.msra.mxu0 0.0
        %5402 = vmatprep.subr.mxu0 0.0
        %5403 = vmatpush1.msra.mxu0 0.0
        %5404 = vmatprep.subr.mxu0 0.0
        %5405 = vmatpush1.msra.mxu0 0.0
        %5406 = vmatprep.subr.mxu0 0.0
        %5407 = vmatpush1.msra.mxu0 0.0
        %5408 = vmatprep.subr.mxu0 0.0
        %5409 = vmatpush1.msra.mxu0 0.0
        %5410 = vmatprep.subr.mxu0 0.0
        %5411 = vmatpush1.msra.mxu0 0.0
        %5412 = vmatprep.subr.mxu0 0.0
        %5413 = vmatpush1.msra.mxu0 0.0
        %5414 = vmatprep.subr.mxu0 0.0
        %5415 = vmatpush1.msra.mxu0 0.0
        %5416 = vmatprep.subr.mxu0 0.0
        %5417 = vmatpush1.msra.mxu0 0.0
        %5418 = vmatprep.subr.mxu0 0.0
        %5419 = vmatpush1.msra.mxu0 0.0
        %5420 = vmatprep.subr.mxu0 0.0
        %5421 = vmatpush1.msra.mxu0 0.0
        %5422 = vmatprep.subr.mxu0 0.0
        %5423 = vmatpush1.msra.mxu0 0.0
        %5424 = vmatprep.subr.mxu0 0.0
        %5425 = vmatpush1.msra.mxu0 0.0
        %5426 = vmatprep.subr.mxu0 0.0
        %5427 = vmatpush1.msra.mxu0 0.0
        %5428 = vmatprep.mubr.f32.mxu0 0.0
        %5429 = vmatmul.mubr.f32.gmra.mrb[0].mxu0 %v5359
        %v5430 = vpop.f32.mrb[0].mxu0
        %v5431 = vadd.f32 0.0, %v5430
        %v5432 = vpop.f32.mrb[0].mxu0
        %v5433 = vadd.f32 0.0, %v5432
        %5434 = vmatprep.mubr.f32.mxu0 0.0
        %5435 = vmatmul.mubr.f32.gmra.mrb[0].mxu0 %v5362
        %v5436 = vpop.f32.mrb[0].mxu0
        %v5437 = vadd.f32 0.0, %v5436
        %v5438 = vpop.f32.mrb[0].mxu0
        %v5439 = vadd.f32 0.0, %v5438
        %5440 = vdwg.mxu0
        %v5441 = vadd.f32 %v5325, %v5431
        %v5442 = vadd.f32 %v5327, %v5433
        %v5443 = vadd.f32 %v5331, %v5437
        %v5444 = vadd.f32 %v5333, %v5439
        %s5445 = scalar_lea.vmem %s4, 304
        %v5446 = vld [vmem:[%s5445] sm:$0xff]
        %v5447 = vld [vmem:[%s5445 + $0x8] sm:$0xff]
        %5448 = vrot.lane.b32.xlu0 %v2935, 76
        %v5449 = vpop.permute.xlu0 %5448
        %5450 = vrot.lane.b32.xlu0 %v2936, 76
        %v5451 = vpop.permute.xlu0 %5450
        %5452 = vrot.lane.b32.xlu0 %v2941, 76
        %v5453 = vpop.permute.xlu0 %5452
        %5454 = vrot.lane.b32.xlu0 %v2937, 76
        %v5455 = vpop.permute.xlu0 %5454
        %5456 = vrot.lane.b32.xlu0 %v2938, 76
        %v5457 = vpop.permute.xlu0 %5456
        %5458 = vrot.lane.b32.xlu0 %v2942, 76
        %v5459 = vpop.permute.xlu0 %5458
        %v5460 = vsel %vm2410, %v5449, %v5451
        %v5461 = vsel %vm2410, %v5451, %v5453
        %v5462 = vsel %vm2410, %v5455, %v5457
        %v5463 = vsel %vm2410, %v5457, %v5459
        %v5469 = vsel %vm2972, %v5446, 0
        %v5472 = vsel %vm2972, %v5447, 0
        %5474 = vmatprep.subr.mxu0 %v5461
        %5475 = vmatpush1.msra.mxu0 %v5460
        %5476 = vmatprep.subr.mxu0 %v5463
        %5477 = vmatpush1.msra.mxu0 %v5462
        %5478 = vmatprep.subr.mxu0 0.0
        %5479 = vmatpush1.msra.mxu0 0.0
        %5480 = vmatprep.subr.mxu0 0.0
        %5481 = vmatpush1.msra.mxu0 0.0
        %5482 = vmatprep.subr.mxu0 0.0
        %5483 = vmatpush1.msra.mxu0 0.0
        %5484 = vmatprep.subr.mxu0 0.0
        %5485 = vmatpush1.msra.mxu0 0.0
        %5486 = vmatprep.subr.mxu0 0.0
        %5487 = vmatpush1.msra.mxu0 0.0
        %5488 = vmatprep.subr.mxu0 0.0
        %5489 = vmatpush1.msra.mxu0 0.0
        %5490 = vmatprep.subr.mxu0 0.0
        %5491 = vmatpush1.msra.mxu0 0.0
        %5492 = vmatprep.subr.mxu0 0.0
        %5493 = vmatpush1.msra.mxu0 0.0
        %5494 = vmatprep.subr.mxu0 0.0
        %5495 = vmatpush1.msra.mxu0 0.0
        %5496 = vmatprep.subr.mxu0 0.0
        %5497 = vmatpush1.msra.mxu0 0.0
        %5498 = vmatprep.subr.mxu0 0.0
        %5499 = vmatpush1.msra.mxu0 0.0
        %5500 = vmatprep.subr.mxu0 0.0
        %5501 = vmatpush1.msra.mxu0 0.0
        %5502 = vmatprep.subr.mxu0 0.0
        %5503 = vmatpush1.msra.mxu0 0.0
        %5504 = vmatprep.subr.mxu0 0.0
        %5505 = vmatpush1.msra.mxu0 0.0
        %5506 = vmatprep.subr.mxu0 0.0
        %5507 = vmatpush1.msra.mxu0 0.0
        %5508 = vmatprep.subr.mxu0 0.0
        %5509 = vmatpush1.msra.mxu0 0.0
        %5510 = vmatprep.subr.mxu0 0.0
        %5511 = vmatpush1.msra.mxu0 0.0
        %5512 = vmatprep.subr.mxu0 0.0
        %5513 = vmatpush1.msra.mxu0 0.0
        %5514 = vmatprep.subr.mxu0 0.0
        %5515 = vmatpush1.msra.mxu0 0.0
        %5516 = vmatprep.subr.mxu0 0.0
        %5517 = vmatpush1.msra.mxu0 0.0
        %5518 = vmatprep.subr.mxu0 0.0
        %5519 = vmatpush1.msra.mxu0 0.0
        %5520 = vmatprep.subr.mxu0 0.0
        %5521 = vmatpush1.msra.mxu0 0.0
        %5522 = vmatprep.subr.mxu0 0.0
        %5523 = vmatpush1.msra.mxu0 0.0
        %5524 = vmatprep.subr.mxu0 0.0
        %5525 = vmatpush1.msra.mxu0 0.0
        %5526 = vmatprep.subr.mxu0 0.0
        %5527 = vmatpush1.msra.mxu0 0.0
        %5528 = vmatprep.subr.mxu0 0.0
        %5529 = vmatpush1.msra.mxu0 0.0
        %5530 = vmatprep.subr.mxu0 0.0
        %5531 = vmatpush1.msra.mxu0 0.0
        %5532 = vmatprep.subr.mxu0 0.0
        %5533 = vmatpush1.msra.mxu0 0.0
        %5534 = vmatprep.subr.mxu0 0.0
        %5535 = vmatpush1.msra.mxu0 0.0
        %5536 = vmatprep.subr.mxu0 0.0
        %5537 = vmatpush1.msra.mxu0 0.0
        %5538 = vmatprep.mubr.f32.mxu0 0.0
        %5539 = vmatmul.mubr.f32.gmra.mrb[0].mxu0 %v5469
        %v5540 = vpop.f32.mrb[0].mxu0
        %v5541 = vadd.f32 0.0, %v5540
        %v5542 = vpop.f32.mrb[0].mxu0
        %v5543 = vadd.f32 0.0, %v5542
        %5544 = vmatprep.mubr.f32.mxu0 0.0
        %5545 = vmatmul.mubr.f32.gmra.mrb[0].mxu0 %v5472
        %v5546 = vpop.f32.mrb[0].mxu0
        %v5547 = vadd.f32 0.0, %v5546
        %v5548 = vpop.f32.mrb[0].mxu0
        %v5549 = vadd.f32 0.0, %v5548
        %5550 = vdwg.mxu0
        %v5551 = vadd.f32 %v5441, %v5541
        %v5552 = vadd.f32 %v5442, %v5543
        %v5553 = vadd.f32 %v5443, %v5547
        %v5554 = vadd.f32 %v5444, %v5549
        %s5555 = scalar_lea.vmem %s4, 384
        %v5556 = vld [vmem:[%s5555] sm:$0xff]
        %v5557 = vld [vmem:[%s5555 + $0x8] sm:$0xff]
        %5558 = vrot.lane.b32.xlu0 %v2935, 60
        %v5559 = vpop.permute.xlu0 %5558
        %5560 = vrot.lane.b32.xlu0 %v2936, 60
        %v5561 = vpop.permute.xlu0 %5560
        %5562 = vrot.lane.b32.xlu0 %v2941, 60
        %v5563 = vpop.permute.xlu0 %5562
        %5564 = vrot.lane.b32.xlu0 %v2937, 60
        %v5565 = vpop.permute.xlu0 %5564
        %5566 = vrot.lane.b32.xlu0 %v2938, 60
        %v5567 = vpop.permute.xlu0 %5566
        %5568 = vrot.lane.b32.xlu0 %v2942, 60
        %v5569 = vpop.permute.xlu0 %5568
        %v5570 = vsel %vm2499, %v5559, %v5561
        %v5571 = vsel %vm2499, %v5561, %v5563
        %v5572 = vsel %vm2499, %v5565, %v5567
        %v5573 = vsel %vm2499, %v5567, %v5569
        %v5579 = vsel %vm2972, %v5556, 0
        %v5582 = vsel %vm2972, %v5557, 0
        %5584 = vmatprep.subr.mxu0 %v5571
        %5585 = vmatpush1.msra.mxu0 %v5570
        %5586 = vmatprep.subr.mxu0 %v5573
        %5587 = vmatpush1.msra.mxu0 %v5572
        %5588 = vmatprep.subr.mxu0 0.0
        %5589 = vmatpush1.msra.mxu0 0.0
        %5590 = vmatprep.subr.mxu0 0.0
        %5591 = vmatpush1.msra.mxu0 0.0
        %5592 = vmatprep.subr.mxu0 0.0
        %5593 = vmatpush1.msra.mxu0 0.0
        %5594 = vmatprep.subr.mxu0 0.0
        %5595 = vmatpush1.msra.mxu0 0.0
        %5596 = vmatprep.subr.mxu0 0.0
        %5597 = vmatpush1.msra.mxu0 0.0
        %5598 = vmatprep.subr.mxu0 0.0
        %5599 = vmatpush1.msra.mxu0 0.0
        %5600 = vmatprep.subr.mxu0 0.0
        %5601 = vmatpush1.msra.mxu0 0.0
        %5602 = vmatprep.subr.mxu0 0.0
        %5603 = vmatpush1.msra.mxu0 0.0
        %5604 = vmatprep.subr.mxu0 0.0
        %5605 = vmatpush1.msra.mxu0 0.0
        %5606 = vmatprep.subr.mxu0 0.0
        %5607 = vmatpush1.msra.mxu0 0.0
        %5608 = vmatprep.subr.mxu0 0.0
        %5609 = vmatpush1.msra.mxu0 0.0
        %5610 = vmatprep.subr.mxu0 0.0
        %5611 = vmatpush1.msra.mxu0 0.0
        %5612 = vmatprep.subr.mxu0 0.0
        %5613 = vmatpush1.msra.mxu0 0.0
        %5614 = vmatprep.subr.mxu0 0.0
        %5615 = vmatpush1.msra.mxu0 0.0
        %5616 = vmatprep.subr.mxu0 0.0
        %5617 = vmatpush1.msra.mxu0 0.0
        %5618 = vmatprep.subr.mxu0 0.0
        %5619 = vmatpush1.msra.mxu0 0.0
        %5620 = vmatprep.subr.mxu0 0.0
        %5621 = vmatpush1.msra.mxu0 0.0
        %5622 = vmatprep.subr.mxu0 0.0
        %5623 = vmatpush1.msra.mxu0 0.0
        %5624 = vmatprep.subr.mxu0 0.0
        %5625 = vmatpush1.msra.mxu0 0.0
        %5626 = vmatprep.subr.mxu0 0.0
        %5627 = vmatpush1.msra.mxu0 0.0
        %5628 = vmatprep.subr.mxu0 0.0
        %5629 = vmatpush1.msra.mxu0 0.0
        %5630 = vmatprep.subr.mxu0 0.0
        %5631 = vmatpush1.msra.mxu0 0.0
        %5632 = vmatprep.subr.mxu0 0.0
        %5633 = vmatpush1.msra.mxu0 0.0
        %5634 = vmatprep.subr.mxu0 0.0
        %5635 = vmatpush1.msra.mxu0 0.0
        %5636 = vmatprep.subr.mxu0 0.0
        %5637 = vmatpush1.msra.mxu0 0.0
        %5638 = vmatprep.subr.mxu0 0.0
        %5639 = vmatpush1.msra.mxu0 0.0
        %5640 = vmatprep.subr.mxu0 0.0
        %5641 = vmatpush1.msra.mxu0 0.0
        %5642 = vmatprep.subr.mxu0 0.0
        %5643 = vmatpush1.msra.mxu0 0.0
        %5644 = vmatprep.subr.mxu0 0.0
        %5645 = vmatpush1.msra.mxu0 0.0
        %5646 = vmatprep.subr.mxu0 0.0
        %5647 = vmatpush1.msra.mxu0 0.0
        %5648 = vmatprep.mubr.f32.mxu0 0.0
        %5649 = vmatmul.mubr.f32.gmra.mrb[0].mxu0 %v5579
        %v5650 = vpop.f32.mrb[0].mxu0
        %v5651 = vadd.f32 0.0, %v5650
        %v5652 = vpop.f32.mrb[0].mxu0
        %v5653 = vadd.f32 0.0, %v5652
        %5654 = vmatprep.mubr.f32.mxu0 0.0
        %5655 = vmatmul.mubr.f32.gmra.mrb[0].mxu0 %v5582
        %v5656 = vpop.f32.mrb[0].mxu0
        %v5657 = vadd.f32 0.0, %v5656
        %v5658 = vpop.f32.mrb[0].mxu0
        %v5659 = vadd.f32 0.0, %v5658
        %5660 = vdwg.mxu0
        %v5661 = vadd.f32 %v5551, %v5651
        %v5662 = vadd.f32 %v5552, %v5653
        %v5663 = vadd.f32 %v5553, %v5657
        %v5664 = vadd.f32 %v5554, %v5659
        %v5665 = vmul.f32 %v5661, %v2590
        %v5666 = vmul.f32 %v5662, %v2591
        %v5667 = vmul.f32 %v5663, %v2590
        %v5668 = vmul.f32 %v5664, %v2591
        %v5669 = vadd.f32 %v5119, %v5665
        %v5670 = vadd.f32 %v5120, %v5666
        %v5671 = vadd.f32 %v5121, %v5667
        %v5672 = vadd.f32 %v5122, %v5668
        %v5673 = vld [vmem:[%s5] sm:$0xff]
        %v5674 = vld [vmem:[%s5 + $0x8] sm:$0xff]
        %v5675 = vld [vmem:[%s5 + $0x10] sm:$0xff]
        %v5676 = vld [vmem:[%s5 + $0x18] sm:$0xff]
        %v5677 = vld [vmem:[%s6] sm:$0xff]
        %v5678 = vld [vmem:[%s6 + $0x8] sm:$0xff]
        %v5679 = vld [vmem:[%s6 + $0x10] sm:$0xff]
        %v5680 = vld [vmem:[%s6 + $0x18] sm:$0xff]
        %v5681 = vsub.f32 %v5669, %v2889
        %v5682 = vsub.f32 %v5670, %v2890
        %v5683 = vsub.f32 %v5671, %v2891
        %v5684 = vsub.f32 %v5672, %v2892
        %v5686 = vsel %vm2972, %v5677, 0
        %v5689 = vsel %vm2972, %v5678, 0
        %v5692 = vsel %vm2972, %v5679, 0
        %v5695 = vsel %vm2972, %v5680, 0
        %5697 = vmatprep.subr.mxu0 %v5682
        %5698 = vmatpush1.msra.mxu0 %v5681
        %5699 = vmatprep.subr.mxu0 %v5684
        %5700 = vmatpush1.msra.mxu0 %v5683
        %5701 = vmatprep.subr.mxu0 0.0
        %5702 = vmatpush1.msra.mxu0 0.0
        %5703 = vmatprep.subr.mxu0 0.0
        %5704 = vmatpush1.msra.mxu0 0.0
        %5705 = vmatprep.subr.mxu0 0.0
        %5706 = vmatpush1.msra.mxu0 0.0
        %5707 = vmatprep.subr.mxu0 0.0
        %5708 = vmatpush1.msra.mxu0 0.0
        %5709 = vmatprep.subr.mxu0 0.0
        %5710 = vmatpush1.msra.mxu0 0.0
        %5711 = vmatprep.subr.mxu0 0.0
        %5712 = vmatpush1.msra.mxu0 0.0
        %5713 = vmatprep.subr.mxu0 0.0
        %5714 = vmatpush1.msra.mxu0 0.0
        %5715 = vmatprep.subr.mxu0 0.0
        %5716 = vmatpush1.msra.mxu0 0.0
        %5717 = vmatprep.subr.mxu0 0.0
        %5718 = vmatpush1.msra.mxu0 0.0
        %5719 = vmatprep.subr.mxu0 0.0
        %5720 = vmatpush1.msra.mxu0 0.0
        %5721 = vmatprep.subr.mxu0 0.0
        %5722 = vmatpush1.msra.mxu0 0.0
        %5723 = vmatprep.subr.mxu0 0.0
        %5724 = vmatpush1.msra.mxu0 0.0
        %5725 = vmatprep.subr.mxu0 0.0
        %5726 = vmatpush1.msra.mxu0 0.0
        %5727 = vmatprep.subr.mxu0 0.0
        %5728 = vmatpush1.msra.mxu0 0.0
        %5729 = vmatprep.subr.mxu0 0.0
        %5730 = vmatpush1.msra.mxu0 0.0
        %5731 = vmatprep.subr.mxu0 0.0
        %5732 = vmatpush1.msra.mxu0 0.0
        %5733 = vmatprep.subr.mxu0 0.0
        %5734 = vmatpush1.msra.mxu0 0.0
        %5735 = vmatprep.subr.mxu0 0.0
        %5736 = vmatpush1.msra.mxu0 0.0
        %5737 = vmatprep.subr.mxu0 0.0
        %5738 = vmatpush1.msra.mxu0 0.0
        %5739 = vmatprep.subr.mxu0 0.0
        %5740 = vmatpush1.msra.mxu0 0.0
        %5741 = vmatprep.subr.mxu0 0.0
        %5742 = vmatpush1.msra.mxu0 0.0
        %5743 = vmatprep.subr.mxu0 0.0
        %5744 = vmatpush1.msra.mxu0 0.0
        %5745 = vmatprep.subr.mxu0 0.0
        %5746 = vmatpush1.msra.mxu0 0.0
        %5747 = vmatprep.subr.mxu0 0.0
        %5748 = vmatpush1.msra.mxu0 0.0
        %5749 = vmatprep.subr.mxu0 0.0
        %5750 = vmatpush1.msra.mxu0 0.0
        %5751 = vmatprep.subr.mxu0 0.0
        %5752 = vmatpush1.msra.mxu0 0.0
        %5753 = vmatprep.subr.mxu0 0.0
        %5754 = vmatpush1.msra.mxu0 0.0
        %5755 = vmatprep.subr.mxu0 0.0
        %5756 = vmatpush1.msra.mxu0 0.0
        %5757 = vmatprep.subr.mxu0 0.0
        %5758 = vmatpush1.msra.mxu0 0.0
        %5759 = vmatprep.subr.mxu0 0.0
        %5760 = vmatpush1.msra.mxu0 0.0
        %5761 = vmatprep.mubr.f32.mxu0 0.0
        %5762 = vmatmul.mubr.f32.gmra.mrb[0].mxu0 %v5686
        %v5763 = vpop.f32.mrb[0].mxu0
        %v5764 = vadd.f32 0.0, %v5763
        %v5765 = vpop.f32.mrb[0].mxu0
        %v5766 = vadd.f32 0.0, %v5765
        %5767 = vmatprep.mubr.f32.mxu0 0.0
        %5768 = vmatmul.mubr.f32.gmra.mrb[0].mxu0 %v5689
        %v5769 = vpop.f32.mrb[0].mxu0
        %v5770 = vadd.f32 0.0, %v5769
        %v5771 = vpop.f32.mrb[0].mxu0
        %v5772 = vadd.f32 0.0, %v5771
        %5773 = vmatprep.mubr.f32.mxu0 0.0
        %5774 = vmatmul.mubr.f32.gmra.mrb[0].mxu0 %v5692
        %v5775 = vpop.f32.mrb[0].mxu0
        %v5776 = vadd.f32 0.0, %v5775
        %v5777 = vpop.f32.mrb[0].mxu0
        %v5778 = vadd.f32 0.0, %v5777
        %5779 = vmatprep.mubr.f32.mxu0 0.0
        %5780 = vmatmul.mubr.f32.gmra.mrb[0].mxu0 %v5695
        %v5781 = vpop.f32.mrb[0].mxu0
        %v5782 = vadd.f32 0.0, %v5781
        %v5783 = vpop.f32.mrb[0].mxu0
        %v5784 = vadd.f32 0.0, %v5783
        %5785 = vdwg.mxu0
        %v5787 = vsel %vm685, %v5673, 0
        %v5790 = vsel %vm685, %v5674, 0
        %v5793 = vsel %vm685, %v5675, 0
        %v5796 = vsel %vm685, %v5676, 0
        %5798 = vmatprep.subr.mxu0 %v2890
        %5799 = vmatpush1.msra.mxu0 %v2889
        %5800 = vmatprep.subr.mxu0 %v2892
        %5801 = vmatpush1.msra.mxu0 %v2891
        %5802 = vmatprep.subr.mxu0 %v2894
        %5803 = vmatpush1.msra.mxu0 %v2893
        %5804 = vmatprep.subr.mxu0 %v2896
        %5805 = vmatpush1.msra.mxu0 %v2895
        %5806 = vmatprep.subr.mxu0 %v2898
        %5807 = vmatpush1.msra.mxu0 %v2897
        %5808 = vmatprep.subr.mxu0 %v2900
        %5809 = vmatpush1.msra.mxu0 %v2899
        %5810 = vmatprep.subr.mxu0 %v2902
        %5811 = vmatpush1.msra.mxu0 %v2901
        %5812 = vmatprep.subr.mxu0 %v2904
        %5813 = vmatpush1.msra.mxu0 %v2903
        %5814 = vmatprep.subr.mxu0 0.0
        %5815 = vmatpush1.msra.mxu0 0.0
        %5816 = vmatprep.subr.mxu0 0.0
        %5817 = vmatpush1.msra.mxu0 0.0
        %5818 = vmatprep.subr.mxu0 0.0
        %5819 = vmatpush1.msra.mxu0 0.0
        %5820 = vmatprep.subr.mxu0 0.0
        %5821 = vmatpush1.msra.mxu0 0.0
        %5822 = vmatprep.subr.mxu0 0.0
        %5823 = vmatpush1.msra.mxu0 0.0
        %5824 = vmatprep.subr.mxu0 0.0
        %5825 = vmatpush1.msra.mxu0 0.0
        %5826 = vmatprep.subr.mxu0 0.0
        %5827 = vmatpush1.msra.mxu0 0.0
        %5828 = vmatprep.subr.mxu0 0.0
        %5829 = vmatpush1.msra.mxu0 0.0
        %5830 = vmatprep.subr.mxu0 0.0
        %5831 = vmatpush1.msra.mxu0 0.0
        %5832 = vmatprep.subr.mxu0 0.0
        %5833 = vmatpush1.msra.mxu0 0.0
        %5834 = vmatprep.subr.mxu0 0.0
        %5835 = vmatpush1.msra.mxu0 0.0
        %5836 = vmatprep.subr.mxu0 0.0
        %5837 = vmatpush1.msra.mxu0 0.0
        %5838 = vmatprep.subr.mxu0 0.0
        %5839 = vmatpush1.msra.mxu0 0.0
        %5840 = vmatprep.subr.mxu0 0.0
        %5841 = vmatpush1.msra.mxu0 0.0
        %5842 = vmatprep.subr.mxu0 0.0
        %5843 = vmatpush1.msra.mxu0 0.0
        %5844 = vmatprep.subr.mxu0 0.0
        %5845 = vmatpush1.msra.mxu0 0.0
        %5846 = vmatprep.subr.mxu0 0.0
        %5847 = vmatpush1.msra.mxu0 0.0
        %5848 = vmatprep.subr.mxu0 0.0
        %5849 = vmatpush1.msra.mxu0 0.0
        %5850 = vmatprep.subr.mxu0 0.0
        %5851 = vmatpush1.msra.mxu0 0.0
        %5852 = vmatprep.subr.mxu0 0.0
        %5853 = vmatpush1.msra.mxu0 0.0
        %5854 = vmatprep.subr.mxu0 0.0
        %5855 = vmatpush1.msra.mxu0 0.0
        %5856 = vmatprep.subr.mxu0 0.0
        %5857 = vmatpush1.msra.mxu0 0.0
        %5858 = vmatprep.subr.mxu0 0.0
        %5859 = vmatpush1.msra.mxu0 0.0
        %5860 = vmatprep.subr.mxu0 0.0
        %5861 = vmatpush1.msra.mxu0 0.0
        %5862 = vmatprep.mubr.f32.mxu0 0.0
        %5863 = vmatmul.mubr.f32.gmra.mrb[0].mxu0 %v5787
        %v5864 = vpop.f32.mrb[0].mxu0
        %v5865 = vadd.f32 %v5764, %v5864
        %v5866 = vpop.f32.mrb[0].mxu0
        %v5867 = vadd.f32 %v5766, %v5866
        %5868 = vmatprep.mubr.f32.mxu0 0.0
        %5869 = vmatmul.mubr.f32.gmra.mrb[0].mxu0 %v5790
        %v5870 = vpop.f32.mrb[0].mxu0
        %v5871 = vadd.f32 %v5770, %v5870
        %v5872 = vpop.f32.mrb[0].mxu0
        %v5873 = vadd.f32 %v5772, %v5872
        %5874 = vmatprep.mubr.f32.mxu0 0.0
        %5875 = vmatmul.mubr.f32.gmra.mrb[0].mxu0 %v5793
        %v5876 = vpop.f32.mrb[0].mxu0
        %v5877 = vadd.f32 %v5776, %v5876
        %v5878 = vpop.f32.mrb[0].mxu0
        %v5879 = vadd.f32 %v5778, %v5878
        %5880 = vmatprep.mubr.f32.mxu0 0.0
        %5881 = vmatmul.mubr.f32.gmra.mrb[0].mxu0 %v5796
        %v5882 = vpop.f32.mrb[0].mxu0
        %v5883 = vadd.f32 %v5782, %v5882
        %v5884 = vpop.f32.mrb[0].mxu0
        %v5885 = vadd.f32 %v5784, %v5884
        %5886 = vdwg.mxu0
        %v5887 = vadd.f32 %v5865, %v277
        %v5888 = vadd.f32 %v5867, %v278
        %v5889 = vadd.f32 %v5871, %v279
        %v5890 = vadd.f32 %v5873, %v280
        %v5891 = vadd.f32 %v5877, %v281
        %v5892 = vadd.f32 %v5879, %v282
        %v5893 = vadd.f32 %v5883, %v283
        %v5894 = vadd.f32 %v5885, %v284
        %v5895 = vmax.f32 %v5887, 0.0
        %v5896 = vmax.f32 %v5888, 0.0
        %v5897 = vmax.f32 %v5889, 0.0
        %v5898 = vmax.f32 %v5890, 0.0
        %v5899 = vmax.f32 %v5891, 0.0
        %v5900 = vmax.f32 %v5892, 0.0
        %v5901 = vmax.f32 %v5893, 0.0
        %v5902 = vmax.f32 %v5894, 0.0
        %5903 = vst [vmem:[%s271] sm:$0xff] %v5895
        %5904 = vst [vmem:[%s271 + $0x8] sm:$0xff] %v5896
        %5905 = vst [vmem:[%s271 + $0x10] sm:$0xff] %v5897
        %5906 = vst [vmem:[%s271 + $0x18] sm:$0xff] %v5898
        %5907 = vst [vmem:[%s271 + $0x20] sm:$0xff] %v5899
        %5908 = vst [vmem:[%s271 + $0x28] sm:$0xff] %v5900
        %5909 = vst [vmem:[%s271 + $0x30] sm:$0xff] %v5901
        %5910 = vst [vmem:[%s271 + $0x38] sm:$0xff] %v5902
        %s5911 = sand.u32 %s181, 1
        %s5912 = scalar_lea.sflag [#allocation5], %s5911
        %s5913 = sand.u32 %s181, 1
        %s5914 = smul.addr %s5913, 64
        %s5915 = scalar_lea.vmem [#allocation4], %s5914
        // Predicated region
        $region49: #{tpu_custom_call.1} parent=47 // pred_check
          %p5916 = pneg %p191
        $region50: #{tpu_custom_call.1} parent=47 // pred_check_branch
          %5918 = sbr.rel (%p5916) target = $region52
        $region51: #{tpu_custom_call.1} parent=47 // pred_region
          %s5920 = ssub.s32 1024, 1024
          %5921 = vsyncadd %s5912, %s5920
          %s5922 = smul.addr %s21, 8
          %s5923 = smul.addr %s5922, 128
          %s5924 = scalar_lea.hbm %s7, %s5923
          %s5925 = sshll.u32 %s5915, 4
          %s5926 = int_to_ptr.vmem [resolvable:$true] %s5925
          %5931 = dma.vmem_to_hbm [thread:$0]  %s5926, 1024, %s5924, %s5912, 256, 256, 16
        $region52: #{tpu_custom_call.1} parent=47 // pred_fallthru
          _
      $region48: #{tpu_custom_call.1} parent=5 // pred_fallthru
        _
      %p5932 = scmp.le.s32.totalorder 2, %s16
      // Predicated region
      $region53: #{tpu_custom_call.1} parent=5 // pred_check
        %p5933 = pneg %p5932
      $region54: #{tpu_custom_call.1} parent=5 // pred_check_branch
        %5935 = sbr.rel (%p5933) target = $region56
      $region55: #{tpu_custom_call.1} parent=5 // pred_region
        %s5936 = ssub.s32 %s16, 2
        // Predicated region
        $region57: #{tpu_custom_call.1} parent=55 // pred_check
          %p5937 = pneg %p197
        $region58: #{tpu_custom_call.1} parent=55 // pred_check_branch
          %5939 = sbr.rel (%p5937) target = $region60
        $region59: #{tpu_custom_call.1} parent=55 // pred_region
          %s5940 = sand.u32 %s182, 1
          %s5941 = scalar_lea.sflag [#allocation5], %s5940
          %s5942 = sand.u32 %s182, 1
          %s5943 = smul.addr %s5942, 64
          %s5944 = scalar_lea.vmem [#allocation4], %s5943
          %5945 = dma.done %s5941, 1024
        $region60: #{tpu_custom_call.1} parent=55 // pred_fallthru
          _
      $region56: #{tpu_custom_call.1} parent=5 // pred_fallthru
        _
    $region6: #{tpu_custom_call.1} parent=1 // loop_footer
      %s20 = sadd.s32 1, %s16
    $region7: #{tpu_custom_call.1} parent=1 // loop_footer_branch
      %15 = sbr.rel target = $region3
    $region8: #{tpu_custom_call.1} parent=1 // loop_exit
      _
    %5946 = vsyncpa [#allocation5], 1
    %s5947 = scalar_lea.sflag [#allocation5], 1
    %5948 = vsyncpa %s5947, 1

</llo_original>
